<compile_context>
chip_gen: v7x
topology: tpu7x:2x2x1
jax: 0.10.0
libtpu: 0.0.40
codegen_flags: <defaults>
</compile_context>

<pallas_src>
import jax
import jax.numpy as jnp
from jax.experimental import pallas as pl
from jax.experimental.pallas import tpu as pltpu


# ----------------------------------------------------------------------------
# Single fused DFFM kernel (one grid step = one batch element).
# ----------------------------------------------------------------------------
def _dffm_kernel_factory(H, W, Cin, Cout):
    KSA = 7
    PADS = KSA // 2          # 3
    WIN5 = (W + 4) * Cin     # padded row width for the fused 5x5 conv

    def kernel(x_ref, caw1_ref, caw2_ref, tsa_ref, t5_ref, bmap_ref, t3_ref,
               sho_ref, o_ref):
        xf = x_ref[0].astype(jnp.float32)                        # (H, W, Cin)

        # ---------------- CBAM channel attention (one stacked MLP pass) ----------------
        avg = jnp.mean(xf, axis=(0, 1), keepdims=True).reshape(1, Cin)
        mx = jnp.max(xf, axis=(0, 1), keepdims=True).reshape(1, Cin)
        am = jnp.concatenate([avg, mx], axis=0)                  # (2, Cin)
        hid = jnp.maximum(
            jnp.dot(am, caw1_ref[...], preferred_element_type=jnp.float32), 0.0)
        logits = jnp.dot(hid, caw2_ref[...], preferred_element_type=jnp.float32)
        ca = jax.nn.sigmoid(jnp.sum(logits, axis=0, keepdims=True))   # (1, Cin)
        f_ca = xf * ca.reshape(1, 1, Cin)                        # (H, W, Cin)

        # ------------- CBAM spatial attention: 7 banded matmuls on pooled maps -------------
        amap = jnp.mean(f_ca, axis=-1)                           # (H, W)
        mmap = jnp.max(f_ca, axis=-1)                            # (H, W)
        zc = jnp.zeros((H, PADS), jnp.float32)
        zr = jnp.zeros((PADS, W + 2 * PADS), jnp.float32)
        pada = jnp.concatenate([zr, jnp.concatenate([zc, amap, zc], axis=1), zr], axis=0)
        padm = jnp.concatenate([zr, jnp.concatenate([zc, mmap, zc], axis=1), zr], axis=0)
        s = jnp.concatenate([pada, padm], axis=1)                # (H+6, 2*(W+6))
        sa = jnp.zeros((H, W), jnp.float32)
        for kh in range(KSA):
            sa = sa + jnp.dot(s[kh:kh + H, :], tsa_ref[kh],
                              preferred_element_type=jnp.float32)
        att = jax.nn.sigmoid(sa)                                 # (H, W)

        # -------- fused 5x5 conv == p1+p2+p3+p4+p5+p6 (reparameterized branches) --------
        f_rows = (f_ca * att[:, :, None]).reshape(H, W * Cin)    # (H, W*Cin)
        zc2 = jnp.zeros((H, 2 * Cin), jnp.float32)
        zr2 = jnp.zeros((2, WIN5), jnp.float32)
        f2 = jnp.concatenate(
            [zr2, jnp.concatenate([zc2, f_rows, zc2], axis=1), zr2], axis=0)
        f2 = f2.astype(jnp.bfloat16)                             # (H+4, (W+4)*Cin)
        p = bmap_ref[...].astype(jnp.float32)                    # (H, W*Cout) bias map
        for kh in range(5):
            p = p + jnp.dot(f2[kh:kh + H, :], t5_ref[kh],
                            preferred_element_type=jnp.float32)

        # ---------- final 3x3 conv + folded BN + LeakyReLU (pad p in registers) ----------
        zrow = jnp.zeros((1, W * Cout), jnp.float32)
        pp = jnp.concatenate([zrow, p, zrow], axis=0).astype(jnp.bfloat16)  # (H+2, W*Cout)
        out = jnp.zeros((H, W * Cout), jnp.float32)
        for kh in range(3):
            out = out + jnp.dot(pp[kh:kh + H, :], t3_ref[kh],
                                preferred_element_type=jnp.float32)
        out = out + sho_ref[...]
        out = jnp.where(out >= 0, out, 0.01 * out)               # nn.LeakyReLU()
        o_ref[0] = out.astype(o_ref.dtype)                       # lane-dense (H, W*Cout)

    return kernel


# ----------------------------------------------------------------------------
# Parameter construction, BN folding, branch reparameterization.
# ----------------------------------------------------------------------------
def fold_bn(bias, gamma, beta, mean, var, eps=1e-5):
    scale = gamma * jax.lax.rsqrt(var + eps)
    shift = (bias - mean) * scale + beta
    return scale, shift


def _bn_params(key, c):
    k1, k2, k3, k4 = jax.random.split(key, 4)
    gamma = 1.0 + 0.1 * jax.random.normal(k1, (c,), jnp.float32)
    beta = 0.1 * jax.random.normal(k2, (c,), jnp.float32)
    mean = 0.1 * jax.random.normal(k3, (c,), jnp.float32)
    var = 0.5 + jnp.abs(0.1 * jax.random.normal(k4, (c,), jnp.float32))
    return gamma, beta, mean, var


def init_params(key, in_ch, out_ch, reduction=16, sa_kernel=7):
    keys = iter(jax.random.split(key, 64))
    nk = lambda: next(keys)

    def conv_bn(kh, kw, cin, cout, use_bias=True):
        w = 0.1 * jax.random.normal(nk(), (kh, kw, cin, cout), jnp.float32)
        b = (0.05 * jax.random.normal(nk(), (cout,), jnp.float32)
             if use_bias else jnp.zeros((cout,), jnp.float32))
        scale, shift = fold_bn(b, *_bn_params(nk(), cout))
        return w, scale, shift

    P = {}
    # --- CBAM (standard reference definition; bias-free shared MLP + 7x7 spatial conv) ---
    hidden = max(in_ch // reduction, 1)
    P["ca_w1"] = 0.1 * jax.random.normal(nk(), (in_ch, hidden), jnp.float32)
    P["ca_w2"] = 0.1 * jax.random.normal(nk(), (hidden, in_ch), jnp.float32)
    P["sa_w"] = 0.1 * jax.random.normal(nk(), (sa_kernel, sa_kernel, 2), jnp.float32)

    # --- six parallel branches: fold BN scales into weights, reparameterize to 5x5 ---
    ori_w, ori_s, ori_sh = conv_bn(3, 3, in_ch, out_ch)                   # oriConv
    asq_w, asq_s, asq_sh = conv_bn(3, 3, in_ch, out_ch, use_bias=False)   # asyConv square
    av_w, av_s, av_sh = conv_bn(3, 1, in_ch, out_ch, use_bias=False)      # asyConv ver
    ah_w, ah_s, ah_sh = conv_bn(1, 3, in_ch, out_ch, use_bias=False)      # asyConv hor
    atr_w, atr_s, atr_sh = conv_bn(3, 3, in_ch, out_ch)                   # atrConv d=2
    c11_w, c11_s, c11_sh = conv_bn(1, 1, in_ch, out_ch)                   # conv1x1
    k1_w, k1_s, k1_sh = conv_bn(1, 1, in_ch, out_ch)                      # conv1_k stage 1
    k2_w, k2_s, k2_sh = conv_bn(3, 3, out_ch, out_ch)                     # conv1_k stage 2
    p1_w, p1_s, p1_sh = conv_bn(1, 1, in_ch, out_ch)                      # conv1_p stage 1
    p2_s, p2_sh = fold_bn(jnp.zeros((out_ch,), jnp.float32),
                          *_bn_params(nk(), out_ch))                      # conv1_p BN2

    Wf = jnp.zeros((5, 5, in_ch, out_ch), jnp.float32)
    Wf = Wf.at[1:4, 1:4].add(ori_w * ori_s)                 # 3x3, pad 1
    Wf = Wf.at[1:4, 1:4].add(asq_w * asq_s)                 # 3x3, pad 1
    Wf = Wf.at[1:4, 2:3].add(av_w * av_s)                   # 3x1, pad (1,0)
    Wf = Wf.at[2:3, 1:4].add(ah_w * ah_s)                   # 1x3, pad (0,1)
    Wf = Wf.at[0::2, 0::2].add(atr_w * atr_s)               # 3x3 dilation 2, pad 2
    Wf = Wf.at[2:3, 2:3].add(c11_w * c11_s)                 # 1x1
    # conv1_k: (1x1∘BN) then (3x3∘BN)  -> composed 3x3
    W1k = k1_w[0, 0] * k1_s                                 # (Cin, Cmid)
    W2k = k2_w * k2_s                                       # (3, 3, Cmid, Cout)
    Wf = Wf.at[1:4, 1:4].add(jnp.einsum("im,abmo->abio", W1k, W2k))
    # conv1_p: (1x1∘BN) then AvgPool3x3(count_include_pad) then BN -> uniform 1/9 taps
    W1p = p1_w[0, 0] * p1_s                                 # (Cin, Cout)
    Wf = Wf.at[1:4, 1:4].add(
        jnp.broadcast_to((W1p * p2_s)[None, None] / 9.0, (3, 3, in_ch, out_ch)))
    P["fused_w"] = Wf

    # constant bias (interior) of the fused branch sum
    P["bias_const"] = (ori_sh + asq_sh + av_sh + ah_sh + atr_sh + c11_sh + k2_sh + p2_sh)
    # border-dependent parts: stage-1 shifts of conv1_k / conv1_p leak through the
    # zero padding of their second stage
    P["b5_q"] = jnp.einsum("abio,i->abo", W2k, k1_sh)       # (3, 3, Cout)
    P["b4_coeff"] = p2_s * p1_sh / 9.0                      # (Cout,)

    # --- final conv: 3x3 + BN + LeakyReLU ---
    o_w, o_s, o_sh = conv_bn(3, 3, out_ch, out_ch)
    P["out_w_eff"] = o_w * o_s
    P["out_shift"] = o_sh
    return P


def _branch_bias_map(H, W, P):
    """Exact (H, W, Cout) bias of the fused branch sum (border-corrected)."""
    ridx = jnp.arange(H)[:, None] + jnp.arange(3)[None, :] - 1
    cidx = jnp.arange(W)[:, None] + jnp.arange(3)[None, :] - 1
    rv = ((ridx >= 0) & (ridx < H)).astype(jnp.float32)     # (H, 3) valid-tap masks
    cv = ((cidx >= 0) & (cidx < W)).astype(jnp.float32)     # (W, 3)
    b_k = jnp.einsum("ha,wb,abo->hwo", rv, cv, P["b5_q"])   # conv1_k shift through 3x3
    cnt = jnp.einsum("ha,wb->hw", rv, cv)                   # avgpool valid-tap count
    b_p = cnt[:, :, None] * P["b4_coeff"][None, None, :]    # conv1_p shift through pool
    return b_k + b_p + P["bias_const"][None, None, :]


# ----------------------------------------------------------------------------
# Host-side row-Toeplitz (block-banded) weight builders.
#   out_row[h, w*Cout+co] = sum_kh  in_row[h+kh, :] @ T[kh][:, w*Cout+co]
# The kw shifts and left/right zero padding are baked into the band structure.
# ----------------------------------------------------------------------------
def _build_row_toeplitz(Wk, w_out, in_pad, conv_pad):
    """Wk: (KH, KW, Cin, Cout) -> (KH, (w_out+2*in_pad)*Cin, w_out*Cout)."""
    KH, KW, Cin, Cout = Wk.shape
    w_in = w_out + 2 * in_pad
    wcols = jnp.arange(w_out)
    T = jnp.zeros((KH, w_in, Cin, w_out, Cout), jnp.float32)
    for kh in range(KH):
        for kw in range(KW):
            wi = wcols + (kw - conv_pad + in_pad)
            valid = (wi >= 0) & (wi < w_in)
            wi_c = jnp.clip(wi, 0, w_in - 1)
            upd = jnp.where(valid[:, None, None], Wk[kh, kw][None, :, :], 0.0)
            T = T.at[kh, wi_c, :, wcols, :].add(upd)
    return T.reshape(KH, w_in * Cin, w_out * Cout)


def _build_sa_toeplitz(sa_w, w_out):
    """sa_w: (K, K, 2) -> (K, 2*(w_out+2*pad), w_out); input rows are [padA | padM]."""
    K = sa_w.shape[0]
    pad = K // 2
    w_in = w_out + 2 * pad
    wcols = jnp.arange(w_out)
    T = jnp.zeros((K, 2, w_in, w_out), jnp.float32)
    for kh in range(K):
        for kw in range(K):
            wi = wcols + kw
            T = T.at[kh, 0, wi, wcols].add(sa_w[kh, kw, 0])
            T = T.at[kh, 1, wi, wcols].add(sa_w[kh, kw, 1])
    return T.reshape(K, 2 * w_in, w_out)


def pack_for_kernel(P, H, W):
    """Build the lane-dense / banded operands the kernel consumes."""
    Wf = P["fused_w"]                         # (5, 5, Cin, Cout)
    Wo = P["out_w_eff"]                       # (3, 3, Cout, Cout)
    Cin, Cout = Wf.shape[2], Wf.shape[3]
    t5 = _build_row_toeplitz(Wf, W, in_pad=2, conv_pad=2).astype(jnp.bfloat16)
    t3 = _build_row_toeplitz(Wo, W, in_pad=0, conv_pad=1).astype(jnp.bfloat16)
    tsa = _build_sa_toeplitz(P["sa_w"], W)                       # f32, tiny
    bias_rows = _branch_bias_map(H, W, P).reshape(H, W * Cout)   # lane-dense bias map
    sho_rows = jnp.tile(P["out_shift"], W).reshape(1, W * Cout)  # lane-dense out shift
    return dict(ca_w1=P["ca_w1"], ca_w2=P["ca_w2"], tsa=tsa, t5=t5, t3=t3,
                bias_rows=bias_rows, sho_rows=sho_rows, cin=Cin, cout=Cout)


# ----------------------------------------------------------------------------
# DFFM forward (NHWC in, NHWC out): one pallas_call over the batch grid.
# ----------------------------------------------------------------------------
def dffm_forward(x, K):
    N, H, W, Cin = x.shape
    Cout = K["cout"]
    kern = _dffm_kernel_factory(H, W, Cin, Cout)
    out = pl.pallas_call(
        kern,
        out_shape=jax.ShapeDtypeStruct((N, H, W * Cout), x.dtype),
        grid=(N,),
        in_specs=[
            pl.BlockSpec((1, H, W, Cin), lambda n: (n, 0, 0, 0)),
            pl.BlockSpec(K["ca_w1"].shape, lambda n: (0, 0)),
            pl.BlockSpec(K["ca_w2"].shape, lambda n: (0, 0)),
            pl.BlockSpec(K["tsa"].shape, lambda n: (0, 0, 0)),
            pl.BlockSpec(K["t5"].shape, lambda n: (0, 0, 0)),
            pl.BlockSpec(K["bias_rows"].shape, lambda n: (0, 0)),
            pl.BlockSpec(K["t3"].shape, lambda n: (0, 0, 0)),
            pl.BlockSpec(K["sho_rows"].shape, lambda n: (0, 0)),
        ],
        out_specs=pl.BlockSpec((1, H, W * Cout), lambda n: (n, 0, 0)),
        compiler_params=pltpu.CompilerParams(
            dimension_semantics=("parallel",),
            vmem_limit_bytes=32 * 1024 * 1024),
    )(x, K["ca_w1"], K["ca_w2"], K["tsa"], K["t5"], K["bias_rows"],
      K["t3"], K["sho_rows"])
    return out.reshape(N, H, W, Cout)


if __name__ == "__main__":
    key = jax.random.PRNGKey(0)
    kx, kp = jax.random.split(key)

    # Small shapes consistent with the module (in_ch >= reduction=16), even batch.
    N, C, H, W = 2, 32, 16, 16
    x_nchw = jax.random.normal(kx, (N, C, H, W), jnp.float32)   # PyTorch-style input
    x = jnp.transpose(x_nchw, (0, 2, 3, 1))                     # -> NHWC for the kernel

    params = init_params(kp, in_ch=C, out_ch=C, reduction=16)
    packed = pack_for_kernel(params, H, W)

    out = dffm_forward(x, packed)
    out = jax.block_until_ready(out)

    assert out.shape == (N, H, W, C)
    assert bool(jnp.all(jnp.isfinite(out)))
    print("KERNEL_OK")
</pallas_src>

<mosaic_0001>
module attributes {stable_mosaic.version = 11 : i64} {
  func.func @kernel(%arg0: i32, %arg1: memref<1x16x16x32xf32, #tpu.memory_space<vmem>>, %arg2: memref<32x2xf32, #tpu.memory_space<vmem>>, %arg3: memref<2x32xf32, #tpu.memory_space<vmem>>, %arg4: memref<7x44x16xf32, #tpu.memory_space<vmem>>, %arg5: memref<5x640x512xbf16, #tpu.memory_space<vmem>>, %arg6: memref<16x512xf32, #tpu.memory_space<vmem>>, %arg7: memref<3x512x512xbf16, #tpu.memory_space<vmem>>, %arg8: memref<1x512xf32, #tpu.memory_space<vmem>>, %arg9: memref<1x16x512xf32, #tpu.memory_space<vmem>>) attributes {dimension_semantics = [#tpu.dimension_semantics<parallel>], iteration_bounds = array<i64: 2>, scalar_prefetch = 0 : i64, scratch_operands = 0 : i64, tpu.core_type = #tpu.core_type<tc>, window_params = [{transform_indices = @transform_0, window_bounds = array<i64: 1, 16, 16, 32>}, {pipeline_mode = #tpu.pipeline_mode<synchronous>, transform_indices = @transform_1, window_bounds = array<i64: 32, 2>}, {pipeline_mode = #tpu.pipeline_mode<synchronous>, transform_indices = @transform_2, window_bounds = array<i64: 2, 32>}, {pipeline_mode = #tpu.pipeline_mode<synchronous>, transform_indices = @transform_3, window_bounds = array<i64: 7, 44, 16>}, {pipeline_mode = #tpu.pipeline_mode<synchronous>, transform_indices = @transform_4, window_bounds = array<i64: 5, 640, 512>}, {pipeline_mode = #tpu.pipeline_mode<synchronous>, transform_indices = @transform_5, window_bounds = array<i64: 16, 512>}, {pipeline_mode = #tpu.pipeline_mode<synchronous>, transform_indices = @transform_6, window_bounds = array<i64: 3, 512, 512>}, {pipeline_mode = #tpu.pipeline_mode<synchronous>, transform_indices = @transform_7, window_bounds = array<i64: 1, 512>}, {transform_indices = @transform_8, window_bounds = array<i64: 1, 16, 512>}]} {
    %c0 = arith.constant 0 : index
    %c0_0 = arith.constant 0 : index
    %c0_1 = arith.constant 0 : index
    %c0_2 = arith.constant 0 : index
    %0 = vector.load %arg1[%c0, %c0_0, %c0_1, %c0_2] : memref<1x16x16x32xf32, #tpu.memory_space<vmem>>, vector<1x16x16x32xf32>
    %1 = vector.shape_cast %0 : vector<1x16x16x32xf32> to vector<16x16x32xf32>
    %cst = arith.constant dense<0.000000e+00> : vector<32xf32>
    %2 = vector.multi_reduction <add>, %1, %cst [0, 1] : vector<16x16x32xf32> to vector<32xf32>
    %3 = vector.shape_cast %2 : vector<32xf32> to vector<1x1x32xf32>
    %cst_3 = arith.constant 2.560000e+02 : f32
    %4 = vector.broadcast %cst_3 : f32 to vector<1x1x32xf32>
    %5 = arith.divf %3, %4 : vector<1x1x32xf32>
    %6 = vector.shape_cast %5 : vector<1x1x32xf32> to vector<1x32xf32>
    %cst_4 = arith.constant dense<0xFF800000> : vector<32xf32>
    %7 = vector.multi_reduction <maximumf>, %1, %cst_4 [0, 1] : vector<16x16x32xf32> to vector<32xf32>
    %8 = vector.shape_cast %7 : vector<32xf32> to vector<1x1x32xf32>
    %9 = vector.shape_cast %8 : vector<1x1x32xf32> to vector<1x32xf32>
    %10 = tpu.concatenate %6, %9 in 0 : vector<1x32xf32>, vector<1x32xf32> -> vector<2x32xf32>
    %c0_5 = arith.constant 0 : index
    %c0_6 = arith.constant 0 : index
    %11 = vector.load %arg2[%c0_5, %c0_6] : memref<32x2xf32, #tpu.memory_space<vmem>>, vector<32x2xf32>
    %cst_7 = arith.constant dense<0.000000e+00> : vector<2x2xf32>
    %12 = tpu.matmul %10, %11, %cst_7 {dimension_numbers = #tpu.dot_dimension_numbers<[1], [0], [0], [1], [0, 0, 1, 1], [], []>} : vector<2x32xf32>, vector<32x2xf32>, vector<2x2xf32> -> vector<2x2xf32>
    %cst_8 = arith.constant 0.000000e+00 : f32
    %13 = vector.broadcast %cst_8 : f32 to vector<2x2xf32>
    %14 = arith.maximumf %12, %13 : vector<2x2xf32>
    %c0_9 = arith.constant 0 : index
    %c0_10 = arith.constant 0 : index
    %15 = vector.load %arg3[%c0_9, %c0_10] : memref<2x32xf32, #tpu.memory_space<vmem>>, vector<2x32xf32>
    %cst_11 = arith.constant dense<0.000000e+00> : vector<2x32xf32>
    %16 = tpu.matmul %14, %15, %cst_11 {dimension_numbers = #tpu.dot_dimension_numbers<[1], [0], [0], [1], [0, 0, 1, 1], [], []>} : vector<2x2xf32>, vector<2x32xf32>, vector<2x32xf32> -> vector<2x32xf32>
    %cst_12 = arith.constant dense<0.000000e+00> : vector<32xf32>
    %17 = vector.multi_reduction <add>, %16, %cst_12 [0] : vector<2x32xf32> to vector<32xf32>
    %18 = vector.shape_cast %17 : vector<32xf32> to vector<1x32xf32>
    %19 = arith.negf %18 : vector<1x32xf32>
    %20 = math.exp %19 : vector<1x32xf32>
    %cst_13 = arith.constant 1.000000e+00 : f32
    %21 = vector.broadcast %cst_13 : f32 to vector<1x32xf32>
    %22 = arith.addf %21, %20 : vector<1x32xf32>
    %23 = arith.divf %21, %22 : vector<1x32xf32>
    %24 = vector.shape_cast %23 : vector<1x32xf32> to vector<1x1x32xf32>
    %25 = vector.broadcast %24 : vector<1x1x32xf32> to vector<16x16x32xf32>
    %26 = arith.mulf %1, %25 : vector<16x16x32xf32>
    %cst_14 = arith.constant dense<0.000000e+00> : vector<16x16xf32>
    %27 = vector.multi_reduction <add>, %26, %cst_14 [2] : vector<16x16x32xf32> to vector<16x16xf32>
    %cst_15 = arith.constant 3.200000e+01 : f32
    %28 = vector.broadcast %cst_15 : f32 to vector<16x16xf32>
    %29 = arith.divf %27, %28 : vector<16x16xf32>
    %cst_16 = arith.constant dense<0xFF800000> : vector<16x16xf32>
    %30 = vector.multi_reduction <maximumf>, %26, %cst_16 [2] : vector<16x16x32xf32> to vector<16x16xf32>
    %cst_17 = arith.constant 0.000000e+00 : f32
    %31 = vector.broadcast %cst_17 : f32 to vector<16x3xf32>
    %cst_18 = arith.constant 0.000000e+00 : f32
    %32 = vector.broadcast %cst_18 : f32 to vector<3x22xf32>
    %33 = tpu.concatenate %31, %29, %31 in 1 : vector<16x3xf32>, vector<16x16xf32>, vector<16x3xf32> -> vector<16x22xf32>
    %34 = tpu.concatenate %32, %33, %32 in 0 : vector<3x22xf32>, vector<16x22xf32>, vector<3x22xf32> -> vector<22x22xf32>
    %35 = tpu.concatenate %31, %30, %31 in 1 : vector<16x3xf32>, vector<16x16xf32>, vector<16x3xf32> -> vector<16x22xf32>
    %36 = tpu.concatenate %32, %35, %32 in 0 : vector<3x22xf32>, vector<16x22xf32>, vector<3x22xf32> -> vector<22x22xf32>
    %37 = tpu.concatenate %34, %36 in 1 : vector<22x22xf32>, vector<22x22xf32> -> vector<22x44xf32>
    %cst_19 = arith.constant 0.000000e+00 : f32
    %38 = vector.broadcast %cst_19 : f32 to vector<16x16xf32>
    %39 = vector.extract_strided_slice %37 {offsets = [0, 0], sizes = [16, 44], strides = [1, 1]} : vector<22x44xf32> to vector<16x44xf32>
    %c0_20 = arith.constant 0 : index
    %c0_21 = arith.constant 0 : index
    %c0_22 = arith.constant 0 : index
    %40 = vector.load %arg4[%c0_20, %c0_21, %c0_22] : memref<7x44x16xf32, #tpu.memory_space<vmem>>, vector<1x44x16xf32>
    %41 = vector.shape_cast %40 : vector<1x44x16xf32> to vector<44x16xf32>
    %cst_23 = arith.constant dense<0.000000e+00> : vector<16x16xf32>
    %42 = tpu.matmul %39, %41, %cst_23 {dimension_numbers = #tpu.dot_dimension_numbers<[1], [0], [0], [1], [0, 0, 1, 1], [], []>} : vector<16x44xf32>, vector<44x16xf32>, vector<16x16xf32> -> vector<16x16xf32>
    %43 = arith.addf %38, %42 : vector<16x16xf32>
    %44 = vector.extract_strided_slice %37 {offsets = [1, 0], sizes = [16, 44], strides = [1, 1]} : vector<22x44xf32> to vector<16x44xf32>
    %c1 = arith.constant 1 : index
    %c0_24 = arith.constant 0 : index
    %c0_25 = arith.constant 0 : index
    %45 = vector.load %arg4[%c1, %c0_24, %c0_25] : memref<7x44x16xf32, #tpu.memory_space<vmem>>, vector<1x44x16xf32>
    %46 = vector.shape_cast %45 : vector<1x44x16xf32> to vector<44x16xf32>
    %cst_26 = arith.constant dense<0.000000e+00> : vector<16x16xf32>
    %47 = tpu.matmul %44, %46, %cst_26 {dimension_numbers = #tpu.dot_dimension_numbers<[1], [0], [0], [1], [0, 0, 1, 1], [], []>} : vector<16x44xf32>, vector<44x16xf32>, vector<16x16xf32> -> vector<16x16xf32>
    %48 = arith.addf %43, %47 : vector<16x16xf32>
    %49 = vector.extract_strided_slice %37 {offsets = [2, 0], sizes = [16, 44], strides = [1, 1]} : vector<22x44xf32> to vector<16x44xf32>
    %c2 = arith.constant 2 : index
    %c0_27 = arith.constant 0 : index
    %c0_28 = arith.constant 0 : index
    %50 = vector.load %arg4[%c2, %c0_27, %c0_28] : memref<7x44x16xf32, #tpu.memory_space<vmem>>, vector<1x44x16xf32>
    %51 = vector.shape_cast %50 : vector<1x44x16xf32> to vector<44x16xf32>
    %cst_29 = arith.constant dense<0.000000e+00> : vector<16x16xf32>
    %52 = tpu.matmul %49, %51, %cst_29 {dimension_numbers = #tpu.dot_dimension_numbers<[1], [0], [0], [1], [0, 0, 1, 1], [], []>} : vector<16x44xf32>, vector<44x16xf32>, vector<16x16xf32> -> vector<16x16xf32>
    %53 = arith.addf %48, %52 : vector<16x16xf32>
    %54 = vector.extract_strided_slice %37 {offsets = [3, 0], sizes = [16, 44], strides = [1, 1]} : vector<22x44xf32> to vector<16x44xf32>
    %c3 = arith.constant 3 : index
    %c0_30 = arith.constant 0 : index
    %c0_31 = arith.constant 0 : index
    %55 = vector.load %arg4[%c3, %c0_30, %c0_31] : memref<7x44x16xf32, #tpu.memory_space<vmem>>, vector<1x44x16xf32>
    %56 = vector.shape_cast %55 : vector<1x44x16xf32> to vector<44x16xf32>
    %cst_32 = arith.constant dense<0.000000e+00> : vector<16x16xf32>
    %57 = tpu.matmul %54, %56, %cst_32 {dimension_numbers = #tpu.dot_dimension_numbers<[1], [0], [0], [1], [0, 0, 1, 1], [], []>} : vector<16x44xf32>, vector<44x16xf32>, vector<16x16xf32> -> vector<16x16xf32>
    %58 = arith.addf %53, %57 : vector<16x16xf32>
    %59 = vector.extract_strided_slice %37 {offsets = [4, 0], sizes = [16, 44], strides = [1, 1]} : vector<22x44xf32> to vector<16x44xf32>
    %c4 = arith.constant 4 : index
    %c0_33 = arith.constant 0 : index
    %c0_34 = arith.constant 0 : index
    %60 = vector.load %arg4[%c4, %c0_33, %c0_34] : memref<7x44x16xf32, #tpu.memory_space<vmem>>, vector<1x44x16xf32>
    %61 = vector.shape_cast %60 : vector<1x44x16xf32> to vector<44x16xf32>
    %cst_35 = arith.constant dense<0.000000e+00> : vector<16x16xf32>
    %62 = tpu.matmul %59, %61, %cst_35 {dimension_numbers = #tpu.dot_dimension_numbers<[1], [0], [0], [1], [0, 0, 1, 1], [], []>} : vector<16x44xf32>, vector<44x16xf32>, vector<16x16xf32> -> vector<16x16xf32>
    %63 = arith.addf %58, %62 : vector<16x16xf32>
    %64 = vector.extract_strided_slice %37 {offsets = [5, 0], sizes = [16, 44], strides = [1, 1]} : vector<22x44xf32> to vector<16x44xf32>
    %c5 = arith.constant 5 : index
    %c0_36 = arith.constant 0 : index
    %c0_37 = arith.constant 0 : index
    %65 = vector.load %arg4[%c5, %c0_36, %c0_37] : memref<7x44x16xf32, #tpu.memory_space<vmem>>, vector<1x44x16xf32>
    %66 = vector.shape_cast %65 : vector<1x44x16xf32> to vector<44x16xf32>
    %cst_38 = arith.constant dense<0.000000e+00> : vector<16x16xf32>
    %67 = tpu.matmul %64, %66, %cst_38 {dimension_numbers = #tpu.dot_dimension_numbers<[1], [0], [0], [1], [0, 0, 1, 1], [], []>} : vector<16x44xf32>, vector<44x16xf32>, vector<16x16xf32> -> vector<16x16xf32>
    %68 = arith.addf %63, %67 : vector<16x16xf32>
    %69 = vector.extract_strided_slice %37 {offsets = [6, 0], sizes = [16, 44], strides = [1, 1]} : vector<22x44xf32> to vector<16x44xf32>
    %c6 = arith.constant 6 : index
    %c0_39 = arith.constant 0 : index
    %c0_40 = arith.constant 0 : index
    %70 = vector.load %arg4[%c6, %c0_39, %c0_40] : memref<7x44x16xf32, #tpu.memory_space<vmem>>, vector<1x44x16xf32>
    %71 = vector.shape_cast %70 : vector<1x44x16xf32> to vector<44x16xf32>
    %cst_41 = arith.constant dense<0.000000e+00> : vector<16x16xf32>
    %72 = tpu.matmul %69, %71, %cst_41 {dimension_numbers = #tpu.dot_dimension_numbers<[1], [0], [0], [1], [0, 0, 1, 1], [], []>} : vector<16x44xf32>, vector<44x16xf32>, vector<16x16xf32> -> vector<16x16xf32>
    %73 = arith.addf %68, %72 : vector<16x16xf32>
    %74 = arith.negf %73 : vector<16x16xf32>
    %75 = math.exp %74 : vector<16x16xf32>
    %cst_42 = arith.constant 1.000000e+00 : f32
    %76 = vector.broadcast %cst_42 : f32 to vector<16x16xf32>
    %77 = arith.addf %76, %75 : vector<16x16xf32>
    %78 = arith.divf %76, %77 : vector<16x16xf32>
    %79 = vector.shape_cast %78 : vector<16x16xf32> to vector<16x16x1xf32>
    %80 = vector.broadcast %79 : vector<16x16x1xf32> to vector<16x16x32xf32>
    %81 = arith.mulf %26, %80 : vector<16x16x32xf32>
    %82 = vector.shape_cast %81 : vector<16x16x32xf32> to vector<16x512xf32>
    %cst_43 = arith.constant 0.000000e+00 : f32
    %83 = vector.broadcast %cst_43 : f32 to vector<16x64xf32>
    %cst_44 = arith.constant 0.000000e+00 : f32
    %84 = vector.broadcast %cst_44 : f32 to vector<2x640xf32>
    %85 = tpu.concatenate %83, %82, %83 in 1 : vector<16x64xf32>, vector<16x512xf32>, vector<16x64xf32> -> vector<16x640xf32>
    %86 = tpu.concatenate %84, %85, %84 in 0 : vector<2x640xf32>, vector<16x640xf32>, vector<2x640xf32> -> vector<20x640xf32>
    %87 = arith.truncf %86 : vector<20x640xf32> to vector<20x640xbf16>
    %c0_45 = arith.constant 0 : index
    %c0_46 = arith.constant 0 : index
    %88 = vector.load %arg6[%c0_45, %c0_46] : memref<16x512xf32, #tpu.memory_space<vmem>>, vector<16x512xf32>
    %89 = vector.extract_strided_slice %87 {offsets = [0, 0], sizes = [16, 640], strides = [1, 1]} : vector<20x640xbf16> to vector<16x640xbf16>
    %c0_47 = arith.constant 0 : index
    %c0_48 = arith.constant 0 : index
    %c0_49 = arith.constant 0 : index
    %90 = vector.load %arg5[%c0_47, %c0_48, %c0_49] : memref<5x640x512xbf16, #tpu.memory_space<vmem>>, vector<1x640x512xbf16>
    %91 = vector.shape_cast %90 : vector<1x640x512xbf16> to vector<640x512xbf16>
    %cst_50 = arith.constant dense<0.000000e+00> : vector<16x512xf32>
    %92 = tpu.matmul %89, %91, %cst_50 {dimension_numbers = #tpu.dot_dimension_numbers<[1], [0], [0], [1], [0, 0, 1, 1], [], []>} : vector<16x640xbf16>, vector<640x512xbf16>, vector<16x512xf32> -> vector<16x512xf32>
    %93 = arith.addf %88, %92 : vector<16x512xf32>
    %94 = vector.extract_strided_slice %87 {offsets = [1, 0], sizes = [16, 640], strides = [1, 1]} : vector<20x640xbf16> to vector<16x640xbf16>
    %c1_51 = arith.constant 1 : index
    %c0_52 = arith.constant 0 : index
    %c0_53 = arith.constant 0 : index
    %95 = vector.load %arg5[%c1_51, %c0_52, %c0_53] : memref<5x640x512xbf16, #tpu.memory_space<vmem>>, vector<1x640x512xbf16>
    %96 = vector.shape_cast %95 : vector<1x640x512xbf16> to vector<640x512xbf16>
    %cst_54 = arith.constant dense<0.000000e+00> : vector<16x512xf32>
    %97 = tpu.matmul %94, %96, %cst_54 {dimension_numbers = #tpu.dot_dimension_numbers<[1], [0], [0], [1], [0, 0, 1, 1], [], []>} : vector<16x640xbf16>, vector<640x512xbf16>, vector<16x512xf32> -> vector<16x512xf32>
    %98 = arith.addf %93, %97 : vector<16x512xf32>
    %99 = vector.extract_strided_slice %87 {offsets = [2, 0], sizes = [16, 640], strides = [1, 1]} : vector<20x640xbf16> to vector<16x640xbf16>
    %c2_55 = arith.constant 2 : index
    %c0_56 = arith.constant 0 : index
    %c0_57 = arith.constant 0 : index
    %100 = vector.load %arg5[%c2_55, %c0_56, %c0_57] : memref<5x640x512xbf16, #tpu.memory_space<vmem>>, vector<1x640x512xbf16>
    %101 = vector.shape_cast %100 : vector<1x640x512xbf16> to vector<640x512xbf16>
    %cst_58 = arith.constant dense<0.000000e+00> : vector<16x512xf32>
    %102 = tpu.matmul %99, %101, %cst_58 {dimension_numbers = #tpu.dot_dimension_numbers<[1], [0], [0], [1], [0, 0, 1, 1], [], []>} : vector<16x640xbf16>, vector<640x512xbf16>, vector<16x512xf32> -> vector<16x512xf32>
    %103 = arith.addf %98, %102 : vector<16x512xf32>
    %104 = vector.extract_strided_slice %87 {offsets = [3, 0], sizes = [16, 640], strides = [1, 1]} : vector<20x640xbf16> to vector<16x640xbf16>
    %c3_59 = arith.constant 3 : index
    %c0_60 = arith.constant 0 : index
    %c0_61 = arith.constant 0 : index
    %105 = vector.load %arg5[%c3_59, %c0_60, %c0_61] : memref<5x640x512xbf16, #tpu.memory_space<vmem>>, vector<1x640x512xbf16>
    %106 = vector.shape_cast %105 : vector<1x640x512xbf16> to vector<640x512xbf16>
    %cst_62 = arith.constant dense<0.000000e+00> : vector<16x512xf32>
    %107 = tpu.matmul %104, %106, %cst_62 {dimension_numbers = #tpu.dot_dimension_numbers<[1], [0], [0], [1], [0, 0, 1, 1], [], []>} : vector<16x640xbf16>, vector<640x512xbf16>, vector<16x512xf32> -> vector<16x512xf32>
    %108 = arith.addf %103, %107 : vector<16x512xf32>
    %109 = vector.extract_strided_slice %87 {offsets = [4, 0], sizes = [16, 640], strides = [1, 1]} : vector<20x640xbf16> to vector<16x640xbf16>
    %c4_63 = arith.constant 4 : index
    %c0_64 = arith.constant 0 : index
    %c0_65 = arith.constant 0 : index
    %110 = vector.load %arg5[%c4_63, %c0_64, %c0_65] : memref<5x640x512xbf16, #tpu.memory_space<vmem>>, vector<1x640x512xbf16>
    %111 = vector.shape_cast %110 : vector<1x640x512xbf16> to vector<640x512xbf16>
    %cst_66 = arith.constant dense<0.000000e+00> : vector<16x512xf32>
    %112 = tpu.matmul %109, %111, %cst_66 {dimension_numbers = #tpu.dot_dimension_numbers<[1], [0], [0], [1], [0, 0, 1, 1], [], []>} : vector<16x640xbf16>, vector<640x512xbf16>, vector<16x512xf32> -> vector<16x512xf32>
    %113 = arith.addf %108, %112 : vector<16x512xf32>
    %cst_67 = arith.constant 0.000000e+00 : f32
    %114 = vector.broadcast %cst_67 : f32 to vector<1x512xf32>
    %115 = tpu.concatenate %114, %113, %114 in 0 : vector<1x512xf32>, vector<16x512xf32>, vector<1x512xf32> -> vector<18x512xf32>
    %116 = arith.truncf %115 : vector<18x512xf32> to vector<18x512xbf16>
    %cst_68 = arith.constant 0.000000e+00 : f32
    %117 = vector.broadcast %cst_68 : f32 to vector<16x512xf32>
    %118 = vector.extract_strided_slice %116 {offsets = [0, 0], sizes = [16, 512], strides = [1, 1]} : vector<18x512xbf16> to vector<16x512xbf16>
    %c0_69 = arith.constant 0 : index
    %c0_70 = arith.constant 0 : index
    %c0_71 = arith.constant 0 : index
    %119 = vector.load %arg7[%c0_69, %c0_70, %c0_71] : memref<3x512x512xbf16, #tpu.memory_space<vmem>>, vector<1x512x512xbf16>
    %120 = vector.shape_cast %119 : vector<1x512x512xbf16> to vector<512x512xbf16>
    %cst_72 = arith.constant dense<0.000000e+00> : vector<16x512xf32>
    %121 = tpu.matmul %118, %120, %cst_72 {dimension_numbers = #tpu.dot_dimension_numbers<[1], [0], [0], [1], [0, 0, 1, 1], [], []>} : vector<16x512xbf16>, vector<512x512xbf16>, vector<16x512xf32> -> vector<16x512xf32>
    %122 = arith.addf %117, %121 : vector<16x512xf32>
    %123 = vector.extract_strided_slice %116 {offsets = [1, 0], sizes = [16, 512], strides = [1, 1]} : vector<18x512xbf16> to vector<16x512xbf16>
    %c1_73 = arith.constant 1 : index
    %c0_74 = arith.constant 0 : index
    %c0_75 = arith.constant 0 : index
    %124 = vector.load %arg7[%c1_73, %c0_74, %c0_75] : memref<3x512x512xbf16, #tpu.memory_space<vmem>>, vector<1x512x512xbf16>
    %125 = vector.shape_cast %124 : vector<1x512x512xbf16> to vector<512x512xbf16>
    %cst_76 = arith.constant dense<0.000000e+00> : vector<16x512xf32>
    %126 = tpu.matmul %123, %125, %cst_76 {dimension_numbers = #tpu.dot_dimension_numbers<[1], [0], [0], [1], [0, 0, 1, 1], [], []>} : vector<16x512xbf16>, vector<512x512xbf16>, vector<16x512xf32> -> vector<16x512xf32>
    %127 = arith.addf %122, %126 : vector<16x512xf32>
    %128 = vector.extract_strided_slice %116 {offsets = [2, 0], sizes = [16, 512], strides = [1, 1]} : vector<18x512xbf16> to vector<16x512xbf16>
    %c2_77 = arith.constant 2 : index
    %c0_78 = arith.constant 0 : index
    %c0_79 = arith.constant 0 : index
    %129 = vector.load %arg7[%c2_77, %c0_78, %c0_79] : memref<3x512x512xbf16, #tpu.memory_space<vmem>>, vector<1x512x512xbf16>
    %130 = vector.shape_cast %129 : vector<1x512x512xbf16> to vector<512x512xbf16>
    %cst_80 = arith.constant dense<0.000000e+00> : vector<16x512xf32>
    %131 = tpu.matmul %128, %130, %cst_80 {dimension_numbers = #tpu.dot_dimension_numbers<[1], [0], [0], [1], [0, 0, 1, 1], [], []>} : vector<16x512xbf16>, vector<512x512xbf16>, vector<16x512xf32> -> vector<16x512xf32>
    %132 = arith.addf %127, %131 : vector<16x512xf32>
    %c0_81 = arith.constant 0 : index
    %c0_82 = arith.constant 0 : index
    %133 = vector.load %arg8[%c0_81, %c0_82] : memref<1x512xf32, #tpu.memory_space<vmem>>, vector<1x512xf32>
    %134 = vector.broadcast %133 : vector<1x512xf32> to vector<16x512xf32>
    %135 = arith.addf %132, %134 : vector<16x512xf32>
    %cst_83 = arith.constant 0.000000e+00 : f32
    %136 = vector.broadcast %cst_83 : f32 to vector<16x512xf32>
    %137 = arith.cmpf oge, %135, %136 : vector<16x512xf32>
    %cst_84 = arith.constant 0.00999999977 : f32
    %138 = vector.broadcast %cst_84 : f32 to vector<16x512xf32>
    %139 = arith.mulf %138, %135 : vector<16x512xf32>
    %140 = arith.select %137, %135, %139 : vector<16x512xi1>, vector<16x512xf32>
    %c0_85 = arith.constant 0 : index
    %c0_86 = arith.constant 0 : index
    %c0_87 = arith.constant 0 : index
    %141 = vector.load %arg9[%c0_85, %c0_86, %c0_87] : memref<1x16x512xf32, #tpu.memory_space<vmem>>, vector<1x16x512xf32>
    %142 = vector.shape_cast %141 : vector<1x16x512xf32> to vector<16x512xf32>
    %143 = vector.shape_cast %140 : vector<16x512xf32> to vector<1x16x512xf32>
    tpu.vector_store %arg9[%c0_85, %c0_86, %c0_87], %143 {strides = array<i32>} : memref<1x16x512xf32, #tpu.memory_space<vmem>>, vector<1x16x512xf32>,
    return
  }
  func.func @transform_0(%arg0: i32) -> (i32, i32, i32, i32) {
    %c0_i32 = arith.constant 0 : i32
    %c0_i32_0 = arith.constant 0 : i32
    %c0_i32_1 = arith.constant 0 : i32
    %c0_i32_2 = arith.constant 0 : i32
    return %arg0, %c0_i32, %c0_i32_0, %c0_i32_1 : i32, i32, i32, i32
  }
  func.func @transform_1(%arg0: i32) -> (i32, i32) {
    %c0_i32 = arith.constant 0 : i32
    %c0_i32_0 = arith.constant 0 : i32
    %c0_i32_1 = arith.constant 0 : i32
    return %c0_i32, %c0_i32_0 : i32, i32
  }
  func.func @transform_2(%arg0: i32) -> (i32, i32) {
    %c0_i32 = arith.constant 0 : i32
    %c0_i32_0 = arith.constant 0 : i32
    %c0_i32_1 = arith.constant 0 : i32
    return %c0_i32, %c0_i32_0 : i32, i32
  }
  func.func @transform_3(%arg0: i32) -> (i32, i32, i32) {
    %c0_i32 = arith.constant 0 : i32
    %c0_i32_0 = arith.constant 0 : i32
    %c0_i32_1 = arith.constant 0 : i32
    %c0_i32_2 = arith.constant 0 : i32
    return %c0_i32, %c0_i32_0, %c0_i32_1 : i32, i32, i32
  }
  func.func @transform_4(%arg0: i32) -> (i32, i32, i32) {
    %c0_i32 = arith.constant 0 : i32
    %c0_i32_0 = arith.constant 0 : i32
    %c0_i32_1 = arith.constant 0 : i32
    %c0_i32_2 = arith.constant 0 : i32
    return %c0_i32, %c0_i32_0, %c0_i32_1 : i32, i32, i32
  }
  func.func @transform_5(%arg0: i32) -> (i32, i32) {
    %c0_i32 = arith.constant 0 : i32
    %c0_i32_0 = arith.constant 0 : i32
    %c0_i32_1 = arith.constant 0 : i32
    return %c0_i32, %c0_i32_0 : i32, i32
  }
  func.func @transform_6(%arg0: i32) -> (i32, i32, i32) {
    %c0_i32 = arith.constant 0 : i32
    %c0_i32_0 = arith.constant 0 : i32
    %c0_i32_1 = arith.constant 0 : i32
    %c0_i32_2 = arith.constant 0 : i32
    return %c0_i32, %c0_i32_0, %c0_i32_1 : i32, i32, i32
  }
  func.func @transform_7(%arg0: i32) -> (i32, i32) {
    %c0_i32 = arith.constant 0 : i32
    %c0_i32_0 = arith.constant 0 : i32
    %c0_i32_1 = arith.constant 0 : i32
    return %c0_i32, %c0_i32_0 : i32, i32
  }
  func.func @transform_8(%arg0: i32) -> (i32, i32, i32) {
    %c0_i32 = arith.constant 0 : i32
    %c0_i32_0 = arith.constant 0 : i32
    %c0_i32_1 = arith.constant 0 : i32
    return %arg0, %c0_i32, %c0_i32_0 : i32, i32, i32
  }
}

</mosaic_0001>

<llo_original>
// kernel: tpu_custom_call.1
$region0: #{tpu_custom_call.1}
  #allocation0 [shape = 'u32[]', space=smem, size = 0x4, offset = 0x4, fixed_abs, tag = 'smem constant byte address 0x4 - core index']
  #allocation1 [shape = 'u32[144,128]{1,0:T(1,128)}', space=vmem, size = 0x12000, scoped, tag = 'internal scratch']
  %s0 = inlined_call_operand.hbm [shape: f32[2,16,16,32], index: 0, kind: input, shape index: {}]
  %s1 = inlined_call_operand.vmem [shape: f32[32,2], index: 1, kind: input, shape index: {}]
  %s2 = inlined_call_operand.hbm [shape: f32[2,32], index: 2, kind: input, shape index: {}]
  %s3 = inlined_call_operand.vmem [shape: f32[7,44,16], index: 3, kind: input, shape index: {}]
  %s4 = inlined_call_operand.hbm [shape: bf16[5,640,512], index: 4, kind: input, shape index: {}]
  %s5 = inlined_call_operand.hbm [shape: f32[16,512], index: 5, kind: input, shape index: {}]
  %s6 = inlined_call_operand.hbm [shape: bf16[3,512,512], index: 6, kind: input, shape index: {}]
  %s7 = inlined_call_operand.hbm [shape: f32[1,512], index: 7, kind: input, shape index: {}]
  %s8 = inlined_call_operand.hbm [shape: f32[2,16,512], index: 8, kind: output, shape index: {}]
  %s9 = sld [smem:[#allocation0]]
  $region89: #{tpu_custom_call.1} parent=0
    _
  %s11 = ssub.s32 1, %s9
  %s12 = scalar_select 0, %s11, %s9
  $region1: #{tpu_custom_call.1} parent=0
    #allocation2 [shape = 'u8[262144]{0}', space=vmem, size = 0x40000, scoped, tag = 'input window, operand 0']
    #allocation3 [shape = 's32[2]{0}', space=sflag, size = 0x8, scoped, tag = 'scoped memory for tpu_custom_call.1']
    #allocation4 [shape = 's32[2]{0}', space=sflag, size = 0x8, scoped, tag = 'scoped memory for tpu_custom_call.1']
    #allocation5 [shape = 'u8[1024]{0}', space=vmem, size = 0x400, scoped, tag = 'input window, operand 2, single buffered']
    #allocation6 [shape = 's32[1]{0}', space=sflag, size = 0x4, scoped, tag = 'scoped memory for tpu_custom_call.1']
    #allocation7 [shape = 'u8[3276800]{0}', space=vmem, size = 0x320000, scoped, tag = 'input window, operand 4, single buffered']
    #allocation8 [shape = 'u8[32768]{0}', space=vmem, size = 0x8000, scoped, tag = 'input window, operand 5, single buffered']
    #allocation9 [shape = 's32[1]{0}', space=sflag, size = 0x4, scoped, tag = 'scoped memory for tpu_custom_call.1']
    #allocation10 [shape = 'u8[1572864]{0}', space=vmem, size = 0x180000, scoped, tag = 'input window, operand 6, single buffered']
    #allocation11 [shape = 'u8[2048]{0}', space=vmem, size = 0x800, scoped, tag = 'input window, operand 7, single buffered']
    #allocation12 [shape = 's32[1]{0}', space=sflag, size = 0x4, scoped, tag = 'scoped memory for tpu_custom_call.1']
    #allocation13 [shape = 'u8[65536]{0}', space=vmem, size = 0x10000, scoped, tag = 'output window, operand 0']
    %13 = vsyncpa [#allocation3], 0
    %s14 = scalar_lea.sflag [#allocation3], 1
    %15 = vsyncpa %s14, 0
    %16 = vsyncpa [#allocation6], 0
    %17 = vsyncpa [#allocation9], 0
    %18 = vsyncpa [#allocation12], 0
    %19 = vsyncpa [#allocation4], 0
    %s20 = scalar_lea.sflag [#allocation4], 1
    %21 = vsyncpa %s20, 0
    loop: start=0, step=1, limit=4
    $region2: #{tpu_custom_call.1} parent=1 // loop_pre_header
      _
    $region3: #{tpu_custom_call.1} parent=1 // loop_header
      %s23 = sphi 0, %s27
      %p24 = scmp.ge.s32.totalorder %s23, 4
      %s33 = sphi 0, %s35
      %s36 = sphi 0, %s33
      %s37 = sphi 0, %s36
      %s53 = sphi 0, %s37
      %s57 = sphi 0, %s57
      %s59 = sphi 0, %s57
      %s60 = sphi 0, %s59
      %s74 = sphi 0, %s60
      %s78 = sphi 0, %s78
      %s80 = sphi 0, %s78
      %s81 = sphi 0, %s80
      %s95 = sphi 0, %s81
      %s99 = sphi 0, %s99
      %s101 = sphi 0, %s99
      %s102 = sphi 0, %s101
      %s116 = sphi 0, %s102
      %s120 = sphi 0, %s120
      %s122 = sphi 0, %s120
      %s123 = sphi 0, %s122
      %s137 = sphi 0, %s123
      %s141 = sphi 0, %s141
      %s143 = sphi 0, %s141
      %s144 = sphi 0, %s143
      %s158 = sphi 0, %s144
      %s162 = sphi 0, %s162
      %s164 = sphi 0, %s162
      %s165 = sphi 0, %s164
      %s179 = sphi 0, %s165
      %s183 = sphi 0, %s183
      %s185 = sphi 0, %s183
      %s186 = sphi 0, %s185
      %s200 = sphi 0, %s186
      %s206 = sphi 0, %s208
      %s209 = sphi 0, %s206
      %s210 = sphi 0, %s209
      %s226 = sphi 0, %s210
    $region4: #{tpu_custom_call.1} parent=1 // loop_header_branch
      %26 = sbr.rel (%p24) target = $region8
    $region5: #{tpu_custom_call.1} parent=1 // loop_body
      %s28 = ssub.s32 %s23, 1
      %s29 = ssub.s32 %s23, 2
      %s30 = sadd.s32 %s23, 1
      %s31 = ssub.s32 %s23, %s30
      %p32 = scmp.eq.s32.totalorder %s31, 0
      %s34 = sadd.s32 %s33, 1
      %s35 = scalar_select %p32, %s33, %s34
      %p38 = pneg %p32
      %p39 = scmp.eq.s32.totalorder %s23, 1
      %p40 = por %p38, %p39
      %p41 = scmp.ne.s32.totalorder %s33, %s36
      %p42 = scmp.eq.s32.totalorder %s23, 0
      %p43 = por %p41, %p42
      %p44 = scmp.ne.s32.totalorder %s33, %s36
      %p45 = scmp.eq.s32.totalorder %s28, 1
      %p46 = por %p44, %p45
      %p47 = scmp.ne.s32.totalorder %s36, %s37
      %p48 = scmp.eq.s32.totalorder %s28, 0
      %p49 = por %p47, %p48
      %p50 = scmp.ne.s32.totalorder %s36, %s37
      %p51 = scmp.eq.s32.totalorder %s29, 1
      %p52 = por %p50, %p51
      %p54 = scmp.ne.s32.totalorder %s37, %s53
      %p55 = scmp.eq.s32.totalorder %s29, 0
      %p56 = por %p54, %p55
      %s58 = sadd.s32 %s57, 1
      %p61 = scmp.eq.s32.totalorder %s23, 1
      %p62 = scmp.ne.s32.totalorder %s57, %s59
      %p63 = scmp.eq.s32.totalorder %s23, 0
      %p64 = por %p62, %p63
      %p65 = scmp.ne.s32.totalorder %s57, %s59
      %p66 = scmp.eq.s32.totalorder %s28, 1
      %p67 = por %p65, %p66
      %p68 = scmp.ne.s32.totalorder %s59, %s60
      %p69 = scmp.eq.s32.totalorder %s28, 0
      %p70 = por %p68, %p69
      %p71 = scmp.ne.s32.totalorder %s59, %s60
      %p72 = scmp.eq.s32.totalorder %s29, 1
      %p73 = por %p71, %p72
      %p75 = scmp.ne.s32.totalorder %s60, %s74
      %p76 = scmp.eq.s32.totalorder %s29, 0
      %p77 = por %p75, %p76
      %s79 = sadd.s32 %s78, 1
      %p82 = scmp.eq.s32.totalorder %s23, 1
      %p83 = scmp.ne.s32.totalorder %s78, %s80
      %p84 = scmp.eq.s32.totalorder %s23, 0
      %p85 = por %p83, %p84
      %p86 = scmp.ne.s32.totalorder %s78, %s80
      %p87 = scmp.eq.s32.totalorder %s28, 1
      %p88 = por %p86, %p87
      %p89 = scmp.ne.s32.totalorder %s80, %s81
      %p90 = scmp.eq.s32.totalorder %s28, 0
      %p91 = por %p89, %p90
      %p92 = scmp.ne.s32.totalorder %s80, %s81
      %p93 = scmp.eq.s32.totalorder %s29, 1
      %p94 = por %p92, %p93
      %p96 = scmp.ne.s32.totalorder %s81, %s95
      %p97 = scmp.eq.s32.totalorder %s29, 0
      %p98 = por %p96, %p97
      %s100 = sadd.s32 %s99, 1
      %p103 = scmp.eq.s32.totalorder %s23, 1
      %p104 = scmp.ne.s32.totalorder %s99, %s101
      %p105 = scmp.eq.s32.totalorder %s23, 0
      %p106 = por %p104, %p105
      %p107 = scmp.ne.s32.totalorder %s99, %s101
      %p108 = scmp.eq.s32.totalorder %s28, 1
      %p109 = por %p107, %p108
      %p110 = scmp.ne.s32.totalorder %s101, %s102
      %p111 = scmp.eq.s32.totalorder %s28, 0
      %p112 = por %p110, %p111
      %p113 = scmp.ne.s32.totalorder %s101, %s102
      %p114 = scmp.eq.s32.totalorder %s29, 1
      %p115 = por %p113, %p114
      %p117 = scmp.ne.s32.totalorder %s102, %s116
      %p118 = scmp.eq.s32.totalorder %s29, 0
      %p119 = por %p117, %p118
      %s121 = sadd.s32 %s120, 1
      %p124 = scmp.eq.s32.totalorder %s23, 1
      %p125 = scmp.ne.s32.totalorder %s120, %s122
      %p126 = scmp.eq.s32.totalorder %s23, 0
      %p127 = por %p125, %p126
      %p128 = scmp.ne.s32.totalorder %s120, %s122
      %p129 = scmp.eq.s32.totalorder %s28, 1
      %p130 = por %p128, %p129
      %p131 = scmp.ne.s32.totalorder %s122, %s123
      %p132 = scmp.eq.s32.totalorder %s28, 0
      %p133 = por %p131, %p132
      %p134 = scmp.ne.s32.totalorder %s122, %s123
      %p135 = scmp.eq.s32.totalorder %s29, 1
      %p136 = por %p134, %p135
      %p138 = scmp.ne.s32.totalorder %s123, %s137
      %p139 = scmp.eq.s32.totalorder %s29, 0
      %p140 = por %p138, %p139
      %s142 = sadd.s32 %s141, 1
      %p145 = scmp.eq.s32.totalorder %s23, 1
      %p146 = scmp.ne.s32.totalorder %s141, %s143
      %p147 = scmp.eq.s32.totalorder %s23, 0
      %p148 = por %p146, %p147
      %p149 = scmp.ne.s32.totalorder %s141, %s143
      %p150 = scmp.eq.s32.totalorder %s28, 1
      %p151 = por %p149, %p150
      %p152 = scmp.ne.s32.totalorder %s143, %s144
      %p153 = scmp.eq.s32.totalorder %s28, 0
      %p154 = por %p152, %p153
      %p155 = scmp.ne.s32.totalorder %s143, %s144
      %p156 = scmp.eq.s32.totalorder %s29, 1
      %p157 = por %p155, %p156
      %p159 = scmp.ne.s32.totalorder %s144, %s158
      %p160 = scmp.eq.s32.totalorder %s29, 0
      %p161 = por %p159, %p160
      %s163 = sadd.s32 %s162, 1
      %p166 = scmp.eq.s32.totalorder %s23, 1
      %p167 = scmp.ne.s32.totalorder %s162, %s164
      %p168 = scmp.eq.s32.totalorder %s23, 0
      %p169 = por %p167, %p168
      %p170 = scmp.ne.s32.totalorder %s162, %s164
      %p171 = scmp.eq.s32.totalorder %s28, 1
      %p172 = por %p170, %p171
      %p173 = scmp.ne.s32.totalorder %s164, %s165
      %p174 = scmp.eq.s32.totalorder %s28, 0
      %p175 = por %p173, %p174
      %p176 = scmp.ne.s32.totalorder %s164, %s165
      %p177 = scmp.eq.s32.totalorder %s29, 1
      %p178 = por %p176, %p177
      %p180 = scmp.ne.s32.totalorder %s165, %s179
      %p181 = scmp.eq.s32.totalorder %s29, 0
      %p182 = por %p180, %p181
      %s184 = sadd.s32 %s183, 1
      %p187 = scmp.eq.s32.totalorder %s23, 1
      %p188 = scmp.ne.s32.totalorder %s183, %s185
      %p189 = scmp.eq.s32.totalorder %s23, 0
      %p190 = por %p188, %p189
      %p191 = scmp.ne.s32.totalorder %s183, %s185
      %p192 = scmp.eq.s32.totalorder %s28, 1
      %p193 = por %p191, %p192
      %p194 = scmp.ne.s32.totalorder %s185, %s186
      %p195 = scmp.eq.s32.totalorder %s28, 0
      %p196 = por %p194, %p195
      %p197 = scmp.ne.s32.totalorder %s185, %s186
      %p198 = scmp.eq.s32.totalorder %s29, 1
      %p199 = por %p197, %p198
      %p201 = scmp.ne.s32.totalorder %s186, %s200
      %p202 = scmp.eq.s32.totalorder %s29, 0
      %p203 = por %p201, %p202
      %s204 = ssub.s32 %s23, %s30
      %p205 = scmp.eq.s32.totalorder %s204, 0
      %s207 = sadd.s32 %s206, 1
      %s208 = scalar_select %p205, %s206, %s207
      %p211 = pneg %p205
      %p212 = scmp.eq.s32.totalorder %s23, 1
      %p213 = por %p211, %p212
      %p214 = scmp.ne.s32.totalorder %s206, %s209
      %p215 = scmp.eq.s32.totalorder %s23, 0
      %p216 = por %p214, %p215
      %p217 = scmp.ne.s32.totalorder %s206, %s209
      %p218 = scmp.eq.s32.totalorder %s28, 1
      %p219 = por %p217, %p218
      %p220 = scmp.ne.s32.totalorder %s209, %s210
      %p221 = scmp.eq.s32.totalorder %s28, 0
      %p222 = por %p220, %p221
      %p223 = scmp.ne.s32.totalorder %s209, %s210
      %p224 = scmp.eq.s32.totalorder %s29, 1
      %p225 = por %p223, %p224
      %p227 = scmp.ne.s32.totalorder %s210, %s226
      %p228 = scmp.eq.s32.totalorder %s29, 0
      %p229 = por %p227, %p228
      %p230 = scmp.le.s32.totalorder 1, %s23
      %p231 = scmp.lt.s32.totalorder %s23, 3
      %p232 = pnand %p230, %p231
      %p233 = pneg %p232
      // Predicated region
      $region9: #{tpu_custom_call.1} parent=5 // pred_check
        _
      $region10: #{tpu_custom_call.1} parent=5 // pred_check_branch
        %235 = sbr.rel (%p232) target = $region12
      $region11: #{tpu_custom_call.1} parent=5 // pred_region
        %s236 = ssub.s32 %s23, 1
        // Predicated region
        $region13: #{tpu_custom_call.1} parent=11 // pred_check
          %p237 = pneg %p70
        $region14: #{tpu_custom_call.1} parent=11 // pred_check_branch
          %239 = sbr.rel (%p237) target = $region16
        $region15: #{tpu_custom_call.1} parent=11 // pred_region
          _
        $region16: #{tpu_custom_call.1} parent=11 // pred_fallthru
          _
        // Predicated region
        $region17: #{tpu_custom_call.1} parent=11 // pred_check
          %p240 = pneg %p91
        $region18: #{tpu_custom_call.1} parent=11 // pred_check_branch
          %242 = sbr.rel (%p240) target = $region20
        $region19: #{tpu_custom_call.1} parent=11 // pred_region
          %s244 = ssub.s32 32, 32
          %245 = vsyncadd [#allocation6], %s244
          %s247 = sshll.u32 [#allocation5], 4
          %s248 = int_to_ptr.vmem [resolvable:$true] %s247
          %250 = dma.hbm_to_vmem [thread:$0]  %s2, 32, %s248, [#allocation6]
        $region20: #{tpu_custom_call.1} parent=11 // pred_fallthru
          _
        // Predicated region
        $region21: #{tpu_custom_call.1} parent=11 // pred_check
          %p251 = pneg %p112
        $region22: #{tpu_custom_call.1} parent=11 // pred_check_branch
          %253 = sbr.rel (%p251) target = $region24
        $region23: #{tpu_custom_call.1} parent=11 // pred_region
          _
        $region24: #{tpu_custom_call.1} parent=11 // pred_fallthru
          _
        // Predicated region
        $region25: #{tpu_custom_call.1} parent=11 // pred_check
          %p254 = pneg %p133
        $region26: #{tpu_custom_call.1} parent=11 // pred_check_branch
          %256 = sbr.rel (%p254) target = $region28
        $region27: #{tpu_custom_call.1} parent=11 // pred_region
          %s258 = ssub.s32 102400, 102400
          %259 = vsyncadd [#allocation6], %s258
          %s260 = sshll.u32 [#allocation7], 4
          %s261 = int_to_ptr.vmem [resolvable:$true] %s260
          %266 = dma.hbm_to_vmem [thread:$0]  %s4, 102400, %s261, [#allocation6], 256, 256, 16
        $region28: #{tpu_custom_call.1} parent=11 // pred_fallthru
          _
        // Predicated region
        $region29: #{tpu_custom_call.1} parent=11 // pred_check
          %p267 = pneg %p154
        $region30: #{tpu_custom_call.1} parent=11 // pred_check_branch
          %269 = sbr.rel (%p267) target = $region32
        $region31: #{tpu_custom_call.1} parent=11 // pred_region
          %s271 = ssub.s32 1024, 1024
          %272 = vsyncadd [#allocation9], %s271
          %s273 = sshll.u32 [#allocation8], 4
          %s274 = int_to_ptr.vmem [resolvable:$true] %s273
          %279 = dma.hbm_to_vmem [thread:$0]  %s5, 1024, %s274, [#allocation9], 512, 512, 32
        $region32: #{tpu_custom_call.1} parent=11 // pred_fallthru
          _
        // Predicated region
        $region33: #{tpu_custom_call.1} parent=11 // pred_check
          %p280 = pneg %p175
        $region34: #{tpu_custom_call.1} parent=11 // pred_check_branch
          %282 = sbr.rel (%p280) target = $region36
        $region35: #{tpu_custom_call.1} parent=11 // pred_region
          %s284 = ssub.s32 49152, 49152
          %285 = vsyncadd [#allocation9], %s284
          %s286 = sshll.u32 [#allocation10], 4
          %s287 = int_to_ptr.vmem [resolvable:$true] %s286
          %292 = dma.hbm_to_vmem [thread:$0]  %s6, 49152, %s287, [#allocation9], 256, 256, 16
        $region36: #{tpu_custom_call.1} parent=11 // pred_fallthru
          _
        // Predicated region
        $region37: #{tpu_custom_call.1} parent=11 // pred_check
          %p293 = pneg %p196
        $region38: #{tpu_custom_call.1} parent=11 // pred_check_branch
          %295 = sbr.rel (%p293) target = $region40
        $region39: #{tpu_custom_call.1} parent=11 // pred_region
          %s297 = ssub.s32 64, 64
          %298 = vsyncadd [#allocation12], %s297
          %s300 = sshll.u32 [#allocation11], 4
          %s301 = int_to_ptr.vmem [resolvable:$true] %s300
          %303 = dma.hbm_to_vmem [thread:$0]  %s7, 64, %s301, [#allocation12]
        $region40: #{tpu_custom_call.1} parent=11 // pred_fallthru
          _
      $region12: #{tpu_custom_call.1} parent=5 // pred_fallthru
        _
      %p304 = scmp.lt.s32.totalorder %s23, 2
      // Predicated region
      $region41: #{tpu_custom_call.1} parent=5 // pred_check
        %p305 = pneg %p304
      $region42: #{tpu_custom_call.1} parent=5 // pred_check_branch
        %307 = sbr.rel (%p305) target = $region44
      $region43: #{tpu_custom_call.1} parent=5 // pred_region
        // Predicated region
        $region45: #{tpu_custom_call.1} parent=43 // pred_check
          %p308 = pneg %p43
        $region46: #{tpu_custom_call.1} parent=43 // pred_check_branch
          %310 = sbr.rel (%p308) target = $region48
        $region47: #{tpu_custom_call.1} parent=43 // pred_region
          %s311 = sand.u32 %s33, 1
          %s312 = scalar_lea.sflag [#allocation3], %s311
          %s313 = sand.u32 %s33, 1
          %s314 = smul.addr %s313, 256
          %s315 = scalar_lea.vmem [#allocation2], %s314
          %s317 = ssub.s32 4096, 4096
          %318 = vsyncadd %s312, %s317
          %s319 = smul.addr %s23, 32
          %s320 = smul.addr %s319, 128
          %s321 = scalar_lea.hbm %s0, %s320
          %s322 = sshll.u32 %s315, 4
          %s323 = int_to_ptr.vmem [resolvable:$true] %s322
          %328 = dma.hbm_to_vmem [thread:$0]  %s321, 4096, %s323, %s312, 128, 128, 8
        $region48: #{tpu_custom_call.1} parent=43 // pred_fallthru
          _
      $region44: #{tpu_custom_call.1} parent=5 // pred_fallthru
        _
      %p329 = scmp.le.s32.totalorder 1, %s23
      %p330 = scmp.lt.s32.totalorder %s23, 3
      %p331 = pnand %p329, %p330
      %p332 = pneg %p331
      // Predicated region
      $region49: #{tpu_custom_call.1} parent=5 // pred_check
        _
      $region50: #{tpu_custom_call.1} parent=5 // pred_check_branch
        %334 = sbr.rel (%p331) target = $region52
      $region51: #{tpu_custom_call.1} parent=5 // pred_region
        %s335 = ssub.s32 %s23, 1
        %s336 = sand.u32 %s36, 1
        %s337 = scalar_lea.sflag [#allocation3], %s336
        %s338 = sand.u32 %s36, 1
        %s339 = smul.addr %s338, 256
        %s340 = scalar_lea.vmem [#allocation2], %s339
        // Predicated region
        $region53: #{tpu_custom_call.1} parent=51 // pred_check
          %p341 = pneg %p49
        $region54: #{tpu_custom_call.1} parent=51 // pred_check_branch
          %343 = sbr.rel (%p341) target = $region56
        $region55: #{tpu_custom_call.1} parent=51 // pred_region
          %344 = dma.done %s337, 4096
        $region56: #{tpu_custom_call.1} parent=51 // pred_fallthru
          _
        // Predicated region
        $region57: #{tpu_custom_call.1} parent=51 // pred_check
          %p345 = pneg %p91
        $region58: #{tpu_custom_call.1} parent=51 // pred_check_branch
          %347 = sbr.rel (%p345) target = $region60
        $region59: #{tpu_custom_call.1} parent=51 // pred_region
          %348 = dma.done [#allocation6], 32
        $region60: #{tpu_custom_call.1} parent=51 // pred_fallthru
          _
        // Predicated region
        $region61: #{tpu_custom_call.1} parent=51 // pred_check
          %p349 = pneg %p133
        $region62: #{tpu_custom_call.1} parent=51 // pred_check_branch
          %351 = sbr.rel (%p349) target = $region64
        $region63: #{tpu_custom_call.1} parent=51 // pred_region
          %352 = dma.done [#allocation6], 102400
        $region64: #{tpu_custom_call.1} parent=51 // pred_fallthru
          _
        // Predicated region
        $region65: #{tpu_custom_call.1} parent=51 // pred_check
          %p353 = pneg %p154
        $region66: #{tpu_custom_call.1} parent=51 // pred_check_branch
          %355 = sbr.rel (%p353) target = $region68
        $region67: #{tpu_custom_call.1} parent=51 // pred_region
          %356 = dma.done [#allocation9], 1024
        $region68: #{tpu_custom_call.1} parent=51 // pred_fallthru
          _
        // Predicated region
        $region69: #{tpu_custom_call.1} parent=51 // pred_check
          %p357 = pneg %p175
        $region70: #{tpu_custom_call.1} parent=51 // pred_check_branch
          %359 = sbr.rel (%p357) target = $region72
        $region71: #{tpu_custom_call.1} parent=51 // pred_region
          %360 = dma.done [#allocation9], 49152
        $region72: #{tpu_custom_call.1} parent=51 // pred_fallthru
          _
        // Predicated region
        $region73: #{tpu_custom_call.1} parent=51 // pred_check
          %p361 = pneg %p196
        $region74: #{tpu_custom_call.1} parent=51 // pred_check_branch
          %363 = sbr.rel (%p361) target = $region76
        $region75: #{tpu_custom_call.1} parent=51 // pred_region
          %364 = dma.done [#allocation12], 64
        $region76: #{tpu_custom_call.1} parent=51 // pred_fallthru
          _
        %s365 = sand.u32 %s36, 1
        %s366 = scalar_lea.sflag [#allocation3], %s365
        %s367 = sand.u32 %s36, 1
        %s368 = smul.addr %s367, 256
        %s369 = scalar_lea.vmem [#allocation2], %s368
        %p370 = pneg %p49
        %p371 = pneg %p46
        %p372 = pneg %p70
        %p373 = pneg %p67
        %p374 = pneg %p91
        %p375 = pneg %p88
        %p376 = pneg %p112
        %p377 = pneg %p109
        %p378 = pneg %p133
        %p379 = pneg %p130
        %p380 = pneg %p154
        %p381 = pneg %p151
        %p382 = pneg %p175
        %p383 = pneg %p172
        %p384 = pneg %p196
        %p385 = pneg %p193
        %p386 = pneg %p222
        %p387 = pneg %p219
        %s388 = sand.u32 %s209, 1
        %s389 = scalar_lea.sflag [#allocation4], %s388
        %s390 = sand.u32 %s209, 1
        %s391 = smul.addr %s390, 64
        %s392 = scalar_lea.vmem [#allocation13], %s391
        %v394 = vld [vmem:[%s340] sm:$0xff]
        %v395 = vld [vmem:[%s340 + $0x8] sm:$0xff]
        %v396 = vld [vmem:[%s340 + $0x10] sm:$0xff]
        %v397 = vld [vmem:[%s340 + $0x18] sm:$0xff]
        %v398 = vld [vmem:[%s340 + $0x20] sm:$0xff]
        %v399 = vld [vmem:[%s340 + $0x28] sm:$0xff]
        %v400 = vld [vmem:[%s340 + $0x30] sm:$0xff]
        %v401 = vld [vmem:[%s340 + $0x38] sm:$0xff]
        %v402 = vld [vmem:[%s340 + $0x40] sm:$0xff]
        %v403 = vld [vmem:[%s340 + $0x48] sm:$0xff]
        %v404 = vld [vmem:[%s340 + $0x50] sm:$0xff]
        %v405 = vld [vmem:[%s340 + $0x58] sm:$0xff]
        %v406 = vld [vmem:[%s340 + $0x60] sm:$0xff]
        %v407 = vld [vmem:[%s340 + $0x68] sm:$0xff]
        %v408 = vld [vmem:[%s340 + $0x70] sm:$0xff]
        %v409 = vld [vmem:[%s340 + $0x78] sm:$0xff]
        %v410 = vld [vmem:[%s340 + $0x80] sm:$0xff]
        %v411 = vld [vmem:[%s340 + $0x88] sm:$0xff]
        %v412 = vld [vmem:[%s340 + $0x90] sm:$0xff]
        %v413 = vld [vmem:[%s340 + $0x98] sm:$0xff]
        %v414 = vld [vmem:[%s340 + $0xa0] sm:$0xff]
        %v415 = vld [vmem:[%s340 + $0xa8] sm:$0xff]
        %v416 = vld [vmem:[%s340 + $0xb0] sm:$0xff]
        %v417 = vld [vmem:[%s340 + $0xb8] sm:$0xff]
        %v418 = vld [vmem:[%s340 + $0xc0] sm:$0xff]
        %v419 = vld [vmem:[%s340 + $0xc8] sm:$0xff]
        %v420 = vld [vmem:[%s340 + $0xd0] sm:$0xff]
        %v421 = vld [vmem:[%s340 + $0xd8] sm:$0xff]
        %v422 = vld [vmem:[%s340 + $0xe0] sm:$0xff]
        %v423 = vld [vmem:[%s340 + $0xe8] sm:$0xff]
        %v424 = vld [vmem:[%s340 + $0xf0] sm:$0xff]
        %v425 = vld [vmem:[%s340 + $0xf8] sm:$0xff]
        %vm426 = vcmask 261120
        %v427 = vsel %vm426, %v394, 0.0
        %v428 = vsel %vm426, %v395, 0.0
        %v429 = vadd.f32 %v427, %v428
        %v430 = vsel %vm426, %v396, 0.0
        %v431 = vadd.f32 %v429, %v430
        %v432 = vsel %vm426, %v397, 0.0
        %v433 = vadd.f32 %v431, %v432
        %v434 = vsel %vm426, %v398, 0.0
        %v435 = vadd.f32 %v433, %v434
        %v436 = vsel %vm426, %v399, 0.0
        %v437 = vadd.f32 %v435, %v436
        %v438 = vsel %vm426, %v400, 0.0
        %v439 = vadd.f32 %v437, %v438
        %v440 = vsel %vm426, %v401, 0.0
        %v441 = vadd.f32 %v439, %v440
        %v442 = vsel %vm426, %v402, 0.0
        %v443 = vadd.f32 %v441, %v442
        %v444 = vsel %vm426, %v403, 0.0
        %v445 = vadd.f32 %v443, %v444
        %v446 = vsel %vm426, %v404, 0.0
        %v447 = vadd.f32 %v445, %v446
        %v448 = vsel %vm426, %v405, 0.0
        %v449 = vadd.f32 %v447, %v448
        %v450 = vsel %vm426, %v406, 0.0
        %v451 = vadd.f32 %v449, %v450
        %v452 = vsel %vm426, %v407, 0.0
        %v453 = vadd.f32 %v451, %v452
        %v454 = vsel %vm426, %v408, 0.0
        %v455 = vadd.f32 %v453, %v454
        %v456 = vsel %vm426, %v409, 0.0
        %v457 = vadd.f32 %v455, %v456
        %v458 = vsel %vm426, %v410, 0.0
        %v459 = vadd.f32 %v457, %v458
        %v460 = vsel %vm426, %v411, 0.0
        %v461 = vadd.f32 %v459, %v460
        %v462 = vsel %vm426, %v412, 0.0
        %v463 = vadd.f32 %v461, %v462
        %v464 = vsel %vm426, %v413, 0.0
        %v465 = vadd.f32 %v463, %v464
        %v466 = vsel %vm426, %v414, 0.0
        %v467 = vadd.f32 %v465, %v466
        %v468 = vsel %vm426, %v415, 0.0
        %v469 = vadd.f32 %v467, %v468
        %v470 = vsel %vm426, %v416, 0.0
        %v471 = vadd.f32 %v469, %v470
        %v472 = vsel %vm426, %v417, 0.0
        %v473 = vadd.f32 %v471, %v472
        %v474 = vsel %vm426, %v418, 0.0
        %v475 = vadd.f32 %v473, %v474
        %v476 = vsel %vm426, %v419, 0.0
        %v477 = vadd.f32 %v475, %v476
        %v478 = vsel %vm426, %v420, 0.0
        %v479 = vadd.f32 %v477, %v478
        %v480 = vsel %vm426, %v421, 0.0
        %v481 = vadd.f32 %v479, %v480
        %v482 = vsel %vm426, %v422, 0.0
        %v483 = vadd.f32 %v481, %v482
        %v484 = vsel %vm426, %v423, 0.0
        %v485 = vadd.f32 %v483, %v484
        %v486 = vsel %vm426, %v424, 0.0
        %v487 = vadd.f32 %v485, %v486
        %v488 = vsel %vm426, %v425, 0.0
        %v489 = vadd.f32 %v487, %v488
        %v490 = vrot.slane %v489, 4
        %v491 = vadd.f32 %v489, %v490
        %v492 = vrot.slane %v491, 2
        %v493 = vadd.f32 %v491, %v492
        %v494 = vrot.slane %v493, 1
        %v495 = vadd.f32 %v493, %v494
        %v496 = vrcp.pop 256.0
        %v497 = vmul.f32 %v495, %v496
        %v498 = vsel %vm426, %v394, -inf
        %v499 = vsel %vm426, %v395, -inf
        %v500 = vsel %vm426, %v396, -inf
        %v501 = vsel %vm426, %v397, -inf
        %v502 = vsel %vm426, %v398, -inf
        %v503 = vmax.f32 %v498, %v502
        %v504 = vsel %vm426, %v399, -inf
        %v505 = vmax.f32 %v499, %v504
        %v506 = vsel %vm426, %v400, -inf
        %v507 = vmax.f32 %v500, %v506
        %v508 = vsel %vm426, %v401, -inf
        %v509 = vmax.f32 %v501, %v508
        %v510 = vsel %vm426, %v402, -inf
        %v511 = vmax.f32 %v503, %v510
        %v512 = vsel %vm426, %v403, -inf
        %v513 = vmax.f32 %v505, %v512
        %v514 = vsel %vm426, %v404, -inf
        %v515 = vmax.f32 %v507, %v514
        %v516 = vsel %vm426, %v405, -inf
        %v517 = vmax.f32 %v509, %v516
        %v518 = vsel %vm426, %v406, -inf
        %v519 = vmax.f32 %v511, %v518
        %v520 = vsel %vm426, %v407, -inf
        %v521 = vmax.f32 %v513, %v520
        %v522 = vsel %vm426, %v408, -inf
        %v523 = vmax.f32 %v515, %v522
        %v524 = vsel %vm426, %v409, -inf
        %v525 = vmax.f32 %v517, %v524
        %v526 = vsel %vm426, %v410, -inf
        %v527 = vmax.f32 %v519, %v526
        %v528 = vsel %vm426, %v411, -inf
        %v529 = vmax.f32 %v521, %v528
        %v530 = vsel %vm426, %v412, -inf
        %v531 = vmax.f32 %v523, %v530
        %v532 = vsel %vm426, %v413, -inf
        %v533 = vmax.f32 %v525, %v532
        %v534 = vsel %vm426, %v414, -inf
        %v535 = vmax.f32 %v527, %v534
        %v536 = vsel %vm426, %v415, -inf
        %v537 = vmax.f32 %v529, %v536
        %v538 = vsel %vm426, %v416, -inf
        %v539 = vmax.f32 %v531, %v538
        %v540 = vsel %vm426, %v417, -inf
        %v541 = vmax.f32 %v533, %v540
        %v542 = vsel %vm426, %v418, -inf
        %v543 = vmax.f32 %v535, %v542
        %v544 = vsel %vm426, %v419, -inf
        %v545 = vmax.f32 %v537, %v544
        %v546 = vsel %vm426, %v420, -inf
        %v547 = vmax.f32 %v539, %v546
        %v548 = vsel %vm426, %v421, -inf
        %v549 = vmax.f32 %v541, %v548
        %v550 = vsel %vm426, %v422, -inf
        %v551 = vmax.f32 %v543, %v550
        %v552 = vsel %vm426, %v423, -inf
        %v553 = vmax.f32 %v545, %v552
        %v554 = vsel %vm426, %v424, -inf
        %v555 = vmax.f32 %v547, %v554
        %v556 = vsel %vm426, %v425, -inf
        %v557 = vmax.f32 %v549, %v556
        %v558 = vmax.f32 %v551, %v553
        %v559 = vmax.f32 %v555, %v557
        %v560 = vmax.f32 %v558, %v559
        %v561 = vrot.slane %v560, 4
        %v562 = vmax.f32 %v560, %v561
        %v563 = vrot.slane %v562, 2
        %v564 = vmax.f32 %v562, %v563
        %v565 = vrot.slane %v564, 1
        %v566 = vmax.f32 %v564, %v565
        %vm567 = vcmask 1040384
        %v568 = vsel %vm567, %v497, %v566
        %v569 = vld [vmem:[%s1] sm:$0xff]
        %v570 = vld [vmem:[%s1 + $0x8] sm:$0xff]
        %v571 = vld [vmem:[%s1 + $0x10] sm:$0xff]
        %v572 = vld [vmem:[%s1 + $0x18] sm:$0xff]
        %v574 = vsel %vm426, %v568, 0
        %576 = vmatprep.subr.mxu0 0.0
        %577 = vmatpush1.msra.mxu0 %v569
        %578 = vmatprep.subr.mxu0 0.0
        %579 = vmatpush1.msra.mxu0 %v570
        %580 = vmatprep.subr.mxu0 0.0
        %581 = vmatpush1.msra.mxu0 %v571
        %582 = vmatprep.subr.mxu0 0.0
        %583 = vmatpush1.msra.mxu0 %v572
        %584 = vmatprep.subr.mxu0 0.0
        %585 = vmatpush1.msra.mxu0 0.0
        %586 = vmatprep.subr.mxu0 0.0
        %587 = vmatpush1.msra.mxu0 0.0
        %588 = vmatprep.subr.mxu0 0.0
        %589 = vmatpush1.msra.mxu0 0.0
        %590 = vmatprep.subr.mxu0 0.0
        %591 = vmatpush1.msra.mxu0 0.0
        %592 = vmatprep.subr.mxu0 0.0
        %593 = vmatpush1.msra.mxu0 0.0
        %594 = vmatprep.subr.mxu0 0.0
        %595 = vmatpush1.msra.mxu0 0.0
        %596 = vmatprep.subr.mxu0 0.0
        %597 = vmatpush1.msra.mxu0 0.0
        %598 = vmatprep.subr.mxu0 0.0
        %599 = vmatpush1.msra.mxu0 0.0
        %600 = vmatprep.subr.mxu0 0.0
        %601 = vmatpush1.msra.mxu0 0.0
        %602 = vmatprep.subr.mxu0 0.0
        %603 = vmatpush1.msra.mxu0 0.0
        %604 = vmatprep.subr.mxu0 0.0
        %605 = vmatpush1.msra.mxu0 0.0
        %606 = vmatprep.subr.mxu0 0.0
        %607 = vmatpush1.msra.mxu0 0.0
        %608 = vmatprep.subr.mxu0 0.0
        %609 = vmatpush1.msra.mxu0 0.0
        %610 = vmatprep.subr.mxu0 0.0
        %611 = vmatpush1.msra.mxu0 0.0
        %612 = vmatprep.subr.mxu0 0.0
        %613 = vmatpush1.msra.mxu0 0.0
        %614 = vmatprep.subr.mxu0 0.0
        %615 = vmatpush1.msra.mxu0 0.0
        %616 = vmatprep.subr.mxu0 0.0
        %617 = vmatpush1.msra.mxu0 0.0
        %618 = vmatprep.subr.mxu0 0.0
        %619 = vmatpush1.msra.mxu0 0.0
        %620 = vmatprep.subr.mxu0 0.0
        %621 = vmatpush1.msra.mxu0 0.0
        %622 = vmatprep.subr.mxu0 0.0
        %623 = vmatpush1.msra.mxu0 0.0
        %624 = vmatprep.subr.mxu0 0.0
        %625 = vmatpush1.msra.mxu0 0.0
        %626 = vmatprep.subr.mxu0 0.0
        %627 = vmatpush1.msra.mxu0 0.0
        %628 = vmatprep.subr.mxu0 0.0
        %629 = vmatpush1.msra.mxu0 0.0
        %630 = vmatprep.subr.mxu0 0.0
        %631 = vmatpush1.msra.mxu0 0.0
        %632 = vmatprep.subr.mxu0 0.0
        %633 = vmatpush1.msra.mxu0 0.0
        %634 = vmatprep.subr.mxu0 0.0
        %635 = vmatpush1.msra.mxu0 0.0
        %636 = vmatprep.subr.mxu0 0.0
        %637 = vmatpush1.msra.mxu0 0.0
        %638 = vmatprep.subr.mxu0 0.0
        %639 = vmatpush1.msra.mxu0 0.0
        %640 = vmatprep.mubr.f32.mxu0 0.0
        %641 = vmatmul.mubr.f32.gmra.mrb[0].mxu0 %v574
        %v642 = vpop.f32.mrb[0].mxu0
        %v643 = vadd.f32 0.0, %v642
        %v644 = vpop.f32.mrb[0].mxu0
        %645 = vdwg.mxu0
        %v646 = vmax.f32 %v643, 0.0
        %v647 = vld [vmem:[#allocation5] sm:$0x3]
        %vm648 = vcmask 15360
        %v650 = vsel %vm648, %v646, 0
        %vm652 = vcmask 1041408
        %v654 = vsel %vm652, %v647, 0
        %656 = vmatprep.subr.mxu0 0.0
        %657 = vmatpush1.msra.mxu0 %v654
        %658 = vmatprep.subr.mxu0 0.0
        %659 = vmatpush1.msra.mxu0 0.0
        %660 = vmatprep.subr.mxu0 0.0
        %661 = vmatpush1.msra.mxu0 0.0
        %662 = vmatprep.subr.mxu0 0.0
        %663 = vmatpush1.msra.mxu0 0.0
        %664 = vmatprep.subr.mxu0 0.0
        %665 = vmatpush1.msra.mxu0 0.0
        %666 = vmatprep.subr.mxu0 0.0
        %667 = vmatpush1.msra.mxu0 0.0
        %668 = vmatprep.subr.mxu0 0.0
        %669 = vmatpush1.msra.mxu0 0.0
        %670 = vmatprep.subr.mxu0 0.0
        %671 = vmatpush1.msra.mxu0 0.0
        %672 = vmatprep.subr.mxu0 0.0
        %673 = vmatpush1.msra.mxu0 0.0
        %674 = vmatprep.subr.mxu0 0.0
        %675 = vmatpush1.msra.mxu0 0.0
        %676 = vmatprep.subr.mxu0 0.0
        %677 = vmatpush1.msra.mxu0 0.0
        %678 = vmatprep.subr.mxu0 0.0
        %679 = vmatpush1.msra.mxu0 0.0
        %680 = vmatprep.subr.mxu0 0.0
        %681 = vmatpush1.msra.mxu0 0.0
        %682 = vmatprep.subr.mxu0 0.0
        %683 = vmatpush1.msra.mxu0 0.0
        %684 = vmatprep.subr.mxu0 0.0
        %685 = vmatpush1.msra.mxu0 0.0
        %686 = vmatprep.subr.mxu0 0.0
        %687 = vmatpush1.msra.mxu0 0.0
        %688 = vmatprep.subr.mxu0 0.0
        %689 = vmatpush1.msra.mxu0 0.0
        %690 = vmatprep.subr.mxu0 0.0
        %691 = vmatpush1.msra.mxu0 0.0
        %692 = vmatprep.subr.mxu0 0.0
        %693 = vmatpush1.msra.mxu0 0.0
        %694 = vmatprep.subr.mxu0 0.0
        %695 = vmatpush1.msra.mxu0 0.0
        %696 = vmatprep.subr.mxu0 0.0
        %697 = vmatpush1.msra.mxu0 0.0
        %698 = vmatprep.subr.mxu0 0.0
        %699 = vmatpush1.msra.mxu0 0.0
        %700 = vmatprep.subr.mxu0 0.0
        %701 = vmatpush1.msra.mxu0 0.0
        %702 = vmatprep.subr.mxu0 0.0
        %703 = vmatpush1.msra.mxu0 0.0
        %704 = vmatprep.subr.mxu0 0.0
        %705 = vmatpush1.msra.mxu0 0.0
        %706 = vmatprep.subr.mxu0 0.0
        %707 = vmatpush1.msra.mxu0 0.0
        %708 = vmatprep.subr.mxu0 0.0
        %709 = vmatpush1.msra.mxu0 0.0
        %710 = vmatprep.subr.mxu0 0.0
        %711 = vmatpush1.msra.mxu0 0.0
        %712 = vmatprep.subr.mxu0 0.0
        %713 = vmatpush1.msra.mxu0 0.0
        %714 = vmatprep.subr.mxu0 0.0
        %715 = vmatpush1.msra.mxu0 0.0
        %716 = vmatprep.subr.mxu0 0.0
        %717 = vmatpush1.msra.mxu0 0.0
        %718 = vmatprep.subr.mxu0 0.0
        %719 = vmatpush1.msra.mxu0 0.0
        %720 = vmatprep.mubr.f32.mxu0 0.0
        %721 = vmatmul.mubr.f32.gmra.mrb[0].mxu0 %v650
        %v722 = vpop.f32.mrb[0].mxu0
        %v723 = vadd.f32 0.0, %v722
        %v724 = vpop.f32.mrb[0].mxu0
        %725 = vdwg.mxu0
        %vm726 = vcmask 254976
        %v727 = vsel %vm726, %v723, 0.0
        %v728 = vrot.slane %v727, 4
        %v729 = vadd.f32 %v727, %v728
        %v730 = vrot.slane %v729, 2
        %v731 = vadd.f32 %v729, %v730
        %v732 = vrot.slane %v731, 1
        %v733 = vadd.f32 %v731, %v732
        %v734 = vxor.u32 %v733, 2147483648
        %v735 = vmul.f32 %v734, 1.442695
        %v736 = vpow.pop %v735
        %v737 = vadd.f32 %v736, 1.0
        %v738 = vrcp.pop %v737
        %v739 = vmul.f32 1.0, %v738
        %v740 = vmul.f32 %v394, %v739
        %v741 = vmul.f32 %v395, %v739
        %v742 = vmul.f32 %v396, %v739
        %v743 = vmul.f32 %v397, %v739
        %v744 = vmul.f32 %v398, %v739
        %v745 = vmul.f32 %v399, %v739
        %v746 = vmul.f32 %v400, %v739
        %v747 = vmul.f32 %v401, %v739
        %v748 = vmul.f32 %v402, %v739
        %v749 = vmul.f32 %v403, %v739
        %v750 = vmul.f32 %v404, %v739
        %v751 = vmul.f32 %v405, %v739
        %v752 = vmul.f32 %v406, %v739
        %v753 = vmul.f32 %v407, %v739
        %v754 = vmul.f32 %v408, %v739
        %v755 = vmul.f32 %v409, %v739
        %v756 = vmul.f32 %v410, %v739
        %v757 = vmul.f32 %v411, %v739
        %v758 = vmul.f32 %v412, %v739
        %v759 = vmul.f32 %v413, %v739
        %v760 = vmul.f32 %v414, %v739
        %v761 = vmul.f32 %v415, %v739
        %v762 = vmul.f32 %v416, %v739
        %v763 = vmul.f32 %v417, %v739
        %v764 = vmul.f32 %v418, %v739
        %v765 = vmul.f32 %v419, %v739
        %v766 = vmul.f32 %v420, %v739
        %v767 = vmul.f32 %v421, %v739
        %v768 = vmul.f32 %v422, %v739
        %v769 = vmul.f32 %v423, %v739
        %v770 = vmul.f32 %v424, %v739
        %v771 = vmul.f32 %v425, %v739
        %v772 = vsel %vm426, %v740, 0.0
        %773 = vadd.xlane.f32.xlu0 %v772
        %v774 = vpop.xlane.xlu0 %773
        %v775 = vsel %vm426, %v741, 0.0
        %776 = vadd.xlane.f32.xlu0 %v775
        %v777 = vpop.xlane.xlu0 %776
        %v778 = vsel %vm426, %v742, 0.0
        %779 = vadd.xlane.f32.xlu0 %v778
        %v780 = vpop.xlane.xlu0 %779
        %v781 = vsel %vm426, %v743, 0.0
        %782 = vadd.xlane.f32.xlu0 %v781
        %v783 = vpop.xlane.xlu0 %782
        %v784 = vsel %vm426, %v744, 0.0
        %785 = vadd.xlane.f32.xlu0 %v784
        %v786 = vpop.xlane.xlu0 %785
        %v787 = vsel %vm426, %v745, 0.0
        %788 = vadd.xlane.f32.xlu0 %v787
        %v789 = vpop.xlane.xlu0 %788
        %v790 = vsel %vm426, %v746, 0.0
        %791 = vadd.xlane.f32.xlu0 %v790
        %v792 = vpop.xlane.xlu0 %791
        %v793 = vsel %vm426, %v747, 0.0
        %794 = vadd.xlane.f32.xlu0 %v793
        %v795 = vpop.xlane.xlu0 %794
        %v796 = vsel %vm426, %v748, 0.0
        %797 = vadd.xlane.f32.xlu0 %v796
        %v798 = vpop.xlane.xlu0 %797
        %v799 = vsel %vm426, %v749, 0.0
        %800 = vadd.xlane.f32.xlu0 %v799
        %v801 = vpop.xlane.xlu0 %800
        %v802 = vsel %vm426, %v750, 0.0
        %803 = vadd.xlane.f32.xlu0 %v802
        %v804 = vpop.xlane.xlu0 %803
        %v805 = vsel %vm426, %v751, 0.0
        %806 = vadd.xlane.f32.xlu0 %v805
        %v807 = vpop.xlane.xlu0 %806
        %v808 = vsel %vm426, %v752, 0.0
        %809 = vadd.xlane.f32.xlu0 %v808
        %v810 = vpop.xlane.xlu0 %809
        %v811 = vsel %vm426, %v753, 0.0
        %812 = vadd.xlane.f32.xlu0 %v811
        %v813 = vpop.xlane.xlu0 %812
        %v814 = vsel %vm426, %v754, 0.0
        %815 = vadd.xlane.f32.xlu0 %v814
        %v816 = vpop.xlane.xlu0 %815
        %v817 = vsel %vm426, %v755, 0.0
        %818 = vadd.xlane.f32.xlu0 %v817
        %v819 = vpop.xlane.xlu0 %818
        %v820 = vsel %vm426, %v756, 0.0
        %821 = vadd.xlane.f32.xlu0 %v820
        %v822 = vpop.xlane.xlu0 %821
        %v823 = vsel %vm426, %v757, 0.0
        %824 = vadd.xlane.f32.xlu0 %v823
        %v825 = vpop.xlane.xlu0 %824
        %v826 = vsel %vm426, %v758, 0.0
        %827 = vadd.xlane.f32.xlu0 %v826
        %v828 = vpop.xlane.xlu0 %827
        %v829 = vsel %vm426, %v759, 0.0
        %830 = vadd.xlane.f32.xlu0 %v829
        %v831 = vpop.xlane.xlu0 %830
        %v832 = vsel %vm426, %v760, 0.0
        %833 = vadd.xlane.f32.xlu0 %v832
        %v834 = vpop.xlane.xlu0 %833
        %v835 = vsel %vm426, %v761, 0.0
        %836 = vadd.xlane.f32.xlu0 %v835
        %v837 = vpop.xlane.xlu0 %836
        %v838 = vsel %vm426, %v762, 0.0
        %839 = vadd.xlane.f32.xlu0 %v838
        %v840 = vpop.xlane.xlu0 %839
        %v841 = vsel %vm426, %v763, 0.0
        %842 = vadd.xlane.f32.xlu0 %v841
        %v843 = vpop.xlane.xlu0 %842
        %v844 = vsel %vm426, %v764, 0.0
        %845 = vadd.xlane.f32.xlu0 %v844
        %v846 = vpop.xlane.xlu0 %845
        %v847 = vsel %vm426, %v765, 0.0
        %848 = vadd.xlane.f32.xlu0 %v847
        %v849 = vpop.xlane.xlu0 %848
        %v850 = vsel %vm426, %v766, 0.0
        %851 = vadd.xlane.f32.xlu0 %v850
        %v852 = vpop.xlane.xlu0 %851
        %v853 = vsel %vm426, %v767, 0.0
        %854 = vadd.xlane.f32.xlu0 %v853
        %v855 = vpop.xlane.xlu0 %854
        %v856 = vsel %vm426, %v768, 0.0
        %857 = vadd.xlane.f32.xlu0 %v856
        %v858 = vpop.xlane.xlu0 %857
        %v859 = vsel %vm426, %v769, 0.0
        %860 = vadd.xlane.f32.xlu0 %v859
        %v861 = vpop.xlane.xlu0 %860
        %v862 = vsel %vm426, %v770, 0.0
        %863 = vadd.xlane.f32.xlu0 %v862
        %v864 = vpop.xlane.xlu0 %863
        %v865 = vsel %vm426, %v771, 0.0
        %866 = vadd.xlane.f32.xlu0 %v865
        %v867 = vpop.xlane.xlu0 %866
        %v868 = vrcp.pop 32.0
        %v869 = vmul.f32 %v774, %v868
        %v870 = vmul.f32 %v777, %v868
        %v871 = vmul.f32 %v780, %v868
        %v872 = vmul.f32 %v783, %v868
        %v873 = vmul.f32 %v786, %v868
        %v874 = vmul.f32 %v789, %v868
        %v875 = vmul.f32 %v792, %v868
        %v876 = vmul.f32 %v795, %v868
        %v877 = vmul.f32 %v798, %v868
        %v878 = vmul.f32 %v801, %v868
        %v879 = vmul.f32 %v804, %v868
        %v880 = vmul.f32 %v807, %v868
        %v881 = vmul.f32 %v810, %v868
        %v882 = vmul.f32 %v813, %v868
        %v883 = vmul.f32 %v816, %v868
        %v884 = vmul.f32 %v819, %v868
        %v885 = vmul.f32 %v822, %v868
        %v886 = vmul.f32 %v825, %v868
        %v887 = vmul.f32 %v828, %v868
        %v888 = vmul.f32 %v831, %v868
        %v889 = vmul.f32 %v834, %v868
        %v890 = vmul.f32 %v837, %v868
        %v891 = vmul.f32 %v840, %v868
        %v892 = vmul.f32 %v843, %v868
        %v893 = vmul.f32 %v846, %v868
        %v894 = vmul.f32 %v849, %v868
        %v895 = vmul.f32 %v852, %v868
        %v896 = vmul.f32 %v855, %v868
        %v897 = vmul.f32 %v858, %v868
        %v898 = vmul.f32 %v861, %v868
        %v899 = vmul.f32 %v864, %v868
        %v900 = vmul.f32 %v867, %v868
        %v901 = vsel %vm426, %v740, -inf
        %902 = vmax.xlane.f32.xlu0 %v901
        %v903 = vpop.xlane.xlu0 %902
        %v904 = vsel %vm426, %v741, -inf
        %905 = vmax.xlane.f32.xlu0 %v904
        %v906 = vpop.xlane.xlu0 %905
        %v907 = vsel %vm426, %v742, -inf
        %908 = vmax.xlane.f32.xlu0 %v907
        %v909 = vpop.xlane.xlu0 %908
        %v910 = vsel %vm426, %v743, -inf
        %911 = vmax.xlane.f32.xlu0 %v910
        %v912 = vpop.xlane.xlu0 %911
        %v913 = vsel %vm426, %v744, -inf
        %914 = vmax.xlane.f32.xlu0 %v913
        %v915 = vpop.xlane.xlu0 %914
        %v916 = vsel %vm426, %v745, -inf
        %917 = vmax.xlane.f32.xlu0 %v916
        %v918 = vpop.xlane.xlu0 %917
        %v919 = vsel %vm426, %v746, -inf
        %920 = vmax.xlane.f32.xlu0 %v919
        %v921 = vpop.xlane.xlu0 %920
        %v922 = vsel %vm426, %v747, -inf
        %923 = vmax.xlane.f32.xlu0 %v922
        %v924 = vpop.xlane.xlu0 %923
        %v925 = vsel %vm426, %v748, -inf
        %926 = vmax.xlane.f32.xlu0 %v925
        %v927 = vpop.xlane.xlu0 %926
        %v928 = vsel %vm426, %v749, -inf
        %929 = vmax.xlane.f32.xlu0 %v928
        %v930 = vpop.xlane.xlu0 %929
        %v931 = vsel %vm426, %v750, -inf
        %932 = vmax.xlane.f32.xlu0 %v931
        %v933 = vpop.xlane.xlu0 %932
        %v934 = vsel %vm426, %v751, -inf
        %935 = vmax.xlane.f32.xlu0 %v934
        %v936 = vpop.xlane.xlu0 %935
        %v937 = vsel %vm426, %v752, -inf
        %938 = vmax.xlane.f32.xlu0 %v937
        %v939 = vpop.xlane.xlu0 %938
        %v940 = vsel %vm426, %v753, -inf
        %941 = vmax.xlane.f32.xlu0 %v940
        %v942 = vpop.xlane.xlu0 %941
        %v943 = vsel %vm426, %v754, -inf
        %944 = vmax.xlane.f32.xlu0 %v943
        %v945 = vpop.xlane.xlu0 %944
        %v946 = vsel %vm426, %v755, -inf
        %947 = vmax.xlane.f32.xlu0 %v946
        %v948 = vpop.xlane.xlu0 %947
        %v949 = vsel %vm426, %v756, -inf
        %950 = vmax.xlane.f32.xlu0 %v949
        %v951 = vpop.xlane.xlu0 %950
        %v952 = vsel %vm426, %v757, -inf
        %953 = vmax.xlane.f32.xlu0 %v952
        %v954 = vpop.xlane.xlu0 %953
        %v955 = vsel %vm426, %v758, -inf
        %956 = vmax.xlane.f32.xlu0 %v955
        %v957 = vpop.xlane.xlu0 %956
        %v958 = vsel %vm426, %v759, -inf
        %959 = vmax.xlane.f32.xlu0 %v958
        %v960 = vpop.xlane.xlu0 %959
        %v961 = vsel %vm426, %v760, -inf
        %962 = vmax.xlane.f32.xlu0 %v961
        %v963 = vpop.xlane.xlu0 %962
        %v964 = vsel %vm426, %v761, -inf
        %965 = vmax.xlane.f32.xlu0 %v964
        %v966 = vpop.xlane.xlu0 %965
        %v967 = vsel %vm426, %v762, -inf
        %968 = vmax.xlane.f32.xlu0 %v967
        %v969 = vpop.xlane.xlu0 %968
        %v970 = vsel %vm426, %v763, -inf
        %971 = vmax.xlane.f32.xlu0 %v970
        %v972 = vpop.xlane.xlu0 %971
        %v973 = vsel %vm426, %v764, -inf
        %974 = vmax.xlane.f32.xlu0 %v973
        %v975 = vpop.xlane.xlu0 %974
        %v976 = vsel %vm426, %v765, -inf
        %977 = vmax.xlane.f32.xlu0 %v976
        %v978 = vpop.xlane.xlu0 %977
        %v979 = vsel %vm426, %v766, -inf
        %980 = vmax.xlane.f32.xlu0 %v979
        %v981 = vpop.xlane.xlu0 %980
        %v982 = vsel %vm426, %v767, -inf
        %983 = vmax.xlane.f32.xlu0 %v982
        %v984 = vpop.xlane.xlu0 %983
        %v985 = vsel %vm426, %v768, -inf
        %986 = vmax.xlane.f32.xlu0 %v985
        %v987 = vpop.xlane.xlu0 %986
        %v988 = vsel %vm426, %v769, -inf
        %989 = vmax.xlane.f32.xlu0 %v988
        %v990 = vpop.xlane.xlu0 %989
        %v991 = vsel %vm426, %v770, -inf
        %992 = vmax.xlane.f32.xlu0 %v991
        %v993 = vpop.xlane.xlu0 %992
        %v994 = vsel %vm426, %v771, -inf
        %995 = vmax.xlane.f32.xlu0 %v994
        %v996 = vpop.xlane.xlu0 %995
        %v1029 = vlaneseq
        %v1030 = vand.u32 %v1029, 127
        %v1031 = vadd.s32 %v1030, 4294967293
        %v1032 = vlaneseq
        %v1033 = vshrl.u32 %v1032, 7
        %v1034 = vsub.s32 %v1031, %v1033
        %v1035 = vrot.slane %v869, %v1034
        %v1036 = vadd.s32 %v1030, 4294967285
        %v1037 = vlaneseq
        %v1038 = vshrl.u32 %v1037, 7
        %v1039 = vsub.s32 %v1036, %v1038
        %v1040 = vrot.slane %v870, %v1039
        %vm1041 = vcmask 154712
        %v1042 = vsel %vm1041, %v1040, %v1035
        %v1043 = vlaneseq
        %v1044 = vshrl.u32 %v1043, 7
        %v1045 = vsub.s32 %v1031, %v1044
        %v1046 = vrot.slane %v871, %v1045
        %v1047 = vlaneseq
        %v1048 = vshrl.u32 %v1047, 7
        %v1049 = vsub.s32 %v1036, %v1048
        %v1050 = vrot.slane %v872, %v1049
        %v1051 = vsel %vm1041, %v1050, %v1046
        %v1052 = vlaneseq
        %v1053 = vshrl.u32 %v1052, 7
        %v1054 = vsub.s32 %v1031, %v1053
        %v1055 = vrot.slane %v873, %v1054
        %v1056 = vlaneseq
        %v1057 = vshrl.u32 %v1056, 7
        %v1058 = vsub.s32 %v1036, %v1057
        %v1059 = vrot.slane %v874, %v1058
        %v1060 = vsel %vm1041, %v1059, %v1055
        %v1061 = vlaneseq
        %v1062 = vshrl.u32 %v1061, 7
        %v1063 = vsub.s32 %v1031, %v1062
        %v1064 = vrot.slane %v875, %v1063
        %v1065 = vlaneseq
        %v1066 = vshrl.u32 %v1065, 7
        %v1067 = vsub.s32 %v1036, %v1066
        %v1068 = vrot.slane %v876, %v1067
        %v1069 = vsel %vm1041, %v1068, %v1064
        %v1070 = vlaneseq
        %v1071 = vshrl.u32 %v1070, 7
        %v1072 = vsub.s32 %v1031, %v1071
        %v1073 = vrot.slane %v877, %v1072
        %v1074 = vlaneseq
        %v1075 = vshrl.u32 %v1074, 7
        %v1076 = vsub.s32 %v1036, %v1075
        %v1077 = vrot.slane %v878, %v1076
        %v1078 = vsel %vm1041, %v1077, %v1073
        %v1079 = vlaneseq
        %v1080 = vshrl.u32 %v1079, 7
        %v1081 = vsub.s32 %v1031, %v1080
        %v1082 = vrot.slane %v879, %v1081
        %v1083 = vlaneseq
        %v1084 = vshrl.u32 %v1083, 7
        %v1085 = vsub.s32 %v1036, %v1084
        %v1086 = vrot.slane %v880, %v1085
        %v1087 = vsel %vm1041, %v1086, %v1082
        %v1088 = vlaneseq
        %v1089 = vshrl.u32 %v1088, 7
        %v1090 = vsub.s32 %v1031, %v1089
        %v1091 = vrot.slane %v881, %v1090
        %v1092 = vlaneseq
        %v1093 = vshrl.u32 %v1092, 7
        %v1094 = vsub.s32 %v1036, %v1093
        %v1095 = vrot.slane %v882, %v1094
        %v1096 = vsel %vm1041, %v1095, %v1091
        %v1097 = vlaneseq
        %v1098 = vshrl.u32 %v1097, 7
        %v1099 = vsub.s32 %v1031, %v1098
        %v1100 = vrot.slane %v883, %v1099
        %v1101 = vlaneseq
        %v1102 = vshrl.u32 %v1101, 7
        %v1103 = vsub.s32 %v1036, %v1102
        %v1104 = vrot.slane %v884, %v1103
        %v1105 = vsel %vm1041, %v1104, %v1100
        %v1106 = vlaneseq
        %v1107 = vshrl.u32 %v1106, 7
        %v1108 = vsub.s32 %v1031, %v1107
        %v1109 = vrot.slane %v885, %v1108
        %v1110 = vlaneseq
        %v1111 = vshrl.u32 %v1110, 7
        %v1112 = vsub.s32 %v1036, %v1111
        %v1113 = vrot.slane %v886, %v1112
        %v1114 = vsel %vm1041, %v1113, %v1109
        %v1115 = vlaneseq
        %v1116 = vshrl.u32 %v1115, 7
        %v1117 = vsub.s32 %v1031, %v1116
        %v1118 = vrot.slane %v887, %v1117
        %v1119 = vlaneseq
        %v1120 = vshrl.u32 %v1119, 7
        %v1121 = vsub.s32 %v1036, %v1120
        %v1122 = vrot.slane %v888, %v1121
        %v1123 = vsel %vm1041, %v1122, %v1118
        %v1124 = vlaneseq
        %v1125 = vshrl.u32 %v1124, 7
        %v1126 = vsub.s32 %v1031, %v1125
        %v1127 = vrot.slane %v889, %v1126
        %v1128 = vlaneseq
        %v1129 = vshrl.u32 %v1128, 7
        %v1130 = vsub.s32 %v1036, %v1129
        %v1131 = vrot.slane %v890, %v1130
        %v1132 = vsel %vm1041, %v1131, %v1127
        %v1133 = vlaneseq
        %v1134 = vshrl.u32 %v1133, 7
        %v1135 = vsub.s32 %v1031, %v1134
        %v1136 = vrot.slane %v891, %v1135
        %v1137 = vlaneseq
        %v1138 = vshrl.u32 %v1137, 7
        %v1139 = vsub.s32 %v1036, %v1138
        %v1140 = vrot.slane %v892, %v1139
        %v1141 = vsel %vm1041, %v1140, %v1136
        %v1142 = vlaneseq
        %v1143 = vshrl.u32 %v1142, 7
        %v1144 = vsub.s32 %v1031, %v1143
        %v1145 = vrot.slane %v893, %v1144
        %v1146 = vlaneseq
        %v1147 = vshrl.u32 %v1146, 7
        %v1148 = vsub.s32 %v1036, %v1147
        %v1149 = vrot.slane %v894, %v1148
        %v1150 = vsel %vm1041, %v1149, %v1145
        %v1151 = vlaneseq
        %v1152 = vshrl.u32 %v1151, 7
        %v1153 = vsub.s32 %v1031, %v1152
        %v1154 = vrot.slane %v895, %v1153
        %v1155 = vlaneseq
        %v1156 = vshrl.u32 %v1155, 7
        %v1157 = vsub.s32 %v1036, %v1156
        %v1158 = vrot.slane %v896, %v1157
        %v1159 = vsel %vm1041, %v1158, %v1154
        %v1160 = vlaneseq
        %v1161 = vshrl.u32 %v1160, 7
        %v1162 = vsub.s32 %v1031, %v1161
        %v1163 = vrot.slane %v897, %v1162
        %v1164 = vlaneseq
        %v1165 = vshrl.u32 %v1164, 7
        %v1166 = vsub.s32 %v1036, %v1165
        %v1167 = vrot.slane %v898, %v1166
        %v1168 = vsel %vm1041, %v1167, %v1163
        %v1169 = vlaneseq
        %v1170 = vshrl.u32 %v1169, 7
        %v1171 = vsub.s32 %v1031, %v1170
        %v1172 = vrot.slane %v899, %v1171
        %v1173 = vlaneseq
        %v1174 = vshrl.u32 %v1173, 7
        %v1175 = vsub.s32 %v1036, %v1174
        %v1176 = vrot.slane %v900, %v1175
        %v1177 = vsel %vm1041, %v1176, %v1172
        %vm1178 = vcmask 1041409
        %v1179 = vsel %vm1178, %v1051, %v1042
        %vm1180 = vcmask 1042434
        %v1181 = vsel %vm1180, %v1060, %v1179
        %vm1182 = vcmask 1043459
        %v1183 = vsel %vm1182, %v1069, %v1181
        %vm1184 = vcmask 1044484
        %v1185 = vsel %vm1184, %v1078, %v1183
        %vm1186 = vcmask 1045509
        %v1187 = vsel %vm1186, %v1087, %v1185
        %vm1188 = vcmask 1046534
        %v1189 = vsel %vm1188, %v1096, %v1187
        %vm1190 = vcmask 1047559
        %v1191 = vsel %vm1190, %v1105, %v1189
        %v1192 = vsel %vm1178, %v1123, %v1114
        %v1193 = vsel %vm1180, %v1132, %v1192
        %v1194 = vsel %vm1182, %v1141, %v1193
        %v1195 = vsel %vm1184, %v1150, %v1194
        %v1196 = vsel %vm1186, %v1159, %v1195
        %v1197 = vsel %vm1188, %v1168, %v1196
        %v1198 = vsel %vm1190, %v1177, %v1197
        %vm1201 = vcmask 23552
        %v1202 = vsel %vm1201, 0.0, %v1191
        %v1203 = vsel %vm1201, 0.0, %v1198
        %vm1204 = vcmask 154624
        %v1205 = vsel %vm1204, %v1202, 0.0
        %v1206 = vsel %vm1204, %v1203, 0.0
        %vm1209 = vcmask 1042432
        %v1210 = vrot.slane %v1205, 5
        %v1211 = vrot.slane %v1206, 5
        %v1212 = vsel %vm1209, %v1210, %v1211
        %v1216 = vsel %vm1209, 0.0, %v1210
        %v1217 = vsel %vm1209, %v1211, 0.0
        %v1250 = vlaneseq
        %v1251 = vshrl.u32 %v1250, 7
        %v1252 = vsub.s32 %v1031, %v1251
        %v1253 = vrot.slane %v903, %v1252
        %v1254 = vlaneseq
        %v1255 = vshrl.u32 %v1254, 7
        %v1256 = vsub.s32 %v1036, %v1255
        %v1257 = vrot.slane %v906, %v1256
        %v1258 = vsel %vm1041, %v1257, %v1253
        %v1259 = vlaneseq
        %v1260 = vshrl.u32 %v1259, 7
        %v1261 = vsub.s32 %v1031, %v1260
        %v1262 = vrot.slane %v909, %v1261
        %v1263 = vlaneseq
        %v1264 = vshrl.u32 %v1263, 7
        %v1265 = vsub.s32 %v1036, %v1264
        %v1266 = vrot.slane %v912, %v1265
        %v1267 = vsel %vm1041, %v1266, %v1262
        %v1268 = vlaneseq
        %v1269 = vshrl.u32 %v1268, 7
        %v1270 = vsub.s32 %v1031, %v1269
        %v1271 = vrot.slane %v915, %v1270
        %v1272 = vlaneseq
        %v1273 = vshrl.u32 %v1272, 7
        %v1274 = vsub.s32 %v1036, %v1273
        %v1275 = vrot.slane %v918, %v1274
        %v1276 = vsel %vm1041, %v1275, %v1271
        %v1277 = vlaneseq
        %v1278 = vshrl.u32 %v1277, 7
        %v1279 = vsub.s32 %v1031, %v1278
        %v1280 = vrot.slane %v921, %v1279
        %v1281 = vlaneseq
        %v1282 = vshrl.u32 %v1281, 7
        %v1283 = vsub.s32 %v1036, %v1282
        %v1284 = vrot.slane %v924, %v1283
        %v1285 = vsel %vm1041, %v1284, %v1280
        %v1286 = vlaneseq
        %v1287 = vshrl.u32 %v1286, 7
        %v1288 = vsub.s32 %v1031, %v1287
        %v1289 = vrot.slane %v927, %v1288
        %v1290 = vlaneseq
        %v1291 = vshrl.u32 %v1290, 7
        %v1292 = vsub.s32 %v1036, %v1291
        %v1293 = vrot.slane %v930, %v1292
        %v1294 = vsel %vm1041, %v1293, %v1289
        %v1295 = vlaneseq
        %v1296 = vshrl.u32 %v1295, 7
        %v1297 = vsub.s32 %v1031, %v1296
        %v1298 = vrot.slane %v933, %v1297
        %v1299 = vlaneseq
        %v1300 = vshrl.u32 %v1299, 7
        %v1301 = vsub.s32 %v1036, %v1300
        %v1302 = vrot.slane %v936, %v1301
        %v1303 = vsel %vm1041, %v1302, %v1298
        %v1304 = vlaneseq
        %v1305 = vshrl.u32 %v1304, 7
        %v1306 = vsub.s32 %v1031, %v1305
        %v1307 = vrot.slane %v939, %v1306
        %v1308 = vlaneseq
        %v1309 = vshrl.u32 %v1308, 7
        %v1310 = vsub.s32 %v1036, %v1309
        %v1311 = vrot.slane %v942, %v1310
        %v1312 = vsel %vm1041, %v1311, %v1307
        %v1313 = vlaneseq
        %v1314 = vshrl.u32 %v1313, 7
        %v1315 = vsub.s32 %v1031, %v1314
        %v1316 = vrot.slane %v945, %v1315
        %v1317 = vlaneseq
        %v1318 = vshrl.u32 %v1317, 7
        %v1319 = vsub.s32 %v1036, %v1318
        %v1320 = vrot.slane %v948, %v1319
        %v1321 = vsel %vm1041, %v1320, %v1316
        %v1322 = vlaneseq
        %v1323 = vshrl.u32 %v1322, 7
        %v1324 = vsub.s32 %v1031, %v1323
        %v1325 = vrot.slane %v951, %v1324
        %v1326 = vlaneseq
        %v1327 = vshrl.u32 %v1326, 7
        %v1328 = vsub.s32 %v1036, %v1327
        %v1329 = vrot.slane %v954, %v1328
        %v1330 = vsel %vm1041, %v1329, %v1325
        %v1331 = vlaneseq
        %v1332 = vshrl.u32 %v1331, 7
        %v1333 = vsub.s32 %v1031, %v1332
        %v1334 = vrot.slane %v957, %v1333
        %v1335 = vlaneseq
        %v1336 = vshrl.u32 %v1335, 7
        %v1337 = vsub.s32 %v1036, %v1336
        %v1338 = vrot.slane %v960, %v1337
        %v1339 = vsel %vm1041, %v1338, %v1334
        %v1340 = vlaneseq
        %v1341 = vshrl.u32 %v1340, 7
        %v1342 = vsub.s32 %v1031, %v1341
        %v1343 = vrot.slane %v963, %v1342
        %v1344 = vlaneseq
        %v1345 = vshrl.u32 %v1344, 7
        %v1346 = vsub.s32 %v1036, %v1345
        %v1347 = vrot.slane %v966, %v1346
        %v1348 = vsel %vm1041, %v1347, %v1343
        %v1349 = vlaneseq
        %v1350 = vshrl.u32 %v1349, 7
        %v1351 = vsub.s32 %v1031, %v1350
        %v1352 = vrot.slane %v969, %v1351
        %v1353 = vlaneseq
        %v1354 = vshrl.u32 %v1353, 7
        %v1355 = vsub.s32 %v1036, %v1354
        %v1356 = vrot.slane %v972, %v1355
        %v1357 = vsel %vm1041, %v1356, %v1352
        %v1358 = vlaneseq
        %v1359 = vshrl.u32 %v1358, 7
        %v1360 = vsub.s32 %v1031, %v1359
        %v1361 = vrot.slane %v975, %v1360
        %v1362 = vlaneseq
        %v1363 = vshrl.u32 %v1362, 7
        %v1364 = vsub.s32 %v1036, %v1363
        %v1365 = vrot.slane %v978, %v1364
        %v1366 = vsel %vm1041, %v1365, %v1361
        %v1367 = vlaneseq
        %v1368 = vshrl.u32 %v1367, 7
        %v1369 = vsub.s32 %v1031, %v1368
        %v1370 = vrot.slane %v981, %v1369
        %v1371 = vlaneseq
        %v1372 = vshrl.u32 %v1371, 7
        %v1373 = vsub.s32 %v1036, %v1372
        %v1374 = vrot.slane %v984, %v1373
        %v1375 = vsel %vm1041, %v1374, %v1370
        %v1376 = vlaneseq
        %v1377 = vshrl.u32 %v1376, 7
        %v1378 = vsub.s32 %v1031, %v1377
        %v1379 = vrot.slane %v987, %v1378
        %v1380 = vlaneseq
        %v1381 = vshrl.u32 %v1380, 7
        %v1382 = vsub.s32 %v1036, %v1381
        %v1383 = vrot.slane %v990, %v1382
        %v1384 = vsel %vm1041, %v1383, %v1379
        %v1385 = vlaneseq
        %v1386 = vshrl.u32 %v1385, 7
        %v1387 = vsub.s32 %v1031, %v1386
        %v1388 = vrot.slane %v993, %v1387
        %v1389 = vlaneseq
        %v1390 = vshrl.u32 %v1389, 7
        %v1391 = vsub.s32 %v1036, %v1390
        %v1392 = vrot.slane %v996, %v1391
        %v1393 = vsel %vm1041, %v1392, %v1388
        %v1394 = vsel %vm1178, %v1267, %v1258
        %v1395 = vsel %vm1180, %v1276, %v1394
        %v1396 = vsel %vm1182, %v1285, %v1395
        %v1397 = vsel %vm1184, %v1294, %v1396
        %v1398 = vsel %vm1186, %v1303, %v1397
        %v1399 = vsel %vm1188, %v1312, %v1398
        %v1400 = vsel %vm1190, %v1321, %v1399
        %v1401 = vsel %vm1178, %v1339, %v1330
        %v1402 = vsel %vm1180, %v1348, %v1401
        %v1403 = vsel %vm1182, %v1357, %v1402
        %v1404 = vsel %vm1184, %v1366, %v1403
        %v1405 = vsel %vm1186, %v1375, %v1404
        %v1406 = vsel %vm1188, %v1384, %v1405
        %v1407 = vsel %vm1190, %v1393, %v1406
        %v1410 = vsel %vm1201, 0.0, %v1400
        %v1411 = vsel %vm1201, 0.0, %v1407
        %v1412 = vsel %vm1204, %v1410, 0.0
        %v1413 = vsel %vm1204, %v1411, 0.0
        %v1416 = vrot.slane %v1412, 5
        %v1417 = vrot.slane %v1413, 5
        %v1418 = vsel %vm1209, %v1416, %v1417
        %v1421 = vsel %vm1209, 0.0, %v1416
        %v1422 = vsel %vm1209, %v1417, 0.0
        %1425 = vrot.lane.b32.xlu0 %v1421, 22
        %v1426 = vpop.permute.xlu0 %1425
        %1427 = vrot.lane.b32.xlu0 %v1418, 22
        %v1428 = vpop.permute.xlu0 %1427
        %1429 = vrot.lane.b32.xlu0 %v1422, 22
        %v1430 = vpop.permute.xlu0 %1429
        %vm1434 = vcmask 179200
        %v1435 = vsel %vm1434, %v1216, %v1426
        %v1436 = vsel %vm1434, %v1212, %v1428
        %v1437 = vsel %vm1434, %v1217, %v1430
        %v1438 = vld [vmem:[%s3] sm:$0xff]
        %v1439 = vld [vmem:[%s3 + $0x8] sm:$0xff]
        %v1440 = vld [vmem:[%s3 + $0x10] sm:$0xff]
        %v1441 = vld [vmem:[%s3 + $0x18] sm:$0xff]
        %v1442 = vld [vmem:[%s3 + $0x20] sm:$0xff]
        %v1443 = vld [vmem:[%s3 + $0x28] sm:$0xf]
        %s1444 = scalar_lea.vmem %s3, 48
        %v1445 = vld [vmem:[%s1444] sm:$0xff]
        %v1446 = vld [vmem:[%s1444 + $0x8] sm:$0xff]
        %v1447 = vld [vmem:[%s1444 + $0x10] sm:$0xff]
        %v1448 = vld [vmem:[%s1444 + $0x18] sm:$0xff]
        %v1449 = vld [vmem:[%s1444 + $0x20] sm:$0xff]
        %v1450 = vld [vmem:[%s1444 + $0x28] sm:$0xf]
        %vm1454 = vcmask 1046528
        %v1455 = vrot.slane %v1435, 1
        %v1456 = vrot.slane %v1436, 1
        %v1457 = vsel %vm1454, %v1455, %v1456
        %v1458 = vrot.slane %v1437, 1
        %v1459 = vsel %vm1454, %v1456, %v1458
        %vm1460 = vcmask 359424
        %v1461 = vsel %vm1460, %v1457, 0
        %v1463 = vsel %vm1460, %v1459, 0
        %vm1465 = vcmask 1043456
        %v1467 = vsel %vm1465, %v1450, 0
        %1469 = vmatprep.subr.mxu0 0.0
        %1470 = vmatpush1.msra.mxu0 %v1445
        %1471 = vmatprep.subr.mxu0 0.0
        %1472 = vmatpush1.msra.mxu0 %v1446
        %1473 = vmatprep.subr.mxu0 0.0
        %1474 = vmatpush1.msra.mxu0 %v1447
        %1475 = vmatprep.subr.mxu0 0.0
        %1476 = vmatpush1.msra.mxu0 %v1448
        %1477 = vmatprep.subr.mxu0 0.0
        %1478 = vmatpush1.msra.mxu0 %v1449
        %1479 = vmatprep.subr.mxu0 0.0
        %1480 = vmatpush1.msra.mxu0 %v1467
        %1481 = vmatprep.subr.mxu0 0.0
        %1482 = vmatpush1.msra.mxu0 0.0
        %1483 = vmatprep.subr.mxu0 0.0
        %1484 = vmatpush1.msra.mxu0 0.0
        %1485 = vmatprep.subr.mxu0 0.0
        %1486 = vmatpush1.msra.mxu0 0.0
        %1487 = vmatprep.subr.mxu0 0.0
        %1488 = vmatpush1.msra.mxu0 0.0
        %1489 = vmatprep.subr.mxu0 0.0
        %1490 = vmatpush1.msra.mxu0 0.0
        %1491 = vmatprep.subr.mxu0 0.0
        %1492 = vmatpush1.msra.mxu0 0.0
        %1493 = vmatprep.subr.mxu0 0.0
        %1494 = vmatpush1.msra.mxu0 0.0
        %1495 = vmatprep.subr.mxu0 0.0
        %1496 = vmatpush1.msra.mxu0 0.0
        %1497 = vmatprep.subr.mxu0 0.0
        %1498 = vmatpush1.msra.mxu0 0.0
        %1499 = vmatprep.subr.mxu0 0.0
        %1500 = vmatpush1.msra.mxu0 0.0
        %1501 = vmatprep.subr.mxu0 0.0
        %1502 = vmatpush1.msra.mxu0 0.0
        %1503 = vmatprep.subr.mxu0 0.0
        %1504 = vmatpush1.msra.mxu0 0.0
        %1505 = vmatprep.subr.mxu0 0.0
        %1506 = vmatpush1.msra.mxu0 0.0
        %1507 = vmatprep.subr.mxu0 0.0
        %1508 = vmatpush1.msra.mxu0 0.0
        %1509 = vmatprep.subr.mxu0 0.0
        %1510 = vmatpush1.msra.mxu0 0.0
        %1511 = vmatprep.subr.mxu0 0.0
        %1512 = vmatpush1.msra.mxu0 0.0
        %1513 = vmatprep.subr.mxu0 0.0
        %1514 = vmatpush1.msra.mxu0 0.0
        %1515 = vmatprep.subr.mxu0 0.0
        %1516 = vmatpush1.msra.mxu0 0.0
        %1517 = vmatprep.subr.mxu0 0.0
        %1518 = vmatpush1.msra.mxu0 0.0
        %1519 = vmatprep.subr.mxu0 0.0
        %1520 = vmatpush1.msra.mxu0 0.0
        %1521 = vmatprep.subr.mxu0 0.0
        %1522 = vmatpush1.msra.mxu0 0.0
        %1523 = vmatprep.subr.mxu0 0.0
        %1524 = vmatpush1.msra.mxu0 0.0
        %1525 = vmatprep.subr.mxu0 0.0
        %1526 = vmatpush1.msra.mxu0 0.0
        %1527 = vmatprep.subr.mxu0 0.0
        %1528 = vmatpush1.msra.mxu0 0.0
        %1529 = vmatprep.subr.mxu0 0.0
        %1530 = vmatpush1.msra.mxu0 0.0
        %1531 = vmatprep.subr.mxu0 0.0
        %1532 = vmatpush1.msra.mxu0 0.0
        %1533 = vmatprep.mubr.f32.mxu0 0.0
        %1534 = vmatmul.mubr.f32.gmra.mrb[0].mxu0 %v1461
        %v1535 = vpop.f32.mrb[0].mxu0
        %v1536 = vadd.f32 0.0, %v1535
        %v1537 = vpop.f32.mrb[0].mxu0
        %1538 = vmatprep.mubr.f32.mxu0 0.0
        %1539 = vmatmul.mubr.f32.gmra.mrb[0].mxu0 %v1463
        %v1540 = vpop.f32.mrb[0].mxu0
        %v1541 = vadd.f32 0.0, %v1540
        %v1542 = vpop.f32.mrb[0].mxu0
        %1543 = vdwg.mxu0
        %v1544 = vsel %vm1460, %v1435, 0
        %v1546 = vsel %vm1460, %v1436, 0
        %v1549 = vsel %vm1465, %v1443, 0
        %1551 = vmatprep.subr.mxu0 0.0
        %1552 = vmatpush1.msra.mxu0 %v1438
        %1553 = vmatprep.subr.mxu0 0.0
        %1554 = vmatpush1.msra.mxu0 %v1439
        %1555 = vmatprep.subr.mxu0 0.0
        %1556 = vmatpush1.msra.mxu0 %v1440
        %1557 = vmatprep.subr.mxu0 0.0
        %1558 = vmatpush1.msra.mxu0 %v1441
        %1559 = vmatprep.subr.mxu0 0.0
        %1560 = vmatpush1.msra.mxu0 %v1442
        %1561 = vmatprep.subr.mxu0 0.0
        %1562 = vmatpush1.msra.mxu0 %v1549
        %1563 = vmatprep.subr.mxu0 0.0
        %1564 = vmatpush1.msra.mxu0 0.0
        %1565 = vmatprep.subr.mxu0 0.0
        %1566 = vmatpush1.msra.mxu0 0.0
        %1567 = vmatprep.subr.mxu0 0.0
        %1568 = vmatpush1.msra.mxu0 0.0
        %1569 = vmatprep.subr.mxu0 0.0
        %1570 = vmatpush1.msra.mxu0 0.0
        %1571 = vmatprep.subr.mxu0 0.0
        %1572 = vmatpush1.msra.mxu0 0.0
        %1573 = vmatprep.subr.mxu0 0.0
        %1574 = vmatpush1.msra.mxu0 0.0
        %1575 = vmatprep.subr.mxu0 0.0
        %1576 = vmatpush1.msra.mxu0 0.0
        %1577 = vmatprep.subr.mxu0 0.0
        %1578 = vmatpush1.msra.mxu0 0.0
        %1579 = vmatprep.subr.mxu0 0.0
        %1580 = vmatpush1.msra.mxu0 0.0
        %1581 = vmatprep.subr.mxu0 0.0
        %1582 = vmatpush1.msra.mxu0 0.0
        %1583 = vmatprep.subr.mxu0 0.0
        %1584 = vmatpush1.msra.mxu0 0.0
        %1585 = vmatprep.subr.mxu0 0.0
        %1586 = vmatpush1.msra.mxu0 0.0
        %1587 = vmatprep.subr.mxu0 0.0
        %1588 = vmatpush1.msra.mxu0 0.0
        %1589 = vmatprep.subr.mxu0 0.0
        %1590 = vmatpush1.msra.mxu0 0.0
        %1591 = vmatprep.subr.mxu0 0.0
        %1592 = vmatpush1.msra.mxu0 0.0
        %1593 = vmatprep.subr.mxu0 0.0
        %1594 = vmatpush1.msra.mxu0 0.0
        %1595 = vmatprep.subr.mxu0 0.0
        %1596 = vmatpush1.msra.mxu0 0.0
        %1597 = vmatprep.subr.mxu0 0.0
        %1598 = vmatpush1.msra.mxu0 0.0
        %1599 = vmatprep.subr.mxu0 0.0
        %1600 = vmatpush1.msra.mxu0 0.0
        %1601 = vmatprep.subr.mxu0 0.0
        %1602 = vmatpush1.msra.mxu0 0.0
        %1603 = vmatprep.subr.mxu0 0.0
        %1604 = vmatpush1.msra.mxu0 0.0
        %1605 = vmatprep.subr.mxu0 0.0
        %1606 = vmatpush1.msra.mxu0 0.0
        %1607 = vmatprep.subr.mxu0 0.0
        %1608 = vmatpush1.msra.mxu0 0.0
        %1609 = vmatprep.subr.mxu0 0.0
        %1610 = vmatpush1.msra.mxu0 0.0
        %1611 = vmatprep.subr.mxu0 0.0
        %1612 = vmatpush1.msra.mxu0 0.0
        %1613 = vmatprep.subr.mxu0 0.0
        %1614 = vmatpush1.msra.mxu0 0.0
        %1615 = vmatprep.mubr.f32.mxu0 0.0
        %1616 = vmatmul.mubr.f32.gmra.mrb[0].mxu0 %v1544
        %v1617 = vpop.f32.mrb[0].mxu0
        %v1618 = vadd.f32 %v1536, %v1617
        %v1619 = vpop.f32.mrb[0].mxu0
        %1620 = vmatprep.mubr.f32.mxu0 0.0
        %1621 = vmatmul.mubr.f32.gmra.mrb[0].mxu0 %v1546
        %v1622 = vpop.f32.mrb[0].mxu0
        %v1623 = vadd.f32 %v1541, %v1622
        %v1624 = vpop.f32.mrb[0].mxu0
        %1625 = vdwg.mxu0
        %s1626 = scalar_lea.vmem %s3, 96
        %v1627 = vld [vmem:[%s1626] sm:$0xff]
        %v1628 = vld [vmem:[%s1626 + $0x8] sm:$0xff]
        %v1629 = vld [vmem:[%s1626 + $0x10] sm:$0xff]
        %v1630 = vld [vmem:[%s1626 + $0x18] sm:$0xff]
        %v1631 = vld [vmem:[%s1626 + $0x20] sm:$0xff]
        %v1632 = vld [vmem:[%s1626 + $0x28] sm:$0xf]
        %vm1633 = vcmask 1045504
        %v1634 = vrot.slane %v1435, 2
        %v1635 = vrot.slane %v1436, 2
        %v1636 = vsel %vm1633, %v1634, %v1635
        %v1637 = vrot.slane %v1437, 2
        %v1638 = vsel %vm1633, %v1635, %v1637
        %v1639 = vsel %vm1460, %v1636, 0
        %v1641 = vsel %vm1460, %v1638, 0
        %v1644 = vsel %vm1465, %v1632, 0
        %1646 = vmatprep.subr.mxu0 0.0
        %1647 = vmatpush1.msra.mxu0 %v1627
        %1648 = vmatprep.subr.mxu0 0.0
        %1649 = vmatpush1.msra.mxu0 %v1628
        %1650 = vmatprep.subr.mxu0 0.0
        %1651 = vmatpush1.msra.mxu0 %v1629
        %1652 = vmatprep.subr.mxu0 0.0
        %1653 = vmatpush1.msra.mxu0 %v1630
        %1654 = vmatprep.subr.mxu0 0.0
        %1655 = vmatpush1.msra.mxu0 %v1631
        %1656 = vmatprep.subr.mxu0 0.0
        %1657 = vmatpush1.msra.mxu0 %v1644
        %1658 = vmatprep.subr.mxu0 0.0
        %1659 = vmatpush1.msra.mxu0 0.0
        %1660 = vmatprep.subr.mxu0 0.0
        %1661 = vmatpush1.msra.mxu0 0.0
        %1662 = vmatprep.subr.mxu0 0.0
        %1663 = vmatpush1.msra.mxu0 0.0
        %1664 = vmatprep.subr.mxu0 0.0
        %1665 = vmatpush1.msra.mxu0 0.0
        %1666 = vmatprep.subr.mxu0 0.0
        %1667 = vmatpush1.msra.mxu0 0.0
        %1668 = vmatprep.subr.mxu0 0.0
        %1669 = vmatpush1.msra.mxu0 0.0
        %1670 = vmatprep.subr.mxu0 0.0
        %1671 = vmatpush1.msra.mxu0 0.0
        %1672 = vmatprep.subr.mxu0 0.0
        %1673 = vmatpush1.msra.mxu0 0.0
        %1674 = vmatprep.subr.mxu0 0.0
        %1675 = vmatpush1.msra.mxu0 0.0
        %1676 = vmatprep.subr.mxu0 0.0
        %1677 = vmatpush1.msra.mxu0 0.0
        %1678 = vmatprep.subr.mxu0 0.0
        %1679 = vmatpush1.msra.mxu0 0.0
        %1680 = vmatprep.subr.mxu0 0.0
        %1681 = vmatpush1.msra.mxu0 0.0
        %1682 = vmatprep.subr.mxu0 0.0
        %1683 = vmatpush1.msra.mxu0 0.0
        %1684 = vmatprep.subr.mxu0 0.0
        %1685 = vmatpush1.msra.mxu0 0.0
        %1686 = vmatprep.subr.mxu0 0.0
        %1687 = vmatpush1.msra.mxu0 0.0
        %1688 = vmatprep.subr.mxu0 0.0
        %1689 = vmatpush1.msra.mxu0 0.0
        %1690 = vmatprep.subr.mxu0 0.0
        %1691 = vmatpush1.msra.mxu0 0.0
        %1692 = vmatprep.subr.mxu0 0.0
        %1693 = vmatpush1.msra.mxu0 0.0
        %1694 = vmatprep.subr.mxu0 0.0
        %1695 = vmatpush1.msra.mxu0 0.0
        %1696 = vmatprep.subr.mxu0 0.0
        %1697 = vmatpush1.msra.mxu0 0.0
        %1698 = vmatprep.subr.mxu0 0.0
        %1699 = vmatpush1.msra.mxu0 0.0
        %1700 = vmatprep.subr.mxu0 0.0
        %1701 = vmatpush1.msra.mxu0 0.0
        %1702 = vmatprep.subr.mxu0 0.0
        %1703 = vmatpush1.msra.mxu0 0.0
        %1704 = vmatprep.subr.mxu0 0.0
        %1705 = vmatpush1.msra.mxu0 0.0
        %1706 = vmatprep.subr.mxu0 0.0
        %1707 = vmatpush1.msra.mxu0 0.0
        %1708 = vmatprep.subr.mxu0 0.0
        %1709 = vmatpush1.msra.mxu0 0.0
        %1710 = vmatprep.mubr.f32.mxu0 0.0
        %1711 = vmatmul.mubr.f32.gmra.mrb[0].mxu0 %v1639
        %v1712 = vpop.f32.mrb[0].mxu0
        %v1713 = vadd.f32 0.0, %v1712
        %v1714 = vpop.f32.mrb[0].mxu0
        %1715 = vmatprep.mubr.f32.mxu0 0.0
        %1716 = vmatmul.mubr.f32.gmra.mrb[0].mxu0 %v1641
        %v1717 = vpop.f32.mrb[0].mxu0
        %v1718 = vadd.f32 0.0, %v1717
        %v1719 = vpop.f32.mrb[0].mxu0
        %1720 = vdwg.mxu0
        %v1721 = vadd.f32 %v1618, %v1713
        %v1722 = vadd.f32 %v1623, %v1718
        %s1723 = scalar_lea.vmem %s3, 144
        %v1724 = vld [vmem:[%s1723] sm:$0xff]
        %v1725 = vld [vmem:[%s1723 + $0x8] sm:$0xff]
        %v1726 = vld [vmem:[%s1723 + $0x10] sm:$0xff]
        %v1727 = vld [vmem:[%s1723 + $0x18] sm:$0xff]
        %v1728 = vld [vmem:[%s1723 + $0x20] sm:$0xff]
        %v1729 = vld [vmem:[%s1723 + $0x28] sm:$0xf]
        %vm1730 = vcmask 1044480
        %v1731 = vrot.slane %v1435, 3
        %v1732 = vrot.slane %v1436, 3
        %v1733 = vsel %vm1730, %v1731, %v1732
        %v1734 = vrot.slane %v1437, 3
        %v1735 = vsel %vm1730, %v1732, %v1734
        %v1736 = vsel %vm1460, %v1733, 0
        %v1738 = vsel %vm1460, %v1735, 0
        %v1741 = vsel %vm1465, %v1729, 0
        %1743 = vmatprep.subr.mxu0 0.0
        %1744 = vmatpush1.msra.mxu0 %v1724
        %1745 = vmatprep.subr.mxu0 0.0
        %1746 = vmatpush1.msra.mxu0 %v1725
        %1747 = vmatprep.subr.mxu0 0.0
        %1748 = vmatpush1.msra.mxu0 %v1726
        %1749 = vmatprep.subr.mxu0 0.0
        %1750 = vmatpush1.msra.mxu0 %v1727
        %1751 = vmatprep.subr.mxu0 0.0
        %1752 = vmatpush1.msra.mxu0 %v1728
        %1753 = vmatprep.subr.mxu0 0.0
        %1754 = vmatpush1.msra.mxu0 %v1741
        %1755 = vmatprep.subr.mxu0 0.0
        %1756 = vmatpush1.msra.mxu0 0.0
        %1757 = vmatprep.subr.mxu0 0.0
        %1758 = vmatpush1.msra.mxu0 0.0
        %1759 = vmatprep.subr.mxu0 0.0
        %1760 = vmatpush1.msra.mxu0 0.0
        %1761 = vmatprep.subr.mxu0 0.0
        %1762 = vmatpush1.msra.mxu0 0.0
        %1763 = vmatprep.subr.mxu0 0.0
        %1764 = vmatpush1.msra.mxu0 0.0
        %1765 = vmatprep.subr.mxu0 0.0
        %1766 = vmatpush1.msra.mxu0 0.0
        %1767 = vmatprep.subr.mxu0 0.0
        %1768 = vmatpush1.msra.mxu0 0.0
        %1769 = vmatprep.subr.mxu0 0.0
        %1770 = vmatpush1.msra.mxu0 0.0
        %1771 = vmatprep.subr.mxu0 0.0
        %1772 = vmatpush1.msra.mxu0 0.0
        %1773 = vmatprep.subr.mxu0 0.0
        %1774 = vmatpush1.msra.mxu0 0.0
        %1775 = vmatprep.subr.mxu0 0.0
        %1776 = vmatpush1.msra.mxu0 0.0
        %1777 = vmatprep.subr.mxu0 0.0
        %1778 = vmatpush1.msra.mxu0 0.0
        %1779 = vmatprep.subr.mxu0 0.0
        %1780 = vmatpush1.msra.mxu0 0.0
        %1781 = vmatprep.subr.mxu0 0.0
        %1782 = vmatpush1.msra.mxu0 0.0
        %1783 = vmatprep.subr.mxu0 0.0
        %1784 = vmatpush1.msra.mxu0 0.0
        %1785 = vmatprep.subr.mxu0 0.0
        %1786 = vmatpush1.msra.mxu0 0.0
        %1787 = vmatprep.subr.mxu0 0.0
        %1788 = vmatpush1.msra.mxu0 0.0
        %1789 = vmatprep.subr.mxu0 0.0
        %1790 = vmatpush1.msra.mxu0 0.0
        %1791 = vmatprep.subr.mxu0 0.0
        %1792 = vmatpush1.msra.mxu0 0.0
        %1793 = vmatprep.subr.mxu0 0.0
        %1794 = vmatpush1.msra.mxu0 0.0
        %1795 = vmatprep.subr.mxu0 0.0
        %1796 = vmatpush1.msra.mxu0 0.0
        %1797 = vmatprep.subr.mxu0 0.0
        %1798 = vmatpush1.msra.mxu0 0.0
        %1799 = vmatprep.subr.mxu0 0.0
        %1800 = vmatpush1.msra.mxu0 0.0
        %1801 = vmatprep.subr.mxu0 0.0
        %1802 = vmatpush1.msra.mxu0 0.0
        %1803 = vmatprep.subr.mxu0 0.0
        %1804 = vmatpush1.msra.mxu0 0.0
        %1805 = vmatprep.subr.mxu0 0.0
        %1806 = vmatpush1.msra.mxu0 0.0
        %1807 = vmatprep.mubr.f32.mxu0 0.0
        %1808 = vmatmul.mubr.f32.gmra.mrb[0].mxu0 %v1736
        %v1809 = vpop.f32.mrb[0].mxu0
        %v1810 = vadd.f32 0.0, %v1809
        %v1811 = vpop.f32.mrb[0].mxu0
        %1812 = vmatprep.mubr.f32.mxu0 0.0
        %1813 = vmatmul.mubr.f32.gmra.mrb[0].mxu0 %v1738
        %v1814 = vpop.f32.mrb[0].mxu0
        %v1815 = vadd.f32 0.0, %v1814
        %v1816 = vpop.f32.mrb[0].mxu0
        %1817 = vdwg.mxu0
        %v1818 = vadd.f32 %v1721, %v1810
        %v1819 = vadd.f32 %v1722, %v1815
        %s1820 = scalar_lea.vmem %s3, 192
        %v1821 = vld [vmem:[%s1820] sm:$0xff]
        %v1822 = vld [vmem:[%s1820 + $0x8] sm:$0xff]
        %v1823 = vld [vmem:[%s1820 + $0x10] sm:$0xff]
        %v1824 = vld [vmem:[%s1820 + $0x18] sm:$0xff]
        %v1825 = vld [vmem:[%s1820 + $0x20] sm:$0xff]
        %v1826 = vld [vmem:[%s1820 + $0x28] sm:$0xf]
        %v1827 = vrot.slane %v1435, 4
        %v1828 = vrot.slane %v1436, 4
        %v1829 = vsel %vm1465, %v1827, %v1828
        %v1830 = vrot.slane %v1437, 4
        %v1831 = vsel %vm1465, %v1828, %v1830
        %v1832 = vsel %vm1460, %v1829, 0
        %v1834 = vsel %vm1460, %v1831, 0
        %v1837 = vsel %vm1465, %v1826, 0
        %1839 = vmatprep.subr.mxu0 0.0
        %1840 = vmatpush1.msra.mxu0 %v1821
        %1841 = vmatprep.subr.mxu0 0.0
        %1842 = vmatpush1.msra.mxu0 %v1822
        %1843 = vmatprep.subr.mxu0 0.0
        %1844 = vmatpush1.msra.mxu0 %v1823
        %1845 = vmatprep.subr.mxu0 0.0
        %1846 = vmatpush1.msra.mxu0 %v1824
        %1847 = vmatprep.subr.mxu0 0.0
        %1848 = vmatpush1.msra.mxu0 %v1825
        %1849 = vmatprep.subr.mxu0 0.0
        %1850 = vmatpush1.msra.mxu0 %v1837
        %1851 = vmatprep.subr.mxu0 0.0
        %1852 = vmatpush1.msra.mxu0 0.0
        %1853 = vmatprep.subr.mxu0 0.0
        %1854 = vmatpush1.msra.mxu0 0.0
        %1855 = vmatprep.subr.mxu0 0.0
        %1856 = vmatpush1.msra.mxu0 0.0
        %1857 = vmatprep.subr.mxu0 0.0
        %1858 = vmatpush1.msra.mxu0 0.0
        %1859 = vmatprep.subr.mxu0 0.0
        %1860 = vmatpush1.msra.mxu0 0.0
        %1861 = vmatprep.subr.mxu0 0.0
        %1862 = vmatpush1.msra.mxu0 0.0
        %1863 = vmatprep.subr.mxu0 0.0
        %1864 = vmatpush1.msra.mxu0 0.0
        %1865 = vmatprep.subr.mxu0 0.0
        %1866 = vmatpush1.msra.mxu0 0.0
        %1867 = vmatprep.subr.mxu0 0.0
        %1868 = vmatpush1.msra.mxu0 0.0
        %1869 = vmatprep.subr.mxu0 0.0
        %1870 = vmatpush1.msra.mxu0 0.0
        %1871 = vmatprep.subr.mxu0 0.0
        %1872 = vmatpush1.msra.mxu0 0.0
        %1873 = vmatprep.subr.mxu0 0.0
        %1874 = vmatpush1.msra.mxu0 0.0
        %1875 = vmatprep.subr.mxu0 0.0
        %1876 = vmatpush1.msra.mxu0 0.0
        %1877 = vmatprep.subr.mxu0 0.0
        %1878 = vmatpush1.msra.mxu0 0.0
        %1879 = vmatprep.subr.mxu0 0.0
        %1880 = vmatpush1.msra.mxu0 0.0
        %1881 = vmatprep.subr.mxu0 0.0
        %1882 = vmatpush1.msra.mxu0 0.0
        %1883 = vmatprep.subr.mxu0 0.0
        %1884 = vmatpush1.msra.mxu0 0.0
        %1885 = vmatprep.subr.mxu0 0.0
        %1886 = vmatpush1.msra.mxu0 0.0
        %1887 = vmatprep.subr.mxu0 0.0
        %1888 = vmatpush1.msra.mxu0 0.0
        %1889 = vmatprep.subr.mxu0 0.0
        %1890 = vmatpush1.msra.mxu0 0.0
        %1891 = vmatprep.subr.mxu0 0.0
        %1892 = vmatpush1.msra.mxu0 0.0
        %1893 = vmatprep.subr.mxu0 0.0
        %1894 = vmatpush1.msra.mxu0 0.0
        %1895 = vmatprep.subr.mxu0 0.0
        %1896 = vmatpush1.msra.mxu0 0.0
        %1897 = vmatprep.subr.mxu0 0.0
        %1898 = vmatpush1.msra.mxu0 0.0
        %1899 = vmatprep.subr.mxu0 0.0
        %1900 = vmatpush1.msra.mxu0 0.0
        %1901 = vmatprep.subr.mxu0 0.0
        %1902 = vmatpush1.msra.mxu0 0.0
        %1903 = vmatprep.mubr.f32.mxu0 0.0
        %1904 = vmatmul.mubr.f32.gmra.mrb[0].mxu0 %v1832
        %v1905 = vpop.f32.mrb[0].mxu0
        %v1906 = vadd.f32 0.0, %v1905
        %v1907 = vpop.f32.mrb[0].mxu0
        %1908 = vmatprep.mubr.f32.mxu0 0.0
        %1909 = vmatmul.mubr.f32.gmra.mrb[0].mxu0 %v1834
        %v1910 = vpop.f32.mrb[0].mxu0
        %v1911 = vadd.f32 0.0, %v1910
        %v1912 = vpop.f32.mrb[0].mxu0
        %1913 = vdwg.mxu0
        %v1914 = vadd.f32 %v1818, %v1906
        %v1915 = vadd.f32 %v1819, %v1911
        %s1916 = scalar_lea.vmem %s3, 240
        %v1917 = vld [vmem:[%s1916] sm:$0xff]
        %v1918 = vld [vmem:[%s1916 + $0x8] sm:$0xff]
        %v1919 = vld [vmem:[%s1916 + $0x10] sm:$0xff]
        %v1920 = vld [vmem:[%s1916 + $0x18] sm:$0xff]
        %v1921 = vld [vmem:[%s1916 + $0x20] sm:$0xff]
        %v1922 = vld [vmem:[%s1916 + $0x28] sm:$0xf]
        %v1923 = vrot.slane %v1435, 5
        %v1924 = vrot.slane %v1436, 5
        %v1925 = vsel %vm1209, %v1923, %v1924
        %v1926 = vrot.slane %v1437, 5
        %v1927 = vsel %vm1209, %v1924, %v1926
        %v1928 = vsel %vm1460, %v1925, 0
        %v1930 = vsel %vm1460, %v1927, 0
        %v1933 = vsel %vm1465, %v1922, 0
        %1935 = vmatprep.subr.mxu0 0.0
        %1936 = vmatpush1.msra.mxu0 %v1917
        %1937 = vmatprep.subr.mxu0 0.0
        %1938 = vmatpush1.msra.mxu0 %v1918
        %1939 = vmatprep.subr.mxu0 0.0
        %1940 = vmatpush1.msra.mxu0 %v1919
        %1941 = vmatprep.subr.mxu0 0.0
        %1942 = vmatpush1.msra.mxu0 %v1920
        %1943 = vmatprep.subr.mxu0 0.0
        %1944 = vmatpush1.msra.mxu0 %v1921
        %1945 = vmatprep.subr.mxu0 0.0
        %1946 = vmatpush1.msra.mxu0 %v1933
        %1947 = vmatprep.subr.mxu0 0.0
        %1948 = vmatpush1.msra.mxu0 0.0
        %1949 = vmatprep.subr.mxu0 0.0
        %1950 = vmatpush1.msra.mxu0 0.0
        %1951 = vmatprep.subr.mxu0 0.0
        %1952 = vmatpush1.msra.mxu0 0.0
        %1953 = vmatprep.subr.mxu0 0.0
        %1954 = vmatpush1.msra.mxu0 0.0
        %1955 = vmatprep.subr.mxu0 0.0
        %1956 = vmatpush1.msra.mxu0 0.0
        %1957 = vmatprep.subr.mxu0 0.0
        %1958 = vmatpush1.msra.mxu0 0.0
        %1959 = vmatprep.subr.mxu0 0.0
        %1960 = vmatpush1.msra.mxu0 0.0
        %1961 = vmatprep.subr.mxu0 0.0
        %1962 = vmatpush1.msra.mxu0 0.0
        %1963 = vmatprep.subr.mxu0 0.0
        %1964 = vmatpush1.msra.mxu0 0.0
        %1965 = vmatprep.subr.mxu0 0.0
        %1966 = vmatpush1.msra.mxu0 0.0
        %1967 = vmatprep.subr.mxu0 0.0
        %1968 = vmatpush1.msra.mxu0 0.0
        %1969 = vmatprep.subr.mxu0 0.0
        %1970 = vmatpush1.msra.mxu0 0.0
        %1971 = vmatprep.subr.mxu0 0.0
        %1972 = vmatpush1.msra.mxu0 0.0
        %1973 = vmatprep.subr.mxu0 0.0
        %1974 = vmatpush1.msra.mxu0 0.0
        %1975 = vmatprep.subr.mxu0 0.0
        %1976 = vmatpush1.msra.mxu0 0.0
        %1977 = vmatprep.subr.mxu0 0.0
        %1978 = vmatpush1.msra.mxu0 0.0
        %1979 = vmatprep.subr.mxu0 0.0
        %1980 = vmatpush1.msra.mxu0 0.0
        %1981 = vmatprep.subr.mxu0 0.0
        %1982 = vmatpush1.msra.mxu0 0.0
        %1983 = vmatprep.subr.mxu0 0.0
        %1984 = vmatpush1.msra.mxu0 0.0
        %1985 = vmatprep.subr.mxu0 0.0
        %1986 = vmatpush1.msra.mxu0 0.0
        %1987 = vmatprep.subr.mxu0 0.0
        %1988 = vmatpush1.msra.mxu0 0.0
        %1989 = vmatprep.subr.mxu0 0.0
        %1990 = vmatpush1.msra.mxu0 0.0
        %1991 = vmatprep.subr.mxu0 0.0
        %1992 = vmatpush1.msra.mxu0 0.0
        %1993 = vmatprep.subr.mxu0 0.0
        %1994 = vmatpush1.msra.mxu0 0.0
        %1995 = vmatprep.subr.mxu0 0.0
        %1996 = vmatpush1.msra.mxu0 0.0
        %1997 = vmatprep.subr.mxu0 0.0
        %1998 = vmatpush1.msra.mxu0 0.0
        %1999 = vmatprep.mubr.f32.mxu0 0.0
        %2000 = vmatmul.mubr.f32.gmra.mrb[0].mxu0 %v1928
        %v2001 = vpop.f32.mrb[0].mxu0
        %v2002 = vadd.f32 0.0, %v2001
        %v2003 = vpop.f32.mrb[0].mxu0
        %2004 = vmatprep.mubr.f32.mxu0 0.0
        %2005 = vmatmul.mubr.f32.gmra.mrb[0].mxu0 %v1930
        %v2006 = vpop.f32.mrb[0].mxu0
        %v2007 = vadd.f32 0.0, %v2006
        %v2008 = vpop.f32.mrb[0].mxu0
        %2009 = vdwg.mxu0
        %v2010 = vadd.f32 %v1914, %v2002
        %v2011 = vadd.f32 %v1915, %v2007
        %s2012 = scalar_lea.vmem %s3, 288
        %v2013 = vld [vmem:[%s2012] sm:$0xff]
        %v2014 = vld [vmem:[%s2012 + $0x8] sm:$0xff]
        %v2015 = vld [vmem:[%s2012 + $0x10] sm:$0xff]
        %v2016 = vld [vmem:[%s2012 + $0x18] sm:$0xff]
        %v2017 = vld [vmem:[%s2012 + $0x20] sm:$0xff]
        %v2018 = vld [vmem:[%s2012 + $0x28] sm:$0xf]
        %v2019 = vrot.slane %v1435, 6
        %v2020 = vrot.slane %v1436, 6
        %v2021 = vsel %vm652, %v2019, %v2020
        %v2022 = vrot.slane %v1437, 6
        %v2023 = vsel %vm652, %v2020, %v2022
        %v2024 = vsel %vm1460, %v2021, 0
        %v2026 = vsel %vm1460, %v2023, 0
        %v2029 = vsel %vm1465, %v2018, 0
        %2031 = vmatprep.subr.mxu0 0.0
        %2032 = vmatpush1.msra.mxu0 %v2013
        %2033 = vmatprep.subr.mxu0 0.0
        %2034 = vmatpush1.msra.mxu0 %v2014
        %2035 = vmatprep.subr.mxu0 0.0
        %2036 = vmatpush1.msra.mxu0 %v2015
        %2037 = vmatprep.subr.mxu0 0.0
        %2038 = vmatpush1.msra.mxu0 %v2016
        %2039 = vmatprep.subr.mxu0 0.0
        %2040 = vmatpush1.msra.mxu0 %v2017
        %2041 = vmatprep.subr.mxu0 0.0
        %2042 = vmatpush1.msra.mxu0 %v2029
        %2043 = vmatprep.subr.mxu0 0.0
        %2044 = vmatpush1.msra.mxu0 0.0
        %2045 = vmatprep.subr.mxu0 0.0
        %2046 = vmatpush1.msra.mxu0 0.0
        %2047 = vmatprep.subr.mxu0 0.0
        %2048 = vmatpush1.msra.mxu0 0.0
        %2049 = vmatprep.subr.mxu0 0.0
        %2050 = vmatpush1.msra.mxu0 0.0
        %2051 = vmatprep.subr.mxu0 0.0
        %2052 = vmatpush1.msra.mxu0 0.0
        %2053 = vmatprep.subr.mxu0 0.0
        %2054 = vmatpush1.msra.mxu0 0.0
        %2055 = vmatprep.subr.mxu0 0.0
        %2056 = vmatpush1.msra.mxu0 0.0
        %2057 = vmatprep.subr.mxu0 0.0
        %2058 = vmatpush1.msra.mxu0 0.0
        %2059 = vmatprep.subr.mxu0 0.0
        %2060 = vmatpush1.msra.mxu0 0.0
        %2061 = vmatprep.subr.mxu0 0.0
        %2062 = vmatpush1.msra.mxu0 0.0
        %2063 = vmatprep.subr.mxu0 0.0
        %2064 = vmatpush1.msra.mxu0 0.0
        %2065 = vmatprep.subr.mxu0 0.0
        %2066 = vmatpush1.msra.mxu0 0.0
        %2067 = vmatprep.subr.mxu0 0.0
        %2068 = vmatpush1.msra.mxu0 0.0
        %2069 = vmatprep.subr.mxu0 0.0
        %2070 = vmatpush1.msra.mxu0 0.0
        %2071 = vmatprep.subr.mxu0 0.0
        %2072 = vmatpush1.msra.mxu0 0.0
        %2073 = vmatprep.subr.mxu0 0.0
        %2074 = vmatpush1.msra.mxu0 0.0
        %2075 = vmatprep.subr.mxu0 0.0
        %2076 = vmatpush1.msra.mxu0 0.0
        %2077 = vmatprep.subr.mxu0 0.0
        %2078 = vmatpush1.msra.mxu0 0.0
        %2079 = vmatprep.subr.mxu0 0.0
        %2080 = vmatpush1.msra.mxu0 0.0
        %2081 = vmatprep.subr.mxu0 0.0
        %2082 = vmatpush1.msra.mxu0 0.0
        %2083 = vmatprep.subr.mxu0 0.0
        %2084 = vmatpush1.msra.mxu0 0.0
        %2085 = vmatprep.subr.mxu0 0.0
        %2086 = vmatpush1.msra.mxu0 0.0
        %2087 = vmatprep.subr.mxu0 0.0
        %2088 = vmatpush1.msra.mxu0 0.0
        %2089 = vmatprep.subr.mxu0 0.0
        %2090 = vmatpush1.msra.mxu0 0.0
        %2091 = vmatprep.subr.mxu0 0.0
        %2092 = vmatpush1.msra.mxu0 0.0
        %2093 = vmatprep.subr.mxu0 0.0
        %2094 = vmatpush1.msra.mxu0 0.0
        %2095 = vmatprep.mubr.f32.mxu0 0.0
        %2096 = vmatmul.mubr.f32.gmra.mrb[0].mxu0 %v2024
        %v2097 = vpop.f32.mrb[0].mxu0
        %v2098 = vadd.f32 0.0, %v2097
        %v2099 = vpop.f32.mrb[0].mxu0
        %2100 = vmatprep.mubr.f32.mxu0 0.0
        %2101 = vmatmul.mubr.f32.gmra.mrb[0].mxu0 %v2026
        %v2102 = vpop.f32.mrb[0].mxu0
        %v2103 = vadd.f32 0.0, %v2102
        %v2104 = vpop.f32.mrb[0].mxu0
        %2105 = vdwg.mxu0
        %v2106 = vadd.f32 %v2010, %v2098
        %v2107 = vadd.f32 %v2011, %v2103
        %v2108 = vxor.u32 %v2106, 2147483648
        %v2109 = vxor.u32 %v2107, 2147483648
        %v2110 = vmul.f32 %v2108, 1.442695
        %v2111 = vpow.pop %v2110
        %v2112 = vmul.f32 %v2109, 1.442695
        %v2113 = vpow.pop %v2112
        %v2114 = vadd.f32 %v2111, 1.0
        %v2115 = vadd.f32 %v2113, 1.0
        %v2116 = vrcp.pop %v2114
        %v2117 = vmul.f32 1.0, %v2116
        %v2118 = vrcp.pop %v2115
        %v2119 = vmul.f32 1.0, %v2118
        %v2120 = vlaneseq
        %v2121 = vshrl.u32 %v2120, 7
        %v2122 = vsub.s32 0, %v2121
        %v2123 = vrot.slane %v2117, %v2122
        %2125 = vbcast.lane.b32.xlu0 %v2123, 256
        %v2126 = vpop.permute.xlu0 %2125
        %s2128 = sor.u32 256, 8
        %2129 = vbcast.lane.b32.xlu0 %v2123, %s2128
        %v2130 = vpop.permute.xlu0 %2129
        %v2131 = vlaneseq
        %v2132 = vshrl.u32 %v2131, 7
        %v2133 = vsub.s32 1, %v2132
        %v2134 = vrot.slane %v2117, %v2133
        %2136 = vbcast.lane.b32.xlu0 %v2134, 256
        %v2137 = vpop.permute.xlu0 %2136
        %s2139 = sor.u32 256, 8
        %2140 = vbcast.lane.b32.xlu0 %v2134, %s2139
        %v2141 = vpop.permute.xlu0 %2140
        %v2142 = vlaneseq
        %v2143 = vshrl.u32 %v2142, 7
        %v2144 = vsub.s32 2, %v2143
        %v2145 = vrot.slane %v2117, %v2144
        %2147 = vbcast.lane.b32.xlu0 %v2145, 256
        %v2148 = vpop.permute.xlu0 %2147
        %s2150 = sor.u32 256, 8
        %2151 = vbcast.lane.b32.xlu0 %v2145, %s2150
        %v2152 = vpop.permute.xlu0 %2151
        %v2153 = vlaneseq
        %v2154 = vshrl.u32 %v2153, 7
        %v2155 = vsub.s32 3, %v2154
        %v2156 = vrot.slane %v2117, %v2155
        %2158 = vbcast.lane.b32.xlu0 %v2156, 256
        %v2159 = vpop.permute.xlu0 %2158
        %s2161 = sor.u32 256, 8
        %2162 = vbcast.lane.b32.xlu0 %v2156, %s2161
        %v2163 = vpop.permute.xlu0 %2162
        %v2164 = vlaneseq
        %v2165 = vshrl.u32 %v2164, 7
        %v2166 = vsub.s32 4, %v2165
        %v2167 = vrot.slane %v2117, %v2166
        %2169 = vbcast.lane.b32.xlu0 %v2167, 256
        %v2170 = vpop.permute.xlu0 %2169
        %s2172 = sor.u32 256, 8
        %2173 = vbcast.lane.b32.xlu0 %v2167, %s2172
        %v2174 = vpop.permute.xlu0 %2173
        %v2175 = vlaneseq
        %v2176 = vshrl.u32 %v2175, 7
        %v2177 = vsub.s32 5, %v2176
        %v2178 = vrot.slane %v2117, %v2177
        %2180 = vbcast.lane.b32.xlu0 %v2178, 256
        %v2181 = vpop.permute.xlu0 %2180
        %s2183 = sor.u32 256, 8
        %2184 = vbcast.lane.b32.xlu0 %v2178, %s2183
        %v2185 = vpop.permute.xlu0 %2184
        %v2186 = vlaneseq
        %v2187 = vshrl.u32 %v2186, 7
        %v2188 = vsub.s32 6, %v2187
        %v2189 = vrot.slane %v2117, %v2188
        %2191 = vbcast.lane.b32.xlu0 %v2189, 256
        %v2192 = vpop.permute.xlu0 %2191
        %s2194 = sor.u32 256, 8
        %2195 = vbcast.lane.b32.xlu0 %v2189, %s2194
        %v2196 = vpop.permute.xlu0 %2195
        %v2197 = vlaneseq
        %v2198 = vshrl.u32 %v2197, 7
        %v2199 = vsub.s32 7, %v2198
        %v2200 = vrot.slane %v2117, %v2199
        %2202 = vbcast.lane.b32.xlu0 %v2200, 256
        %v2203 = vpop.permute.xlu0 %2202
        %s2205 = sor.u32 256, 8
        %2206 = vbcast.lane.b32.xlu0 %v2200, %s2205
        %v2207 = vpop.permute.xlu0 %2206
        %v2208 = vlaneseq
        %v2209 = vshrl.u32 %v2208, 7
        %v2210 = vsub.s32 0, %v2209
        %v2211 = vrot.slane %v2119, %v2210
        %2213 = vbcast.lane.b32.xlu0 %v2211, 256
        %v2214 = vpop.permute.xlu0 %2213
        %s2216 = sor.u32 256, 8
        %2217 = vbcast.lane.b32.xlu0 %v2211, %s2216
        %v2218 = vpop.permute.xlu0 %2217
        %v2219 = vlaneseq
        %v2220 = vshrl.u32 %v2219, 7
        %v2221 = vsub.s32 1, %v2220
        %v2222 = vrot.slane %v2119, %v2221
        %2224 = vbcast.lane.b32.xlu0 %v2222, 256
        %v2225 = vpop.permute.xlu0 %2224
        %s2227 = sor.u32 256, 8
        %2228 = vbcast.lane.b32.xlu0 %v2222, %s2227
        %v2229 = vpop.permute.xlu0 %2228
        %v2230 = vlaneseq
        %v2231 = vshrl.u32 %v2230, 7
        %v2232 = vsub.s32 2, %v2231
        %v2233 = vrot.slane %v2119, %v2232
        %2235 = vbcast.lane.b32.xlu0 %v2233, 256
        %v2236 = vpop.permute.xlu0 %2235
        %s2238 = sor.u32 256, 8
        %2239 = vbcast.lane.b32.xlu0 %v2233, %s2238
        %v2240 = vpop.permute.xlu0 %2239
        %v2241 = vlaneseq
        %v2242 = vshrl.u32 %v2241, 7
        %v2243 = vsub.s32 3, %v2242
        %v2244 = vrot.slane %v2119, %v2243
        %2246 = vbcast.lane.b32.xlu0 %v2244, 256
        %v2247 = vpop.permute.xlu0 %2246
        %s2249 = sor.u32 256, 8
        %2250 = vbcast.lane.b32.xlu0 %v2244, %s2249
        %v2251 = vpop.permute.xlu0 %2250
        %v2252 = vlaneseq
        %v2253 = vshrl.u32 %v2252, 7
        %v2254 = vsub.s32 4, %v2253
        %v2255 = vrot.slane %v2119, %v2254
        %2257 = vbcast.lane.b32.xlu0 %v2255, 256
        %v2258 = vpop.permute.xlu0 %2257
        %s2260 = sor.u32 256, 8
        %2261 = vbcast.lane.b32.xlu0 %v2255, %s2260
        %v2262 = vpop.permute.xlu0 %2261
        %v2263 = vlaneseq
        %v2264 = vshrl.u32 %v2263, 7
        %v2265 = vsub.s32 5, %v2264
        %v2266 = vrot.slane %v2119, %v2265
        %2268 = vbcast.lane.b32.xlu0 %v2266, 256
        %v2269 = vpop.permute.xlu0 %2268
        %s2271 = sor.u32 256, 8
        %2272 = vbcast.lane.b32.xlu0 %v2266, %s2271
        %v2273 = vpop.permute.xlu0 %2272
        %v2274 = vlaneseq
        %v2275 = vshrl.u32 %v2274, 7
        %v2276 = vsub.s32 6, %v2275
        %v2277 = vrot.slane %v2119, %v2276
        %2279 = vbcast.lane.b32.xlu0 %v2277, 256
        %v2280 = vpop.permute.xlu0 %2279
        %s2282 = sor.u32 256, 8
        %2283 = vbcast.lane.b32.xlu0 %v2277, %s2282
        %v2284 = vpop.permute.xlu0 %2283
        %v2285 = vlaneseq
        %v2286 = vshrl.u32 %v2285, 7
        %v2287 = vsub.s32 7, %v2286
        %v2288 = vrot.slane %v2119, %v2287
        %2290 = vbcast.lane.b32.xlu0 %v2288, 256
        %v2291 = vpop.permute.xlu0 %2290
        %s2293 = sor.u32 256, 8
        %2294 = vbcast.lane.b32.xlu0 %v2288, %s2293
        %v2295 = vpop.permute.xlu0 %2294
        %v2296 = vmul.f32 %v740, %v2126
        %v2297 = vmul.f32 %v741, %v2130
        %v2298 = vmul.f32 %v742, %v2137
        %v2299 = vmul.f32 %v743, %v2141
        %v2300 = vmul.f32 %v744, %v2148
        %v2301 = vmul.f32 %v745, %v2152
        %v2302 = vmul.f32 %v746, %v2159
        %v2303 = vmul.f32 %v747, %v2163
        %v2304 = vmul.f32 %v748, %v2170
        %v2305 = vmul.f32 %v749, %v2174
        %v2306 = vmul.f32 %v750, %v2181
        %v2307 = vmul.f32 %v751, %v2185
        %v2308 = vmul.f32 %v752, %v2192
        %v2309 = vmul.f32 %v753, %v2196
        %v2310 = vmul.f32 %v754, %v2203
        %v2311 = vmul.f32 %v755, %v2207
        %v2312 = vmul.f32 %v756, %v2214
        %v2313 = vmul.f32 %v757, %v2218
        %v2314 = vmul.f32 %v758, %v2225
        %v2315 = vmul.f32 %v759, %v2229
        %v2316 = vmul.f32 %v760, %v2236
        %v2317 = vmul.f32 %v761, %v2240
        %v2318 = vmul.f32 %v762, %v2247
        %v2319 = vmul.f32 %v763, %v2251
        %v2320 = vmul.f32 %v764, %v2258
        %v2321 = vmul.f32 %v765, %v2262
        %v2322 = vmul.f32 %v766, %v2269
        %v2323 = vmul.f32 %v767, %v2273
        %v2324 = vmul.f32 %v768, %v2280
        %v2325 = vmul.f32 %v769, %v2284
        %v2326 = vmul.f32 %v770, %v2291
        %v2327 = vmul.f32 %v771, %v2295
        %v2328 = vcombine.low %v2296, %v2300
        %v2329 = vcombine.high %v2296, %v2300
        %v2331 = vunpack.c.l.s4 1983009808
        %v2332 = vunpack.c.0.s8 %v2331
        %v2333 = vlaneseq
        %v2334 = vshrl.u32 %v2333, 7
        %v2335 = vsub.s32 %v2332, %v2334
        %v2336 = vrot.slane %v2328, %v2335
        %v2338 = vunpack.c.l.s4 1983009808
        %v2339 = vunpack.c.0.s8 %v2338
        %v2340 = vlaneseq
        %v2341 = vshrl.u32 %v2340, 7
        %v2342 = vsub.s32 %v2339, %v2341
        %v2343 = vrot.slane %v2329, %v2342
        %v2344 = vcombine.low %v2298, %v2302
        %v2345 = vcombine.high %v2298, %v2302
        %v2347 = vunpack.c.l.s4 1983009808
        %v2348 = vunpack.c.0.s8 %v2347
        %v2349 = vlaneseq
        %v2350 = vshrl.u32 %v2349, 7
        %v2351 = vsub.s32 %v2348, %v2350
        %v2352 = vrot.slane %v2344, %v2351
        %v2354 = vunpack.c.l.s4 1983009808
        %v2355 = vunpack.c.0.s8 %v2354
        %v2356 = vlaneseq
        %v2357 = vshrl.u32 %v2356, 7
        %v2358 = vsub.s32 %v2355, %v2357
        %v2359 = vrot.slane %v2345, %v2358
        %v2360 = vcombine.low %v2304, %v2308
        %v2361 = vcombine.high %v2304, %v2308
        %v2363 = vunpack.c.l.s4 1983009808
        %v2364 = vunpack.c.0.s8 %v2363
        %v2365 = vlaneseq
        %v2366 = vshrl.u32 %v2365, 7
        %v2367 = vsub.s32 %v2364, %v2366
        %v2368 = vrot.slane %v2360, %v2367
        %v2370 = vunpack.c.l.s4 1983009808
        %v2371 = vunpack.c.0.s8 %v2370
        %v2372 = vlaneseq
        %v2373 = vshrl.u32 %v2372, 7
        %v2374 = vsub.s32 %v2371, %v2373
        %v2375 = vrot.slane %v2361, %v2374
        %v2376 = vcombine.low %v2306, %v2310
        %v2377 = vcombine.high %v2306, %v2310
        %v2379 = vunpack.c.l.s4 1983009808
        %v2380 = vunpack.c.0.s8 %v2379
        %v2381 = vlaneseq
        %v2382 = vshrl.u32 %v2381, 7
        %v2383 = vsub.s32 %v2380, %v2382
        %v2384 = vrot.slane %v2376, %v2383
        %v2386 = vunpack.c.l.s4 1983009808
        %v2387 = vunpack.c.0.s8 %v2386
        %v2388 = vlaneseq
        %v2389 = vshrl.u32 %v2388, 7
        %v2390 = vsub.s32 %v2387, %v2389
        %v2391 = vrot.slane %v2377, %v2390
        %v2392 = vcombine.low %v2336, %v2352
        %v2393 = vcombine.high %v2336, %v2352
        %v2395 = vunpack.c.l.s4 1934713408
        %v2396 = vunpack.c.0.s8 %v2395
        %v2397 = vlaneseq
        %v2398 = vshrl.u32 %v2397, 7
        %v2399 = vsub.s32 %v2396, %v2398
        %v2400 = vrot.slane %v2392, %v2399
        %v2402 = vunpack.c.l.s4 1934713408
        %v2403 = vunpack.c.0.s8 %v2402
        %v2404 = vlaneseq
        %v2405 = vshrl.u32 %v2404, 7
        %v2406 = vsub.s32 %v2403, %v2405
        %v2407 = vrot.slane %v2393, %v2406
        %v2408 = vcombine.low %v2343, %v2359
        %v2409 = vcombine.high %v2343, %v2359
        %v2411 = vunpack.c.l.s4 1934713408
        %v2412 = vunpack.c.0.s8 %v2411
        %v2413 = vlaneseq
        %v2414 = vshrl.u32 %v2413, 7
        %v2415 = vsub.s32 %v2412, %v2414
        %v2416 = vrot.slane %v2408, %v2415
        %v2418 = vunpack.c.l.s4 1934713408
        %v2419 = vunpack.c.0.s8 %v2418
        %v2420 = vlaneseq
        %v2421 = vshrl.u32 %v2420, 7
        %v2422 = vsub.s32 %v2419, %v2421
        %v2423 = vrot.slane %v2409, %v2422
        %v2424 = vcombine.low %v2368, %v2384
        %v2425 = vcombine.high %v2368, %v2384
        %v2427 = vunpack.c.l.s4 1934713408
        %v2428 = vunpack.c.0.s8 %v2427
        %v2429 = vlaneseq
        %v2430 = vshrl.u32 %v2429, 7
        %v2431 = vsub.s32 %v2428, %v2430
        %v2432 = vrot.slane %v2424, %v2431
        %v2434 = vunpack.c.l.s4 1934713408
        %v2435 = vunpack.c.0.s8 %v2434
        %v2436 = vlaneseq
        %v2437 = vshrl.u32 %v2436, 7
        %v2438 = vsub.s32 %v2435, %v2437
        %v2439 = vrot.slane %v2425, %v2438
        %v2440 = vcombine.low %v2375, %v2391
        %v2441 = vcombine.high %v2375, %v2391
        %v2443 = vunpack.c.l.s4 1934713408
        %v2444 = vunpack.c.0.s8 %v2443
        %v2445 = vlaneseq
        %v2446 = vshrl.u32 %v2445, 7
        %v2447 = vsub.s32 %v2444, %v2446
        %v2448 = vrot.slane %v2440, %v2447
        %v2450 = vunpack.c.l.s4 1934713408
        %v2451 = vunpack.c.0.s8 %v2450
        %v2452 = vlaneseq
        %v2453 = vshrl.u32 %v2452, 7
        %v2454 = vsub.s32 %v2451, %v2453
        %v2455 = vrot.slane %v2441, %v2454
        %v2456 = vcombine.low %v2400, %v2432
        %v2457 = vcombine.high %v2400, %v2432
        %v2458 = vcombine.low %v2407, %v2439
        %v2459 = vcombine.high %v2407, %v2439
        %v2460 = vcombine.low %v2416, %v2448
        %v2461 = vcombine.high %v2416, %v2448
        %v2462 = vcombine.low %v2423, %v2455
        %v2463 = vcombine.high %v2423, %v2455
        %v2464 = vcombine.low %v2312, %v2316
        %v2465 = vcombine.high %v2312, %v2316
        %v2467 = vunpack.c.l.s4 1983009808
        %v2468 = vunpack.c.0.s8 %v2467
        %v2469 = vlaneseq
        %v2470 = vshrl.u32 %v2469, 7
        %v2471 = vsub.s32 %v2468, %v2470
        %v2472 = vrot.slane %v2464, %v2471
        %v2474 = vunpack.c.l.s4 1983009808
        %v2475 = vunpack.c.0.s8 %v2474
        %v2476 = vlaneseq
        %v2477 = vshrl.u32 %v2476, 7
        %v2478 = vsub.s32 %v2475, %v2477
        %v2479 = vrot.slane %v2465, %v2478
        %v2480 = vcombine.low %v2314, %v2318
        %v2481 = vcombine.high %v2314, %v2318
        %v2483 = vunpack.c.l.s4 1983009808
        %v2484 = vunpack.c.0.s8 %v2483
        %v2485 = vlaneseq
        %v2486 = vshrl.u32 %v2485, 7
        %v2487 = vsub.s32 %v2484, %v2486
        %v2488 = vrot.slane %v2480, %v2487
        %v2490 = vunpack.c.l.s4 1983009808
        %v2491 = vunpack.c.0.s8 %v2490
        %v2492 = vlaneseq
        %v2493 = vshrl.u32 %v2492, 7
        %v2494 = vsub.s32 %v2491, %v2493
        %v2495 = vrot.slane %v2481, %v2494
        %v2496 = vcombine.low %v2320, %v2324
        %v2497 = vcombine.high %v2320, %v2324
        %v2499 = vunpack.c.l.s4 1983009808
        %v2500 = vunpack.c.0.s8 %v2499
        %v2501 = vlaneseq
        %v2502 = vshrl.u32 %v2501, 7
        %v2503 = vsub.s32 %v2500, %v2502
        %v2504 = vrot.slane %v2496, %v2503
        %v2506 = vunpack.c.l.s4 1983009808
        %v2507 = vunpack.c.0.s8 %v2506
        %v2508 = vlaneseq
        %v2509 = vshrl.u32 %v2508, 7
        %v2510 = vsub.s32 %v2507, %v2509
        %v2511 = vrot.slane %v2497, %v2510
        %v2512 = vcombine.low %v2322, %v2326
        %v2513 = vcombine.high %v2322, %v2326
        %v2515 = vunpack.c.l.s4 1983009808
        %v2516 = vunpack.c.0.s8 %v2515
        %v2517 = vlaneseq
        %v2518 = vshrl.u32 %v2517, 7
        %v2519 = vsub.s32 %v2516, %v2518
        %v2520 = vrot.slane %v2512, %v2519
        %v2522 = vunpack.c.l.s4 1983009808
        %v2523 = vunpack.c.0.s8 %v2522
        %v2524 = vlaneseq
        %v2525 = vshrl.u32 %v2524, 7
        %v2526 = vsub.s32 %v2523, %v2525
        %v2527 = vrot.slane %v2513, %v2526
        %v2528 = vcombine.low %v2472, %v2488
        %v2529 = vcombine.high %v2472, %v2488
        %v2531 = vunpack.c.l.s4 1934713408
        %v2532 = vunpack.c.0.s8 %v2531
        %v2533 = vlaneseq
        %v2534 = vshrl.u32 %v2533, 7
        %v2535 = vsub.s32 %v2532, %v2534
        %v2536 = vrot.slane %v2528, %v2535
        %v2538 = vunpack.c.l.s4 1934713408
        %v2539 = vunpack.c.0.s8 %v2538
        %v2540 = vlaneseq
        %v2541 = vshrl.u32 %v2540, 7
        %v2542 = vsub.s32 %v2539, %v2541
        %v2543 = vrot.slane %v2529, %v2542
        %v2544 = vcombine.low %v2479, %v2495
        %v2545 = vcombine.high %v2479, %v2495
        %v2547 = vunpack.c.l.s4 1934713408
        %v2548 = vunpack.c.0.s8 %v2547
        %v2549 = vlaneseq
        %v2550 = vshrl.u32 %v2549, 7
        %v2551 = vsub.s32 %v2548, %v2550
        %v2552 = vrot.slane %v2544, %v2551
        %v2554 = vunpack.c.l.s4 1934713408
        %v2555 = vunpack.c.0.s8 %v2554
        %v2556 = vlaneseq
        %v2557 = vshrl.u32 %v2556, 7
        %v2558 = vsub.s32 %v2555, %v2557
        %v2559 = vrot.slane %v2545, %v2558
        %v2560 = vcombine.low %v2504, %v2520
        %v2561 = vcombine.high %v2504, %v2520
        %v2563 = vunpack.c.l.s4 1934713408
        %v2564 = vunpack.c.0.s8 %v2563
        %v2565 = vlaneseq
        %v2566 = vshrl.u32 %v2565, 7
        %v2567 = vsub.s32 %v2564, %v2566
        %v2568 = vrot.slane %v2560, %v2567
        %v2570 = vunpack.c.l.s4 1934713408
        %v2571 = vunpack.c.0.s8 %v2570
        %v2572 = vlaneseq
        %v2573 = vshrl.u32 %v2572, 7
        %v2574 = vsub.s32 %v2571, %v2573
        %v2575 = vrot.slane %v2561, %v2574
        %v2576 = vcombine.low %v2511, %v2527
        %v2577 = vcombine.high %v2511, %v2527
        %v2579 = vunpack.c.l.s4 1934713408
        %v2580 = vunpack.c.0.s8 %v2579
        %v2581 = vlaneseq
        %v2582 = vshrl.u32 %v2581, 7
        %v2583 = vsub.s32 %v2580, %v2582
        %v2584 = vrot.slane %v2576, %v2583
        %v2586 = vunpack.c.l.s4 1934713408
        %v2587 = vunpack.c.0.s8 %v2586
        %v2588 = vlaneseq
        %v2589 = vshrl.u32 %v2588, 7
        %v2590 = vsub.s32 %v2587, %v2589
        %v2591 = vrot.slane %v2577, %v2590
        %v2592 = vcombine.low %v2536, %v2568
        %v2593 = vcombine.high %v2536, %v2568
        %v2594 = vcombine.low %v2543, %v2575
        %v2595 = vcombine.high %v2543, %v2575
        %v2596 = vcombine.low %v2552, %v2584
        %v2597 = vcombine.high %v2552, %v2584
        %v2598 = vcombine.low %v2559, %v2591
        %v2599 = vcombine.high %v2559, %v2591
        %v2600 = vcombine.low %v2297, %v2301
        %v2601 = vcombine.high %v2297, %v2301
        %v2603 = vunpack.c.l.s4 1983009808
        %v2604 = vunpack.c.0.s8 %v2603
        %v2605 = vlaneseq
        %v2606 = vshrl.u32 %v2605, 7
        %v2607 = vsub.s32 %v2604, %v2606
        %v2608 = vrot.slane %v2600, %v2607
        %v2610 = vunpack.c.l.s4 1983009808
        %v2611 = vunpack.c.0.s8 %v2610
        %v2612 = vlaneseq
        %v2613 = vshrl.u32 %v2612, 7
        %v2614 = vsub.s32 %v2611, %v2613
        %v2615 = vrot.slane %v2601, %v2614
        %v2616 = vcombine.low %v2299, %v2303
        %v2617 = vcombine.high %v2299, %v2303
        %v2619 = vunpack.c.l.s4 1983009808
        %v2620 = vunpack.c.0.s8 %v2619
        %v2621 = vlaneseq
        %v2622 = vshrl.u32 %v2621, 7
        %v2623 = vsub.s32 %v2620, %v2622
        %v2624 = vrot.slane %v2616, %v2623
        %v2626 = vunpack.c.l.s4 1983009808
        %v2627 = vunpack.c.0.s8 %v2626
        %v2628 = vlaneseq
        %v2629 = vshrl.u32 %v2628, 7
        %v2630 = vsub.s32 %v2627, %v2629
        %v2631 = vrot.slane %v2617, %v2630
        %v2632 = vcombine.low %v2305, %v2309
        %v2633 = vcombine.high %v2305, %v2309
        %v2635 = vunpack.c.l.s4 1983009808
        %v2636 = vunpack.c.0.s8 %v2635
        %v2637 = vlaneseq
        %v2638 = vshrl.u32 %v2637, 7
        %v2639 = vsub.s32 %v2636, %v2638
        %v2640 = vrot.slane %v2632, %v2639
        %v2642 = vunpack.c.l.s4 1983009808
        %v2643 = vunpack.c.0.s8 %v2642
        %v2644 = vlaneseq
        %v2645 = vshrl.u32 %v2644, 7
        %v2646 = vsub.s32 %v2643, %v2645
        %v2647 = vrot.slane %v2633, %v2646
        %v2648 = vcombine.low %v2307, %v2311
        %v2649 = vcombine.high %v2307, %v2311
        %v2651 = vunpack.c.l.s4 1983009808
        %v2652 = vunpack.c.0.s8 %v2651
        %v2653 = vlaneseq
        %v2654 = vshrl.u32 %v2653, 7
        %v2655 = vsub.s32 %v2652, %v2654
        %v2656 = vrot.slane %v2648, %v2655
        %v2658 = vunpack.c.l.s4 1983009808
        %v2659 = vunpack.c.0.s8 %v2658
        %v2660 = vlaneseq
        %v2661 = vshrl.u32 %v2660, 7
        %v2662 = vsub.s32 %v2659, %v2661
        %v2663 = vrot.slane %v2649, %v2662
        %v2664 = vcombine.low %v2608, %v2624
        %v2665 = vcombine.high %v2608, %v2624
        %v2667 = vunpack.c.l.s4 1934713408
        %v2668 = vunpack.c.0.s8 %v2667
        %v2669 = vlaneseq
        %v2670 = vshrl.u32 %v2669, 7
        %v2671 = vsub.s32 %v2668, %v2670
        %v2672 = vrot.slane %v2664, %v2671
        %v2674 = vunpack.c.l.s4 1934713408
        %v2675 = vunpack.c.0.s8 %v2674
        %v2676 = vlaneseq
        %v2677 = vshrl.u32 %v2676, 7
        %v2678 = vsub.s32 %v2675, %v2677
        %v2679 = vrot.slane %v2665, %v2678
        %v2680 = vcombine.low %v2615, %v2631
        %v2681 = vcombine.high %v2615, %v2631
        %v2683 = vunpack.c.l.s4 1934713408
        %v2684 = vunpack.c.0.s8 %v2683
        %v2685 = vlaneseq
        %v2686 = vshrl.u32 %v2685, 7
        %v2687 = vsub.s32 %v2684, %v2686
        %v2688 = vrot.slane %v2680, %v2687
        %v2690 = vunpack.c.l.s4 1934713408
        %v2691 = vunpack.c.0.s8 %v2690
        %v2692 = vlaneseq
        %v2693 = vshrl.u32 %v2692, 7
        %v2694 = vsub.s32 %v2691, %v2693
        %v2695 = vrot.slane %v2681, %v2694
        %v2696 = vcombine.low %v2640, %v2656
        %v2697 = vcombine.high %v2640, %v2656
        %v2699 = vunpack.c.l.s4 1934713408
        %v2700 = vunpack.c.0.s8 %v2699
        %v2701 = vlaneseq
        %v2702 = vshrl.u32 %v2701, 7
        %v2703 = vsub.s32 %v2700, %v2702
        %v2704 = vrot.slane %v2696, %v2703
        %v2706 = vunpack.c.l.s4 1934713408
        %v2707 = vunpack.c.0.s8 %v2706
        %v2708 = vlaneseq
        %v2709 = vshrl.u32 %v2708, 7
        %v2710 = vsub.s32 %v2707, %v2709
        %v2711 = vrot.slane %v2697, %v2710
        %v2712 = vcombine.low %v2647, %v2663
        %v2713 = vcombine.high %v2647, %v2663
        %v2715 = vunpack.c.l.s4 1934713408
        %v2716 = vunpack.c.0.s8 %v2715
        %v2717 = vlaneseq
        %v2718 = vshrl.u32 %v2717, 7
        %v2719 = vsub.s32 %v2716, %v2718
        %v2720 = vrot.slane %v2712, %v2719
        %v2722 = vunpack.c.l.s4 1934713408
        %v2723 = vunpack.c.0.s8 %v2722
        %v2724 = vlaneseq
        %v2725 = vshrl.u32 %v2724, 7
        %v2726 = vsub.s32 %v2723, %v2725
        %v2727 = vrot.slane %v2713, %v2726
        %v2728 = vcombine.low %v2672, %v2704
        %v2729 = vcombine.high %v2672, %v2704
        %v2730 = vcombine.low %v2679, %v2711
        %v2731 = vcombine.high %v2679, %v2711
        %v2732 = vcombine.low %v2688, %v2720
        %v2733 = vcombine.high %v2688, %v2720
        %v2734 = vcombine.low %v2695, %v2727
        %v2735 = vcombine.high %v2695, %v2727
        %v2736 = vcombine.low %v2313, %v2317
        %v2737 = vcombine.high %v2313, %v2317
        %v2739 = vunpack.c.l.s4 1983009808
        %v2740 = vunpack.c.0.s8 %v2739
        %v2741 = vlaneseq
        %v2742 = vshrl.u32 %v2741, 7
        %v2743 = vsub.s32 %v2740, %v2742
        %v2744 = vrot.slane %v2736, %v2743
        %v2746 = vunpack.c.l.s4 1983009808
        %v2747 = vunpack.c.0.s8 %v2746
        %v2748 = vlaneseq
        %v2749 = vshrl.u32 %v2748, 7
        %v2750 = vsub.s32 %v2747, %v2749
        %v2751 = vrot.slane %v2737, %v2750
        %v2752 = vcombine.low %v2315, %v2319
        %v2753 = vcombine.high %v2315, %v2319
        %v2755 = vunpack.c.l.s4 1983009808
        %v2756 = vunpack.c.0.s8 %v2755
        %v2757 = vlaneseq
        %v2758 = vshrl.u32 %v2757, 7
        %v2759 = vsub.s32 %v2756, %v2758
        %v2760 = vrot.slane %v2752, %v2759
        %v2762 = vunpack.c.l.s4 1983009808
        %v2763 = vunpack.c.0.s8 %v2762
        %v2764 = vlaneseq
        %v2765 = vshrl.u32 %v2764, 7
        %v2766 = vsub.s32 %v2763, %v2765
        %v2767 = vrot.slane %v2753, %v2766
        %v2768 = vcombine.low %v2321, %v2325
        %v2769 = vcombine.high %v2321, %v2325
        %v2771 = vunpack.c.l.s4 1983009808
        %v2772 = vunpack.c.0.s8 %v2771
        %v2773 = vlaneseq
        %v2774 = vshrl.u32 %v2773, 7
        %v2775 = vsub.s32 %v2772, %v2774
        %v2776 = vrot.slane %v2768, %v2775
        %v2778 = vunpack.c.l.s4 1983009808
        %v2779 = vunpack.c.0.s8 %v2778
        %v2780 = vlaneseq
        %v2781 = vshrl.u32 %v2780, 7
        %v2782 = vsub.s32 %v2779, %v2781
        %v2783 = vrot.slane %v2769, %v2782
        %v2784 = vcombine.low %v2323, %v2327
        %v2785 = vcombine.high %v2323, %v2327
        %v2787 = vunpack.c.l.s4 1983009808
        %v2788 = vunpack.c.0.s8 %v2787
        %v2789 = vlaneseq
        %v2790 = vshrl.u32 %v2789, 7
        %v2791 = vsub.s32 %v2788, %v2790
        %v2792 = vrot.slane %v2784, %v2791
        %v2794 = vunpack.c.l.s4 1983009808
        %v2795 = vunpack.c.0.s8 %v2794
        %v2796 = vlaneseq
        %v2797 = vshrl.u32 %v2796, 7
        %v2798 = vsub.s32 %v2795, %v2797
        %v2799 = vrot.slane %v2785, %v2798
        %v2800 = vcombine.low %v2744, %v2760
        %v2801 = vcombine.high %v2744, %v2760
        %v2803 = vunpack.c.l.s4 1934713408
        %v2804 = vunpack.c.0.s8 %v2803
        %v2805 = vlaneseq
        %v2806 = vshrl.u32 %v2805, 7
        %v2807 = vsub.s32 %v2804, %v2806
        %v2808 = vrot.slane %v2800, %v2807
        %v2810 = vunpack.c.l.s4 1934713408
        %v2811 = vunpack.c.0.s8 %v2810
        %v2812 = vlaneseq
        %v2813 = vshrl.u32 %v2812, 7
        %v2814 = vsub.s32 %v2811, %v2813
        %v2815 = vrot.slane %v2801, %v2814
        %v2816 = vcombine.low %v2751, %v2767
        %v2817 = vcombine.high %v2751, %v2767
        %v2819 = vunpack.c.l.s4 1934713408
        %v2820 = vunpack.c.0.s8 %v2819
        %v2821 = vlaneseq
        %v2822 = vshrl.u32 %v2821, 7
        %v2823 = vsub.s32 %v2820, %v2822
        %v2824 = vrot.slane %v2816, %v2823
        %v2826 = vunpack.c.l.s4 1934713408
        %v2827 = vunpack.c.0.s8 %v2826
        %v2828 = vlaneseq
        %v2829 = vshrl.u32 %v2828, 7
        %v2830 = vsub.s32 %v2827, %v2829
        %v2831 = vrot.slane %v2817, %v2830
        %v2832 = vcombine.low %v2776, %v2792
        %v2833 = vcombine.high %v2776, %v2792
        %v2835 = vunpack.c.l.s4 1934713408
        %v2836 = vunpack.c.0.s8 %v2835
        %v2837 = vlaneseq
        %v2838 = vshrl.u32 %v2837, 7
        %v2839 = vsub.s32 %v2836, %v2838
        %v2840 = vrot.slane %v2832, %v2839
        %v2842 = vunpack.c.l.s4 1934713408
        %v2843 = vunpack.c.0.s8 %v2842
        %v2844 = vlaneseq
        %v2845 = vshrl.u32 %v2844, 7
        %v2846 = vsub.s32 %v2843, %v2845
        %v2847 = vrot.slane %v2833, %v2846
        %v2848 = vcombine.low %v2783, %v2799
        %v2849 = vcombine.high %v2783, %v2799
        %v2851 = vunpack.c.l.s4 1934713408
        %v2852 = vunpack.c.0.s8 %v2851
        %v2853 = vlaneseq
        %v2854 = vshrl.u32 %v2853, 7
        %v2855 = vsub.s32 %v2852, %v2854
        %v2856 = vrot.slane %v2848, %v2855
        %v2858 = vunpack.c.l.s4 1934713408
        %v2859 = vunpack.c.0.s8 %v2858
        %v2860 = vlaneseq
        %v2861 = vshrl.u32 %v2860, 7
        %v2862 = vsub.s32 %v2859, %v2861
        %v2863 = vrot.slane %v2849, %v2862
        %v2864 = vcombine.low %v2808, %v2840
        %v2865 = vcombine.high %v2808, %v2840
        %v2866 = vcombine.low %v2815, %v2847
        %v2867 = vcombine.high %v2815, %v2847
        %v2868 = vcombine.low %v2824, %v2856
        %v2869 = vcombine.high %v2824, %v2856
        %v2870 = vcombine.low %v2831, %v2863
        %v2871 = vcombine.high %v2831, %v2863
        %2874 = vrot.lane.b32.xlu0 %v2457, 32
        %v2875 = vpop.permute.xlu0 %2874
        %2876 = vrot.lane.b32.xlu0 %v2593, 32
        %v2877 = vpop.permute.xlu0 %2876
        %2882 = vrot.lane.b32.xlu0 %v2458, 64
        %v2883 = vpop.permute.xlu0 %2882
        %2884 = vrot.lane.b32.xlu0 %v2594, 64
        %v2885 = vpop.permute.xlu0 %2884
        %2890 = vrot.lane.b32.xlu0 %v2459, 96
        %v2891 = vpop.permute.xlu0 %2890
        %2892 = vrot.lane.b32.xlu0 %v2595, 96
        %v2893 = vpop.permute.xlu0 %2892
        %2898 = vrot.lane.b32.xlu0 %v2461, 32
        %v2899 = vpop.permute.xlu0 %2898
        %2900 = vrot.lane.b32.xlu0 %v2597, 32
        %v2901 = vpop.permute.xlu0 %2900
        %2906 = vrot.lane.b32.xlu0 %v2462, 64
        %v2907 = vpop.permute.xlu0 %2906
        %2908 = vrot.lane.b32.xlu0 %v2598, 64
        %v2909 = vpop.permute.xlu0 %2908
        %2914 = vrot.lane.b32.xlu0 %v2463, 96
        %v2915 = vpop.permute.xlu0 %2914
        %2916 = vrot.lane.b32.xlu0 %v2599, 96
        %v2917 = vpop.permute.xlu0 %2916
        %2922 = vrot.lane.b32.xlu0 %v2729, 32
        %v2923 = vpop.permute.xlu0 %2922
        %2924 = vrot.lane.b32.xlu0 %v2865, 32
        %v2925 = vpop.permute.xlu0 %2924
        %2930 = vrot.lane.b32.xlu0 %v2730, 64
        %v2931 = vpop.permute.xlu0 %2930
        %2932 = vrot.lane.b32.xlu0 %v2866, 64
        %v2933 = vpop.permute.xlu0 %2932
        %2938 = vrot.lane.b32.xlu0 %v2731, 96
        %v2939 = vpop.permute.xlu0 %2938
        %2940 = vrot.lane.b32.xlu0 %v2867, 96
        %v2941 = vpop.permute.xlu0 %2940
        %2946 = vrot.lane.b32.xlu0 %v2733, 32
        %v2947 = vpop.permute.xlu0 %2946
        %2948 = vrot.lane.b32.xlu0 %v2869, 32
        %v2949 = vpop.permute.xlu0 %2948
        %2954 = vrot.lane.b32.xlu0 %v2734, 64
        %v2955 = vpop.permute.xlu0 %2954
        %2956 = vrot.lane.b32.xlu0 %v2870, 64
        %v2957 = vpop.permute.xlu0 %2956
        %2962 = vrot.lane.b32.xlu0 %v2735, 96
        %v2963 = vpop.permute.xlu0 %2962
        %2964 = vrot.lane.b32.xlu0 %v2871, 96
        %v2965 = vpop.permute.xlu0 %2964
        %v2968 = vsel %vm426, %v2456, %v2875
        %v2969 = vsel %vm426, %v2592, %v2877
        %vm2970 = vcmask 523264
        %v2971 = vsel %vm2970, %v2968, %v2883
        %v2972 = vsel %vm2970, %v2969, %v2885
        %vm2973 = vcmask 785408
        %v2974 = vsel %vm2973, %v2971, %v2891
        %v2975 = vsel %vm2973, %v2972, %v2893
        %v2976 = vsel %vm426, %v2460, %v2899
        %v2977 = vsel %vm426, %v2596, %v2901
        %v2978 = vsel %vm2970, %v2976, %v2907
        %v2979 = vsel %vm2970, %v2977, %v2909
        %v2980 = vsel %vm2973, %v2978, %v2915
        %v2981 = vsel %vm2973, %v2979, %v2917
        %v2982 = vsel %vm426, %v2728, %v2923
        %v2983 = vsel %vm426, %v2864, %v2925
        %v2984 = vsel %vm2970, %v2982, %v2931
        %v2985 = vsel %vm2970, %v2983, %v2933
        %v2986 = vsel %vm2973, %v2984, %v2939
        %v2987 = vsel %vm2973, %v2985, %v2941
        %v2988 = vsel %vm426, %v2732, %v2947
        %v2989 = vsel %vm426, %v2868, %v2949
        %v2990 = vsel %vm2970, %v2988, %v2955
        %v2991 = vsel %vm2970, %v2989, %v2957
        %v2992 = vsel %vm2973, %v2990, %v2963
        %v2993 = vsel %vm2973, %v2991, %v2965
        %3002 = vrot.lane.b32.xlu0 %v2974, 64
        %v3003 = vpop.permute.xlu0 %3002
        %3004 = vrot.lane.b32.xlu0 %v2980, 64
        %v3005 = vpop.permute.xlu0 %3004
        %3006 = vrot.lane.b32.xlu0 %v2986, 64
        %v3007 = vpop.permute.xlu0 %3006
        %3008 = vrot.lane.b32.xlu0 %v2992, 64
        %v3009 = vpop.permute.xlu0 %3008
        %3010 = vrot.lane.b32.xlu0 %v2975, 64
        %v3011 = vpop.permute.xlu0 %3010
        %3012 = vrot.lane.b32.xlu0 %v2981, 64
        %v3013 = vpop.permute.xlu0 %3012
        %3014 = vrot.lane.b32.xlu0 %v2987, 64
        %v3015 = vpop.permute.xlu0 %3014
        %3016 = vrot.lane.b32.xlu0 %v2993, 64
        %v3017 = vpop.permute.xlu0 %3016
        %v3018 = vsel %vm2970, %v3003, %v3005
        %v3019 = vsel %vm2970, %v3005, %v3007
        %v3020 = vsel %vm2970, %v3007, %v3009
        %v3021 = vsel %vm2970, %v3011, %v3013
        %v3022 = vsel %vm2970, %v3013, %v3015
        %v3023 = vsel %vm2970, %v3015, %v3017
        %v3028 = vsel %vm2970, 0.0, %v3003
        %v3029 = vsel %vm2970, 0.0, %v3011
        %v3030 = vsel %vm2970, %v3009, 0.0
        %v3031 = vsel %vm2970, %v3017, 0.0
        %v3036 = vrot.slane %v3028, 6
        %v3037 = vrot.slane %v3018, 6
        %v3038 = vrot.slane %v3019, 6
        %v3039 = vrot.slane %v3020, 6
        %v3040 = vrot.slane %v3030, 6
        %v3041 = vrot.slane %v3029, 6
        %v3042 = vsel %vm652, %v3036, %v3041
        %v3043 = vrot.slane %v3021, 6
        %v3044 = vsel %vm652, %v3037, %v3043
        %v3045 = vrot.slane %v3022, 6
        %v3046 = vsel %vm652, %v3038, %v3045
        %v3047 = vrot.slane %v3023, 6
        %v3048 = vsel %vm652, %v3039, %v3047
        %v3049 = vrot.slane %v3031, 6
        %v3050 = vsel %vm652, %v3040, %v3049
        %v3066 = vsel %vm652, 0.0, %v3036
        %v3067 = vsel %vm652, 0.0, %v3037
        %v3068 = vsel %vm652, 0.0, %v3038
        %v3069 = vsel %vm652, 0.0, %v3039
        %v3070 = vsel %vm652, 0.0, %v3040
        %v3071 = vsel %vm652, %v3041, 0.0
        %v3072 = vsel %vm652, %v3043, 0.0
        %v3073 = vsel %vm652, %v3045, 0.0
        %v3074 = vsel %vm652, %v3047, 0.0
        %v3075 = vsel %vm652, %v3049, 0.0
        %v3076 = vpack.c.bf16 %v3042, %v3066
        %v3077 = vpack.c.bf16 %v3044, %v3067
        %v3078 = vpack.c.bf16 %v3046, %v3068
        %v3079 = vpack.c.bf16 %v3048, %v3069
        %v3080 = vpack.c.bf16 %v3050, %v3070
        %v3081 = vpack.c.bf16 %v3071, %v3071
        %v3082 = vpack.c.bf16 %v3072, %v3072
        %v3083 = vpack.c.bf16 %v3073, %v3073
        %v3084 = vpack.c.bf16 %v3074, %v3074
        %v3085 = vpack.c.bf16 %v3075, %v3075
        %v3086 = vld [vmem:[#allocation8] sm:$0xff]
        %v3087 = vld [vmem:[#allocation8 + $0x8] sm:$0xff]
        %v3088 = vld [vmem:[#allocation8 + $0x10] sm:$0xff]
        %v3089 = vld [vmem:[#allocation8 + $0x18] sm:$0xff]
        %v3090 = vld [vmem:[#allocation8 + $0x20] sm:$0xff]
        %v3091 = vld [vmem:[#allocation8 + $0x28] sm:$0xff]
        %v3092 = vld [vmem:[#allocation8 + $0x30] sm:$0xff]
        %v3093 = vld [vmem:[#allocation8 + $0x38] sm:$0xff]
        %v3094 = vld [vmem:[#allocation7] sm:$0xff]
        %v3095 = vld [vmem:[#allocation7 + $0x8] sm:$0xff]
        %v3096 = vld [vmem:[#allocation7 + $0x10] sm:$0xff]
        %v3097 = vld [vmem:[#allocation7 + $0x18] sm:$0xff]
        %v3098 = vld [vmem:[#allocation7 + $0x20] sm:$0xff]
        %v3099 = vld [vmem:[#allocation7 + $0x28] sm:$0xff]
        %v3100 = vld [vmem:[#allocation7 + $0x30] sm:$0xff]
        %v3101 = vld [vmem:[#allocation7 + $0x38] sm:$0xff]
        %v3102 = vld [vmem:[#allocation7 + $0x40] sm:$0xff]
        %v3103 = vld [vmem:[#allocation7 + $0x48] sm:$0xff]
        %v3104 = vld [vmem:[#allocation7 + $0x50] sm:$0xff]
        %v3105 = vld [vmem:[#allocation7 + $0x58] sm:$0xff]
        %v3106 = vld [vmem:[#allocation7 + $0x60] sm:$0xff]
        %v3107 = vld [vmem:[#allocation7 + $0x68] sm:$0xff]
        %v3108 = vld [vmem:[#allocation7 + $0x70] sm:$0xff]
        %v3109 = vld [vmem:[#allocation7 + $0x78] sm:$0xff]
        %v3110 = vld [vmem:[#allocation7 + $0x80] sm:$0xff]
        %v3111 = vld [vmem:[#allocation7 + $0x88] sm:$0xff]
        %v3112 = vld [vmem:[#allocation7 + $0x90] sm:$0xff]
        %v3113 = vld [vmem:[#allocation7 + $0x98] sm:$0xff]
        %v3114 = vld [vmem:[#allocation7 + $0xa0] sm:$0xff]
        %v3115 = vld [vmem:[#allocation7 + $0xa8] sm:$0xff]
        %v3116 = vld [vmem:[#allocation7 + $0xb0] sm:$0xff]
        %v3117 = vld [vmem:[#allocation7 + $0xb8] sm:$0xff]
        %v3118 = vld [vmem:[#allocation7 + $0xc0] sm:$0xff]
        %v3119 = vld [vmem:[#allocation7 + $0xc8] sm:$0xff]
        %v3120 = vld [vmem:[#allocation7 + $0xd0] sm:$0xff]
        %v3121 = vld [vmem:[#allocation7 + $0xd8] sm:$0xff]
        %v3122 = vld [vmem:[#allocation7 + $0xe0] sm:$0xff]
        %v3123 = vld [vmem:[#allocation7 + $0xe8] sm:$0xff]
        %v3124 = vld [vmem:[#allocation7 + $0xf0] sm:$0xff]
        %v3125 = vld [vmem:[#allocation7 + $0xf8] sm:$0xff]
        %v3126 = vld [vmem:[#allocation7 + $0x100] sm:$0xff]
        %v3127 = vld [vmem:[#allocation7 + $0x108] sm:$0xff]
        %v3128 = vld [vmem:[#allocation7 + $0x110] sm:$0xff]
        %v3129 = vld [vmem:[#allocation7 + $0x118] sm:$0xff]
        %v3130 = vld [vmem:[#allocation7 + $0x120] sm:$0xff]
        %v3131 = vld [vmem:[#allocation7 + $0x128] sm:$0xff]
        %v3132 = vld [vmem:[#allocation7 + $0x130] sm:$0xff]
        %v3133 = vld [vmem:[#allocation7 + $0x138] sm:$0xff]
        %v3134 = vld [vmem:[#allocation7 + $0x140] sm:$0xff]
        %v3135 = vld [vmem:[#allocation7 + $0x148] sm:$0xff]
        %v3136 = vld [vmem:[#allocation7 + $0x150] sm:$0xff]
        %v3137 = vld [vmem:[#allocation7 + $0x158] sm:$0xff]
        %v3138 = vld [vmem:[#allocation7 + $0x160] sm:$0xff]
        %v3139 = vld [vmem:[#allocation7 + $0x168] sm:$0xff]
        %v3140 = vld [vmem:[#allocation7 + $0x170] sm:$0xff]
        %v3141 = vld [vmem:[#allocation7 + $0x178] sm:$0xff]
        %v3142 = vld [vmem:[#allocation7 + $0x180] sm:$0xff]
        %v3143 = vld [vmem:[#allocation7 + $0x188] sm:$0xff]
        %v3144 = vld [vmem:[#allocation7 + $0x190] sm:$0xff]
        %v3145 = vld [vmem:[#allocation7 + $0x198] sm:$0xff]
        %v3146 = vld [vmem:[#allocation7 + $0x1a0] sm:$0xff]
        %v3147 = vld [vmem:[#allocation7 + $0x1a8] sm:$0xff]
        %v3148 = vld [vmem:[#allocation7 + $0x1b0] sm:$0xff]
        %v3149 = vld [vmem:[#allocation7 + $0x1b8] sm:$0xff]
        %v3150 = vld [vmem:[#allocation7 + $0x1c0] sm:$0xff]
        %v3151 = vld [vmem:[#allocation7 + $0x1c8] sm:$0xff]
        %v3152 = vld [vmem:[#allocation7 + $0x1d0] sm:$0xff]
        %v3153 = vld [vmem:[#allocation7 + $0x1d8] sm:$0xff]
        %v3154 = vld [vmem:[#allocation7 + $0x1e0] sm:$0xff]
        %v3155 = vld [vmem:[#allocation7 + $0x1e8] sm:$0xff]
        %v3156 = vld [vmem:[#allocation7 + $0x1f0] sm:$0xff]
        %v3157 = vld [vmem:[#allocation7 + $0x1f8] sm:$0xff]
        %v3158 = vld [vmem:[#allocation7 + $0x200] sm:$0xff]
        %v3159 = vld [vmem:[#allocation7 + $0x208] sm:$0xff]
        %v3160 = vld [vmem:[#allocation7 + $0x210] sm:$0xff]
        %v3161 = vld [vmem:[#allocation7 + $0x218] sm:$0xff]
        %v3162 = vld [vmem:[#allocation7 + $0x220] sm:$0xff]
        %v3163 = vld [vmem:[#allocation7 + $0x228] sm:$0xff]
        %v3164 = vld [vmem:[#allocation7 + $0x230] sm:$0xff]
        %v3165 = vld [vmem:[#allocation7 + $0x238] sm:$0xff]
        %v3166 = vld [vmem:[#allocation7 + $0x240] sm:$0xff]
        %v3167 = vld [vmem:[#allocation7 + $0x248] sm:$0xff]
        %v3168 = vld [vmem:[#allocation7 + $0x250] sm:$0xff]
        %v3169 = vld [vmem:[#allocation7 + $0x258] sm:$0xff]
        %v3170 = vld [vmem:[#allocation7 + $0x260] sm:$0xff]
        %v3171 = vld [vmem:[#allocation7 + $0x268] sm:$0xff]
        %v3172 = vld [vmem:[#allocation7 + $0x270] sm:$0xff]
        %v3173 = vld [vmem:[#allocation7 + $0x278] sm:$0xff]
        %v3174 = vld [vmem:[#allocation7 + $0x280] sm:$0xff]
        %v3175 = vld [vmem:[#allocation7 + $0x288] sm:$0xff]
        %v3176 = vld [vmem:[#allocation7 + $0x290] sm:$0xff]
        %v3177 = vld [vmem:[#allocation7 + $0x298] sm:$0xff]
        %v3178 = vld [vmem:[#allocation7 + $0x2a0] sm:$0xff]
        %v3179 = vld [vmem:[#allocation7 + $0x2a8] sm:$0xff]
        %v3180 = vld [vmem:[#allocation7 + $0x2b0] sm:$0xff]
        %v3181 = vld [vmem:[#allocation7 + $0x2b8] sm:$0xff]
        %v3182 = vld [vmem:[#allocation7 + $0x2c0] sm:$0xff]
        %v3183 = vld [vmem:[#allocation7 + $0x2c8] sm:$0xff]
        %v3184 = vld [vmem:[#allocation7 + $0x2d0] sm:$0xff]
        %v3185 = vld [vmem:[#allocation7 + $0x2d8] sm:$0xff]
        %v3186 = vld [vmem:[#allocation7 + $0x2e0] sm:$0xff]
        %v3187 = vld [vmem:[#allocation7 + $0x2e8] sm:$0xff]
        %v3188 = vld [vmem:[#allocation7 + $0x2f0] sm:$0xff]
        %v3189 = vld [vmem:[#allocation7 + $0x2f8] sm:$0xff]
        %v3190 = vld [vmem:[#allocation7 + $0x300] sm:$0xff]
        %v3191 = vld [vmem:[#allocation7 + $0x308] sm:$0xff]
        %v3192 = vld [vmem:[#allocation7 + $0x310] sm:$0xff]
        %v3193 = vld [vmem:[#allocation7 + $0x318] sm:$0xff]
        %v3194 = vld [vmem:[#allocation7 + $0x320] sm:$0xff]
        %v3195 = vld [vmem:[#allocation7 + $0x328] sm:$0xff]
        %v3196 = vld [vmem:[#allocation7 + $0x330] sm:$0xff]
        %v3197 = vld [vmem:[#allocation7 + $0x338] sm:$0xff]
        %v3198 = vld [vmem:[#allocation7 + $0x340] sm:$0xff]
        %v3199 = vld [vmem:[#allocation7 + $0x348] sm:$0xff]
        %v3200 = vld [vmem:[#allocation7 + $0x350] sm:$0xff]
        %v3201 = vld [vmem:[#allocation7 + $0x358] sm:$0xff]
        %v3202 = vld [vmem:[#allocation7 + $0x360] sm:$0xff]
        %v3203 = vld [vmem:[#allocation7 + $0x368] sm:$0xff]
        %v3204 = vld [vmem:[#allocation7 + $0x370] sm:$0xff]
        %v3205 = vld [vmem:[#allocation7 + $0x378] sm:$0xff]
        %v3206 = vld [vmem:[#allocation7 + $0x380] sm:$0xff]
        %v3207 = vld [vmem:[#allocation7 + $0x388] sm:$0xff]
        %v3208 = vld [vmem:[#allocation7 + $0x390] sm:$0xff]
        %v3209 = vld [vmem:[#allocation7 + $0x398] sm:$0xff]
        %v3210 = vld [vmem:[#allocation7 + $0x3a0] sm:$0xff]
        %v3211 = vld [vmem:[#allocation7 + $0x3a8] sm:$0xff]
        %v3212 = vld [vmem:[#allocation7 + $0x3b0] sm:$0xff]
        %v3213 = vld [vmem:[#allocation7 + $0x3b8] sm:$0xff]
        %v3214 = vld [vmem:[#allocation7 + $0x3c0] sm:$0xff]
        %v3215 = vld [vmem:[#allocation7 + $0x3c8] sm:$0xff]
        %v3216 = vld [vmem:[#allocation7 + $0x3d0] sm:$0xff]
        %v3217 = vld [vmem:[#allocation7 + $0x3d8] sm:$0xff]
        %v3218 = vld [vmem:[#allocation7 + $0x3e0] sm:$0xff]
        %v3219 = vld [vmem:[#allocation7 + $0x3e8] sm:$0xff]
        %v3220 = vld [vmem:[#allocation7 + $0x3f0] sm:$0xff]
        %v3221 = vld [vmem:[#allocation7 + $0x3f8] sm:$0xff]
        %v3222 = vld [vmem:[#allocation7 + $0x400] sm:$0xff]
        %v3223 = vld [vmem:[#allocation7 + $0x408] sm:$0xff]
        %v3224 = vld [vmem:[#allocation7 + $0x410] sm:$0xff]
        %v3225 = vld [vmem:[#allocation7 + $0x418] sm:$0xff]
        %v3226 = vld [vmem:[#allocation7 + $0x420] sm:$0xff]
        %v3227 = vld [vmem:[#allocation7 + $0x428] sm:$0xff]
        %v3228 = vld [vmem:[#allocation7 + $0x430] sm:$0xff]
        %v3229 = vld [vmem:[#allocation7 + $0x438] sm:$0xff]
        %v3230 = vld [vmem:[#allocation7 + $0x440] sm:$0xff]
        %v3231 = vld [vmem:[#allocation7 + $0x448] sm:$0xff]
        %v3232 = vld [vmem:[#allocation7 + $0x450] sm:$0xff]
        %v3233 = vld [vmem:[#allocation7 + $0x458] sm:$0xff]
        %v3234 = vld [vmem:[#allocation7 + $0x460] sm:$0xff]
        %v3235 = vld [vmem:[#allocation7 + $0x468] sm:$0xff]
        %v3236 = vld [vmem:[#allocation7 + $0x470] sm:$0xff]
        %v3237 = vld [vmem:[#allocation7 + $0x478] sm:$0xff]
        %v3238 = vld [vmem:[#allocation7 + $0x480] sm:$0xff]
        %v3239 = vld [vmem:[#allocation7 + $0x488] sm:$0xff]
        %v3240 = vld [vmem:[#allocation7 + $0x490] sm:$0xff]
        %v3241 = vld [vmem:[#allocation7 + $0x498] sm:$0xff]
        %v3242 = vld [vmem:[#allocation7 + $0x4a0] sm:$0xff]
        %v3243 = vld [vmem:[#allocation7 + $0x4a8] sm:$0xff]
        %v3244 = vld [vmem:[#allocation7 + $0x4b0] sm:$0xff]
        %v3245 = vld [vmem:[#allocation7 + $0x4b8] sm:$0xff]
        %v3246 = vld [vmem:[#allocation7 + $0x4c0] sm:$0xff]
        %v3247 = vld [vmem:[#allocation7 + $0x4c8] sm:$0xff]
        %v3248 = vld [vmem:[#allocation7 + $0x4d0] sm:$0xff]
        %v3249 = vld [vmem:[#allocation7 + $0x4d8] sm:$0xff]
        %v3250 = vld [vmem:[#allocation7 + $0x4e0] sm:$0xff]
        %v3251 = vld [vmem:[#allocation7 + $0x4e8] sm:$0xff]
        %v3252 = vld [vmem:[#allocation7 + $0x4f0] sm:$0xff]
        %v3253 = vld [vmem:[#allocation7 + $0x4f8] sm:$0xff]
        %v3414 = vunpack.c.l.b16 %v3094
        %v3415 = vunpack.c.h.b16 %v3094
        %v3416 = vunpack.c.l.b16 %v3095
        %v3417 = vunpack.c.h.b16 %v3095
        %v3418 = vunpack.c.l.b16 %v3096
        %v3419 = vunpack.c.h.b16 %v3096
        %v3420 = vunpack.c.l.b16 %v3097
        %v3421 = vunpack.c.h.b16 %v3097
        %v3422 = vunpack.c.l.b16 %v3098
        %v3423 = vunpack.c.h.b16 %v3098
        %v3424 = vunpack.c.l.b16 %v3099
        %v3425 = vunpack.c.h.b16 %v3099
        %v3426 = vunpack.c.l.b16 %v3100
        %v3427 = vunpack.c.h.b16 %v3100
        %v3428 = vunpack.c.l.b16 %v3101
        %v3429 = vunpack.c.h.b16 %v3101
        %v3430 = vunpack.c.l.b16 %v3102
        %v3431 = vunpack.c.h.b16 %v3102
        %v3432 = vunpack.c.l.b16 %v3103
        %v3433 = vunpack.c.h.b16 %v3103
        %v3434 = vunpack.c.l.b16 %v3104
        %v3435 = vunpack.c.h.b16 %v3104
        %v3436 = vunpack.c.l.b16 %v3105
        %v3437 = vunpack.c.h.b16 %v3105
        %v3438 = vunpack.c.l.b16 %v3106
        %v3439 = vunpack.c.h.b16 %v3106
        %v3440 = vunpack.c.l.b16 %v3107
        %v3441 = vunpack.c.h.b16 %v3107
        %v3442 = vunpack.c.l.b16 %v3108
        %v3443 = vunpack.c.h.b16 %v3108
        %v3444 = vunpack.c.l.b16 %v3109
        %v3445 = vunpack.c.h.b16 %v3109
        %v3446 = vunpack.c.l.b16 %v3110
        %v3447 = vunpack.c.h.b16 %v3110
        %v3448 = vunpack.c.l.b16 %v3111
        %v3449 = vunpack.c.h.b16 %v3111
        %v3450 = vunpack.c.l.b16 %v3112
        %v3451 = vunpack.c.h.b16 %v3112
        %v3452 = vunpack.c.l.b16 %v3113
        %v3453 = vunpack.c.h.b16 %v3113
        %v3454 = vunpack.c.l.b16 %v3114
        %v3455 = vunpack.c.h.b16 %v3114
        %v3456 = vunpack.c.l.b16 %v3115
        %v3457 = vunpack.c.h.b16 %v3115
        %v3458 = vunpack.c.l.b16 %v3116
        %v3459 = vunpack.c.h.b16 %v3116
        %v3460 = vunpack.c.l.b16 %v3117
        %v3461 = vunpack.c.h.b16 %v3117
        %v3462 = vunpack.c.l.b16 %v3118
        %v3463 = vunpack.c.h.b16 %v3118
        %v3464 = vunpack.c.l.b16 %v3119
        %v3465 = vunpack.c.h.b16 %v3119
        %v3466 = vunpack.c.l.b16 %v3120
        %v3467 = vunpack.c.h.b16 %v3120
        %v3468 = vunpack.c.l.b16 %v3121
        %v3469 = vunpack.c.h.b16 %v3121
        %v3470 = vunpack.c.l.b16 %v3122
        %v3471 = vunpack.c.h.b16 %v3122
        %v3472 = vunpack.c.l.b16 %v3123
        %v3473 = vunpack.c.h.b16 %v3123
        %v3474 = vunpack.c.l.b16 %v3124
        %v3475 = vunpack.c.h.b16 %v3124
        %v3476 = vunpack.c.l.b16 %v3125
        %v3477 = vunpack.c.h.b16 %v3125
        %v3478 = vunpack.c.l.b16 %v3126
        %v3479 = vunpack.c.h.b16 %v3126
        %v3480 = vunpack.c.l.b16 %v3127
        %v3481 = vunpack.c.h.b16 %v3127
        %v3482 = vunpack.c.l.b16 %v3128
        %v3483 = vunpack.c.h.b16 %v3128
        %v3484 = vunpack.c.l.b16 %v3129
        %v3485 = vunpack.c.h.b16 %v3129
        %v3486 = vunpack.c.l.b16 %v3130
        %v3487 = vunpack.c.h.b16 %v3130
        %v3488 = vunpack.c.l.b16 %v3131
        %v3489 = vunpack.c.h.b16 %v3131
        %v3490 = vunpack.c.l.b16 %v3132
        %v3491 = vunpack.c.h.b16 %v3132
        %v3492 = vunpack.c.l.b16 %v3133
        %v3493 = vunpack.c.h.b16 %v3133
        %v3494 = vunpack.c.l.b16 %v3134
        %v3495 = vunpack.c.h.b16 %v3134
        %v3496 = vunpack.c.l.b16 %v3135
        %v3497 = vunpack.c.h.b16 %v3135
        %v3498 = vunpack.c.l.b16 %v3136
        %v3499 = vunpack.c.h.b16 %v3136
        %v3500 = vunpack.c.l.b16 %v3137
        %v3501 = vunpack.c.h.b16 %v3137
        %v3502 = vunpack.c.l.b16 %v3138
        %v3503 = vunpack.c.h.b16 %v3138
        %v3504 = vunpack.c.l.b16 %v3139
        %v3505 = vunpack.c.h.b16 %v3139
        %v3506 = vunpack.c.l.b16 %v3140
        %v3507 = vunpack.c.h.b16 %v3140
        %v3508 = vunpack.c.l.b16 %v3141
        %v3509 = vunpack.c.h.b16 %v3141
        %v3510 = vunpack.c.l.b16 %v3142
        %v3511 = vunpack.c.h.b16 %v3142
        %v3512 = vunpack.c.l.b16 %v3143
        %v3513 = vunpack.c.h.b16 %v3143
        %v3514 = vunpack.c.l.b16 %v3144
        %v3515 = vunpack.c.h.b16 %v3144
        %v3516 = vunpack.c.l.b16 %v3145
        %v3517 = vunpack.c.h.b16 %v3145
        %v3518 = vunpack.c.l.b16 %v3146
        %v3519 = vunpack.c.h.b16 %v3146
        %v3520 = vunpack.c.l.b16 %v3147
        %v3521 = vunpack.c.h.b16 %v3147
        %v3522 = vunpack.c.l.b16 %v3148
        %v3523 = vunpack.c.h.b16 %v3148
        %v3524 = vunpack.c.l.b16 %v3149
        %v3525 = vunpack.c.h.b16 %v3149
        %v3526 = vunpack.c.l.b16 %v3150
        %v3527 = vunpack.c.h.b16 %v3150
        %v3528 = vunpack.c.l.b16 %v3151
        %v3529 = vunpack.c.h.b16 %v3151
        %v3530 = vunpack.c.l.b16 %v3152
        %v3531 = vunpack.c.h.b16 %v3152
        %v3532 = vunpack.c.l.b16 %v3153
        %v3533 = vunpack.c.h.b16 %v3153
        %v3534 = vunpack.c.l.b16 %v3154
        %v3535 = vunpack.c.h.b16 %v3154
        %v3536 = vunpack.c.l.b16 %v3155
        %v3537 = vunpack.c.h.b16 %v3155
        %v3538 = vunpack.c.l.b16 %v3156
        %v3539 = vunpack.c.h.b16 %v3156
        %v3540 = vunpack.c.l.b16 %v3157
        %v3541 = vunpack.c.h.b16 %v3157
        %v3542 = vunpack.c.l.b16 %v3158
        %v3543 = vunpack.c.h.b16 %v3158
        %v3544 = vunpack.c.l.b16 %v3159
        %v3545 = vunpack.c.h.b16 %v3159
        %v3546 = vunpack.c.l.b16 %v3160
        %v3547 = vunpack.c.h.b16 %v3160
        %v3548 = vunpack.c.l.b16 %v3161
        %v3549 = vunpack.c.h.b16 %v3161
        %v3550 = vunpack.c.l.b16 %v3162
        %v3551 = vunpack.c.h.b16 %v3162
        %v3552 = vunpack.c.l.b16 %v3163
        %v3553 = vunpack.c.h.b16 %v3163
        %v3554 = vunpack.c.l.b16 %v3164
        %v3555 = vunpack.c.h.b16 %v3164
        %v3556 = vunpack.c.l.b16 %v3165
        %v3557 = vunpack.c.h.b16 %v3165
        %v3558 = vunpack.c.l.b16 %v3166
        %v3559 = vunpack.c.h.b16 %v3166
        %v3560 = vunpack.c.l.b16 %v3167
        %v3561 = vunpack.c.h.b16 %v3167
        %v3562 = vunpack.c.l.b16 %v3168
        %v3563 = vunpack.c.h.b16 %v3168
        %v3564 = vunpack.c.l.b16 %v3169
        %v3565 = vunpack.c.h.b16 %v3169
        %v3566 = vunpack.c.l.b16 %v3170
        %v3567 = vunpack.c.h.b16 %v3170
        %v3568 = vunpack.c.l.b16 %v3171
        %v3569 = vunpack.c.h.b16 %v3171
        %v3570 = vunpack.c.l.b16 %v3172
        %v3571 = vunpack.c.h.b16 %v3172
        %v3572 = vunpack.c.l.b16 %v3173
        %v3573 = vunpack.c.h.b16 %v3173
        %v3574 = vunpack.c.l.b16 %v3174
        %v3575 = vunpack.c.h.b16 %v3174
        %v3576 = vunpack.c.l.b16 %v3175
        %v3577 = vunpack.c.h.b16 %v3175
        %v3578 = vunpack.c.l.b16 %v3176
        %v3579 = vunpack.c.h.b16 %v3176
        %v3580 = vunpack.c.l.b16 %v3177
        %v3581 = vunpack.c.h.b16 %v3177
        %v3582 = vunpack.c.l.b16 %v3178
        %v3583 = vunpack.c.h.b16 %v3178
        %v3584 = vunpack.c.l.b16 %v3179
        %v3585 = vunpack.c.h.b16 %v3179
        %v3586 = vunpack.c.l.b16 %v3180
        %v3587 = vunpack.c.h.b16 %v3180
        %v3588 = vunpack.c.l.b16 %v3181
        %v3589 = vunpack.c.h.b16 %v3181
        %v3590 = vunpack.c.l.b16 %v3182
        %v3591 = vunpack.c.h.b16 %v3182
        %v3592 = vunpack.c.l.b16 %v3183
        %v3593 = vunpack.c.h.b16 %v3183
        %v3594 = vunpack.c.l.b16 %v3184
        %v3595 = vunpack.c.h.b16 %v3184
        %v3596 = vunpack.c.l.b16 %v3185
        %v3597 = vunpack.c.h.b16 %v3185
        %v3598 = vunpack.c.l.b16 %v3186
        %v3599 = vunpack.c.h.b16 %v3186
        %v3600 = vunpack.c.l.b16 %v3187
        %v3601 = vunpack.c.h.b16 %v3187
        %v3602 = vunpack.c.l.b16 %v3188
        %v3603 = vunpack.c.h.b16 %v3188
        %v3604 = vunpack.c.l.b16 %v3189
        %v3605 = vunpack.c.h.b16 %v3189
        %v3606 = vunpack.c.l.b16 %v3190
        %v3607 = vunpack.c.h.b16 %v3190
        %v3608 = vunpack.c.l.b16 %v3191
        %v3609 = vunpack.c.h.b16 %v3191
        %v3610 = vunpack.c.l.b16 %v3192
        %v3611 = vunpack.c.h.b16 %v3192
        %v3612 = vunpack.c.l.b16 %v3193
        %v3613 = vunpack.c.h.b16 %v3193
        %v3614 = vunpack.c.l.b16 %v3194
        %v3615 = vunpack.c.h.b16 %v3194
        %v3616 = vunpack.c.l.b16 %v3195
        %v3617 = vunpack.c.h.b16 %v3195
        %v3618 = vunpack.c.l.b16 %v3196
        %v3619 = vunpack.c.h.b16 %v3196
        %v3620 = vunpack.c.l.b16 %v3197
        %v3621 = vunpack.c.h.b16 %v3197
        %v3622 = vunpack.c.l.b16 %v3198
        %v3623 = vunpack.c.h.b16 %v3198
        %v3624 = vunpack.c.l.b16 %v3199
        %v3625 = vunpack.c.h.b16 %v3199
        %v3626 = vunpack.c.l.b16 %v3200
        %v3627 = vunpack.c.h.b16 %v3200
        %v3628 = vunpack.c.l.b16 %v3201
        %v3629 = vunpack.c.h.b16 %v3201
        %v3630 = vunpack.c.l.b16 %v3202
        %v3631 = vunpack.c.h.b16 %v3202
        %v3632 = vunpack.c.l.b16 %v3203
        %v3633 = vunpack.c.h.b16 %v3203
        %v3634 = vunpack.c.l.b16 %v3204
        %v3635 = vunpack.c.h.b16 %v3204
        %v3636 = vunpack.c.l.b16 %v3205
        %v3637 = vunpack.c.h.b16 %v3205
        %v3638 = vunpack.c.l.b16 %v3206
        %v3639 = vunpack.c.h.b16 %v3206
        %v3640 = vunpack.c.l.b16 %v3207
        %v3641 = vunpack.c.h.b16 %v3207
        %v3642 = vunpack.c.l.b16 %v3208
        %v3643 = vunpack.c.h.b16 %v3208
        %v3644 = vunpack.c.l.b16 %v3209
        %v3645 = vunpack.c.h.b16 %v3209
        %v3646 = vunpack.c.l.b16 %v3210
        %v3647 = vunpack.c.h.b16 %v3210
        %v3648 = vunpack.c.l.b16 %v3211
        %v3649 = vunpack.c.h.b16 %v3211
        %v3650 = vunpack.c.l.b16 %v3212
        %v3651 = vunpack.c.h.b16 %v3212
        %v3652 = vunpack.c.l.b16 %v3213
        %v3653 = vunpack.c.h.b16 %v3213
        %v3654 = vunpack.c.l.b16 %v3214
        %v3655 = vunpack.c.h.b16 %v3214
        %v3656 = vunpack.c.l.b16 %v3215
        %v3657 = vunpack.c.h.b16 %v3215
        %v3658 = vunpack.c.l.b16 %v3216
        %v3659 = vunpack.c.h.b16 %v3216
        %v3660 = vunpack.c.l.b16 %v3217
        %v3661 = vunpack.c.h.b16 %v3217
        %v3662 = vunpack.c.l.b16 %v3218
        %v3663 = vunpack.c.h.b16 %v3218
        %v3664 = vunpack.c.l.b16 %v3219
        %v3665 = vunpack.c.h.b16 %v3219
        %v3666 = vunpack.c.l.b16 %v3220
        %v3667 = vunpack.c.h.b16 %v3220
        %v3668 = vunpack.c.l.b16 %v3221
        %v3669 = vunpack.c.h.b16 %v3221
        %v3670 = vunpack.c.l.b16 %v3222
        %v3671 = vunpack.c.h.b16 %v3222
        %v3672 = vunpack.c.l.b16 %v3223
        %v3673 = vunpack.c.h.b16 %v3223
        %v3674 = vunpack.c.l.b16 %v3224
        %v3675 = vunpack.c.h.b16 %v3224
        %v3676 = vunpack.c.l.b16 %v3225
        %v3677 = vunpack.c.h.b16 %v3225
        %v3678 = vunpack.c.l.b16 %v3226
        %v3679 = vunpack.c.h.b16 %v3226
        %v3680 = vunpack.c.l.b16 %v3227
        %v3681 = vunpack.c.h.b16 %v3227
        %v3682 = vunpack.c.l.b16 %v3228
        %v3683 = vunpack.c.h.b16 %v3228
        %v3684 = vunpack.c.l.b16 %v3229
        %v3685 = vunpack.c.h.b16 %v3229
        %v3686 = vunpack.c.l.b16 %v3230
        %v3687 = vunpack.c.h.b16 %v3230
        %v3688 = vunpack.c.l.b16 %v3231
        %v3689 = vunpack.c.h.b16 %v3231
        %v3690 = vunpack.c.l.b16 %v3232
        %v3691 = vunpack.c.h.b16 %v3232
        %v3692 = vunpack.c.l.b16 %v3233
        %v3693 = vunpack.c.h.b16 %v3233
        %v3694 = vunpack.c.l.b16 %v3234
        %v3695 = vunpack.c.h.b16 %v3234
        %v3696 = vunpack.c.l.b16 %v3235
        %v3697 = vunpack.c.h.b16 %v3235
        %v3698 = vunpack.c.l.b16 %v3236
        %v3699 = vunpack.c.h.b16 %v3236
        %v3700 = vunpack.c.l.b16 %v3237
        %v3701 = vunpack.c.h.b16 %v3237
        %v3702 = vunpack.c.l.b16 %v3238
        %v3703 = vunpack.c.h.b16 %v3238
        %v3704 = vunpack.c.l.b16 %v3239
        %v3705 = vunpack.c.h.b16 %v3239
        %v3706 = vunpack.c.l.b16 %v3240
        %v3707 = vunpack.c.h.b16 %v3240
        %v3708 = vunpack.c.l.b16 %v3241
        %v3709 = vunpack.c.h.b16 %v3241
        %v3710 = vunpack.c.l.b16 %v3242
        %v3711 = vunpack.c.h.b16 %v3242
        %v3712 = vunpack.c.l.b16 %v3243
        %v3713 = vunpack.c.h.b16 %v3243
        %v3714 = vunpack.c.l.b16 %v3244
        %v3715 = vunpack.c.h.b16 %v3244
        %v3716 = vunpack.c.l.b16 %v3245
        %v3717 = vunpack.c.h.b16 %v3245
        %v3718 = vunpack.c.l.b16 %v3246
        %v3719 = vunpack.c.h.b16 %v3246
        %v3720 = vunpack.c.l.b16 %v3247
        %v3721 = vunpack.c.h.b16 %v3247
        %v3722 = vunpack.c.l.b16 %v3248
        %v3723 = vunpack.c.h.b16 %v3248
        %v3724 = vunpack.c.l.b16 %v3249
        %v3725 = vunpack.c.h.b16 %v3249
        %v3726 = vunpack.c.l.b16 %v3250
        %v3727 = vunpack.c.h.b16 %v3250
        %v3728 = vunpack.c.l.b16 %v3251
        %v3729 = vunpack.c.h.b16 %v3251
        %v3730 = vunpack.c.l.b16 %v3252
        %v3731 = vunpack.c.h.b16 %v3252
        %v3732 = vunpack.c.l.b16 %v3253
        %v3733 = vunpack.c.h.b16 %v3253
        %v3734 = vpack.c.b16 %v3418, %v3414
        %v3735 = vpack.c.b16 %v3419, %v3415
        %v3736 = vpack.c.b16 %v3420, %v3416
        %v3737 = vpack.c.b16 %v3421, %v3417
        %v3738 = vpack.c.b16 %v3426, %v3422
        %v3739 = vpack.c.b16 %v3427, %v3423
        %v3740 = vpack.c.b16 %v3428, %v3424
        %v3741 = vpack.c.b16 %v3429, %v3425
        %v3742 = vpack.c.b16 %v3434, %v3430
        %v3743 = vpack.c.b16 %v3435, %v3431
        %v3744 = vpack.c.b16 %v3436, %v3432
        %v3745 = vpack.c.b16 %v3437, %v3433
        %v3746 = vpack.c.b16 %v3442, %v3438
        %v3747 = vpack.c.b16 %v3443, %v3439
        %v3748 = vpack.c.b16 %v3444, %v3440
        %v3749 = vpack.c.b16 %v3445, %v3441
        %v3750 = vpack.c.b16 %v3450, %v3446
        %v3751 = vpack.c.b16 %v3451, %v3447
        %v3752 = vpack.c.b16 %v3452, %v3448
        %v3753 = vpack.c.b16 %v3453, %v3449
        %v3754 = vpack.c.b16 %v3458, %v3454
        %v3755 = vpack.c.b16 %v3459, %v3455
        %v3756 = vpack.c.b16 %v3460, %v3456
        %v3757 = vpack.c.b16 %v3461, %v3457
        %v3758 = vpack.c.b16 %v3466, %v3462
        %v3759 = vpack.c.b16 %v3467, %v3463
        %v3760 = vpack.c.b16 %v3468, %v3464
        %v3761 = vpack.c.b16 %v3469, %v3465
        %v3762 = vpack.c.b16 %v3474, %v3470
        %v3763 = vpack.c.b16 %v3475, %v3471
        %v3764 = vpack.c.b16 %v3476, %v3472
        %v3765 = vpack.c.b16 %v3477, %v3473
        %v3766 = vpack.c.b16 %v3482, %v3478
        %v3767 = vpack.c.b16 %v3483, %v3479
        %v3768 = vpack.c.b16 %v3484, %v3480
        %v3769 = vpack.c.b16 %v3485, %v3481
        %v3770 = vpack.c.b16 %v3490, %v3486
        %v3771 = vpack.c.b16 %v3491, %v3487
        %v3772 = vpack.c.b16 %v3492, %v3488
        %v3773 = vpack.c.b16 %v3493, %v3489
        %v3774 = vpack.c.b16 %v3498, %v3494
        %v3775 = vpack.c.b16 %v3499, %v3495
        %v3776 = vpack.c.b16 %v3500, %v3496
        %v3777 = vpack.c.b16 %v3501, %v3497
        %v3778 = vpack.c.b16 %v3506, %v3502
        %v3779 = vpack.c.b16 %v3507, %v3503
        %v3780 = vpack.c.b16 %v3508, %v3504
        %v3781 = vpack.c.b16 %v3509, %v3505
        %v3782 = vpack.c.b16 %v3514, %v3510
        %v3783 = vpack.c.b16 %v3515, %v3511
        %v3784 = vpack.c.b16 %v3516, %v3512
        %v3785 = vpack.c.b16 %v3517, %v3513
        %v3786 = vpack.c.b16 %v3522, %v3518
        %v3787 = vpack.c.b16 %v3523, %v3519
        %v3788 = vpack.c.b16 %v3524, %v3520
        %v3789 = vpack.c.b16 %v3525, %v3521
        %v3790 = vpack.c.b16 %v3530, %v3526
        %v3791 = vpack.c.b16 %v3531, %v3527
        %v3792 = vpack.c.b16 %v3532, %v3528
        %v3793 = vpack.c.b16 %v3533, %v3529
        %v3794 = vpack.c.b16 %v3538, %v3534
        %v3795 = vpack.c.b16 %v3539, %v3535
        %v3796 = vpack.c.b16 %v3540, %v3536
        %v3797 = vpack.c.b16 %v3541, %v3537
        %v3798 = vpack.c.b16 %v3546, %v3542
        %v3799 = vpack.c.b16 %v3547, %v3543
        %v3800 = vpack.c.b16 %v3548, %v3544
        %v3801 = vpack.c.b16 %v3549, %v3545
        %v3802 = vpack.c.b16 %v3554, %v3550
        %v3803 = vpack.c.b16 %v3555, %v3551
        %v3804 = vpack.c.b16 %v3556, %v3552
        %v3805 = vpack.c.b16 %v3557, %v3553
        %v3806 = vpack.c.b16 %v3562, %v3558
        %v3807 = vpack.c.b16 %v3563, %v3559
        %v3808 = vpack.c.b16 %v3564, %v3560
        %v3809 = vpack.c.b16 %v3565, %v3561
        %v3810 = vpack.c.b16 %v3570, %v3566
        %v3811 = vpack.c.b16 %v3571, %v3567
        %v3812 = vpack.c.b16 %v3572, %v3568
        %v3813 = vpack.c.b16 %v3573, %v3569
        %v3814 = vpack.c.b16 %v3578, %v3574
        %v3815 = vpack.c.b16 %v3579, %v3575
        %v3816 = vpack.c.b16 %v3580, %v3576
        %v3817 = vpack.c.b16 %v3581, %v3577
        %v3818 = vpack.c.b16 %v3586, %v3582
        %v3819 = vpack.c.b16 %v3587, %v3583
        %v3820 = vpack.c.b16 %v3588, %v3584
        %v3821 = vpack.c.b16 %v3589, %v3585
        %v3822 = vpack.c.b16 %v3594, %v3590
        %v3823 = vpack.c.b16 %v3595, %v3591
        %v3824 = vpack.c.b16 %v3596, %v3592
        %v3825 = vpack.c.b16 %v3597, %v3593
        %v3826 = vpack.c.b16 %v3602, %v3598
        %v3827 = vpack.c.b16 %v3603, %v3599
        %v3828 = vpack.c.b16 %v3604, %v3600
        %v3829 = vpack.c.b16 %v3605, %v3601
        %v3830 = vpack.c.b16 %v3610, %v3606
        %v3831 = vpack.c.b16 %v3611, %v3607
        %v3832 = vpack.c.b16 %v3612, %v3608
        %v3833 = vpack.c.b16 %v3613, %v3609
        %v3834 = vpack.c.b16 %v3618, %v3614
        %v3835 = vpack.c.b16 %v3619, %v3615
        %v3836 = vpack.c.b16 %v3620, %v3616
        %v3837 = vpack.c.b16 %v3621, %v3617
        %v3838 = vpack.c.b16 %v3626, %v3622
        %v3839 = vpack.c.b16 %v3627, %v3623
        %v3840 = vpack.c.b16 %v3628, %v3624
        %v3841 = vpack.c.b16 %v3629, %v3625
        %v3842 = vpack.c.b16 %v3634, %v3630
        %v3843 = vpack.c.b16 %v3635, %v3631
        %v3844 = vpack.c.b16 %v3636, %v3632
        %v3845 = vpack.c.b16 %v3637, %v3633
        %v3846 = vpack.c.b16 %v3642, %v3638
        %v3847 = vpack.c.b16 %v3643, %v3639
        %v3848 = vpack.c.b16 %v3644, %v3640
        %v3849 = vpack.c.b16 %v3645, %v3641
        %v3850 = vpack.c.b16 %v3650, %v3646
        %v3851 = vpack.c.b16 %v3651, %v3647
        %v3852 = vpack.c.b16 %v3652, %v3648
        %v3853 = vpack.c.b16 %v3653, %v3649
        %v3854 = vpack.c.b16 %v3658, %v3654
        %v3855 = vpack.c.b16 %v3659, %v3655
        %v3856 = vpack.c.b16 %v3660, %v3656
        %v3857 = vpack.c.b16 %v3661, %v3657
        %v3858 = vpack.c.b16 %v3666, %v3662
        %v3859 = vpack.c.b16 %v3667, %v3663
        %v3860 = vpack.c.b16 %v3668, %v3664
        %v3861 = vpack.c.b16 %v3669, %v3665
        %v3862 = vpack.c.b16 %v3674, %v3670
        %v3863 = vpack.c.b16 %v3675, %v3671
        %v3864 = vpack.c.b16 %v3676, %v3672
        %v3865 = vpack.c.b16 %v3677, %v3673
        %v3866 = vpack.c.b16 %v3682, %v3678
        %v3867 = vpack.c.b16 %v3683, %v3679
        %v3868 = vpack.c.b16 %v3684, %v3680
        %v3869 = vpack.c.b16 %v3685, %v3681
        %v3870 = vpack.c.b16 %v3690, %v3686
        %v3871 = vpack.c.b16 %v3691, %v3687
        %v3872 = vpack.c.b16 %v3692, %v3688
        %v3873 = vpack.c.b16 %v3693, %v3689
        %v3874 = vpack.c.b16 %v3698, %v3694
        %v3875 = vpack.c.b16 %v3699, %v3695
        %v3876 = vpack.c.b16 %v3700, %v3696
        %v3877 = vpack.c.b16 %v3701, %v3697
        %v3878 = vpack.c.b16 %v3706, %v3702
        %v3879 = vpack.c.b16 %v3707, %v3703
        %v3880 = vpack.c.b16 %v3708, %v3704
        %v3881 = vpack.c.b16 %v3709, %v3705
        %v3882 = vpack.c.b16 %v3714, %v3710
        %v3883 = vpack.c.b16 %v3715, %v3711
        %v3884 = vpack.c.b16 %v3716, %v3712
        %v3885 = vpack.c.b16 %v3717, %v3713
        %v3886 = vpack.c.b16 %v3722, %v3718
        %v3887 = vpack.c.b16 %v3723, %v3719
        %v3888 = vpack.c.b16 %v3724, %v3720
        %v3889 = vpack.c.b16 %v3725, %v3721
        %v3890 = vpack.c.b16 %v3730, %v3726
        %v3891 = vpack.c.b16 %v3731, %v3727
        %v3892 = vpack.c.b16 %v3732, %v3728
        %v3893 = vpack.c.b16 %v3733, %v3729
        %4054 = vmatprep.subr.bf16.mxu0 %v3735
        %4055 = vmatpush1.bf16.msra.mxu0 %v3734
        %4056 = vmatprep.subr.bf16.mxu0 %v3739
        %4057 = vmatpush1.bf16.msra.mxu0 %v3738
        %4058 = vmatprep.subr.bf16.mxu0 %v3743
        %4059 = vmatpush1.bf16.msra.mxu0 %v3742
        %4060 = vmatprep.subr.bf16.mxu0 %v3747
        %4061 = vmatpush1.bf16.msra.mxu0 %v3746
        %4062 = vmatprep.subr.bf16.mxu0 %v3751
        %4063 = vmatpush1.bf16.msra.mxu0 %v3750
        %4064 = vmatprep.subr.bf16.mxu0 %v3755
        %4065 = vmatpush1.bf16.msra.mxu0 %v3754
        %4066 = vmatprep.subr.bf16.mxu0 %v3759
        %4067 = vmatpush1.bf16.msra.mxu0 %v3758
        %4068 = vmatprep.subr.bf16.mxu0 %v3763
        %4069 = vmatpush1.bf16.msra.mxu0 %v3762
        %4070 = vmatprep.subr.bf16.mxu0 %v3767
        %4071 = vmatpush1.bf16.msra.mxu0 %v3766
        %4072 = vmatprep.subr.bf16.mxu0 %v3771
        %4073 = vmatpush1.bf16.msra.mxu0 %v3770
        %4074 = vmatprep.subr.bf16.mxu0 %v3775
        %4075 = vmatpush1.bf16.msra.mxu0 %v3774
        %4076 = vmatprep.subr.bf16.mxu0 %v3779
        %4077 = vmatpush1.bf16.msra.mxu0 %v3778
        %4078 = vmatprep.subr.bf16.mxu0 %v3783
        %4079 = vmatpush1.bf16.msra.mxu0 %v3782
        %4080 = vmatprep.subr.bf16.mxu0 %v3787
        %4081 = vmatpush1.bf16.msra.mxu0 %v3786
        %4082 = vmatprep.subr.bf16.mxu0 %v3791
        %4083 = vmatpush1.bf16.msra.mxu0 %v3790
        %4084 = vmatprep.subr.bf16.mxu0 %v3795
        %4085 = vmatpush1.bf16.msra.mxu0 %v3794
        %4086 = vmatprep.mubr.bf16.mxu0 %v3077
        %4087 = vmatmul.mubr.bf16.gmra.mrb[0].mxu0 %v3076
        %v4088 = vpop.f32.mrb[0].mxu0
        %v4089 = vadd.f32 0.0, %v4088
        %v4090 = vpop.f32.mrb[0].mxu0
        %v4091 = vadd.f32 0.0, %v4090
        %v4092 = vpop.f32.mrb[0].mxu0
        %v4093 = vadd.f32 0.0, %v4092
        %v4094 = vpop.f32.mrb[0].mxu0
        %v4095 = vadd.f32 0.0, %v4094
        %4096 = vdwg.mxu0
        %4097 = vmatprep.subr.bf16.mxu0 %v3799
        %4098 = vmatpush1.bf16.msra.mxu0 %v3798
        %4099 = vmatprep.subr.bf16.mxu0 %v3803
        %4100 = vmatpush1.bf16.msra.mxu0 %v3802
        %4101 = vmatprep.subr.bf16.mxu0 %v3807
        %4102 = vmatpush1.bf16.msra.mxu0 %v3806
        %4103 = vmatprep.subr.bf16.mxu0 %v3811
        %4104 = vmatpush1.bf16.msra.mxu0 %v3810
        %4105 = vmatprep.subr.bf16.mxu0 %v3815
        %4106 = vmatpush1.bf16.msra.mxu0 %v3814
        %4107 = vmatprep.subr.bf16.mxu0 %v3819
        %4108 = vmatpush1.bf16.msra.mxu0 %v3818
        %4109 = vmatprep.subr.bf16.mxu0 %v3823
        %4110 = vmatpush1.bf16.msra.mxu0 %v3822
        %4111 = vmatprep.subr.bf16.mxu0 %v3827
        %4112 = vmatpush1.bf16.msra.mxu0 %v3826
        %4113 = vmatprep.subr.bf16.mxu0 %v3831
        %4114 = vmatpush1.bf16.msra.mxu0 %v3830
        %4115 = vmatprep.subr.bf16.mxu0 %v3835
        %4116 = vmatpush1.bf16.msra.mxu0 %v3834
        %4117 = vmatprep.subr.bf16.mxu0 %v3839
        %4118 = vmatpush1.bf16.msra.mxu0 %v3838
        %4119 = vmatprep.subr.bf16.mxu0 %v3843
        %4120 = vmatpush1.bf16.msra.mxu0 %v3842
        %4121 = vmatprep.subr.bf16.mxu0 %v3847
        %4122 = vmatpush1.bf16.msra.mxu0 %v3846
        %4123 = vmatprep.subr.bf16.mxu0 %v3851
        %4124 = vmatpush1.bf16.msra.mxu0 %v3850
        %4125 = vmatprep.subr.bf16.mxu0 %v3855
        %4126 = vmatpush1.bf16.msra.mxu0 %v3854
        %4127 = vmatprep.subr.bf16.mxu0 %v3859
        %4128 = vmatpush1.bf16.msra.mxu0 %v3858
        %4129 = vmatprep.mubr.bf16.mxu0 %v3079
        %4130 = vmatmul.mubr.bf16.gmra.mrb[0].mxu0 %v3078
        %v4131 = vpop.f32.mrb[0].mxu0
        %v4132 = vadd.f32 %v4089, %v4131
        %v4133 = vpop.f32.mrb[0].mxu0
        %v4134 = vadd.f32 %v4091, %v4133
        %v4135 = vpop.f32.mrb[0].mxu0
        %v4136 = vadd.f32 %v4093, %v4135
        %v4137 = vpop.f32.mrb[0].mxu0
        %v4138 = vadd.f32 %v4095, %v4137
        %4139 = vdwg.mxu0
        %4140 = vmatprep.subr.bf16.mxu0 %v3863
        %4141 = vmatpush1.bf16.msra.mxu0 %v3862
        %4142 = vmatprep.subr.bf16.mxu0 %v3867
        %4143 = vmatpush1.bf16.msra.mxu0 %v3866
        %4144 = vmatprep.subr.bf16.mxu0 %v3871
        %4145 = vmatpush1.bf16.msra.mxu0 %v3870
        %4146 = vmatprep.subr.bf16.mxu0 %v3875
        %4147 = vmatpush1.bf16.msra.mxu0 %v3874
        %4148 = vmatprep.subr.bf16.mxu0 %v3879
        %4149 = vmatpush1.bf16.msra.mxu0 %v3878
        %4150 = vmatprep.subr.bf16.mxu0 %v3883
        %4151 = vmatpush1.bf16.msra.mxu0 %v3882
        %4152 = vmatprep.subr.bf16.mxu0 %v3887
        %4153 = vmatpush1.bf16.msra.mxu0 %v3886
        %4154 = vmatprep.subr.bf16.mxu0 %v3891
        %4155 = vmatpush1.bf16.msra.mxu0 %v3890
        %4156 = vmatprep.subr.bf16.mxu0 0
        %4157 = vmatpush1.bf16.msra.mxu0 0
        %4158 = vmatprep.subr.bf16.mxu0 0
        %4159 = vmatpush1.bf16.msra.mxu0 0
        %4160 = vmatprep.subr.bf16.mxu0 0
        %4161 = vmatpush1.bf16.msra.mxu0 0
        %4162 = vmatprep.subr.bf16.mxu0 0
        %4163 = vmatpush1.bf16.msra.mxu0 0
        %4164 = vmatprep.subr.bf16.mxu0 0
        %4165 = vmatpush1.bf16.msra.mxu0 0
        %4166 = vmatprep.subr.bf16.mxu0 0
        %4167 = vmatpush1.bf16.msra.mxu0 0
        %4168 = vmatprep.subr.bf16.mxu0 0
        %4169 = vmatpush1.bf16.msra.mxu0 0
        %4170 = vmatprep.subr.bf16.mxu0 0
        %4171 = vmatpush1.bf16.msra.mxu0 0
        %4172 = vmatprep.mubr.bf16.mxu0 0
        %4173 = vmatmul.mubr.bf16.gmra.mrb[0].mxu0 %v3080
        %v4174 = vpop.f32.mrb[0].mxu0
        %v4175 = vadd.f32 %v4132, %v4174
        %v4176 = vpop.f32.mrb[0].mxu0
        %v4177 = vadd.f32 %v4134, %v4176
        %v4178 = vpop.f32.mrb[0].mxu0
        %v4179 = vadd.f32 %v4136, %v4178
        %v4180 = vpop.f32.mrb[0].mxu0
        %v4181 = vadd.f32 %v4138, %v4180
        %4182 = vdwg.mxu0
        %4183 = vmatprep.subr.bf16.mxu0 %v3737
        %4184 = vmatpush1.bf16.msra.mxu0 %v3736
        %4185 = vmatprep.subr.bf16.mxu0 %v3741
        %4186 = vmatpush1.bf16.msra.mxu0 %v3740
        %4187 = vmatprep.subr.bf16.mxu0 %v3745
        %4188 = vmatpush1.bf16.msra.mxu0 %v3744
        %4189 = vmatprep.subr.bf16.mxu0 %v3749
        %4190 = vmatpush1.bf16.msra.mxu0 %v3748
        %4191 = vmatprep.subr.bf16.mxu0 %v3753
        %4192 = vmatpush1.bf16.msra.mxu0 %v3752
        %4193 = vmatprep.subr.bf16.mxu0 %v3757
        %4194 = vmatpush1.bf16.msra.mxu0 %v3756
        %4195 = vmatprep.subr.bf16.mxu0 %v3761
        %4196 = vmatpush1.bf16.msra.mxu0 %v3760
        %4197 = vmatprep.subr.bf16.mxu0 %v3765
        %4198 = vmatpush1.bf16.msra.mxu0 %v3764
        %4199 = vmatprep.subr.bf16.mxu0 %v3769
        %4200 = vmatpush1.bf16.msra.mxu0 %v3768
        %4201 = vmatprep.subr.bf16.mxu0 %v3773
        %4202 = vmatpush1.bf16.msra.mxu0 %v3772
        %4203 = vmatprep.subr.bf16.mxu0 %v3777
        %4204 = vmatpush1.bf16.msra.mxu0 %v3776
        %4205 = vmatprep.subr.bf16.mxu0 %v3781
        %4206 = vmatpush1.bf16.msra.mxu0 %v3780
        %4207 = vmatprep.subr.bf16.mxu0 %v3785
        %4208 = vmatpush1.bf16.msra.mxu0 %v3784
        %4209 = vmatprep.subr.bf16.mxu0 %v3789
        %4210 = vmatpush1.bf16.msra.mxu0 %v3788
        %4211 = vmatprep.subr.bf16.mxu0 %v3793
        %4212 = vmatpush1.bf16.msra.mxu0 %v3792
        %4213 = vmatprep.subr.bf16.mxu0 %v3797
        %4214 = vmatpush1.bf16.msra.mxu0 %v3796
        %4215 = vmatprep.mubr.bf16.mxu0 %v3077
        %4216 = vmatmul.mubr.bf16.gmra.mrb[0].mxu0 %v3076
        %v4217 = vpop.f32.mrb[0].mxu0
        %v4218 = vadd.f32 0.0, %v4217
        %v4219 = vpop.f32.mrb[0].mxu0
        %v4220 = vadd.f32 0.0, %v4219
        %v4221 = vpop.f32.mrb[0].mxu0
        %v4222 = vadd.f32 0.0, %v4221
        %v4223 = vpop.f32.mrb[0].mxu0
        %v4224 = vadd.f32 0.0, %v4223
        %4225 = vdwg.mxu0
        %4226 = vmatprep.subr.bf16.mxu0 %v3801
        %4227 = vmatpush1.bf16.msra.mxu0 %v3800
        %4228 = vmatprep.subr.bf16.mxu0 %v3805
        %4229 = vmatpush1.bf16.msra.mxu0 %v3804
        %4230 = vmatprep.subr.bf16.mxu0 %v3809
        %4231 = vmatpush1.bf16.msra.mxu0 %v3808
        %4232 = vmatprep.subr.bf16.mxu0 %v3813
        %4233 = vmatpush1.bf16.msra.mxu0 %v3812
        %4234 = vmatprep.subr.bf16.mxu0 %v3817
        %4235 = vmatpush1.bf16.msra.mxu0 %v3816
        %4236 = vmatprep.subr.bf16.mxu0 %v3821
        %4237 = vmatpush1.bf16.msra.mxu0 %v3820
        %4238 = vmatprep.subr.bf16.mxu0 %v3825
        %4239 = vmatpush1.bf16.msra.mxu0 %v3824
        %4240 = vmatprep.subr.bf16.mxu0 %v3829
        %4241 = vmatpush1.bf16.msra.mxu0 %v3828
        %4242 = vmatprep.subr.bf16.mxu0 %v3833
        %4243 = vmatpush1.bf16.msra.mxu0 %v3832
        %4244 = vmatprep.subr.bf16.mxu0 %v3837
        %4245 = vmatpush1.bf16.msra.mxu0 %v3836
        %4246 = vmatprep.subr.bf16.mxu0 %v3841
        %4247 = vmatpush1.bf16.msra.mxu0 %v3840
        %4248 = vmatprep.subr.bf16.mxu0 %v3845
        %4249 = vmatpush1.bf16.msra.mxu0 %v3844
        %4250 = vmatprep.subr.bf16.mxu0 %v3849
        %4251 = vmatpush1.bf16.msra.mxu0 %v3848
        %4252 = vmatprep.subr.bf16.mxu0 %v3853
        %4253 = vmatpush1.bf16.msra.mxu0 %v3852
        %4254 = vmatprep.subr.bf16.mxu0 %v3857
        %4255 = vmatpush1.bf16.msra.mxu0 %v3856
        %4256 = vmatprep.subr.bf16.mxu0 %v3861
        %4257 = vmatpush1.bf16.msra.mxu0 %v3860
        %4258 = vmatprep.mubr.bf16.mxu0 %v3079
        %4259 = vmatmul.mubr.bf16.gmra.mrb[0].mxu0 %v3078
        %v4260 = vpop.f32.mrb[0].mxu0
        %v4261 = vadd.f32 %v4218, %v4260
        %v4262 = vpop.f32.mrb[0].mxu0
        %v4263 = vadd.f32 %v4220, %v4262
        %v4264 = vpop.f32.mrb[0].mxu0
        %v4265 = vadd.f32 %v4222, %v4264
        %v4266 = vpop.f32.mrb[0].mxu0
        %v4267 = vadd.f32 %v4224, %v4266
        %4268 = vdwg.mxu0
        %4269 = vmatprep.subr.bf16.mxu0 %v3865
        %4270 = vmatpush1.bf16.msra.mxu0 %v3864
        %4271 = vmatprep.subr.bf16.mxu0 %v3869
        %4272 = vmatpush1.bf16.msra.mxu0 %v3868
        %4273 = vmatprep.subr.bf16.mxu0 %v3873
        %4274 = vmatpush1.bf16.msra.mxu0 %v3872
        %4275 = vmatprep.subr.bf16.mxu0 %v3877
        %4276 = vmatpush1.bf16.msra.mxu0 %v3876
        %4277 = vmatprep.subr.bf16.mxu0 %v3881
        %4278 = vmatpush1.bf16.msra.mxu0 %v3880
        %4279 = vmatprep.subr.bf16.mxu0 %v3885
        %4280 = vmatpush1.bf16.msra.mxu0 %v3884
        %4281 = vmatprep.subr.bf16.mxu0 %v3889
        %4282 = vmatpush1.bf16.msra.mxu0 %v3888
        %4283 = vmatprep.subr.bf16.mxu0 %v3893
        %4284 = vmatpush1.bf16.msra.mxu0 %v3892
        %4285 = vmatprep.subr.bf16.mxu0 0
        %4286 = vmatpush1.bf16.msra.mxu0 0
        %4287 = vmatprep.subr.bf16.mxu0 0
        %4288 = vmatpush1.bf16.msra.mxu0 0
        %4289 = vmatprep.subr.bf16.mxu0 0
        %4290 = vmatpush1.bf16.msra.mxu0 0
        %4291 = vmatprep.subr.bf16.mxu0 0
        %4292 = vmatpush1.bf16.msra.mxu0 0
        %4293 = vmatprep.subr.bf16.mxu0 0
        %4294 = vmatpush1.bf16.msra.mxu0 0
        %4295 = vmatprep.subr.bf16.mxu0 0
        %4296 = vmatpush1.bf16.msra.mxu0 0
        %4297 = vmatprep.subr.bf16.mxu0 0
        %4298 = vmatpush1.bf16.msra.mxu0 0
        %4299 = vmatprep.subr.bf16.mxu0 0
        %4300 = vmatpush1.bf16.msra.mxu0 0
        %4301 = vmatprep.mubr.bf16.mxu0 0
        %4302 = vmatmul.mubr.bf16.gmra.mrb[0].mxu0 %v3080
        %v4303 = vpop.f32.mrb[0].mxu0
        %v4304 = vadd.f32 %v4261, %v4303
        %v4305 = vpop.f32.mrb[0].mxu0
        %v4306 = vadd.f32 %v4263, %v4305
        %v4307 = vpop.f32.mrb[0].mxu0
        %v4308 = vadd.f32 %v4265, %v4307
        %v4309 = vpop.f32.mrb[0].mxu0
        %v4310 = vadd.f32 %v4267, %v4309
        %4311 = vdwg.mxu0
        %v4312 = vadd.f32 %v3086, %v4175
        %v4313 = vadd.f32 %v3087, %v4177
        %v4314 = vadd.f32 %v3088, %v4304
        %v4315 = vadd.f32 %v3089, %v4306
        %v4316 = vadd.f32 %v3090, %v4179
        %v4317 = vadd.f32 %v3091, %v4181
        %v4318 = vadd.f32 %v3092, %v4308
        %v4319 = vadd.f32 %v3093, %v4310
        %s4320 = scalar_lea.vmem [#allocation7], 1280
        %v4321 = vld [vmem:[%s4320] sm:$0xff]
        %v4322 = vld [vmem:[%s4320 + $0x8] sm:$0xff]
        %v4323 = vld [vmem:[%s4320 + $0x10] sm:$0xff]
        %v4324 = vld [vmem:[%s4320 + $0x18] sm:$0xff]
        %v4325 = vld [vmem:[%s4320 + $0x20] sm:$0xff]
        %v4326 = vld [vmem:[%s4320 + $0x28] sm:$0xff]
        %v4327 = vld [vmem:[%s4320 + $0x30] sm:$0xff]
        %v4328 = vld [vmem:[%s4320 + $0x38] sm:$0xff]
        %v4329 = vld [vmem:[%s4320 + $0x40] sm:$0xff]
        %v4330 = vld [vmem:[%s4320 + $0x48] sm:$0xff]
        %v4331 = vld [vmem:[%s4320 + $0x50] sm:$0xff]
        %v4332 = vld [vmem:[%s4320 + $0x58] sm:$0xff]
        %v4333 = vld [vmem:[%s4320 + $0x60] sm:$0xff]
        %v4334 = vld [vmem:[%s4320 + $0x68] sm:$0xff]
        %v4335 = vld [vmem:[%s4320 + $0x70] sm:$0xff]
        %v4336 = vld [vmem:[%s4320 + $0x78] sm:$0xff]
        %v4337 = vld [vmem:[%s4320 + $0x80] sm:$0xff]
        %v4338 = vld [vmem:[%s4320 + $0x88] sm:$0xff]
        %v4339 = vld [vmem:[%s4320 + $0x90] sm:$0xff]
        %v4340 = vld [vmem:[%s4320 + $0x98] sm:$0xff]
        %v4341 = vld [vmem:[%s4320 + $0xa0] sm:$0xff]
        %v4342 = vld [vmem:[%s4320 + $0xa8] sm:$0xff]
        %v4343 = vld [vmem:[%s4320 + $0xb0] sm:$0xff]
        %v4344 = vld [vmem:[%s4320 + $0xb8] sm:$0xff]
        %v4345 = vld [vmem:[%s4320 + $0xc0] sm:$0xff]
        %v4346 = vld [vmem:[%s4320 + $0xc8] sm:$0xff]
        %v4347 = vld [vmem:[%s4320 + $0xd0] sm:$0xff]
        %v4348 = vld [vmem:[%s4320 + $0xd8] sm:$0xff]
        %v4349 = vld [vmem:[%s4320 + $0xe0] sm:$0xff]
        %v4350 = vld [vmem:[%s4320 + $0xe8] sm:$0xff]
        %v4351 = vld [vmem:[%s4320 + $0xf0] sm:$0xff]
        %v4352 = vld [vmem:[%s4320 + $0xf8] sm:$0xff]
        %v4353 = vld [vmem:[%s4320 + $0x100] sm:$0xff]
        %v4354 = vld [vmem:[%s4320 + $0x108] sm:$0xff]
        %v4355 = vld [vmem:[%s4320 + $0x110] sm:$0xff]
        %v4356 = vld [vmem:[%s4320 + $0x118] sm:$0xff]
        %v4357 = vld [vmem:[%s4320 + $0x120] sm:$0xff]
        %v4358 = vld [vmem:[%s4320 + $0x128] sm:$0xff]
        %v4359 = vld [vmem:[%s4320 + $0x130] sm:$0xff]
        %v4360 = vld [vmem:[%s4320 + $0x138] sm:$0xff]
        %v4361 = vld [vmem:[%s4320 + $0x140] sm:$0xff]
        %v4362 = vld [vmem:[%s4320 + $0x148] sm:$0xff]
        %v4363 = vld [vmem:[%s4320 + $0x150] sm:$0xff]
        %v4364 = vld [vmem:[%s4320 + $0x158] sm:$0xff]
        %v4365 = vld [vmem:[%s4320 + $0x160] sm:$0xff]
        %v4366 = vld [vmem:[%s4320 + $0x168] sm:$0xff]
        %v4367 = vld [vmem:[%s4320 + $0x170] sm:$0xff]
        %v4368 = vld [vmem:[%s4320 + $0x178] sm:$0xff]
        %v4369 = vld [vmem:[%s4320 + $0x180] sm:$0xff]
        %v4370 = vld [vmem:[%s4320 + $0x188] sm:$0xff]
        %v4371 = vld [vmem:[%s4320 + $0x190] sm:$0xff]
        %v4372 = vld [vmem:[%s4320 + $0x198] sm:$0xff]
        %v4373 = vld [vmem:[%s4320 + $0x1a0] sm:$0xff]
        %v4374 = vld [vmem:[%s4320 + $0x1a8] sm:$0xff]
        %v4375 = vld [vmem:[%s4320 + $0x1b0] sm:$0xff]
        %v4376 = vld [vmem:[%s4320 + $0x1b8] sm:$0xff]
        %v4377 = vld [vmem:[%s4320 + $0x1c0] sm:$0xff]
        %v4378 = vld [vmem:[%s4320 + $0x1c8] sm:$0xff]
        %v4379 = vld [vmem:[%s4320 + $0x1d0] sm:$0xff]
        %v4380 = vld [vmem:[%s4320 + $0x1d8] sm:$0xff]
        %v4381 = vld [vmem:[%s4320 + $0x1e0] sm:$0xff]
        %v4382 = vld [vmem:[%s4320 + $0x1e8] sm:$0xff]
        %v4383 = vld [vmem:[%s4320 + $0x1f0] sm:$0xff]
        %v4384 = vld [vmem:[%s4320 + $0x1f8] sm:$0xff]
        %v4385 = vld [vmem:[%s4320 + $0x200] sm:$0xff]
        %v4386 = vld [vmem:[%s4320 + $0x208] sm:$0xff]
        %v4387 = vld [vmem:[%s4320 + $0x210] sm:$0xff]
        %v4388 = vld [vmem:[%s4320 + $0x218] sm:$0xff]
        %v4389 = vld [vmem:[%s4320 + $0x220] sm:$0xff]
        %v4390 = vld [vmem:[%s4320 + $0x228] sm:$0xff]
        %v4391 = vld [vmem:[%s4320 + $0x230] sm:$0xff]
        %v4392 = vld [vmem:[%s4320 + $0x238] sm:$0xff]
        %v4393 = vld [vmem:[%s4320 + $0x240] sm:$0xff]
        %v4394 = vld [vmem:[%s4320 + $0x248] sm:$0xff]
        %v4395 = vld [vmem:[%s4320 + $0x250] sm:$0xff]
        %v4396 = vld [vmem:[%s4320 + $0x258] sm:$0xff]
        %v4397 = vld [vmem:[%s4320 + $0x260] sm:$0xff]
        %v4398 = vld [vmem:[%s4320 + $0x268] sm:$0xff]
        %v4399 = vld [vmem:[%s4320 + $0x270] sm:$0xff]
        %v4400 = vld [vmem:[%s4320 + $0x278] sm:$0xff]
        %v4401 = vld [vmem:[%s4320 + $0x280] sm:$0xff]
        %v4402 = vld [vmem:[%s4320 + $0x288] sm:$0xff]
        %v4403 = vld [vmem:[%s4320 + $0x290] sm:$0xff]
        %v4404 = vld [vmem:[%s4320 + $0x298] sm:$0xff]
        %v4405 = vld [vmem:[%s4320 + $0x2a0] sm:$0xff]
        %v4406 = vld [vmem:[%s4320 + $0x2a8] sm:$0xff]
        %v4407 = vld [vmem:[%s4320 + $0x2b0] sm:$0xff]
        %v4408 = vld [vmem:[%s4320 + $0x2b8] sm:$0xff]
        %v4409 = vld [vmem:[%s4320 + $0x2c0] sm:$0xff]
        %v4410 = vld [vmem:[%s4320 + $0x2c8] sm:$0xff]
        %v4411 = vld [vmem:[%s4320 + $0x2d0] sm:$0xff]
        %v4412 = vld [vmem:[%s4320 + $0x2d8] sm:$0xff]
        %v4413 = vld [vmem:[%s4320 + $0x2e0] sm:$0xff]
        %v4414 = vld [vmem:[%s4320 + $0x2e8] sm:$0xff]
        %v4415 = vld [vmem:[%s4320 + $0x2f0] sm:$0xff]
        %v4416 = vld [vmem:[%s4320 + $0x2f8] sm:$0xff]
        %v4417 = vld [vmem:[%s4320 + $0x300] sm:$0xff]
        %v4418 = vld [vmem:[%s4320 + $0x308] sm:$0xff]
        %v4419 = vld [vmem:[%s4320 + $0x310] sm:$0xff]
        %v4420 = vld [vmem:[%s4320 + $0x318] sm:$0xff]
        %v4421 = vld [vmem:[%s4320 + $0x320] sm:$0xff]
        %v4422 = vld [vmem:[%s4320 + $0x328] sm:$0xff]
        %v4423 = vld [vmem:[%s4320 + $0x330] sm:$0xff]
        %v4424 = vld [vmem:[%s4320 + $0x338] sm:$0xff]
        %v4425 = vld [vmem:[%s4320 + $0x340] sm:$0xff]
        %v4426 = vld [vmem:[%s4320 + $0x348] sm:$0xff]
        %v4427 = vld [vmem:[%s4320 + $0x350] sm:$0xff]
        %v4428 = vld [vmem:[%s4320 + $0x358] sm:$0xff]
        %v4429 = vld [vmem:[%s4320 + $0x360] sm:$0xff]
        %v4430 = vld [vmem:[%s4320 + $0x368] sm:$0xff]
        %v4431 = vld [vmem:[%s4320 + $0x370] sm:$0xff]
        %v4432 = vld [vmem:[%s4320 + $0x378] sm:$0xff]
        %v4433 = vld [vmem:[%s4320 + $0x380] sm:$0xff]
        %v4434 = vld [vmem:[%s4320 + $0x388] sm:$0xff]
        %v4435 = vld [vmem:[%s4320 + $0x390] sm:$0xff]
        %v4436 = vld [vmem:[%s4320 + $0x398] sm:$0xff]
        %v4437 = vld [vmem:[%s4320 + $0x3a0] sm:$0xff]
        %v4438 = vld [vmem:[%s4320 + $0x3a8] sm:$0xff]
        %v4439 = vld [vmem:[%s4320 + $0x3b0] sm:$0xff]
        %v4440 = vld [vmem:[%s4320 + $0x3b8] sm:$0xff]
        %v4441 = vld [vmem:[%s4320 + $0x3c0] sm:$0xff]
        %v4442 = vld [vmem:[%s4320 + $0x3c8] sm:$0xff]
        %v4443 = vld [vmem:[%s4320 + $0x3d0] sm:$0xff]
        %v4444 = vld [vmem:[%s4320 + $0x3d8] sm:$0xff]
        %v4445 = vld [vmem:[%s4320 + $0x3e0] sm:$0xff]
        %v4446 = vld [vmem:[%s4320 + $0x3e8] sm:$0xff]
        %v4447 = vld [vmem:[%s4320 + $0x3f0] sm:$0xff]
        %v4448 = vld [vmem:[%s4320 + $0x3f8] sm:$0xff]
        %v4449 = vld [vmem:[%s4320 + $0x400] sm:$0xff]
        %v4450 = vld [vmem:[%s4320 + $0x408] sm:$0xff]
        %v4451 = vld [vmem:[%s4320 + $0x410] sm:$0xff]
        %v4452 = vld [vmem:[%s4320 + $0x418] sm:$0xff]
        %v4453 = vld [vmem:[%s4320 + $0x420] sm:$0xff]
        %v4454 = vld [vmem:[%s4320 + $0x428] sm:$0xff]
        %v4455 = vld [vmem:[%s4320 + $0x430] sm:$0xff]
        %v4456 = vld [vmem:[%s4320 + $0x438] sm:$0xff]
        %v4457 = vld [vmem:[%s4320 + $0x440] sm:$0xff]
        %v4458 = vld [vmem:[%s4320 + $0x448] sm:$0xff]
        %v4459 = vld [vmem:[%s4320 + $0x450] sm:$0xff]
        %v4460 = vld [vmem:[%s4320 + $0x458] sm:$0xff]
        %v4461 = vld [vmem:[%s4320 + $0x460] sm:$0xff]
        %v4462 = vld [vmem:[%s4320 + $0x468] sm:$0xff]
        %v4463 = vld [vmem:[%s4320 + $0x470] sm:$0xff]
        %v4464 = vld [vmem:[%s4320 + $0x478] sm:$0xff]
        %v4465 = vld [vmem:[%s4320 + $0x480] sm:$0xff]
        %v4466 = vld [vmem:[%s4320 + $0x488] sm:$0xff]
        %v4467 = vld [vmem:[%s4320 + $0x490] sm:$0xff]
        %v4468 = vld [vmem:[%s4320 + $0x498] sm:$0xff]
        %v4469 = vld [vmem:[%s4320 + $0x4a0] sm:$0xff]
        %v4470 = vld [vmem:[%s4320 + $0x4a8] sm:$0xff]
        %v4471 = vld [vmem:[%s4320 + $0x4b0] sm:$0xff]
        %v4472 = vld [vmem:[%s4320 + $0x4b8] sm:$0xff]
        %v4473 = vld [vmem:[%s4320 + $0x4c0] sm:$0xff]
        %v4474 = vld [vmem:[%s4320 + $0x4c8] sm:$0xff]
        %v4475 = vld [vmem:[%s4320 + $0x4d0] sm:$0xff]
        %v4476 = vld [vmem:[%s4320 + $0x4d8] sm:$0xff]
        %v4477 = vld [vmem:[%s4320 + $0x4e0] sm:$0xff]
        %v4478 = vld [vmem:[%s4320 + $0x4e8] sm:$0xff]
        %v4479 = vld [vmem:[%s4320 + $0x4f0] sm:$0xff]
        %v4480 = vld [vmem:[%s4320 + $0x4f8] sm:$0xff]
        %vm4481 = vsmask.f32 7424
        %v4483 = vshrl.u32 %v3076, 16
        %v4485 = vshll.u32 %v3076, 16
        %v4487 = vrot.slane %v4485, 1
        %v4488 = vor.u32 %v4483, %v4487
        %v4490 = vshll.u32 %v3081, 16
        %v4492 = vrot.slane %v4490, 1
        %v4493 = vsel %vm4481, %v4488, %v4492
        %v4495 = vshrl.u32 %v3077, 16
        %v4497 = vshll.u32 %v3077, 16
        %v4499 = vrot.slane %v4497, 1
        %v4500 = vor.u32 %v4495, %v4499
        %v4502 = vshll.u32 %v3082, 16
        %v4504 = vrot.slane %v4502, 1
        %v4505 = vsel %vm4481, %v4500, %v4504
        %v4507 = vshrl.u32 %v3078, 16
        %v4509 = vshll.u32 %v3078, 16
        %v4511 = vrot.slane %v4509, 1
        %v4512 = vor.u32 %v4507, %v4511
        %v4514 = vshll.u32 %v3083, 16
        %v4516 = vrot.slane %v4514, 1
        %v4517 = vsel %vm4481, %v4512, %v4516
        %v4519 = vshrl.u32 %v3079, 16
        %v4521 = vshll.u32 %v3079, 16
        %v4523 = vrot.slane %v4521, 1
        %v4524 = vor.u32 %v4519, %v4523
        %v4526 = vshll.u32 %v3084, 16
        %v4528 = vrot.slane %v4526, 1
        %v4529 = vsel %vm4481, %v4524, %v4528
        %v4531 = vshrl.u32 %v3080, 16
        %v4533 = vshll.u32 %v3080, 16
        %v4535 = vrot.slane %v4533, 1
        %v4536 = vor.u32 %v4531, %v4535
        %v4538 = vshll.u32 %v3085, 16
        %v4540 = vrot.slane %v4538, 1
        %v4541 = vsel %vm4481, %v4536, %v4540
        %v4707 = vunpack.c.l.b16 %v4321
        %v4708 = vunpack.c.h.b16 %v4321
        %v4709 = vunpack.c.l.b16 %v4322
        %v4710 = vunpack.c.h.b16 %v4322
        %v4711 = vunpack.c.l.b16 %v4323
        %v4712 = vunpack.c.h.b16 %v4323
        %v4713 = vunpack.c.l.b16 %v4324
        %v4714 = vunpack.c.h.b16 %v4324
        %v4715 = vunpack.c.l.b16 %v4325
        %v4716 = vunpack.c.h.b16 %v4325
        %v4717 = vunpack.c.l.b16 %v4326
        %v4718 = vunpack.c.h.b16 %v4326
        %v4719 = vunpack.c.l.b16 %v4327
        %v4720 = vunpack.c.h.b16 %v4327
        %v4721 = vunpack.c.l.b16 %v4328
        %v4722 = vunpack.c.h.b16 %v4328
        %v4723 = vunpack.c.l.b16 %v4329
        %v4724 = vunpack.c.h.b16 %v4329
        %v4725 = vunpack.c.l.b16 %v4330
        %v4726 = vunpack.c.h.b16 %v4330
        %v4727 = vunpack.c.l.b16 %v4331
        %v4728 = vunpack.c.h.b16 %v4331
        %v4729 = vunpack.c.l.b16 %v4332
        %v4730 = vunpack.c.h.b16 %v4332
        %v4731 = vunpack.c.l.b16 %v4333
        %v4732 = vunpack.c.h.b16 %v4333
        %v4733 = vunpack.c.l.b16 %v4334
        %v4734 = vunpack.c.h.b16 %v4334
        %v4735 = vunpack.c.l.b16 %v4335
        %v4736 = vunpack.c.h.b16 %v4335
        %v4737 = vunpack.c.l.b16 %v4336
        %v4738 = vunpack.c.h.b16 %v4336
        %v4739 = vunpack.c.l.b16 %v4337
        %v4740 = vunpack.c.h.b16 %v4337
        %v4741 = vunpack.c.l.b16 %v4338
        %v4742 = vunpack.c.h.b16 %v4338
        %v4743 = vunpack.c.l.b16 %v4339
        %v4744 = vunpack.c.h.b16 %v4339
        %v4745 = vunpack.c.l.b16 %v4340
        %v4746 = vunpack.c.h.b16 %v4340
        %v4747 = vunpack.c.l.b16 %v4341
        %v4748 = vunpack.c.h.b16 %v4341
        %v4749 = vunpack.c.l.b16 %v4342
        %v4750 = vunpack.c.h.b16 %v4342
        %v4751 = vunpack.c.l.b16 %v4343
        %v4752 = vunpack.c.h.b16 %v4343
        %v4753 = vunpack.c.l.b16 %v4344
        %v4754 = vunpack.c.h.b16 %v4344
        %v4755 = vunpack.c.l.b16 %v4345
        %v4756 = vunpack.c.h.b16 %v4345
        %v4757 = vunpack.c.l.b16 %v4346
        %v4758 = vunpack.c.h.b16 %v4346
        %v4759 = vunpack.c.l.b16 %v4347
        %v4760 = vunpack.c.h.b16 %v4347
        %v4761 = vunpack.c.l.b16 %v4348
        %v4762 = vunpack.c.h.b16 %v4348
        %v4763 = vunpack.c.l.b16 %v4349
        %v4764 = vunpack.c.h.b16 %v4349
        %v4765 = vunpack.c.l.b16 %v4350
        %v4766 = vunpack.c.h.b16 %v4350
        %v4767 = vunpack.c.l.b16 %v4351
        %v4768 = vunpack.c.h.b16 %v4351
        %v4769 = vunpack.c.l.b16 %v4352
        %v4770 = vunpack.c.h.b16 %v4352
        %v4771 = vunpack.c.l.b16 %v4353
        %v4772 = vunpack.c.h.b16 %v4353
        %v4773 = vunpack.c.l.b16 %v4354
        %v4774 = vunpack.c.h.b16 %v4354
        %v4775 = vunpack.c.l.b16 %v4355
        %v4776 = vunpack.c.h.b16 %v4355
        %v4777 = vunpack.c.l.b16 %v4356
        %v4778 = vunpack.c.h.b16 %v4356
        %v4779 = vunpack.c.l.b16 %v4357
        %v4780 = vunpack.c.h.b16 %v4357
        %v4781 = vunpack.c.l.b16 %v4358
        %v4782 = vunpack.c.h.b16 %v4358
        %v4783 = vunpack.c.l.b16 %v4359
        %v4784 = vunpack.c.h.b16 %v4359
        %v4785 = vunpack.c.l.b16 %v4360
        %v4786 = vunpack.c.h.b16 %v4360
        %v4787 = vunpack.c.l.b16 %v4361
        %v4788 = vunpack.c.h.b16 %v4361
        %v4789 = vunpack.c.l.b16 %v4362
        %v4790 = vunpack.c.h.b16 %v4362
        %v4791 = vunpack.c.l.b16 %v4363
        %v4792 = vunpack.c.h.b16 %v4363
        %v4793 = vunpack.c.l.b16 %v4364
        %v4794 = vunpack.c.h.b16 %v4364
        %v4795 = vunpack.c.l.b16 %v4365
        %v4796 = vunpack.c.h.b16 %v4365
        %v4797 = vunpack.c.l.b16 %v4366
        %v4798 = vunpack.c.h.b16 %v4366
        %v4799 = vunpack.c.l.b16 %v4367
        %v4800 = vunpack.c.h.b16 %v4367
        %v4801 = vunpack.c.l.b16 %v4368
        %v4802 = vunpack.c.h.b16 %v4368
        %v4803 = vunpack.c.l.b16 %v4369
        %v4804 = vunpack.c.h.b16 %v4369
        %v4805 = vunpack.c.l.b16 %v4370
        %v4806 = vunpack.c.h.b16 %v4370
        %v4807 = vunpack.c.l.b16 %v4371
        %v4808 = vunpack.c.h.b16 %v4371
        %v4809 = vunpack.c.l.b16 %v4372
        %v4810 = vunpack.c.h.b16 %v4372
        %v4811 = vunpack.c.l.b16 %v4373
        %v4812 = vunpack.c.h.b16 %v4373
        %v4813 = vunpack.c.l.b16 %v4374
        %v4814 = vunpack.c.h.b16 %v4374
        %v4815 = vunpack.c.l.b16 %v4375
        %v4816 = vunpack.c.h.b16 %v4375
        %v4817 = vunpack.c.l.b16 %v4376
        %v4818 = vunpack.c.h.b16 %v4376
        %v4819 = vunpack.c.l.b16 %v4377
        %v4820 = vunpack.c.h.b16 %v4377
        %v4821 = vunpack.c.l.b16 %v4378
        %v4822 = vunpack.c.h.b16 %v4378
        %v4823 = vunpack.c.l.b16 %v4379
        %v4824 = vunpack.c.h.b16 %v4379
        %v4825 = vunpack.c.l.b16 %v4380
        %v4826 = vunpack.c.h.b16 %v4380
        %v4827 = vunpack.c.l.b16 %v4381
        %v4828 = vunpack.c.h.b16 %v4381
        %v4829 = vunpack.c.l.b16 %v4382
        %v4830 = vunpack.c.h.b16 %v4382
        %v4831 = vunpack.c.l.b16 %v4383
        %v4832 = vunpack.c.h.b16 %v4383
        %v4833 = vunpack.c.l.b16 %v4384
        %v4834 = vunpack.c.h.b16 %v4384
        %v4835 = vunpack.c.l.b16 %v4385
        %v4836 = vunpack.c.h.b16 %v4385
        %v4837 = vunpack.c.l.b16 %v4386
        %v4838 = vunpack.c.h.b16 %v4386
        %v4839 = vunpack.c.l.b16 %v4387
        %v4840 = vunpack.c.h.b16 %v4387
        %v4841 = vunpack.c.l.b16 %v4388
        %v4842 = vunpack.c.h.b16 %v4388
        %v4843 = vunpack.c.l.b16 %v4389
        %v4844 = vunpack.c.h.b16 %v4389
        %v4845 = vunpack.c.l.b16 %v4390
        %v4846 = vunpack.c.h.b16 %v4390
        %v4847 = vunpack.c.l.b16 %v4391
        %v4848 = vunpack.c.h.b16 %v4391
        %v4849 = vunpack.c.l.b16 %v4392
        %v4850 = vunpack.c.h.b16 %v4392
        %v4851 = vunpack.c.l.b16 %v4393
        %v4852 = vunpack.c.h.b16 %v4393
        %v4853 = vunpack.c.l.b16 %v4394
        %v4854 = vunpack.c.h.b16 %v4394
        %v4855 = vunpack.c.l.b16 %v4395
        %v4856 = vunpack.c.h.b16 %v4395
        %v4857 = vunpack.c.l.b16 %v4396
        %v4858 = vunpack.c.h.b16 %v4396
        %v4859 = vunpack.c.l.b16 %v4397
        %v4860 = vunpack.c.h.b16 %v4397
        %v4861 = vunpack.c.l.b16 %v4398
        %v4862 = vunpack.c.h.b16 %v4398
        %v4863 = vunpack.c.l.b16 %v4399
        %v4864 = vunpack.c.h.b16 %v4399
        %v4865 = vunpack.c.l.b16 %v4400
        %v4866 = vunpack.c.h.b16 %v4400
        %v4867 = vunpack.c.l.b16 %v4401
        %v4868 = vunpack.c.h.b16 %v4401
        %v4869 = vunpack.c.l.b16 %v4402
        %v4870 = vunpack.c.h.b16 %v4402
        %v4871 = vunpack.c.l.b16 %v4403
        %v4872 = vunpack.c.h.b16 %v4403
        %v4873 = vunpack.c.l.b16 %v4404
        %v4874 = vunpack.c.h.b16 %v4404
        %v4875 = vunpack.c.l.b16 %v4405
        %v4876 = vunpack.c.h.b16 %v4405
        %v4877 = vunpack.c.l.b16 %v4406
        %v4878 = vunpack.c.h.b16 %v4406
        %v4879 = vunpack.c.l.b16 %v4407
        %v4880 = vunpack.c.h.b16 %v4407
        %v4881 = vunpack.c.l.b16 %v4408
        %v4882 = vunpack.c.h.b16 %v4408
        %v4883 = vunpack.c.l.b16 %v4409
        %v4884 = vunpack.c.h.b16 %v4409
        %v4885 = vunpack.c.l.b16 %v4410
        %v4886 = vunpack.c.h.b16 %v4410
        %v4887 = vunpack.c.l.b16 %v4411
        %v4888 = vunpack.c.h.b16 %v4411
        %v4889 = vunpack.c.l.b16 %v4412
        %v4890 = vunpack.c.h.b16 %v4412
        %v4891 = vunpack.c.l.b16 %v4413
        %v4892 = vunpack.c.h.b16 %v4413
        %v4893 = vunpack.c.l.b16 %v4414
        %v4894 = vunpack.c.h.b16 %v4414
        %v4895 = vunpack.c.l.b16 %v4415
        %v4896 = vunpack.c.h.b16 %v4415
        %v4897 = vunpack.c.l.b16 %v4416
        %v4898 = vunpack.c.h.b16 %v4416
        %v4899 = vunpack.c.l.b16 %v4417
        %v4900 = vunpack.c.h.b16 %v4417
        %v4901 = vunpack.c.l.b16 %v4418
        %v4902 = vunpack.c.h.b16 %v4418
        %v4903 = vunpack.c.l.b16 %v4419
        %v4904 = vunpack.c.h.b16 %v4419
        %v4905 = vunpack.c.l.b16 %v4420
        %v4906 = vunpack.c.h.b16 %v4420
        %v4907 = vunpack.c.l.b16 %v4421
        %v4908 = vunpack.c.h.b16 %v4421
        %v4909 = vunpack.c.l.b16 %v4422
        %v4910 = vunpack.c.h.b16 %v4422
        %v4911 = vunpack.c.l.b16 %v4423
        %v4912 = vunpack.c.h.b16 %v4423
        %v4913 = vunpack.c.l.b16 %v4424
        %v4914 = vunpack.c.h.b16 %v4424
        %v4915 = vunpack.c.l.b16 %v4425
        %v4916 = vunpack.c.h.b16 %v4425
        %v4917 = vunpack.c.l.b16 %v4426
        %v4918 = vunpack.c.h.b16 %v4426
        %v4919 = vunpack.c.l.b16 %v4427
        %v4920 = vunpack.c.h.b16 %v4427
        %v4921 = vunpack.c.l.b16 %v4428
        %v4922 = vunpack.c.h.b16 %v4428
        %v4923 = vunpack.c.l.b16 %v4429
        %v4924 = vunpack.c.h.b16 %v4429
        %v4925 = vunpack.c.l.b16 %v4430
        %v4926 = vunpack.c.h.b16 %v4430
        %v4927 = vunpack.c.l.b16 %v4431
        %v4928 = vunpack.c.h.b16 %v4431
        %v4929 = vunpack.c.l.b16 %v4432
        %v4930 = vunpack.c.h.b16 %v4432
        %v4931 = vunpack.c.l.b16 %v4433
        %v4932 = vunpack.c.h.b16 %v4433
        %v4933 = vunpack.c.l.b16 %v4434
        %v4934 = vunpack.c.h.b16 %v4434
        %v4935 = vunpack.c.l.b16 %v4435
        %v4936 = vunpack.c.h.b16 %v4435
        %v4937 = vunpack.c.l.b16 %v4436
        %v4938 = vunpack.c.h.b16 %v4436
        %v4939 = vunpack.c.l.b16 %v4437
        %v4940 = vunpack.c.h.b16 %v4437
        %v4941 = vunpack.c.l.b16 %v4438
        %v4942 = vunpack.c.h.b16 %v4438
        %v4943 = vunpack.c.l.b16 %v4439
        %v4944 = vunpack.c.h.b16 %v4439
        %v4945 = vunpack.c.l.b16 %v4440
        %v4946 = vunpack.c.h.b16 %v4440
        %v4947 = vunpack.c.l.b16 %v4441
        %v4948 = vunpack.c.h.b16 %v4441
        %v4949 = vunpack.c.l.b16 %v4442
        %v4950 = vunpack.c.h.b16 %v4442
        %v4951 = vunpack.c.l.b16 %v4443
        %v4952 = vunpack.c.h.b16 %v4443
        %v4953 = vunpack.c.l.b16 %v4444
        %v4954 = vunpack.c.h.b16 %v4444
        %v4955 = vunpack.c.l.b16 %v4445
        %v4956 = vunpack.c.h.b16 %v4445
        %v4957 = vunpack.c.l.b16 %v4446
        %v4958 = vunpack.c.h.b16 %v4446
        %v4959 = vunpack.c.l.b16 %v4447
        %v4960 = vunpack.c.h.b16 %v4447
        %v4961 = vunpack.c.l.b16 %v4448
        %v4962 = vunpack.c.h.b16 %v4448
        %v4963 = vunpack.c.l.b16 %v4449
        %v4964 = vunpack.c.h.b16 %v4449
        %v4965 = vunpack.c.l.b16 %v4450
        %v4966 = vunpack.c.h.b16 %v4450
        %v4967 = vunpack.c.l.b16 %v4451
        %v4968 = vunpack.c.h.b16 %v4451
        %v4969 = vunpack.c.l.b16 %v4452
        %v4970 = vunpack.c.h.b16 %v4452
        %v4971 = vunpack.c.l.b16 %v4453
        %v4972 = vunpack.c.h.b16 %v4453
        %v4973 = vunpack.c.l.b16 %v4454
        %v4974 = vunpack.c.h.b16 %v4454
        %v4975 = vunpack.c.l.b16 %v4455
        %v4976 = vunpack.c.h.b16 %v4455
        %v4977 = vunpack.c.l.b16 %v4456
        %v4978 = vunpack.c.h.b16 %v4456
        %v4979 = vunpack.c.l.b16 %v4457
        %v4980 = vunpack.c.h.b16 %v4457
        %v4981 = vunpack.c.l.b16 %v4458
        %v4982 = vunpack.c.h.b16 %v4458
        %v4983 = vunpack.c.l.b16 %v4459
        %v4984 = vunpack.c.h.b16 %v4459
        %v4985 = vunpack.c.l.b16 %v4460
        %v4986 = vunpack.c.h.b16 %v4460
        %v4987 = vunpack.c.l.b16 %v4461
        %v4988 = vunpack.c.h.b16 %v4461
        %v4989 = vunpack.c.l.b16 %v4462
        %v4990 = vunpack.c.h.b16 %v4462
        %v4991 = vunpack.c.l.b16 %v4463
        %v4992 = vunpack.c.h.b16 %v4463
        %v4993 = vunpack.c.l.b16 %v4464
        %v4994 = vunpack.c.h.b16 %v4464
        %v4995 = vunpack.c.l.b16 %v4465
        %v4996 = vunpack.c.h.b16 %v4465
        %v4997 = vunpack.c.l.b16 %v4466
        %v4998 = vunpack.c.h.b16 %v4466
        %v4999 = vunpack.c.l.b16 %v4467
        %v5000 = vunpack.c.h.b16 %v4467
        %v5001 = vunpack.c.l.b16 %v4468
        %v5002 = vunpack.c.h.b16 %v4468
        %v5003 = vunpack.c.l.b16 %v4469
        %v5004 = vunpack.c.h.b16 %v4469
        %v5005 = vunpack.c.l.b16 %v4470
        %v5006 = vunpack.c.h.b16 %v4470
        %v5007 = vunpack.c.l.b16 %v4471
        %v5008 = vunpack.c.h.b16 %v4471
        %v5009 = vunpack.c.l.b16 %v4472
        %v5010 = vunpack.c.h.b16 %v4472
        %v5011 = vunpack.c.l.b16 %v4473
        %v5012 = vunpack.c.h.b16 %v4473
        %v5013 = vunpack.c.l.b16 %v4474
        %v5014 = vunpack.c.h.b16 %v4474
        %v5015 = vunpack.c.l.b16 %v4475
        %v5016 = vunpack.c.h.b16 %v4475
        %v5017 = vunpack.c.l.b16 %v4476
        %v5018 = vunpack.c.h.b16 %v4476
        %v5019 = vunpack.c.l.b16 %v4477
        %v5020 = vunpack.c.h.b16 %v4477
        %v5021 = vunpack.c.l.b16 %v4478
        %v5022 = vunpack.c.h.b16 %v4478
        %v5023 = vunpack.c.l.b16 %v4479
        %v5024 = vunpack.c.h.b16 %v4479
        %v5025 = vunpack.c.l.b16 %v4480
        %v5026 = vunpack.c.h.b16 %v4480
        %v5027 = vpack.c.b16 %v4711, %v4707
        %v5028 = vpack.c.b16 %v4712, %v4708
        %v5029 = vpack.c.b16 %v4713, %v4709
        %v5030 = vpack.c.b16 %v4714, %v4710
        %v5031 = vpack.c.b16 %v4719, %v4715
        %v5032 = vpack.c.b16 %v4720, %v4716
        %v5033 = vpack.c.b16 %v4721, %v4717
        %v5034 = vpack.c.b16 %v4722, %v4718
        %v5035 = vpack.c.b16 %v4727, %v4723
        %v5036 = vpack.c.b16 %v4728, %v4724
        %v5037 = vpack.c.b16 %v4729, %v4725
        %v5038 = vpack.c.b16 %v4730, %v4726
        %v5039 = vpack.c.b16 %v4735, %v4731
        %v5040 = vpack.c.b16 %v4736, %v4732
        %v5041 = vpack.c.b16 %v4737, %v4733
        %v5042 = vpack.c.b16 %v4738, %v4734
        %v5043 = vpack.c.b16 %v4743, %v4739
        %v5044 = vpack.c.b16 %v4744, %v4740
        %v5045 = vpack.c.b16 %v4745, %v4741
        %v5046 = vpack.c.b16 %v4746, %v4742
        %v5047 = vpack.c.b16 %v4751, %v4747
        %v5048 = vpack.c.b16 %v4752, %v4748
        %v5049 = vpack.c.b16 %v4753, %v4749
        %v5050 = vpack.c.b16 %v4754, %v4750
        %v5051 = vpack.c.b16 %v4759, %v4755
        %v5052 = vpack.c.b16 %v4760, %v4756
        %v5053 = vpack.c.b16 %v4761, %v4757
        %v5054 = vpack.c.b16 %v4762, %v4758
        %v5055 = vpack.c.b16 %v4767, %v4763
        %v5056 = vpack.c.b16 %v4768, %v4764
        %v5057 = vpack.c.b16 %v4769, %v4765
        %v5058 = vpack.c.b16 %v4770, %v4766
        %v5059 = vpack.c.b16 %v4775, %v4771
        %v5060 = vpack.c.b16 %v4776, %v4772
        %v5061 = vpack.c.b16 %v4777, %v4773
        %v5062 = vpack.c.b16 %v4778, %v4774
        %v5063 = vpack.c.b16 %v4783, %v4779
        %v5064 = vpack.c.b16 %v4784, %v4780
        %v5065 = vpack.c.b16 %v4785, %v4781
        %v5066 = vpack.c.b16 %v4786, %v4782
        %v5067 = vpack.c.b16 %v4791, %v4787
        %v5068 = vpack.c.b16 %v4792, %v4788
        %v5069 = vpack.c.b16 %v4793, %v4789
        %v5070 = vpack.c.b16 %v4794, %v4790
        %v5071 = vpack.c.b16 %v4799, %v4795
        %v5072 = vpack.c.b16 %v4800, %v4796
        %v5073 = vpack.c.b16 %v4801, %v4797
        %v5074 = vpack.c.b16 %v4802, %v4798
        %v5075 = vpack.c.b16 %v4807, %v4803
        %v5076 = vpack.c.b16 %v4808, %v4804
        %v5077 = vpack.c.b16 %v4809, %v4805
        %v5078 = vpack.c.b16 %v4810, %v4806
        %v5079 = vpack.c.b16 %v4815, %v4811
        %v5080 = vpack.c.b16 %v4816, %v4812
        %v5081 = vpack.c.b16 %v4817, %v4813
        %v5082 = vpack.c.b16 %v4818, %v4814
        %v5083 = vpack.c.b16 %v4823, %v4819
        %v5084 = vpack.c.b16 %v4824, %v4820
        %v5085 = vpack.c.b16 %v4825, %v4821
        %v5086 = vpack.c.b16 %v4826, %v4822
        %v5087 = vpack.c.b16 %v4831, %v4827
        %v5088 = vpack.c.b16 %v4832, %v4828
        %v5089 = vpack.c.b16 %v4833, %v4829
        %v5090 = vpack.c.b16 %v4834, %v4830
        %v5091 = vpack.c.b16 %v4839, %v4835
        %v5092 = vpack.c.b16 %v4840, %v4836
        %v5093 = vpack.c.b16 %v4841, %v4837
        %v5094 = vpack.c.b16 %v4842, %v4838
        %v5095 = vpack.c.b16 %v4847, %v4843
        %v5096 = vpack.c.b16 %v4848, %v4844
        %v5097 = vpack.c.b16 %v4849, %v4845
        %v5098 = vpack.c.b16 %v4850, %v4846
        %v5099 = vpack.c.b16 %v4855, %v4851
        %v5100 = vpack.c.b16 %v4856, %v4852
        %v5101 = vpack.c.b16 %v4857, %v4853
        %v5102 = vpack.c.b16 %v4858, %v4854
        %v5103 = vpack.c.b16 %v4863, %v4859
        %v5104 = vpack.c.b16 %v4864, %v4860
        %v5105 = vpack.c.b16 %v4865, %v4861
        %v5106 = vpack.c.b16 %v4866, %v4862
        %v5107 = vpack.c.b16 %v4871, %v4867
        %v5108 = vpack.c.b16 %v4872, %v4868
        %v5109 = vpack.c.b16 %v4873, %v4869
        %v5110 = vpack.c.b16 %v4874, %v4870
        %v5111 = vpack.c.b16 %v4879, %v4875
        %v5112 = vpack.c.b16 %v4880, %v4876
        %v5113 = vpack.c.b16 %v4881, %v4877
        %v5114 = vpack.c.b16 %v4882, %v4878
        %v5115 = vpack.c.b16 %v4887, %v4883
        %v5116 = vpack.c.b16 %v4888, %v4884
        %v5117 = vpack.c.b16 %v4889, %v4885
        %v5118 = vpack.c.b16 %v4890, %v4886
        %v5119 = vpack.c.b16 %v4895, %v4891
        %v5120 = vpack.c.b16 %v4896, %v4892
        %v5121 = vpack.c.b16 %v4897, %v4893
        %v5122 = vpack.c.b16 %v4898, %v4894
        %v5123 = vpack.c.b16 %v4903, %v4899
        %v5124 = vpack.c.b16 %v4904, %v4900
        %v5125 = vpack.c.b16 %v4905, %v4901
        %v5126 = vpack.c.b16 %v4906, %v4902
        %v5127 = vpack.c.b16 %v4911, %v4907
        %v5128 = vpack.c.b16 %v4912, %v4908
        %v5129 = vpack.c.b16 %v4913, %v4909
        %v5130 = vpack.c.b16 %v4914, %v4910
        %v5131 = vpack.c.b16 %v4919, %v4915
        %v5132 = vpack.c.b16 %v4920, %v4916
        %v5133 = vpack.c.b16 %v4921, %v4917
        %v5134 = vpack.c.b16 %v4922, %v4918
        %v5135 = vpack.c.b16 %v4927, %v4923
        %v5136 = vpack.c.b16 %v4928, %v4924
        %v5137 = vpack.c.b16 %v4929, %v4925
        %v5138 = vpack.c.b16 %v4930, %v4926
        %v5139 = vpack.c.b16 %v4935, %v4931
        %v5140 = vpack.c.b16 %v4936, %v4932
        %v5141 = vpack.c.b16 %v4937, %v4933
        %v5142 = vpack.c.b16 %v4938, %v4934
        %v5143 = vpack.c.b16 %v4943, %v4939
        %v5144 = vpack.c.b16 %v4944, %v4940
        %v5145 = vpack.c.b16 %v4945, %v4941
        %v5146 = vpack.c.b16 %v4946, %v4942
        %v5147 = vpack.c.b16 %v4951, %v4947
        %v5148 = vpack.c.b16 %v4952, %v4948
        %v5149 = vpack.c.b16 %v4953, %v4949
        %v5150 = vpack.c.b16 %v4954, %v4950
        %v5151 = vpack.c.b16 %v4959, %v4955
        %v5152 = vpack.c.b16 %v4960, %v4956
        %v5153 = vpack.c.b16 %v4961, %v4957
        %v5154 = vpack.c.b16 %v4962, %v4958
        %v5155 = vpack.c.b16 %v4967, %v4963
        %v5156 = vpack.c.b16 %v4968, %v4964
        %v5157 = vpack.c.b16 %v4969, %v4965
        %v5158 = vpack.c.b16 %v4970, %v4966
        %v5159 = vpack.c.b16 %v4975, %v4971
        %v5160 = vpack.c.b16 %v4976, %v4972
        %v5161 = vpack.c.b16 %v4977, %v4973
        %v5162 = vpack.c.b16 %v4978, %v4974
        %v5163 = vpack.c.b16 %v4983, %v4979
        %v5164 = vpack.c.b16 %v4984, %v4980
        %v5165 = vpack.c.b16 %v4985, %v4981
        %v5166 = vpack.c.b16 %v4986, %v4982
        %v5167 = vpack.c.b16 %v4991, %v4987
        %v5168 = vpack.c.b16 %v4992, %v4988
        %v5169 = vpack.c.b16 %v4993, %v4989
        %v5170 = vpack.c.b16 %v4994, %v4990
        %v5171 = vpack.c.b16 %v4999, %v4995
        %v5172 = vpack.c.b16 %v5000, %v4996
        %v5173 = vpack.c.b16 %v5001, %v4997
        %v5174 = vpack.c.b16 %v5002, %v4998
        %v5175 = vpack.c.b16 %v5007, %v5003
        %v5176 = vpack.c.b16 %v5008, %v5004
        %v5177 = vpack.c.b16 %v5009, %v5005
        %v5178 = vpack.c.b16 %v5010, %v5006
        %v5179 = vpack.c.b16 %v5015, %v5011
        %v5180 = vpack.c.b16 %v5016, %v5012
        %v5181 = vpack.c.b16 %v5017, %v5013
        %v5182 = vpack.c.b16 %v5018, %v5014
        %v5183 = vpack.c.b16 %v5023, %v5019
        %v5184 = vpack.c.b16 %v5024, %v5020
        %v5185 = vpack.c.b16 %v5025, %v5021
        %v5186 = vpack.c.b16 %v5026, %v5022
        %5347 = vmatprep.subr.bf16.mxu0 %v5028
        %5348 = vmatpush1.bf16.msra.mxu0 %v5027
        %5349 = vmatprep.subr.bf16.mxu0 %v5032
        %5350 = vmatpush1.bf16.msra.mxu0 %v5031
        %5351 = vmatprep.subr.bf16.mxu0 %v5036
        %5352 = vmatpush1.bf16.msra.mxu0 %v5035
        %5353 = vmatprep.subr.bf16.mxu0 %v5040
        %5354 = vmatpush1.bf16.msra.mxu0 %v5039
        %5355 = vmatprep.subr.bf16.mxu0 %v5044
        %5356 = vmatpush1.bf16.msra.mxu0 %v5043
        %5357 = vmatprep.subr.bf16.mxu0 %v5048
        %5358 = vmatpush1.bf16.msra.mxu0 %v5047
        %5359 = vmatprep.subr.bf16.mxu0 %v5052
        %5360 = vmatpush1.bf16.msra.mxu0 %v5051
        %5361 = vmatprep.subr.bf16.mxu0 %v5056
        %5362 = vmatpush1.bf16.msra.mxu0 %v5055
        %5363 = vmatprep.subr.bf16.mxu0 %v5060
        %5364 = vmatpush1.bf16.msra.mxu0 %v5059
        %5365 = vmatprep.subr.bf16.mxu0 %v5064
        %5366 = vmatpush1.bf16.msra.mxu0 %v5063
        %5367 = vmatprep.subr.bf16.mxu0 %v5068
        %5368 = vmatpush1.bf16.msra.mxu0 %v5067
        %5369 = vmatprep.subr.bf16.mxu0 %v5072
        %5370 = vmatpush1.bf16.msra.mxu0 %v5071
        %5371 = vmatprep.subr.bf16.mxu0 %v5076
        %5372 = vmatpush1.bf16.msra.mxu0 %v5075
        %5373 = vmatprep.subr.bf16.mxu0 %v5080
        %5374 = vmatpush1.bf16.msra.mxu0 %v5079
        %5375 = vmatprep.subr.bf16.mxu0 %v5084
        %5376 = vmatpush1.bf16.msra.mxu0 %v5083
        %5377 = vmatprep.subr.bf16.mxu0 %v5088
        %5378 = vmatpush1.bf16.msra.mxu0 %v5087
        %5379 = vmatprep.mubr.bf16.mxu0 %v4505
        %5380 = vmatmul.mubr.bf16.gmra.mrb[0].mxu0 %v4493
        %v5381 = vpop.f32.mrb[0].mxu0
        %v5382 = vadd.f32 0.0, %v5381
        %v5383 = vpop.f32.mrb[0].mxu0
        %v5384 = vadd.f32 0.0, %v5383
        %v5385 = vpop.f32.mrb[0].mxu0
        %v5386 = vadd.f32 0.0, %v5385
        %v5387 = vpop.f32.mrb[0].mxu0
        %v5388 = vadd.f32 0.0, %v5387
        %5389 = vdwg.mxu0
        %5390 = vmatprep.subr.bf16.mxu0 %v5092
        %5391 = vmatpush1.bf16.msra.mxu0 %v5091
        %5392 = vmatprep.subr.bf16.mxu0 %v5096
        %5393 = vmatpush1.bf16.msra.mxu0 %v5095
        %5394 = vmatprep.subr.bf16.mxu0 %v5100
        %5395 = vmatpush1.bf16.msra.mxu0 %v5099
        %5396 = vmatprep.subr.bf16.mxu0 %v5104
        %5397 = vmatpush1.bf16.msra.mxu0 %v5103
        %5398 = vmatprep.subr.bf16.mxu0 %v5108
        %5399 = vmatpush1.bf16.msra.mxu0 %v5107
        %5400 = vmatprep.subr.bf16.mxu0 %v5112
        %5401 = vmatpush1.bf16.msra.mxu0 %v5111
        %5402 = vmatprep.subr.bf16.mxu0 %v5116
        %5403 = vmatpush1.bf16.msra.mxu0 %v5115
        %5404 = vmatprep.subr.bf16.mxu0 %v5120
        %5405 = vmatpush1.bf16.msra.mxu0 %v5119
        %5406 = vmatprep.subr.bf16.mxu0 %v5124
        %5407 = vmatpush1.bf16.msra.mxu0 %v5123
        %5408 = vmatprep.subr.bf16.mxu0 %v5128
        %5409 = vmatpush1.bf16.msra.mxu0 %v5127
        %5410 = vmatprep.subr.bf16.mxu0 %v5132
        %5411 = vmatpush1.bf16.msra.mxu0 %v5131
        %5412 = vmatprep.subr.bf16.mxu0 %v5136
        %5413 = vmatpush1.bf16.msra.mxu0 %v5135
        %5414 = vmatprep.subr.bf16.mxu0 %v5140
        %5415 = vmatpush1.bf16.msra.mxu0 %v5139
        %5416 = vmatprep.subr.bf16.mxu0 %v5144
        %5417 = vmatpush1.bf16.msra.mxu0 %v5143
        %5418 = vmatprep.subr.bf16.mxu0 %v5148
        %5419 = vmatpush1.bf16.msra.mxu0 %v5147
        %5420 = vmatprep.subr.bf16.mxu0 %v5152
        %5421 = vmatpush1.bf16.msra.mxu0 %v5151
        %5422 = vmatprep.mubr.bf16.mxu0 %v4529
        %5423 = vmatmul.mubr.bf16.gmra.mrb[0].mxu0 %v4517
        %v5424 = vpop.f32.mrb[0].mxu0
        %v5425 = vadd.f32 %v5382, %v5424
        %v5426 = vpop.f32.mrb[0].mxu0
        %v5427 = vadd.f32 %v5384, %v5426
        %v5428 = vpop.f32.mrb[0].mxu0
        %v5429 = vadd.f32 %v5386, %v5428
        %v5430 = vpop.f32.mrb[0].mxu0
        %v5431 = vadd.f32 %v5388, %v5430
        %5432 = vdwg.mxu0
        %5433 = vmatprep.subr.bf16.mxu0 %v5156
        %5434 = vmatpush1.bf16.msra.mxu0 %v5155
        %5435 = vmatprep.subr.bf16.mxu0 %v5160
        %5436 = vmatpush1.bf16.msra.mxu0 %v5159
        %5437 = vmatprep.subr.bf16.mxu0 %v5164
        %5438 = vmatpush1.bf16.msra.mxu0 %v5163
        %5439 = vmatprep.subr.bf16.mxu0 %v5168
        %5440 = vmatpush1.bf16.msra.mxu0 %v5167
        %5441 = vmatprep.subr.bf16.mxu0 %v5172
        %5442 = vmatpush1.bf16.msra.mxu0 %v5171
        %5443 = vmatprep.subr.bf16.mxu0 %v5176
        %5444 = vmatpush1.bf16.msra.mxu0 %v5175
        %5445 = vmatprep.subr.bf16.mxu0 %v5180
        %5446 = vmatpush1.bf16.msra.mxu0 %v5179
        %5447 = vmatprep.subr.bf16.mxu0 %v5184
        %5448 = vmatpush1.bf16.msra.mxu0 %v5183
        %5449 = vmatprep.subr.bf16.mxu0 0
        %5450 = vmatpush1.bf16.msra.mxu0 0
        %5451 = vmatprep.subr.bf16.mxu0 0
        %5452 = vmatpush1.bf16.msra.mxu0 0
        %5453 = vmatprep.subr.bf16.mxu0 0
        %5454 = vmatpush1.bf16.msra.mxu0 0
        %5455 = vmatprep.subr.bf16.mxu0 0
        %5456 = vmatpush1.bf16.msra.mxu0 0
        %5457 = vmatprep.subr.bf16.mxu0 0
        %5458 = vmatpush1.bf16.msra.mxu0 0
        %5459 = vmatprep.subr.bf16.mxu0 0
        %5460 = vmatpush1.bf16.msra.mxu0 0
        %5461 = vmatprep.subr.bf16.mxu0 0
        %5462 = vmatpush1.bf16.msra.mxu0 0
        %5463 = vmatprep.subr.bf16.mxu0 0
        %5464 = vmatpush1.bf16.msra.mxu0 0
        %5465 = vmatprep.mubr.bf16.mxu0 0
        %5466 = vmatmul.mubr.bf16.gmra.mrb[0].mxu0 %v4541
        %v5467 = vpop.f32.mrb[0].mxu0
        %v5468 = vadd.f32 %v5425, %v5467
        %v5469 = vpop.f32.mrb[0].mxu0
        %v5470 = vadd.f32 %v5427, %v5469
        %v5471 = vpop.f32.mrb[0].mxu0
        %v5472 = vadd.f32 %v5429, %v5471
        %v5473 = vpop.f32.mrb[0].mxu0
        %v5474 = vadd.f32 %v5431, %v5473
        %5475 = vdwg.mxu0
        %5476 = vmatprep.subr.bf16.mxu0 %v5030
        %5477 = vmatpush1.bf16.msra.mxu0 %v5029
        %5478 = vmatprep.subr.bf16.mxu0 %v5034
        %5479 = vmatpush1.bf16.msra.mxu0 %v5033
        %5480 = vmatprep.subr.bf16.mxu0 %v5038
        %5481 = vmatpush1.bf16.msra.mxu0 %v5037
        %5482 = vmatprep.subr.bf16.mxu0 %v5042
        %5483 = vmatpush1.bf16.msra.mxu0 %v5041
        %5484 = vmatprep.subr.bf16.mxu0 %v5046
        %5485 = vmatpush1.bf16.msra.mxu0 %v5045
        %5486 = vmatprep.subr.bf16.mxu0 %v5050
        %5487 = vmatpush1.bf16.msra.mxu0 %v5049
        %5488 = vmatprep.subr.bf16.mxu0 %v5054
        %5489 = vmatpush1.bf16.msra.mxu0 %v5053
        %5490 = vmatprep.subr.bf16.mxu0 %v5058
        %5491 = vmatpush1.bf16.msra.mxu0 %v5057
        %5492 = vmatprep.subr.bf16.mxu0 %v5062
        %5493 = vmatpush1.bf16.msra.mxu0 %v5061
        %5494 = vmatprep.subr.bf16.mxu0 %v5066
        %5495 = vmatpush1.bf16.msra.mxu0 %v5065
        %5496 = vmatprep.subr.bf16.mxu0 %v5070
        %5497 = vmatpush1.bf16.msra.mxu0 %v5069
        %5498 = vmatprep.subr.bf16.mxu0 %v5074
        %5499 = vmatpush1.bf16.msra.mxu0 %v5073
        %5500 = vmatprep.subr.bf16.mxu0 %v5078
        %5501 = vmatpush1.bf16.msra.mxu0 %v5077
        %5502 = vmatprep.subr.bf16.mxu0 %v5082
        %5503 = vmatpush1.bf16.msra.mxu0 %v5081
        %5504 = vmatprep.subr.bf16.mxu0 %v5086
        %5505 = vmatpush1.bf16.msra.mxu0 %v5085
        %5506 = vmatprep.subr.bf16.mxu0 %v5090
        %5507 = vmatpush1.bf16.msra.mxu0 %v5089
        %5508 = vmatprep.mubr.bf16.mxu0 %v4505
        %5509 = vmatmul.mubr.bf16.gmra.mrb[0].mxu0 %v4493
        %v5510 = vpop.f32.mrb[0].mxu0
        %v5511 = vadd.f32 0.0, %v5510
        %v5512 = vpop.f32.mrb[0].mxu0
        %v5513 = vadd.f32 0.0, %v5512
        %v5514 = vpop.f32.mrb[0].mxu0
        %v5515 = vadd.f32 0.0, %v5514
        %v5516 = vpop.f32.mrb[0].mxu0
        %v5517 = vadd.f32 0.0, %v5516
        %5518 = vdwg.mxu0
        %5519 = vmatprep.subr.bf16.mxu0 %v5094
        %5520 = vmatpush1.bf16.msra.mxu0 %v5093
        %5521 = vmatprep.subr.bf16.mxu0 %v5098
        %5522 = vmatpush1.bf16.msra.mxu0 %v5097
        %5523 = vmatprep.subr.bf16.mxu0 %v5102
        %5524 = vmatpush1.bf16.msra.mxu0 %v5101
        %5525 = vmatprep.subr.bf16.mxu0 %v5106
        %5526 = vmatpush1.bf16.msra.mxu0 %v5105
        %5527 = vmatprep.subr.bf16.mxu0 %v5110
        %5528 = vmatpush1.bf16.msra.mxu0 %v5109
        %5529 = vmatprep.subr.bf16.mxu0 %v5114
        %5530 = vmatpush1.bf16.msra.mxu0 %v5113
        %5531 = vmatprep.subr.bf16.mxu0 %v5118
        %5532 = vmatpush1.bf16.msra.mxu0 %v5117
        %5533 = vmatprep.subr.bf16.mxu0 %v5122
        %5534 = vmatpush1.bf16.msra.mxu0 %v5121
        %5535 = vmatprep.subr.bf16.mxu0 %v5126
        %5536 = vmatpush1.bf16.msra.mxu0 %v5125
        %5537 = vmatprep.subr.bf16.mxu0 %v5130
        %5538 = vmatpush1.bf16.msra.mxu0 %v5129
        %5539 = vmatprep.subr.bf16.mxu0 %v5134
        %5540 = vmatpush1.bf16.msra.mxu0 %v5133
        %5541 = vmatprep.subr.bf16.mxu0 %v5138
        %5542 = vmatpush1.bf16.msra.mxu0 %v5137
        %5543 = vmatprep.subr.bf16.mxu0 %v5142
        %5544 = vmatpush1.bf16.msra.mxu0 %v5141
        %5545 = vmatprep.subr.bf16.mxu0 %v5146
        %5546 = vmatpush1.bf16.msra.mxu0 %v5145
        %5547 = vmatprep.subr.bf16.mxu0 %v5150
        %5548 = vmatpush1.bf16.msra.mxu0 %v5149
        %5549 = vmatprep.subr.bf16.mxu0 %v5154
        %5550 = vmatpush1.bf16.msra.mxu0 %v5153
        %5551 = vmatprep.mubr.bf16.mxu0 %v4529
        %5552 = vmatmul.mubr.bf16.gmra.mrb[0].mxu0 %v4517
        %v5553 = vpop.f32.mrb[0].mxu0
        %v5554 = vadd.f32 %v5511, %v5553
        %v5555 = vpop.f32.mrb[0].mxu0
        %v5556 = vadd.f32 %v5513, %v5555
        %v5557 = vpop.f32.mrb[0].mxu0
        %v5558 = vadd.f32 %v5515, %v5557
        %v5559 = vpop.f32.mrb[0].mxu0
        %v5560 = vadd.f32 %v5517, %v5559
        %5561 = vdwg.mxu0
        %5562 = vmatprep.subr.bf16.mxu0 %v5158
        %5563 = vmatpush1.bf16.msra.mxu0 %v5157
        %5564 = vmatprep.subr.bf16.mxu0 %v5162
        %5565 = vmatpush1.bf16.msra.mxu0 %v5161
        %5566 = vmatprep.subr.bf16.mxu0 %v5166
        %5567 = vmatpush1.bf16.msra.mxu0 %v5165
        %5568 = vmatprep.subr.bf16.mxu0 %v5170
        %5569 = vmatpush1.bf16.msra.mxu0 %v5169
        %5570 = vmatprep.subr.bf16.mxu0 %v5174
        %5571 = vmatpush1.bf16.msra.mxu0 %v5173
        %5572 = vmatprep.subr.bf16.mxu0 %v5178
        %5573 = vmatpush1.bf16.msra.mxu0 %v5177
        %5574 = vmatprep.subr.bf16.mxu0 %v5182
        %5575 = vmatpush1.bf16.msra.mxu0 %v5181
        %5576 = vmatprep.subr.bf16.mxu0 %v5186
        %5577 = vmatpush1.bf16.msra.mxu0 %v5185
        %5578 = vmatprep.subr.bf16.mxu0 0
        %5579 = vmatpush1.bf16.msra.mxu0 0
        %5580 = vmatprep.subr.bf16.mxu0 0
        %5581 = vmatpush1.bf16.msra.mxu0 0
        %5582 = vmatprep.subr.bf16.mxu0 0
        %5583 = vmatpush1.bf16.msra.mxu0 0
        %5584 = vmatprep.subr.bf16.mxu0 0
        %5585 = vmatpush1.bf16.msra.mxu0 0
        %5586 = vmatprep.subr.bf16.mxu0 0
        %5587 = vmatpush1.bf16.msra.mxu0 0
        %5588 = vmatprep.subr.bf16.mxu0 0
        %5589 = vmatpush1.bf16.msra.mxu0 0
        %5590 = vmatprep.subr.bf16.mxu0 0
        %5591 = vmatpush1.bf16.msra.mxu0 0
        %5592 = vmatprep.subr.bf16.mxu0 0
        %5593 = vmatpush1.bf16.msra.mxu0 0
        %5594 = vmatprep.mubr.bf16.mxu0 0
        %5595 = vmatmul.mubr.bf16.gmra.mrb[0].mxu0 %v4541
        %v5596 = vpop.f32.mrb[0].mxu0
        %v5597 = vadd.f32 %v5554, %v5596
        %v5598 = vpop.f32.mrb[0].mxu0
        %v5599 = vadd.f32 %v5556, %v5598
        %v5600 = vpop.f32.mrb[0].mxu0
        %v5601 = vadd.f32 %v5558, %v5600
        %v5602 = vpop.f32.mrb[0].mxu0
        %v5603 = vadd.f32 %v5560, %v5602
        %5604 = vdwg.mxu0
        %v5605 = vadd.f32 %v4312, %v5468
        %v5606 = vadd.f32 %v4313, %v5470
        %v5607 = vadd.f32 %v4314, %v5597
        %v5608 = vadd.f32 %v4315, %v5599
        %v5609 = vadd.f32 %v4316, %v5472
        %v5610 = vadd.f32 %v4317, %v5474
        %v5611 = vadd.f32 %v4318, %v5601
        %v5612 = vadd.f32 %v4319, %v5603
        %s5613 = scalar_lea.vmem [#allocation7], 2560
        %v5614 = vld [vmem:[%s5613] sm:$0xff]
        %v5615 = vld [vmem:[%s5613 + $0x8] sm:$0xff]
        %v5616 = vld [vmem:[%s5613 + $0x10] sm:$0xff]
        %v5617 = vld [vmem:[%s5613 + $0x18] sm:$0xff]
        %v5618 = vld [vmem:[%s5613 + $0x20] sm:$0xff]
        %v5619 = vld [vmem:[%s5613 + $0x28] sm:$0xff]
        %v5620 = vld [vmem:[%s5613 + $0x30] sm:$0xff]
        %v5621 = vld [vmem:[%s5613 + $0x38] sm:$0xff]
        %v5622 = vld [vmem:[%s5613 + $0x40] sm:$0xff]
        %v5623 = vld [vmem:[%s5613 + $0x48] sm:$0xff]
        %v5624 = vld [vmem:[%s5613 + $0x50] sm:$0xff]
        %v5625 = vld [vmem:[%s5613 + $0x58] sm:$0xff]
        %v5626 = vld [vmem:[%s5613 + $0x60] sm:$0xff]
        %v5627 = vld [vmem:[%s5613 + $0x68] sm:$0xff]
        %v5628 = vld [vmem:[%s5613 + $0x70] sm:$0xff]
        %v5629 = vld [vmem:[%s5613 + $0x78] sm:$0xff]
        %v5630 = vld [vmem:[%s5613 + $0x80] sm:$0xff]
        %v5631 = vld [vmem:[%s5613 + $0x88] sm:$0xff]
        %v5632 = vld [vmem:[%s5613 + $0x90] sm:$0xff]
        %v5633 = vld [vmem:[%s5613 + $0x98] sm:$0xff]
        %v5634 = vld [vmem:[%s5613 + $0xa0] sm:$0xff]
        %v5635 = vld [vmem:[%s5613 + $0xa8] sm:$0xff]
        %v5636 = vld [vmem:[%s5613 + $0xb0] sm:$0xff]
        %v5637 = vld [vmem:[%s5613 + $0xb8] sm:$0xff]
        %v5638 = vld [vmem:[%s5613 + $0xc0] sm:$0xff]
        %v5639 = vld [vmem:[%s5613 + $0xc8] sm:$0xff]
        %v5640 = vld [vmem:[%s5613 + $0xd0] sm:$0xff]
        %v5641 = vld [vmem:[%s5613 + $0xd8] sm:$0xff]
        %v5642 = vld [vmem:[%s5613 + $0xe0] sm:$0xff]
        %v5643 = vld [vmem:[%s5613 + $0xe8] sm:$0xff]
        %v5644 = vld [vmem:[%s5613 + $0xf0] sm:$0xff]
        %v5645 = vld [vmem:[%s5613 + $0xf8] sm:$0xff]
        %v5646 = vld [vmem:[%s5613 + $0x100] sm:$0xff]
        %v5647 = vld [vmem:[%s5613 + $0x108] sm:$0xff]
        %v5648 = vld [vmem:[%s5613 + $0x110] sm:$0xff]
        %v5649 = vld [vmem:[%s5613 + $0x118] sm:$0xff]
        %v5650 = vld [vmem:[%s5613 + $0x120] sm:$0xff]
        %v5651 = vld [vmem:[%s5613 + $0x128] sm:$0xff]
        %v5652 = vld [vmem:[%s5613 + $0x130] sm:$0xff]
        %v5653 = vld [vmem:[%s5613 + $0x138] sm:$0xff]
        %v5654 = vld [vmem:[%s5613 + $0x140] sm:$0xff]
        %v5655 = vld [vmem:[%s5613 + $0x148] sm:$0xff]
        %v5656 = vld [vmem:[%s5613 + $0x150] sm:$0xff]
        %v5657 = vld [vmem:[%s5613 + $0x158] sm:$0xff]
        %v5658 = vld [vmem:[%s5613 + $0x160] sm:$0xff]
        %v5659 = vld [vmem:[%s5613 + $0x168] sm:$0xff]
        %v5660 = vld [vmem:[%s5613 + $0x170] sm:$0xff]
        %v5661 = vld [vmem:[%s5613 + $0x178] sm:$0xff]
        %v5662 = vld [vmem:[%s5613 + $0x180] sm:$0xff]
        %v5663 = vld [vmem:[%s5613 + $0x188] sm:$0xff]
        %v5664 = vld [vmem:[%s5613 + $0x190] sm:$0xff]
        %v5665 = vld [vmem:[%s5613 + $0x198] sm:$0xff]
        %v5666 = vld [vmem:[%s5613 + $0x1a0] sm:$0xff]
        %v5667 = vld [vmem:[%s5613 + $0x1a8] sm:$0xff]
        %v5668 = vld [vmem:[%s5613 + $0x1b0] sm:$0xff]
        %v5669 = vld [vmem:[%s5613 + $0x1b8] sm:$0xff]
        %v5670 = vld [vmem:[%s5613 + $0x1c0] sm:$0xff]
        %v5671 = vld [vmem:[%s5613 + $0x1c8] sm:$0xff]
        %v5672 = vld [vmem:[%s5613 + $0x1d0] sm:$0xff]
        %v5673 = vld [vmem:[%s5613 + $0x1d8] sm:$0xff]
        %v5674 = vld [vmem:[%s5613 + $0x1e0] sm:$0xff]
        %v5675 = vld [vmem:[%s5613 + $0x1e8] sm:$0xff]
        %v5676 = vld [vmem:[%s5613 + $0x1f0] sm:$0xff]
        %v5677 = vld [vmem:[%s5613 + $0x1f8] sm:$0xff]
        %v5678 = vld [vmem:[%s5613 + $0x200] sm:$0xff]
        %v5679 = vld [vmem:[%s5613 + $0x208] sm:$0xff]
        %v5680 = vld [vmem:[%s5613 + $0x210] sm:$0xff]
        %v5681 = vld [vmem:[%s5613 + $0x218] sm:$0xff]
        %v5682 = vld [vmem:[%s5613 + $0x220] sm:$0xff]
        %v5683 = vld [vmem:[%s5613 + $0x228] sm:$0xff]
        %v5684 = vld [vmem:[%s5613 + $0x230] sm:$0xff]
        %v5685 = vld [vmem:[%s5613 + $0x238] sm:$0xff]
        %v5686 = vld [vmem:[%s5613 + $0x240] sm:$0xff]
        %v5687 = vld [vmem:[%s5613 + $0x248] sm:$0xff]
        %v5688 = vld [vmem:[%s5613 + $0x250] sm:$0xff]
        %v5689 = vld [vmem:[%s5613 + $0x258] sm:$0xff]
        %v5690 = vld [vmem:[%s5613 + $0x260] sm:$0xff]
        %v5691 = vld [vmem:[%s5613 + $0x268] sm:$0xff]
        %v5692 = vld [vmem:[%s5613 + $0x270] sm:$0xff]
        %v5693 = vld [vmem:[%s5613 + $0x278] sm:$0xff]
        %v5694 = vld [vmem:[%s5613 + $0x280] sm:$0xff]
        %v5695 = vld [vmem:[%s5613 + $0x288] sm:$0xff]
        %v5696 = vld [vmem:[%s5613 + $0x290] sm:$0xff]
        %v5697 = vld [vmem:[%s5613 + $0x298] sm:$0xff]
        %v5698 = vld [vmem:[%s5613 + $0x2a0] sm:$0xff]
        %v5699 = vld [vmem:[%s5613 + $0x2a8] sm:$0xff]
        %v5700 = vld [vmem:[%s5613 + $0x2b0] sm:$0xff]
        %v5701 = vld [vmem:[%s5613 + $0x2b8] sm:$0xff]
        %v5702 = vld [vmem:[%s5613 + $0x2c0] sm:$0xff]
        %v5703 = vld [vmem:[%s5613 + $0x2c8] sm:$0xff]
        %v5704 = vld [vmem:[%s5613 + $0x2d0] sm:$0xff]
        %v5705 = vld [vmem:[%s5613 + $0x2d8] sm:$0xff]
        %v5706 = vld [vmem:[%s5613 + $0x2e0] sm:$0xff]
        %v5707 = vld [vmem:[%s5613 + $0x2e8] sm:$0xff]
        %v5708 = vld [vmem:[%s5613 + $0x2f0] sm:$0xff]
        %v5709 = vld [vmem:[%s5613 + $0x2f8] sm:$0xff]
        %v5710 = vld [vmem:[%s5613 + $0x300] sm:$0xff]
        %v5711 = vld [vmem:[%s5613 + $0x308] sm:$0xff]
        %v5712 = vld [vmem:[%s5613 + $0x310] sm:$0xff]
        %v5713 = vld [vmem:[%s5613 + $0x318] sm:$0xff]
        %v5714 = vld [vmem:[%s5613 + $0x320] sm:$0xff]
        %v5715 = vld [vmem:[%s5613 + $0x328] sm:$0xff]
        %v5716 = vld [vmem:[%s5613 + $0x330] sm:$0xff]
        %v5717 = vld [vmem:[%s5613 + $0x338] sm:$0xff]
        %v5718 = vld [vmem:[%s5613 + $0x340] sm:$0xff]
        %v5719 = vld [vmem:[%s5613 + $0x348] sm:$0xff]
        %v5720 = vld [vmem:[%s5613 + $0x350] sm:$0xff]
        %v5721 = vld [vmem:[%s5613 + $0x358] sm:$0xff]
        %v5722 = vld [vmem:[%s5613 + $0x360] sm:$0xff]
        %v5723 = vld [vmem:[%s5613 + $0x368] sm:$0xff]
        %v5724 = vld [vmem:[%s5613 + $0x370] sm:$0xff]
        %v5725 = vld [vmem:[%s5613 + $0x378] sm:$0xff]
        %v5726 = vld [vmem:[%s5613 + $0x380] sm:$0xff]
        %v5727 = vld [vmem:[%s5613 + $0x388] sm:$0xff]
        %v5728 = vld [vmem:[%s5613 + $0x390] sm:$0xff]
        %v5729 = vld [vmem:[%s5613 + $0x398] sm:$0xff]
        %v5730 = vld [vmem:[%s5613 + $0x3a0] sm:$0xff]
        %v5731 = vld [vmem:[%s5613 + $0x3a8] sm:$0xff]
        %v5732 = vld [vmem:[%s5613 + $0x3b0] sm:$0xff]
        %v5733 = vld [vmem:[%s5613 + $0x3b8] sm:$0xff]
        %v5734 = vld [vmem:[%s5613 + $0x3c0] sm:$0xff]
        %v5735 = vld [vmem:[%s5613 + $0x3c8] sm:$0xff]
        %v5736 = vld [vmem:[%s5613 + $0x3d0] sm:$0xff]
        %v5737 = vld [vmem:[%s5613 + $0x3d8] sm:$0xff]
        %v5738 = vld [vmem:[%s5613 + $0x3e0] sm:$0xff]
        %v5739 = vld [vmem:[%s5613 + $0x3e8] sm:$0xff]
        %v5740 = vld [vmem:[%s5613 + $0x3f0] sm:$0xff]
        %v5741 = vld [vmem:[%s5613 + $0x3f8] sm:$0xff]
        %v5742 = vld [vmem:[%s5613 + $0x400] sm:$0xff]
        %v5743 = vld [vmem:[%s5613 + $0x408] sm:$0xff]
        %v5744 = vld [vmem:[%s5613 + $0x410] sm:$0xff]
        %v5745 = vld [vmem:[%s5613 + $0x418] sm:$0xff]
        %v5746 = vld [vmem:[%s5613 + $0x420] sm:$0xff]
        %v5747 = vld [vmem:[%s5613 + $0x428] sm:$0xff]
        %v5748 = vld [vmem:[%s5613 + $0x430] sm:$0xff]
        %v5749 = vld [vmem:[%s5613 + $0x438] sm:$0xff]
        %v5750 = vld [vmem:[%s5613 + $0x440] sm:$0xff]
        %v5751 = vld [vmem:[%s5613 + $0x448] sm:$0xff]
        %v5752 = vld [vmem:[%s5613 + $0x450] sm:$0xff]
        %v5753 = vld [vmem:[%s5613 + $0x458] sm:$0xff]
        %v5754 = vld [vmem:[%s5613 + $0x460] sm:$0xff]
        %v5755 = vld [vmem:[%s5613 + $0x468] sm:$0xff]
        %v5756 = vld [vmem:[%s5613 + $0x470] sm:$0xff]
        %v5757 = vld [vmem:[%s5613 + $0x478] sm:$0xff]
        %v5758 = vld [vmem:[%s5613 + $0x480] sm:$0xff]
        %v5759 = vld [vmem:[%s5613 + $0x488] sm:$0xff]
        %v5760 = vld [vmem:[%s5613 + $0x490] sm:$0xff]
        %v5761 = vld [vmem:[%s5613 + $0x498] sm:$0xff]
        %v5762 = vld [vmem:[%s5613 + $0x4a0] sm:$0xff]
        %v5763 = vld [vmem:[%s5613 + $0x4a8] sm:$0xff]
        %v5764 = vld [vmem:[%s5613 + $0x4b0] sm:$0xff]
        %v5765 = vld [vmem:[%s5613 + $0x4b8] sm:$0xff]
        %v5766 = vld [vmem:[%s5613 + $0x4c0] sm:$0xff]
        %v5767 = vld [vmem:[%s5613 + $0x4c8] sm:$0xff]
        %v5768 = vld [vmem:[%s5613 + $0x4d0] sm:$0xff]
        %v5769 = vld [vmem:[%s5613 + $0x4d8] sm:$0xff]
        %v5770 = vld [vmem:[%s5613 + $0x4e0] sm:$0xff]
        %v5771 = vld [vmem:[%s5613 + $0x4e8] sm:$0xff]
        %v5772 = vld [vmem:[%s5613 + $0x4f0] sm:$0xff]
        %v5773 = vld [vmem:[%s5613 + $0x4f8] sm:$0xff]
        %vm5784 = vcmask 1046528
        %v5785 = vrot.slane %v3076, 1
        %v5786 = vrot.slane %v3081, 1
        %v5787 = vsel %vm5784, %v5785, %v5786
        %v5788 = vrot.slane %v3077, 1
        %v5789 = vrot.slane %v3082, 1
        %v5790 = vsel %vm5784, %v5788, %v5789
        %v5791 = vrot.slane %v3078, 1
        %v5792 = vrot.slane %v3083, 1
        %v5793 = vsel %vm5784, %v5791, %v5792
        %v5794 = vrot.slane %v3079, 1
        %v5795 = vrot.slane %v3084, 1
        %v5796 = vsel %vm5784, %v5794, %v5795
        %v5797 = vrot.slane %v3080, 1
        %v5798 = vrot.slane %v3085, 1
        %v5799 = vsel %vm5784, %v5797, %v5798
        %v5965 = vunpack.c.l.b16 %v5614
        %v5966 = vunpack.c.h.b16 %v5614
        %v5967 = vunpack.c.l.b16 %v5615
        %v5968 = vunpack.c.h.b16 %v5615
        %v5969 = vunpack.c.l.b16 %v5616
        %v5970 = vunpack.c.h.b16 %v5616
        %v5971 = vunpack.c.l.b16 %v5617
        %v5972 = vunpack.c.h.b16 %v5617
        %v5973 = vunpack.c.l.b16 %v5618
        %v5974 = vunpack.c.h.b16 %v5618
        %v5975 = vunpack.c.l.b16 %v5619
        %v5976 = vunpack.c.h.b16 %v5619
        %v5977 = vunpack.c.l.b16 %v5620
        %v5978 = vunpack.c.h.b16 %v5620
        %v5979 = vunpack.c.l.b16 %v5621
        %v5980 = vunpack.c.h.b16 %v5621
        %v5981 = vunpack.c.l.b16 %v5622
        %v5982 = vunpack.c.h.b16 %v5622
        %v5983 = vunpack.c.l.b16 %v5623
        %v5984 = vunpack.c.h.b16 %v5623
        %v5985 = vunpack.c.l.b16 %v5624
        %v5986 = vunpack.c.h.b16 %v5624
        %v5987 = vunpack.c.l.b16 %v5625
        %v5988 = vunpack.c.h.b16 %v5625
        %v5989 = vunpack.c.l.b16 %v5626
        %v5990 = vunpack.c.h.b16 %v5626
        %v5991 = vunpack.c.l.b16 %v5627
        %v5992 = vunpack.c.h.b16 %v5627
        %v5993 = vunpack.c.l.b16 %v5628
        %v5994 = vunpack.c.h.b16 %v5628
        %v5995 = vunpack.c.l.b16 %v5629
        %v5996 = vunpack.c.h.b16 %v5629
        %v5997 = vunpack.c.l.b16 %v5630
        %v5998 = vunpack.c.h.b16 %v5630
        %v5999 = vunpack.c.l.b16 %v5631
        %v6000 = vunpack.c.h.b16 %v5631
        %v6001 = vunpack.c.l.b16 %v5632
        %v6002 = vunpack.c.h.b16 %v5632
        %v6003 = vunpack.c.l.b16 %v5633
        %v6004 = vunpack.c.h.b16 %v5633
        %v6005 = vunpack.c.l.b16 %v5634
        %v6006 = vunpack.c.h.b16 %v5634
        %v6007 = vunpack.c.l.b16 %v5635
        %v6008 = vunpack.c.h.b16 %v5635
        %v6009 = vunpack.c.l.b16 %v5636
        %v6010 = vunpack.c.h.b16 %v5636
        %v6011 = vunpack.c.l.b16 %v5637
        %v6012 = vunpack.c.h.b16 %v5637
        %v6013 = vunpack.c.l.b16 %v5638
        %v6014 = vunpack.c.h.b16 %v5638
        %v6015 = vunpack.c.l.b16 %v5639
        %v6016 = vunpack.c.h.b16 %v5639
        %v6017 = vunpack.c.l.b16 %v5640
        %v6018 = vunpack.c.h.b16 %v5640
        %v6019 = vunpack.c.l.b16 %v5641
        %v6020 = vunpack.c.h.b16 %v5641
        %v6021 = vunpack.c.l.b16 %v5642
        %v6022 = vunpack.c.h.b16 %v5642
        %v6023 = vunpack.c.l.b16 %v5643
        %v6024 = vunpack.c.h.b16 %v5643
        %v6025 = vunpack.c.l.b16 %v5644
        %v6026 = vunpack.c.h.b16 %v5644
        %v6027 = vunpack.c.l.b16 %v5645
        %v6028 = vunpack.c.h.b16 %v5645
        %v6029 = vunpack.c.l.b16 %v5646
        %v6030 = vunpack.c.h.b16 %v5646
        %v6031 = vunpack.c.l.b16 %v5647
        %v6032 = vunpack.c.h.b16 %v5647
        %v6033 = vunpack.c.l.b16 %v5648
        %v6034 = vunpack.c.h.b16 %v5648
        %v6035 = vunpack.c.l.b16 %v5649
        %v6036 = vunpack.c.h.b16 %v5649
        %v6037 = vunpack.c.l.b16 %v5650
        %v6038 = vunpack.c.h.b16 %v5650
        %v6039 = vunpack.c.l.b16 %v5651
        %v6040 = vunpack.c.h.b16 %v5651
        %v6041 = vunpack.c.l.b16 %v5652
        %v6042 = vunpack.c.h.b16 %v5652
        %v6043 = vunpack.c.l.b16 %v5653
        %v6044 = vunpack.c.h.b16 %v5653
        %v6045 = vunpack.c.l.b16 %v5654
        %v6046 = vunpack.c.h.b16 %v5654
        %v6047 = vunpack.c.l.b16 %v5655
        %v6048 = vunpack.c.h.b16 %v5655
        %v6049 = vunpack.c.l.b16 %v5656
        %v6050 = vunpack.c.h.b16 %v5656
        %v6051 = vunpack.c.l.b16 %v5657
        %v6052 = vunpack.c.h.b16 %v5657
        %v6053 = vunpack.c.l.b16 %v5658
        %v6054 = vunpack.c.h.b16 %v5658
        %v6055 = vunpack.c.l.b16 %v5659
        %v6056 = vunpack.c.h.b16 %v5659
        %v6057 = vunpack.c.l.b16 %v5660
        %v6058 = vunpack.c.h.b16 %v5660
        %v6059 = vunpack.c.l.b16 %v5661
        %v6060 = vunpack.c.h.b16 %v5661
        %v6061 = vunpack.c.l.b16 %v5662
        %v6062 = vunpack.c.h.b16 %v5662
        %v6063 = vunpack.c.l.b16 %v5663
        %v6064 = vunpack.c.h.b16 %v5663
        %v6065 = vunpack.c.l.b16 %v5664
        %v6066 = vunpack.c.h.b16 %v5664
        %v6067 = vunpack.c.l.b16 %v5665
        %v6068 = vunpack.c.h.b16 %v5665
        %v6069 = vunpack.c.l.b16 %v5666
        %v6070 = vunpack.c.h.b16 %v5666
        %v6071 = vunpack.c.l.b16 %v5667
        %v6072 = vunpack.c.h.b16 %v5667
        %v6073 = vunpack.c.l.b16 %v5668
        %v6074 = vunpack.c.h.b16 %v5668
        %v6075 = vunpack.c.l.b16 %v5669
        %v6076 = vunpack.c.h.b16 %v5669
        %v6077 = vunpack.c.l.b16 %v5670
        %v6078 = vunpack.c.h.b16 %v5670
        %v6079 = vunpack.c.l.b16 %v5671
        %v6080 = vunpack.c.h.b16 %v5671
        %v6081 = vunpack.c.l.b16 %v5672
        %v6082 = vunpack.c.h.b16 %v5672
        %v6083 = vunpack.c.l.b16 %v5673
        %v6084 = vunpack.c.h.b16 %v5673
        %v6085 = vunpack.c.l.b16 %v5674
        %v6086 = vunpack.c.h.b16 %v5674
        %v6087 = vunpack.c.l.b16 %v5675
        %v6088 = vunpack.c.h.b16 %v5675
        %v6089 = vunpack.c.l.b16 %v5676
        %v6090 = vunpack.c.h.b16 %v5676
        %v6091 = vunpack.c.l.b16 %v5677
        %v6092 = vunpack.c.h.b16 %v5677
        %v6093 = vunpack.c.l.b16 %v5678
        %v6094 = vunpack.c.h.b16 %v5678
        %v6095 = vunpack.c.l.b16 %v5679
        %v6096 = vunpack.c.h.b16 %v5679
        %v6097 = vunpack.c.l.b16 %v5680
        %v6098 = vunpack.c.h.b16 %v5680
        %v6099 = vunpack.c.l.b16 %v5681
        %v6100 = vunpack.c.h.b16 %v5681
        %v6101 = vunpack.c.l.b16 %v5682
        %v6102 = vunpack.c.h.b16 %v5682
        %v6103 = vunpack.c.l.b16 %v5683
        %v6104 = vunpack.c.h.b16 %v5683
        %v6105 = vunpack.c.l.b16 %v5684
        %v6106 = vunpack.c.h.b16 %v5684
        %v6107 = vunpack.c.l.b16 %v5685
        %v6108 = vunpack.c.h.b16 %v5685
        %v6109 = vunpack.c.l.b16 %v5686
        %v6110 = vunpack.c.h.b16 %v5686
        %v6111 = vunpack.c.l.b16 %v5687
        %v6112 = vunpack.c.h.b16 %v5687
        %v6113 = vunpack.c.l.b16 %v5688
        %v6114 = vunpack.c.h.b16 %v5688
        %v6115 = vunpack.c.l.b16 %v5689
        %v6116 = vunpack.c.h.b16 %v5689
        %v6117 = vunpack.c.l.b16 %v5690
        %v6118 = vunpack.c.h.b16 %v5690
        %v6119 = vunpack.c.l.b16 %v5691
        %v6120 = vunpack.c.h.b16 %v5691
        %v6121 = vunpack.c.l.b16 %v5692
        %v6122 = vunpack.c.h.b16 %v5692
        %v6123 = vunpack.c.l.b16 %v5693
        %v6124 = vunpack.c.h.b16 %v5693
        %v6125 = vunpack.c.l.b16 %v5694
        %v6126 = vunpack.c.h.b16 %v5694
        %v6127 = vunpack.c.l.b16 %v5695
        %v6128 = vunpack.c.h.b16 %v5695
        %v6129 = vunpack.c.l.b16 %v5696
        %v6130 = vunpack.c.h.b16 %v5696
        %v6131 = vunpack.c.l.b16 %v5697
        %v6132 = vunpack.c.h.b16 %v5697
        %v6133 = vunpack.c.l.b16 %v5698
        %v6134 = vunpack.c.h.b16 %v5698
        %v6135 = vunpack.c.l.b16 %v5699
        %v6136 = vunpack.c.h.b16 %v5699
        %v6137 = vunpack.c.l.b16 %v5700
        %v6138 = vunpack.c.h.b16 %v5700
        %v6139 = vunpack.c.l.b16 %v5701
        %v6140 = vunpack.c.h.b16 %v5701
        %v6141 = vunpack.c.l.b16 %v5702
        %v6142 = vunpack.c.h.b16 %v5702
        %v6143 = vunpack.c.l.b16 %v5703
        %v6144 = vunpack.c.h.b16 %v5703
        %v6145 = vunpack.c.l.b16 %v5704
        %v6146 = vunpack.c.h.b16 %v5704
        %v6147 = vunpack.c.l.b16 %v5705
        %v6148 = vunpack.c.h.b16 %v5705
        %v6149 = vunpack.c.l.b16 %v5706
        %v6150 = vunpack.c.h.b16 %v5706
        %v6151 = vunpack.c.l.b16 %v5707
        %v6152 = vunpack.c.h.b16 %v5707
        %v6153 = vunpack.c.l.b16 %v5708
        %v6154 = vunpack.c.h.b16 %v5708
        %v6155 = vunpack.c.l.b16 %v5709
        %v6156 = vunpack.c.h.b16 %v5709
        %v6157 = vunpack.c.l.b16 %v5710
        %v6158 = vunpack.c.h.b16 %v5710
        %v6159 = vunpack.c.l.b16 %v5711
        %v6160 = vunpack.c.h.b16 %v5711
        %v6161 = vunpack.c.l.b16 %v5712
        %v6162 = vunpack.c.h.b16 %v5712
        %v6163 = vunpack.c.l.b16 %v5713
        %v6164 = vunpack.c.h.b16 %v5713
        %v6165 = vunpack.c.l.b16 %v5714
        %v6166 = vunpack.c.h.b16 %v5714
        %v6167 = vunpack.c.l.b16 %v5715
        %v6168 = vunpack.c.h.b16 %v5715
        %v6169 = vunpack.c.l.b16 %v5716
        %v6170 = vunpack.c.h.b16 %v5716
        %v6171 = vunpack.c.l.b16 %v5717
        %v6172 = vunpack.c.h.b16 %v5717
        %v6173 = vunpack.c.l.b16 %v5718
        %v6174 = vunpack.c.h.b16 %v5718
        %v6175 = vunpack.c.l.b16 %v5719
        %v6176 = vunpack.c.h.b16 %v5719
        %v6177 = vunpack.c.l.b16 %v5720
        %v6178 = vunpack.c.h.b16 %v5720
        %v6179 = vunpack.c.l.b16 %v5721
        %v6180 = vunpack.c.h.b16 %v5721
        %v6181 = vunpack.c.l.b16 %v5722
        %v6182 = vunpack.c.h.b16 %v5722
        %v6183 = vunpack.c.l.b16 %v5723
        %v6184 = vunpack.c.h.b16 %v5723
        %v6185 = vunpack.c.l.b16 %v5724
        %v6186 = vunpack.c.h.b16 %v5724
        %v6187 = vunpack.c.l.b16 %v5725
        %v6188 = vunpack.c.h.b16 %v5725
        %v6189 = vunpack.c.l.b16 %v5726
        %v6190 = vunpack.c.h.b16 %v5726
        %v6191 = vunpack.c.l.b16 %v5727
        %v6192 = vunpack.c.h.b16 %v5727
        %v6193 = vunpack.c.l.b16 %v5728
        %v6194 = vunpack.c.h.b16 %v5728
        %v6195 = vunpack.c.l.b16 %v5729
        %v6196 = vunpack.c.h.b16 %v5729
        %v6197 = vunpack.c.l.b16 %v5730
        %v6198 = vunpack.c.h.b16 %v5730
        %v6199 = vunpack.c.l.b16 %v5731
        %v6200 = vunpack.c.h.b16 %v5731
        %v6201 = vunpack.c.l.b16 %v5732
        %v6202 = vunpack.c.h.b16 %v5732
        %v6203 = vunpack.c.l.b16 %v5733
        %v6204 = vunpack.c.h.b16 %v5733
        %v6205 = vunpack.c.l.b16 %v5734
        %v6206 = vunpack.c.h.b16 %v5734
        %v6207 = vunpack.c.l.b16 %v5735
        %v6208 = vunpack.c.h.b16 %v5735
        %v6209 = vunpack.c.l.b16 %v5736
        %v6210 = vunpack.c.h.b16 %v5736
        %v6211 = vunpack.c.l.b16 %v5737
        %v6212 = vunpack.c.h.b16 %v5737
        %v6213 = vunpack.c.l.b16 %v5738
        %v6214 = vunpack.c.h.b16 %v5738
        %v6215 = vunpack.c.l.b16 %v5739
        %v6216 = vunpack.c.h.b16 %v5739
        %v6217 = vunpack.c.l.b16 %v5740
        %v6218 = vunpack.c.h.b16 %v5740
        %v6219 = vunpack.c.l.b16 %v5741
        %v6220 = vunpack.c.h.b16 %v5741
        %v6221 = vunpack.c.l.b16 %v5742
        %v6222 = vunpack.c.h.b16 %v5742
        %v6223 = vunpack.c.l.b16 %v5743
        %v6224 = vunpack.c.h.b16 %v5743
        %v6225 = vunpack.c.l.b16 %v5744
        %v6226 = vunpack.c.h.b16 %v5744
        %v6227 = vunpack.c.l.b16 %v5745
        %v6228 = vunpack.c.h.b16 %v5745
        %v6229 = vunpack.c.l.b16 %v5746
        %v6230 = vunpack.c.h.b16 %v5746
        %v6231 = vunpack.c.l.b16 %v5747
        %v6232 = vunpack.c.h.b16 %v5747
        %v6233 = vunpack.c.l.b16 %v5748
        %v6234 = vunpack.c.h.b16 %v5748
        %v6235 = vunpack.c.l.b16 %v5749
        %v6236 = vunpack.c.h.b16 %v5749
        %v6237 = vunpack.c.l.b16 %v5750
        %v6238 = vunpack.c.h.b16 %v5750
        %v6239 = vunpack.c.l.b16 %v5751
        %v6240 = vunpack.c.h.b16 %v5751
        %v6241 = vunpack.c.l.b16 %v5752
        %v6242 = vunpack.c.h.b16 %v5752
        %v6243 = vunpack.c.l.b16 %v5753
        %v6244 = vunpack.c.h.b16 %v5753
        %v6245 = vunpack.c.l.b16 %v5754
        %v6246 = vunpack.c.h.b16 %v5754
        %v6247 = vunpack.c.l.b16 %v5755
        %v6248 = vunpack.c.h.b16 %v5755
        %v6249 = vunpack.c.l.b16 %v5756
        %v6250 = vunpack.c.h.b16 %v5756
        %v6251 = vunpack.c.l.b16 %v5757
        %v6252 = vunpack.c.h.b16 %v5757
        %v6253 = vunpack.c.l.b16 %v5758
        %v6254 = vunpack.c.h.b16 %v5758
        %v6255 = vunpack.c.l.b16 %v5759
        %v6256 = vunpack.c.h.b16 %v5759
        %v6257 = vunpack.c.l.b16 %v5760
        %v6258 = vunpack.c.h.b16 %v5760
        %v6259 = vunpack.c.l.b16 %v5761
        %v6260 = vunpack.c.h.b16 %v5761
        %v6261 = vunpack.c.l.b16 %v5762
        %v6262 = vunpack.c.h.b16 %v5762
        %v6263 = vunpack.c.l.b16 %v5763
        %v6264 = vunpack.c.h.b16 %v5763
        %v6265 = vunpack.c.l.b16 %v5764
        %v6266 = vunpack.c.h.b16 %v5764
        %v6267 = vunpack.c.l.b16 %v5765
        %v6268 = vunpack.c.h.b16 %v5765
        %v6269 = vunpack.c.l.b16 %v5766
        %v6270 = vunpack.c.h.b16 %v5766
        %v6271 = vunpack.c.l.b16 %v5767
        %v6272 = vunpack.c.h.b16 %v5767
        %v6273 = vunpack.c.l.b16 %v5768
        %v6274 = vunpack.c.h.b16 %v5768
        %v6275 = vunpack.c.l.b16 %v5769
        %v6276 = vunpack.c.h.b16 %v5769
        %v6277 = vunpack.c.l.b16 %v5770
        %v6278 = vunpack.c.h.b16 %v5770
        %v6279 = vunpack.c.l.b16 %v5771
        %v6280 = vunpack.c.h.b16 %v5771
        %v6281 = vunpack.c.l.b16 %v5772
        %v6282 = vunpack.c.h.b16 %v5772
        %v6283 = vunpack.c.l.b16 %v5773
        %v6284 = vunpack.c.h.b16 %v5773
        %v6285 = vpack.c.b16 %v5969, %v5965
        %v6286 = vpack.c.b16 %v5970, %v5966
        %v6287 = vpack.c.b16 %v5971, %v5967
        %v6288 = vpack.c.b16 %v5972, %v5968
        %v6289 = vpack.c.b16 %v5977, %v5973
        %v6290 = vpack.c.b16 %v5978, %v5974
        %v6291 = vpack.c.b16 %v5979, %v5975
        %v6292 = vpack.c.b16 %v5980, %v5976
        %v6293 = vpack.c.b16 %v5985, %v5981
        %v6294 = vpack.c.b16 %v5986, %v5982
        %v6295 = vpack.c.b16 %v5987, %v5983
        %v6296 = vpack.c.b16 %v5988, %v5984
        %v6297 = vpack.c.b16 %v5993, %v5989
        %v6298 = vpack.c.b16 %v5994, %v5990
        %v6299 = vpack.c.b16 %v5995, %v5991
        %v6300 = vpack.c.b16 %v5996, %v5992
        %v6301 = vpack.c.b16 %v6001, %v5997
        %v6302 = vpack.c.b16 %v6002, %v5998
        %v6303 = vpack.c.b16 %v6003, %v5999
        %v6304 = vpack.c.b16 %v6004, %v6000
        %v6305 = vpack.c.b16 %v6009, %v6005
        %v6306 = vpack.c.b16 %v6010, %v6006
        %v6307 = vpack.c.b16 %v6011, %v6007
        %v6308 = vpack.c.b16 %v6012, %v6008
        %v6309 = vpack.c.b16 %v6017, %v6013
        %v6310 = vpack.c.b16 %v6018, %v6014
        %v6311 = vpack.c.b16 %v6019, %v6015
        %v6312 = vpack.c.b16 %v6020, %v6016
        %v6313 = vpack.c.b16 %v6025, %v6021
        %v6314 = vpack.c.b16 %v6026, %v6022
        %v6315 = vpack.c.b16 %v6027, %v6023
        %v6316 = vpack.c.b16 %v6028, %v6024
        %v6317 = vpack.c.b16 %v6033, %v6029
        %v6318 = vpack.c.b16 %v6034, %v6030
        %v6319 = vpack.c.b16 %v6035, %v6031
        %v6320 = vpack.c.b16 %v6036, %v6032
        %v6321 = vpack.c.b16 %v6041, %v6037
        %v6322 = vpack.c.b16 %v6042, %v6038
        %v6323 = vpack.c.b16 %v6043, %v6039
        %v6324 = vpack.c.b16 %v6044, %v6040
        %v6325 = vpack.c.b16 %v6049, %v6045
        %v6326 = vpack.c.b16 %v6050, %v6046
        %v6327 = vpack.c.b16 %v6051, %v6047
        %v6328 = vpack.c.b16 %v6052, %v6048
        %v6329 = vpack.c.b16 %v6057, %v6053
        %v6330 = vpack.c.b16 %v6058, %v6054
        %v6331 = vpack.c.b16 %v6059, %v6055
        %v6332 = vpack.c.b16 %v6060, %v6056
        %v6333 = vpack.c.b16 %v6065, %v6061
        %v6334 = vpack.c.b16 %v6066, %v6062
        %v6335 = vpack.c.b16 %v6067, %v6063
        %v6336 = vpack.c.b16 %v6068, %v6064
        %v6337 = vpack.c.b16 %v6073, %v6069
        %v6338 = vpack.c.b16 %v6074, %v6070
        %v6339 = vpack.c.b16 %v6075, %v6071
        %v6340 = vpack.c.b16 %v6076, %v6072
        %v6341 = vpack.c.b16 %v6081, %v6077
        %v6342 = vpack.c.b16 %v6082, %v6078
        %v6343 = vpack.c.b16 %v6083, %v6079
        %v6344 = vpack.c.b16 %v6084, %v6080
        %v6345 = vpack.c.b16 %v6089, %v6085
        %v6346 = vpack.c.b16 %v6090, %v6086
        %v6347 = vpack.c.b16 %v6091, %v6087
        %v6348 = vpack.c.b16 %v6092, %v6088
        %v6349 = vpack.c.b16 %v6097, %v6093
        %v6350 = vpack.c.b16 %v6098, %v6094
        %v6351 = vpack.c.b16 %v6099, %v6095
        %v6352 = vpack.c.b16 %v6100, %v6096
        %v6353 = vpack.c.b16 %v6105, %v6101
        %v6354 = vpack.c.b16 %v6106, %v6102
        %v6355 = vpack.c.b16 %v6107, %v6103
        %v6356 = vpack.c.b16 %v6108, %v6104
        %v6357 = vpack.c.b16 %v6113, %v6109
        %v6358 = vpack.c.b16 %v6114, %v6110
        %v6359 = vpack.c.b16 %v6115, %v6111
        %v6360 = vpack.c.b16 %v6116, %v6112
        %v6361 = vpack.c.b16 %v6121, %v6117
        %v6362 = vpack.c.b16 %v6122, %v6118
        %v6363 = vpack.c.b16 %v6123, %v6119
        %v6364 = vpack.c.b16 %v6124, %v6120
        %v6365 = vpack.c.b16 %v6129, %v6125
        %v6366 = vpack.c.b16 %v6130, %v6126
        %v6367 = vpack.c.b16 %v6131, %v6127
        %v6368 = vpack.c.b16 %v6132, %v6128
        %v6369 = vpack.c.b16 %v6137, %v6133
        %v6370 = vpack.c.b16 %v6138, %v6134
        %v6371 = vpack.c.b16 %v6139, %v6135
        %v6372 = vpack.c.b16 %v6140, %v6136
        %v6373 = vpack.c.b16 %v6145, %v6141
        %v6374 = vpack.c.b16 %v6146, %v6142
        %v6375 = vpack.c.b16 %v6147, %v6143
        %v6376 = vpack.c.b16 %v6148, %v6144
        %v6377 = vpack.c.b16 %v6153, %v6149
        %v6378 = vpack.c.b16 %v6154, %v6150
        %v6379 = vpack.c.b16 %v6155, %v6151
        %v6380 = vpack.c.b16 %v6156, %v6152
        %v6381 = vpack.c.b16 %v6161, %v6157
        %v6382 = vpack.c.b16 %v6162, %v6158
        %v6383 = vpack.c.b16 %v6163, %v6159
        %v6384 = vpack.c.b16 %v6164, %v6160
        %v6385 = vpack.c.b16 %v6169, %v6165
        %v6386 = vpack.c.b16 %v6170, %v6166
        %v6387 = vpack.c.b16 %v6171, %v6167
        %v6388 = vpack.c.b16 %v6172, %v6168
        %v6389 = vpack.c.b16 %v6177, %v6173
        %v6390 = vpack.c.b16 %v6178, %v6174
        %v6391 = vpack.c.b16 %v6179, %v6175
        %v6392 = vpack.c.b16 %v6180, %v6176
        %v6393 = vpack.c.b16 %v6185, %v6181
        %v6394 = vpack.c.b16 %v6186, %v6182
        %v6395 = vpack.c.b16 %v6187, %v6183
        %v6396 = vpack.c.b16 %v6188, %v6184
        %v6397 = vpack.c.b16 %v6193, %v6189
        %v6398 = vpack.c.b16 %v6194, %v6190
        %v6399 = vpack.c.b16 %v6195, %v6191
        %v6400 = vpack.c.b16 %v6196, %v6192
        %v6401 = vpack.c.b16 %v6201, %v6197
        %v6402 = vpack.c.b16 %v6202, %v6198
        %v6403 = vpack.c.b16 %v6203, %v6199
        %v6404 = vpack.c.b16 %v6204, %v6200
        %v6405 = vpack.c.b16 %v6209, %v6205
        %v6406 = vpack.c.b16 %v6210, %v6206
        %v6407 = vpack.c.b16 %v6211, %v6207
        %v6408 = vpack.c.b16 %v6212, %v6208
        %v6409 = vpack.c.b16 %v6217, %v6213
        %v6410 = vpack.c.b16 %v6218, %v6214
        %v6411 = vpack.c.b16 %v6219, %v6215
        %v6412 = vpack.c.b16 %v6220, %v6216
        %v6413 = vpack.c.b16 %v6225, %v6221
        %v6414 = vpack.c.b16 %v6226, %v6222
        %v6415 = vpack.c.b16 %v6227, %v6223
        %v6416 = vpack.c.b16 %v6228, %v6224
        %v6417 = vpack.c.b16 %v6233, %v6229
        %v6418 = vpack.c.b16 %v6234, %v6230
        %v6419 = vpack.c.b16 %v6235, %v6231
        %v6420 = vpack.c.b16 %v6236, %v6232
        %v6421 = vpack.c.b16 %v6241, %v6237
        %v6422 = vpack.c.b16 %v6242, %v6238
        %v6423 = vpack.c.b16 %v6243, %v6239
        %v6424 = vpack.c.b16 %v6244, %v6240
        %v6425 = vpack.c.b16 %v6249, %v6245
        %v6426 = vpack.c.b16 %v6250, %v6246
        %v6427 = vpack.c.b16 %v6251, %v6247
        %v6428 = vpack.c.b16 %v6252, %v6248
        %v6429 = vpack.c.b16 %v6257, %v6253
        %v6430 = vpack.c.b16 %v6258, %v6254
        %v6431 = vpack.c.b16 %v6259, %v6255
        %v6432 = vpack.c.b16 %v6260, %v6256
        %v6433 = vpack.c.b16 %v6265, %v6261
        %v6434 = vpack.c.b16 %v6266, %v6262
        %v6435 = vpack.c.b16 %v6267, %v6263
        %v6436 = vpack.c.b16 %v6268, %v6264
        %v6437 = vpack.c.b16 %v6273, %v6269
        %v6438 = vpack.c.b16 %v6274, %v6270
        %v6439 = vpack.c.b16 %v6275, %v6271
        %v6440 = vpack.c.b16 %v6276, %v6272
        %v6441 = vpack.c.b16 %v6281, %v6277
        %v6442 = vpack.c.b16 %v6282, %v6278
        %v6443 = vpack.c.b16 %v6283, %v6279
        %v6444 = vpack.c.b16 %v6284, %v6280
        %6605 = vmatprep.subr.bf16.mxu0 %v6286
        %6606 = vmatpush1.bf16.msra.mxu0 %v6285
        %6607 = vmatprep.subr.bf16.mxu0 %v6290
        %6608 = vmatpush1.bf16.msra.mxu0 %v6289
        %6609 = vmatprep.subr.bf16.mxu0 %v6294
        %6610 = vmatpush1.bf16.msra.mxu0 %v6293
        %6611 = vmatprep.subr.bf16.mxu0 %v6298
        %6612 = vmatpush1.bf16.msra.mxu0 %v6297
        %6613 = vmatprep.subr.bf16.mxu0 %v6302
        %6614 = vmatpush1.bf16.msra.mxu0 %v6301
        %6615 = vmatprep.subr.bf16.mxu0 %v6306
        %6616 = vmatpush1.bf16.msra.mxu0 %v6305
        %6617 = vmatprep.subr.bf16.mxu0 %v6310
        %6618 = vmatpush1.bf16.msra.mxu0 %v6309
        %6619 = vmatprep.subr.bf16.mxu0 %v6314
        %6620 = vmatpush1.bf16.msra.mxu0 %v6313
        %6621 = vmatprep.subr.bf16.mxu0 %v6318
        %6622 = vmatpush1.bf16.msra.mxu0 %v6317
        %6623 = vmatprep.subr.bf16.mxu0 %v6322
        %6624 = vmatpush1.bf16.msra.mxu0 %v6321
        %6625 = vmatprep.subr.bf16.mxu0 %v6326
        %6626 = vmatpush1.bf16.msra.mxu0 %v6325
        %6627 = vmatprep.subr.bf16.mxu0 %v6330
        %6628 = vmatpush1.bf16.msra.mxu0 %v6329
        %6629 = vmatprep.subr.bf16.mxu0 %v6334
        %6630 = vmatpush1.bf16.msra.mxu0 %v6333
        %6631 = vmatprep.subr.bf16.mxu0 %v6338
        %6632 = vmatpush1.bf16.msra.mxu0 %v6337
        %6633 = vmatprep.subr.bf16.mxu0 %v6342
        %6634 = vmatpush1.bf16.msra.mxu0 %v6341
        %6635 = vmatprep.subr.bf16.mxu0 %v6346
        %6636 = vmatpush1.bf16.msra.mxu0 %v6345
        %6637 = vmatprep.mubr.bf16.mxu0 %v5790
        %6638 = vmatmul.mubr.bf16.gmra.mrb[0].mxu0 %v5787
        %v6639 = vpop.f32.mrb[0].mxu0
        %v6640 = vadd.f32 0.0, %v6639
        %v6641 = vpop.f32.mrb[0].mxu0
        %v6642 = vadd.f32 0.0, %v6641
        %v6643 = vpop.f32.mrb[0].mxu0
        %v6644 = vadd.f32 0.0, %v6643
        %v6645 = vpop.f32.mrb[0].mxu0
        %v6646 = vadd.f32 0.0, %v6645
        %6647 = vdwg.mxu0
        %6648 = vmatprep.subr.bf16.mxu0 %v6350
        %6649 = vmatpush1.bf16.msra.mxu0 %v6349
        %6650 = vmatprep.subr.bf16.mxu0 %v6354
        %6651 = vmatpush1.bf16.msra.mxu0 %v6353
        %6652 = vmatprep.subr.bf16.mxu0 %v6358
        %6653 = vmatpush1.bf16.msra.mxu0 %v6357
        %6654 = vmatprep.subr.bf16.mxu0 %v6362
        %6655 = vmatpush1.bf16.msra.mxu0 %v6361
        %6656 = vmatprep.subr.bf16.mxu0 %v6366
        %6657 = vmatpush1.bf16.msra.mxu0 %v6365
        %6658 = vmatprep.subr.bf16.mxu0 %v6370
        %6659 = vmatpush1.bf16.msra.mxu0 %v6369
        %6660 = vmatprep.subr.bf16.mxu0 %v6374
        %6661 = vmatpush1.bf16.msra.mxu0 %v6373
        %6662 = vmatprep.subr.bf16.mxu0 %v6378
        %6663 = vmatpush1.bf16.msra.mxu0 %v6377
        %6664 = vmatprep.subr.bf16.mxu0 %v6382
        %6665 = vmatpush1.bf16.msra.mxu0 %v6381
        %6666 = vmatprep.subr.bf16.mxu0 %v6386
        %6667 = vmatpush1.bf16.msra.mxu0 %v6385
        %6668 = vmatprep.subr.bf16.mxu0 %v6390
        %6669 = vmatpush1.bf16.msra.mxu0 %v6389
        %6670 = vmatprep.subr.bf16.mxu0 %v6394
        %6671 = vmatpush1.bf16.msra.mxu0 %v6393
        %6672 = vmatprep.subr.bf16.mxu0 %v6398
        %6673 = vmatpush1.bf16.msra.mxu0 %v6397
        %6674 = vmatprep.subr.bf16.mxu0 %v6402
        %6675 = vmatpush1.bf16.msra.mxu0 %v6401
        %6676 = vmatprep.subr.bf16.mxu0 %v6406
        %6677 = vmatpush1.bf16.msra.mxu0 %v6405
        %6678 = vmatprep.subr.bf16.mxu0 %v6410
        %6679 = vmatpush1.bf16.msra.mxu0 %v6409
        %6680 = vmatprep.mubr.bf16.mxu0 %v5796
        %6681 = vmatmul.mubr.bf16.gmra.mrb[0].mxu0 %v5793
        %v6682 = vpop.f32.mrb[0].mxu0
        %v6683 = vadd.f32 %v6640, %v6682
        %v6684 = vpop.f32.mrb[0].mxu0
        %v6685 = vadd.f32 %v6642, %v6684
        %v6686 = vpop.f32.mrb[0].mxu0
        %v6687 = vadd.f32 %v6644, %v6686
        %v6688 = vpop.f32.mrb[0].mxu0
        %v6689 = vadd.f32 %v6646, %v6688
        %6690 = vdwg.mxu0
        %6691 = vmatprep.subr.bf16.mxu0 %v6414
        %6692 = vmatpush1.bf16.msra.mxu0 %v6413
        %6693 = vmatprep.subr.bf16.mxu0 %v6418
        %6694 = vmatpush1.bf16.msra.mxu0 %v6417
        %6695 = vmatprep.subr.bf16.mxu0 %v6422
        %6696 = vmatpush1.bf16.msra.mxu0 %v6421
        %6697 = vmatprep.subr.bf16.mxu0 %v6426
        %6698 = vmatpush1.bf16.msra.mxu0 %v6425
        %6699 = vmatprep.subr.bf16.mxu0 %v6430
        %6700 = vmatpush1.bf16.msra.mxu0 %v6429
        %6701 = vmatprep.subr.bf16.mxu0 %v6434
        %6702 = vmatpush1.bf16.msra.mxu0 %v6433
        %6703 = vmatprep.subr.bf16.mxu0 %v6438
        %6704 = vmatpush1.bf16.msra.mxu0 %v6437
        %6705 = vmatprep.subr.bf16.mxu0 %v6442
        %6706 = vmatpush1.bf16.msra.mxu0 %v6441
        %6707 = vmatprep.subr.bf16.mxu0 0
        %6708 = vmatpush1.bf16.msra.mxu0 0
        %6709 = vmatprep.subr.bf16.mxu0 0
        %6710 = vmatpush1.bf16.msra.mxu0 0
        %6711 = vmatprep.subr.bf16.mxu0 0
        %6712 = vmatpush1.bf16.msra.mxu0 0
        %6713 = vmatprep.subr.bf16.mxu0 0
        %6714 = vmatpush1.bf16.msra.mxu0 0
        %6715 = vmatprep.subr.bf16.mxu0 0
        %6716 = vmatpush1.bf16.msra.mxu0 0
        %6717 = vmatprep.subr.bf16.mxu0 0
        %6718 = vmatpush1.bf16.msra.mxu0 0
        %6719 = vmatprep.subr.bf16.mxu0 0
        %6720 = vmatpush1.bf16.msra.mxu0 0
        %6721 = vmatprep.subr.bf16.mxu0 0
        %6722 = vmatpush1.bf16.msra.mxu0 0
        %6723 = vmatprep.mubr.bf16.mxu0 0
        %6724 = vmatmul.mubr.bf16.gmra.mrb[0].mxu0 %v5799
        %v6725 = vpop.f32.mrb[0].mxu0
        %v6726 = vadd.f32 %v6683, %v6725
        %v6727 = vpop.f32.mrb[0].mxu0
        %v6728 = vadd.f32 %v6685, %v6727
        %v6729 = vpop.f32.mrb[0].mxu0
        %v6730 = vadd.f32 %v6687, %v6729
        %v6731 = vpop.f32.mrb[0].mxu0
        %v6732 = vadd.f32 %v6689, %v6731
        %6733 = vdwg.mxu0
        %6734 = vmatprep.subr.bf16.mxu0 %v6288
        %6735 = vmatpush1.bf16.msra.mxu0 %v6287
        %6736 = vmatprep.subr.bf16.mxu0 %v6292
        %6737 = vmatpush1.bf16.msra.mxu0 %v6291
        %6738 = vmatprep.subr.bf16.mxu0 %v6296
        %6739 = vmatpush1.bf16.msra.mxu0 %v6295
        %6740 = vmatprep.subr.bf16.mxu0 %v6300
        %6741 = vmatpush1.bf16.msra.mxu0 %v6299
        %6742 = vmatprep.subr.bf16.mxu0 %v6304
        %6743 = vmatpush1.bf16.msra.mxu0 %v6303
        %6744 = vmatprep.subr.bf16.mxu0 %v6308
        %6745 = vmatpush1.bf16.msra.mxu0 %v6307
        %6746 = vmatprep.subr.bf16.mxu0 %v6312
        %6747 = vmatpush1.bf16.msra.mxu0 %v6311
        %6748 = vmatprep.subr.bf16.mxu0 %v6316
        %6749 = vmatpush1.bf16.msra.mxu0 %v6315
        %6750 = vmatprep.subr.bf16.mxu0 %v6320
        %6751 = vmatpush1.bf16.msra.mxu0 %v6319
        %6752 = vmatprep.subr.bf16.mxu0 %v6324
        %6753 = vmatpush1.bf16.msra.mxu0 %v6323
        %6754 = vmatprep.subr.bf16.mxu0 %v6328
        %6755 = vmatpush1.bf16.msra.mxu0 %v6327
        %6756 = vmatprep.subr.bf16.mxu0 %v6332
        %6757 = vmatpush1.bf16.msra.mxu0 %v6331
        %6758 = vmatprep.subr.bf16.mxu0 %v6336
        %6759 = vmatpush1.bf16.msra.mxu0 %v6335
        %6760 = vmatprep.subr.bf16.mxu0 %v6340
        %6761 = vmatpush1.bf16.msra.mxu0 %v6339
        %6762 = vmatprep.subr.bf16.mxu0 %v6344
        %6763 = vmatpush1.bf16.msra.mxu0 %v6343
        %6764 = vmatprep.subr.bf16.mxu0 %v6348
        %6765 = vmatpush1.bf16.msra.mxu0 %v6347
        %6766 = vmatprep.mubr.bf16.mxu0 %v5790
        %6767 = vmatmul.mubr.bf16.gmra.mrb[0].mxu0 %v5787
        %v6768 = vpop.f32.mrb[0].mxu0
        %v6769 = vadd.f32 0.0, %v6768
        %v6770 = vpop.f32.mrb[0].mxu0
        %v6771 = vadd.f32 0.0, %v6770
        %v6772 = vpop.f32.mrb[0].mxu0
        %v6773 = vadd.f32 0.0, %v6772
        %v6774 = vpop.f32.mrb[0].mxu0
        %v6775 = vadd.f32 0.0, %v6774
        %6776 = vdwg.mxu0
        %6777 = vmatprep.subr.bf16.mxu0 %v6352
        %6778 = vmatpush1.bf16.msra.mxu0 %v6351
        %6779 = vmatprep.subr.bf16.mxu0 %v6356
        %6780 = vmatpush1.bf16.msra.mxu0 %v6355
        %6781 = vmatprep.subr.bf16.mxu0 %v6360
        %6782 = vmatpush1.bf16.msra.mxu0 %v6359
        %6783 = vmatprep.subr.bf16.mxu0 %v6364
        %6784 = vmatpush1.bf16.msra.mxu0 %v6363
        %6785 = vmatprep.subr.bf16.mxu0 %v6368
        %6786 = vmatpush1.bf16.msra.mxu0 %v6367
        %6787 = vmatprep.subr.bf16.mxu0 %v6372
        %6788 = vmatpush1.bf16.msra.mxu0 %v6371
        %6789 = vmatprep.subr.bf16.mxu0 %v6376
        %6790 = vmatpush1.bf16.msra.mxu0 %v6375
        %6791 = vmatprep.subr.bf16.mxu0 %v6380
        %6792 = vmatpush1.bf16.msra.mxu0 %v6379
        %6793 = vmatprep.subr.bf16.mxu0 %v6384
        %6794 = vmatpush1.bf16.msra.mxu0 %v6383
        %6795 = vmatprep.subr.bf16.mxu0 %v6388
        %6796 = vmatpush1.bf16.msra.mxu0 %v6387
        %6797 = vmatprep.subr.bf16.mxu0 %v6392
        %6798 = vmatpush1.bf16.msra.mxu0 %v6391
        %6799 = vmatprep.subr.bf16.mxu0 %v6396
        %6800 = vmatpush1.bf16.msra.mxu0 %v6395
        %6801 = vmatprep.subr.bf16.mxu0 %v6400
        %6802 = vmatpush1.bf16.msra.mxu0 %v6399
        %6803 = vmatprep.subr.bf16.mxu0 %v6404
        %6804 = vmatpush1.bf16.msra.mxu0 %v6403
        %6805 = vmatprep.subr.bf16.mxu0 %v6408
        %6806 = vmatpush1.bf16.msra.mxu0 %v6407
        %6807 = vmatprep.subr.bf16.mxu0 %v6412
        %6808 = vmatpush1.bf16.msra.mxu0 %v6411
        %6809 = vmatprep.mubr.bf16.mxu0 %v5796
        %6810 = vmatmul.mubr.bf16.gmra.mrb[0].mxu0 %v5793
        %v6811 = vpop.f32.mrb[0].mxu0
        %v6812 = vadd.f32 %v6769, %v6811
        %v6813 = vpop.f32.mrb[0].mxu0
        %v6814 = vadd.f32 %v6771, %v6813
        %v6815 = vpop.f32.mrb[0].mxu0
        %v6816 = vadd.f32 %v6773, %v6815
        %v6817 = vpop.f32.mrb[0].mxu0
        %v6818 = vadd.f32 %v6775, %v6817
        %6819 = vdwg.mxu0
        %6820 = vmatprep.subr.bf16.mxu0 %v6416
        %6821 = vmatpush1.bf16.msra.mxu0 %v6415
        %6822 = vmatprep.subr.bf16.mxu0 %v6420
        %6823 = vmatpush1.bf16.msra.mxu0 %v6419
        %6824 = vmatprep.subr.bf16.mxu0 %v6424
        %6825 = vmatpush1.bf16.msra.mxu0 %v6423
        %6826 = vmatprep.subr.bf16.mxu0 %v6428
        %6827 = vmatpush1.bf16.msra.mxu0 %v6427
        %6828 = vmatprep.subr.bf16.mxu0 %v6432
        %6829 = vmatpush1.bf16.msra.mxu0 %v6431
        %6830 = vmatprep.subr.bf16.mxu0 %v6436
        %6831 = vmatpush1.bf16.msra.mxu0 %v6435
        %6832 = vmatprep.subr.bf16.mxu0 %v6440
        %6833 = vmatpush1.bf16.msra.mxu0 %v6439
        %6834 = vmatprep.subr.bf16.mxu0 %v6444
        %6835 = vmatpush1.bf16.msra.mxu0 %v6443
        %6836 = vmatprep.subr.bf16.mxu0 0
        %6837 = vmatpush1.bf16.msra.mxu0 0
        %6838 = vmatprep.subr.bf16.mxu0 0
        %6839 = vmatpush1.bf16.msra.mxu0 0
        %6840 = vmatprep.subr.bf16.mxu0 0
        %6841 = vmatpush1.bf16.msra.mxu0 0
        %6842 = vmatprep.subr.bf16.mxu0 0
        %6843 = vmatpush1.bf16.msra.mxu0 0
        %6844 = vmatprep.subr.bf16.mxu0 0
        %6845 = vmatpush1.bf16.msra.mxu0 0
        %6846 = vmatprep.subr.bf16.mxu0 0
        %6847 = vmatpush1.bf16.msra.mxu0 0
        %6848 = vmatprep.subr.bf16.mxu0 0
        %6849 = vmatpush1.bf16.msra.mxu0 0
        %6850 = vmatprep.subr.bf16.mxu0 0
        %6851 = vmatpush1.bf16.msra.mxu0 0
        %6852 = vmatprep.mubr.bf16.mxu0 0
        %6853 = vmatmul.mubr.bf16.gmra.mrb[0].mxu0 %v5799
        %v6854 = vpop.f32.mrb[0].mxu0
        %v6855 = vadd.f32 %v6812, %v6854
        %v6856 = vpop.f32.mrb[0].mxu0
        %v6857 = vadd.f32 %v6814, %v6856
        %v6858 = vpop.f32.mrb[0].mxu0
        %v6859 = vadd.f32 %v6816, %v6858
        %v6860 = vpop.f32.mrb[0].mxu0
        %v6861 = vadd.f32 %v6818, %v6860
        %6862 = vdwg.mxu0
        %v6863 = vadd.f32 %v5605, %v6726
        %v6864 = vadd.f32 %v5606, %v6728
        %v6865 = vadd.f32 %v5607, %v6855
        %v6866 = vadd.f32 %v5608, %v6857
        %v6867 = vadd.f32 %v5609, %v6730
        %v6868 = vadd.f32 %v5610, %v6732
        %v6869 = vadd.f32 %v5611, %v6859
        %v6870 = vadd.f32 %v5612, %v6861
        %s6871 = scalar_lea.vmem [#allocation7], 3840
        %v6872 = vld [vmem:[%s6871] sm:$0xff]
        %v6873 = vld [vmem:[%s6871 + $0x8] sm:$0xff]
        %v6874 = vld [vmem:[%s6871 + $0x10] sm:$0xff]
        %v6875 = vld [vmem:[%s6871 + $0x18] sm:$0xff]
        %v6876 = vld [vmem:[%s6871 + $0x20] sm:$0xff]
        %v6877 = vld [vmem:[%s6871 + $0x28] sm:$0xff]
        %v6878 = vld [vmem:[%s6871 + $0x30] sm:$0xff]
        %v6879 = vld [vmem:[%s6871 + $0x38] sm:$0xff]
        %v6880 = vld [vmem:[%s6871 + $0x40] sm:$0xff]
        %v6881 = vld [vmem:[%s6871 + $0x48] sm:$0xff]
        %v6882 = vld [vmem:[%s6871 + $0x50] sm:$0xff]
        %v6883 = vld [vmem:[%s6871 + $0x58] sm:$0xff]
        %v6884 = vld [vmem:[%s6871 + $0x60] sm:$0xff]
        %v6885 = vld [vmem:[%s6871 + $0x68] sm:$0xff]
        %v6886 = vld [vmem:[%s6871 + $0x70] sm:$0xff]
        %v6887 = vld [vmem:[%s6871 + $0x78] sm:$0xff]
        %v6888 = vld [vmem:[%s6871 + $0x80] sm:$0xff]
        %v6889 = vld [vmem:[%s6871 + $0x88] sm:$0xff]
        %v6890 = vld [vmem:[%s6871 + $0x90] sm:$0xff]
        %v6891 = vld [vmem:[%s6871 + $0x98] sm:$0xff]
        %v6892 = vld [vmem:[%s6871 + $0xa0] sm:$0xff]
        %v6893 = vld [vmem:[%s6871 + $0xa8] sm:$0xff]
        %v6894 = vld [vmem:[%s6871 + $0xb0] sm:$0xff]
        %v6895 = vld [vmem:[%s6871 + $0xb8] sm:$0xff]
        %v6896 = vld [vmem:[%s6871 + $0xc0] sm:$0xff]
        %v6897 = vld [vmem:[%s6871 + $0xc8] sm:$0xff]
        %v6898 = vld [vmem:[%s6871 + $0xd0] sm:$0xff]
        %v6899 = vld [vmem:[%s6871 + $0xd8] sm:$0xff]
        %v6900 = vld [vmem:[%s6871 + $0xe0] sm:$0xff]
        %v6901 = vld [vmem:[%s6871 + $0xe8] sm:$0xff]
        %v6902 = vld [vmem:[%s6871 + $0xf0] sm:$0xff]
        %v6903 = vld [vmem:[%s6871 + $0xf8] sm:$0xff]
        %v6904 = vld [vmem:[%s6871 + $0x100] sm:$0xff]
        %v6905 = vld [vmem:[%s6871 + $0x108] sm:$0xff]
        %v6906 = vld [vmem:[%s6871 + $0x110] sm:$0xff]
        %v6907 = vld [vmem:[%s6871 + $0x118] sm:$0xff]
        %v6908 = vld [vmem:[%s6871 + $0x120] sm:$0xff]
        %v6909 = vld [vmem:[%s6871 + $0x128] sm:$0xff]
        %v6910 = vld [vmem:[%s6871 + $0x130] sm:$0xff]
        %v6911 = vld [vmem:[%s6871 + $0x138] sm:$0xff]
        %v6912 = vld [vmem:[%s6871 + $0x140] sm:$0xff]
        %v6913 = vld [vmem:[%s6871 + $0x148] sm:$0xff]
        %v6914 = vld [vmem:[%s6871 + $0x150] sm:$0xff]
        %v6915 = vld [vmem:[%s6871 + $0x158] sm:$0xff]
        %v6916 = vld [vmem:[%s6871 + $0x160] sm:$0xff]
        %v6917 = vld [vmem:[%s6871 + $0x168] sm:$0xff]
        %v6918 = vld [vmem:[%s6871 + $0x170] sm:$0xff]
        %v6919 = vld [vmem:[%s6871 + $0x178] sm:$0xff]
        %v6920 = vld [vmem:[%s6871 + $0x180] sm:$0xff]
        %v6921 = vld [vmem:[%s6871 + $0x188] sm:$0xff]
        %v6922 = vld [vmem:[%s6871 + $0x190] sm:$0xff]
        %v6923 = vld [vmem:[%s6871 + $0x198] sm:$0xff]
        %v6924 = vld [vmem:[%s6871 + $0x1a0] sm:$0xff]
        %v6925 = vld [vmem:[%s6871 + $0x1a8] sm:$0xff]
        %v6926 = vld [vmem:[%s6871 + $0x1b0] sm:$0xff]
        %v6927 = vld [vmem:[%s6871 + $0x1b8] sm:$0xff]
        %v6928 = vld [vmem:[%s6871 + $0x1c0] sm:$0xff]
        %v6929 = vld [vmem:[%s6871 + $0x1c8] sm:$0xff]
        %v6930 = vld [vmem:[%s6871 + $0x1d0] sm:$0xff]
        %v6931 = vld [vmem:[%s6871 + $0x1d8] sm:$0xff]
        %v6932 = vld [vmem:[%s6871 + $0x1e0] sm:$0xff]
        %v6933 = vld [vmem:[%s6871 + $0x1e8] sm:$0xff]
        %v6934 = vld [vmem:[%s6871 + $0x1f0] sm:$0xff]
        %v6935 = vld [vmem:[%s6871 + $0x1f8] sm:$0xff]
        %v6936 = vld [vmem:[%s6871 + $0x200] sm:$0xff]
        %v6937 = vld [vmem:[%s6871 + $0x208] sm:$0xff]
        %v6938 = vld [vmem:[%s6871 + $0x210] sm:$0xff]
        %v6939 = vld [vmem:[%s6871 + $0x218] sm:$0xff]
        %v6940 = vld [vmem:[%s6871 + $0x220] sm:$0xff]
        %v6941 = vld [vmem:[%s6871 + $0x228] sm:$0xff]
        %v6942 = vld [vmem:[%s6871 + $0x230] sm:$0xff]
        %v6943 = vld [vmem:[%s6871 + $0x238] sm:$0xff]
        %v6944 = vld [vmem:[%s6871 + $0x240] sm:$0xff]
        %v6945 = vld [vmem:[%s6871 + $0x248] sm:$0xff]
        %v6946 = vld [vmem:[%s6871 + $0x250] sm:$0xff]
        %v6947 = vld [vmem:[%s6871 + $0x258] sm:$0xff]
        %v6948 = vld [vmem:[%s6871 + $0x260] sm:$0xff]
        %v6949 = vld [vmem:[%s6871 + $0x268] sm:$0xff]
        %v6950 = vld [vmem:[%s6871 + $0x270] sm:$0xff]
        %v6951 = vld [vmem:[%s6871 + $0x278] sm:$0xff]
        %v6952 = vld [vmem:[%s6871 + $0x280] sm:$0xff]
        %v6953 = vld [vmem:[%s6871 + $0x288] sm:$0xff]
        %v6954 = vld [vmem:[%s6871 + $0x290] sm:$0xff]
        %v6955 = vld [vmem:[%s6871 + $0x298] sm:$0xff]
        %v6956 = vld [vmem:[%s6871 + $0x2a0] sm:$0xff]
        %v6957 = vld [vmem:[%s6871 + $0x2a8] sm:$0xff]
        %v6958 = vld [vmem:[%s6871 + $0x2b0] sm:$0xff]
        %v6959 = vld [vmem:[%s6871 + $0x2b8] sm:$0xff]
        %v6960 = vld [vmem:[%s6871 + $0x2c0] sm:$0xff]
        %v6961 = vld [vmem:[%s6871 + $0x2c8] sm:$0xff]
        %v6962 = vld [vmem:[%s6871 + $0x2d0] sm:$0xff]
        %v6963 = vld [vmem:[%s6871 + $0x2d8] sm:$0xff]
        %v6964 = vld [vmem:[%s6871 + $0x2e0] sm:$0xff]
        %v6965 = vld [vmem:[%s6871 + $0x2e8] sm:$0xff]
        %v6966 = vld [vmem:[%s6871 + $0x2f0] sm:$0xff]
        %v6967 = vld [vmem:[%s6871 + $0x2f8] sm:$0xff]
        %v6968 = vld [vmem:[%s6871 + $0x300] sm:$0xff]
        %v6969 = vld [vmem:[%s6871 + $0x308] sm:$0xff]
        %v6970 = vld [vmem:[%s6871 + $0x310] sm:$0xff]
        %v6971 = vld [vmem:[%s6871 + $0x318] sm:$0xff]
        %v6972 = vld [vmem:[%s6871 + $0x320] sm:$0xff]
        %v6973 = vld [vmem:[%s6871 + $0x328] sm:$0xff]
        %v6974 = vld [vmem:[%s6871 + $0x330] sm:$0xff]
        %v6975 = vld [vmem:[%s6871 + $0x338] sm:$0xff]
        %v6976 = vld [vmem:[%s6871 + $0x340] sm:$0xff]
        %v6977 = vld [vmem:[%s6871 + $0x348] sm:$0xff]
        %v6978 = vld [vmem:[%s6871 + $0x350] sm:$0xff]
        %v6979 = vld [vmem:[%s6871 + $0x358] sm:$0xff]
        %v6980 = vld [vmem:[%s6871 + $0x360] sm:$0xff]
        %v6981 = vld [vmem:[%s6871 + $0x368] sm:$0xff]
        %v6982 = vld [vmem:[%s6871 + $0x370] sm:$0xff]
        %v6983 = vld [vmem:[%s6871 + $0x378] sm:$0xff]
        %v6984 = vld [vmem:[%s6871 + $0x380] sm:$0xff]
        %v6985 = vld [vmem:[%s6871 + $0x388] sm:$0xff]
        %v6986 = vld [vmem:[%s6871 + $0x390] sm:$0xff]
        %v6987 = vld [vmem:[%s6871 + $0x398] sm:$0xff]
        %v6988 = vld [vmem:[%s6871 + $0x3a0] sm:$0xff]
        %v6989 = vld [vmem:[%s6871 + $0x3a8] sm:$0xff]
        %v6990 = vld [vmem:[%s6871 + $0x3b0] sm:$0xff]
        %v6991 = vld [vmem:[%s6871 + $0x3b8] sm:$0xff]
        %v6992 = vld [vmem:[%s6871 + $0x3c0] sm:$0xff]
        %v6993 = vld [vmem:[%s6871 + $0x3c8] sm:$0xff]
        %v6994 = vld [vmem:[%s6871 + $0x3d0] sm:$0xff]
        %v6995 = vld [vmem:[%s6871 + $0x3d8] sm:$0xff]
        %v6996 = vld [vmem:[%s6871 + $0x3e0] sm:$0xff]
        %v6997 = vld [vmem:[%s6871 + $0x3e8] sm:$0xff]
        %v6998 = vld [vmem:[%s6871 + $0x3f0] sm:$0xff]
        %v6999 = vld [vmem:[%s6871 + $0x3f8] sm:$0xff]
        %v7000 = vld [vmem:[%s6871 + $0x400] sm:$0xff]
        %v7001 = vld [vmem:[%s6871 + $0x408] sm:$0xff]
        %v7002 = vld [vmem:[%s6871 + $0x410] sm:$0xff]
        %v7003 = vld [vmem:[%s6871 + $0x418] sm:$0xff]
        %v7004 = vld [vmem:[%s6871 + $0x420] sm:$0xff]
        %v7005 = vld [vmem:[%s6871 + $0x428] sm:$0xff]
        %v7006 = vld [vmem:[%s6871 + $0x430] sm:$0xff]
        %v7007 = vld [vmem:[%s6871 + $0x438] sm:$0xff]
        %v7008 = vld [vmem:[%s6871 + $0x440] sm:$0xff]
        %v7009 = vld [vmem:[%s6871 + $0x448] sm:$0xff]
        %v7010 = vld [vmem:[%s6871 + $0x450] sm:$0xff]
        %v7011 = vld [vmem:[%s6871 + $0x458] sm:$0xff]
        %v7012 = vld [vmem:[%s6871 + $0x460] sm:$0xff]
        %v7013 = vld [vmem:[%s6871 + $0x468] sm:$0xff]
        %v7014 = vld [vmem:[%s6871 + $0x470] sm:$0xff]
        %v7015 = vld [vmem:[%s6871 + $0x478] sm:$0xff]
        %v7016 = vld [vmem:[%s6871 + $0x480] sm:$0xff]
        %v7017 = vld [vmem:[%s6871 + $0x488] sm:$0xff]
        %v7018 = vld [vmem:[%s6871 + $0x490] sm:$0xff]
        %v7019 = vld [vmem:[%s6871 + $0x498] sm:$0xff]
        %v7020 = vld [vmem:[%s6871 + $0x4a0] sm:$0xff]
        %v7021 = vld [vmem:[%s6871 + $0x4a8] sm:$0xff]
        %v7022 = vld [vmem:[%s6871 + $0x4b0] sm:$0xff]
        %v7023 = vld [vmem:[%s6871 + $0x4b8] sm:$0xff]
        %v7024 = vld [vmem:[%s6871 + $0x4c0] sm:$0xff]
        %v7025 = vld [vmem:[%s6871 + $0x4c8] sm:$0xff]
        %v7026 = vld [vmem:[%s6871 + $0x4d0] sm:$0xff]
        %v7027 = vld [vmem:[%s6871 + $0x4d8] sm:$0xff]
        %v7028 = vld [vmem:[%s6871 + $0x4e0] sm:$0xff]
        %v7029 = vld [vmem:[%s6871 + $0x4e8] sm:$0xff]
        %v7030 = vld [vmem:[%s6871 + $0x4f0] sm:$0xff]
        %v7031 = vld [vmem:[%s6871 + $0x4f8] sm:$0xff]
        %vm7032 = vsmask.f32 6400
        %v7033 = vrot.slane %v4483, 1
        %v7034 = vrot.slane %v4485, 2
        %v7035 = vor.u32 %v7033, %v7034
        %v7036 = vshrl.u32 %v3081, 16
        %v7038 = vrot.slane %v7036, 1
        %v7039 = vrot.slane %v4490, 2
        %v7040 = vor.u32 %v7038, %v7039
        %v7041 = vsel %vm7032, %v7035, %v7040
        %v7042 = vrot.slane %v4495, 1
        %v7043 = vrot.slane %v4497, 2
        %v7044 = vor.u32 %v7042, %v7043
        %v7045 = vshrl.u32 %v3082, 16
        %v7047 = vrot.slane %v7045, 1
        %v7048 = vrot.slane %v4502, 2
        %v7049 = vor.u32 %v7047, %v7048
        %v7050 = vsel %vm7032, %v7044, %v7049
        %v7051 = vrot.slane %v4507, 1
        %v7052 = vrot.slane %v4509, 2
        %v7053 = vor.u32 %v7051, %v7052
        %v7054 = vshrl.u32 %v3083, 16
        %v7056 = vrot.slane %v7054, 1
        %v7057 = vrot.slane %v4514, 2
        %v7058 = vor.u32 %v7056, %v7057
        %v7059 = vsel %vm7032, %v7053, %v7058
        %v7060 = vrot.slane %v4519, 1
        %v7061 = vrot.slane %v4521, 2
        %v7062 = vor.u32 %v7060, %v7061
        %v7063 = vshrl.u32 %v3084, 16
        %v7065 = vrot.slane %v7063, 1
        %v7066 = vrot.slane %v4526, 2
        %v7067 = vor.u32 %v7065, %v7066
        %v7068 = vsel %vm7032, %v7062, %v7067
        %v7069 = vrot.slane %v4531, 1
        %v7070 = vrot.slane %v4533, 2
        %v7071 = vor.u32 %v7069, %v7070
        %v7072 = vshrl.u32 %v3085, 16
        %v7074 = vrot.slane %v7072, 1
        %v7075 = vrot.slane %v4538, 2
        %v7076 = vor.u32 %v7074, %v7075
        %v7077 = vsel %vm7032, %v7071, %v7076
        %v7243 = vunpack.c.l.b16 %v6872
        %v7244 = vunpack.c.h.b16 %v6872
        %v7245 = vunpack.c.l.b16 %v6873
        %v7246 = vunpack.c.h.b16 %v6873
        %v7247 = vunpack.c.l.b16 %v6874
        %v7248 = vunpack.c.h.b16 %v6874
        %v7249 = vunpack.c.l.b16 %v6875
        %v7250 = vunpack.c.h.b16 %v6875
        %v7251 = vunpack.c.l.b16 %v6876
        %v7252 = vunpack.c.h.b16 %v6876
        %v7253 = vunpack.c.l.b16 %v6877
        %v7254 = vunpack.c.h.b16 %v6877
        %v7255 = vunpack.c.l.b16 %v6878
        %v7256 = vunpack.c.h.b16 %v6878
        %v7257 = vunpack.c.l.b16 %v6879
        %v7258 = vunpack.c.h.b16 %v6879
        %v7259 = vunpack.c.l.b16 %v6880
        %v7260 = vunpack.c.h.b16 %v6880
        %v7261 = vunpack.c.l.b16 %v6881
        %v7262 = vunpack.c.h.b16 %v6881
        %v7263 = vunpack.c.l.b16 %v6882
        %v7264 = vunpack.c.h.b16 %v6882
        %v7265 = vunpack.c.l.b16 %v6883
        %v7266 = vunpack.c.h.b16 %v6883
        %v7267 = vunpack.c.l.b16 %v6884
        %v7268 = vunpack.c.h.b16 %v6884
        %v7269 = vunpack.c.l.b16 %v6885
        %v7270 = vunpack.c.h.b16 %v6885
        %v7271 = vunpack.c.l.b16 %v6886
        %v7272 = vunpack.c.h.b16 %v6886
        %v7273 = vunpack.c.l.b16 %v6887
        %v7274 = vunpack.c.h.b16 %v6887
        %v7275 = vunpack.c.l.b16 %v6888
        %v7276 = vunpack.c.h.b16 %v6888
        %v7277 = vunpack.c.l.b16 %v6889
        %v7278 = vunpack.c.h.b16 %v6889
        %v7279 = vunpack.c.l.b16 %v6890
        %v7280 = vunpack.c.h.b16 %v6890
        %v7281 = vunpack.c.l.b16 %v6891
        %v7282 = vunpack.c.h.b16 %v6891
        %v7283 = vunpack.c.l.b16 %v6892
        %v7284 = vunpack.c.h.b16 %v6892
        %v7285 = vunpack.c.l.b16 %v6893
        %v7286 = vunpack.c.h.b16 %v6893
        %v7287 = vunpack.c.l.b16 %v6894
        %v7288 = vunpack.c.h.b16 %v6894
        %v7289 = vunpack.c.l.b16 %v6895
        %v7290 = vunpack.c.h.b16 %v6895
        %v7291 = vunpack.c.l.b16 %v6896
        %v7292 = vunpack.c.h.b16 %v6896
        %v7293 = vunpack.c.l.b16 %v6897
        %v7294 = vunpack.c.h.b16 %v6897
        %v7295 = vunpack.c.l.b16 %v6898
        %v7296 = vunpack.c.h.b16 %v6898
        %v7297 = vunpack.c.l.b16 %v6899
        %v7298 = vunpack.c.h.b16 %v6899
        %v7299 = vunpack.c.l.b16 %v6900
        %v7300 = vunpack.c.h.b16 %v6900
        %v7301 = vunpack.c.l.b16 %v6901
        %v7302 = vunpack.c.h.b16 %v6901
        %v7303 = vunpack.c.l.b16 %v6902
        %v7304 = vunpack.c.h.b16 %v6902
        %v7305 = vunpack.c.l.b16 %v6903
        %v7306 = vunpack.c.h.b16 %v6903
        %v7307 = vunpack.c.l.b16 %v6904
        %v7308 = vunpack.c.h.b16 %v6904
        %v7309 = vunpack.c.l.b16 %v6905
        %v7310 = vunpack.c.h.b16 %v6905
        %v7311 = vunpack.c.l.b16 %v6906
        %v7312 = vunpack.c.h.b16 %v6906
        %v7313 = vunpack.c.l.b16 %v6907
        %v7314 = vunpack.c.h.b16 %v6907
        %v7315 = vunpack.c.l.b16 %v6908
        %v7316 = vunpack.c.h.b16 %v6908
        %v7317 = vunpack.c.l.b16 %v6909
        %v7318 = vunpack.c.h.b16 %v6909
        %v7319 = vunpack.c.l.b16 %v6910
        %v7320 = vunpack.c.h.b16 %v6910
        %v7321 = vunpack.c.l.b16 %v6911
        %v7322 = vunpack.c.h.b16 %v6911
        %v7323 = vunpack.c.l.b16 %v6912
        %v7324 = vunpack.c.h.b16 %v6912
        %v7325 = vunpack.c.l.b16 %v6913
        %v7326 = vunpack.c.h.b16 %v6913
        %v7327 = vunpack.c.l.b16 %v6914
        %v7328 = vunpack.c.h.b16 %v6914
        %v7329 = vunpack.c.l.b16 %v6915
        %v7330 = vunpack.c.h.b16 %v6915
        %v7331 = vunpack.c.l.b16 %v6916
        %v7332 = vunpack.c.h.b16 %v6916
        %v7333 = vunpack.c.l.b16 %v6917
        %v7334 = vunpack.c.h.b16 %v6917
        %v7335 = vunpack.c.l.b16 %v6918
        %v7336 = vunpack.c.h.b16 %v6918
        %v7337 = vunpack.c.l.b16 %v6919
        %v7338 = vunpack.c.h.b16 %v6919
        %v7339 = vunpack.c.l.b16 %v6920
        %v7340 = vunpack.c.h.b16 %v6920
        %v7341 = vunpack.c.l.b16 %v6921
        %v7342 = vunpack.c.h.b16 %v6921
        %v7343 = vunpack.c.l.b16 %v6922
        %v7344 = vunpack.c.h.b16 %v6922
        %v7345 = vunpack.c.l.b16 %v6923
        %v7346 = vunpack.c.h.b16 %v6923
        %v7347 = vunpack.c.l.b16 %v6924
        %v7348 = vunpack.c.h.b16 %v6924
        %v7349 = vunpack.c.l.b16 %v6925
        %v7350 = vunpack.c.h.b16 %v6925
        %v7351 = vunpack.c.l.b16 %v6926
        %v7352 = vunpack.c.h.b16 %v6926
        %v7353 = vunpack.c.l.b16 %v6927
        %v7354 = vunpack.c.h.b16 %v6927
        %v7355 = vunpack.c.l.b16 %v6928
        %v7356 = vunpack.c.h.b16 %v6928
        %v7357 = vunpack.c.l.b16 %v6929
        %v7358 = vunpack.c.h.b16 %v6929
        %v7359 = vunpack.c.l.b16 %v6930
        %v7360 = vunpack.c.h.b16 %v6930
        %v7361 = vunpack.c.l.b16 %v6931
        %v7362 = vunpack.c.h.b16 %v6931
        %v7363 = vunpack.c.l.b16 %v6932
        %v7364 = vunpack.c.h.b16 %v6932
        %v7365 = vunpack.c.l.b16 %v6933
        %v7366 = vunpack.c.h.b16 %v6933
        %v7367 = vunpack.c.l.b16 %v6934
        %v7368 = vunpack.c.h.b16 %v6934
        %v7369 = vunpack.c.l.b16 %v6935
        %v7370 = vunpack.c.h.b16 %v6935
        %v7371 = vunpack.c.l.b16 %v6936
        %v7372 = vunpack.c.h.b16 %v6936
        %v7373 = vunpack.c.l.b16 %v6937
        %v7374 = vunpack.c.h.b16 %v6937
        %v7375 = vunpack.c.l.b16 %v6938
        %v7376 = vunpack.c.h.b16 %v6938
        %v7377 = vunpack.c.l.b16 %v6939
        %v7378 = vunpack.c.h.b16 %v6939
        %v7379 = vunpack.c.l.b16 %v6940
        %v7380 = vunpack.c.h.b16 %v6940
        %v7381 = vunpack.c.l.b16 %v6941
        %v7382 = vunpack.c.h.b16 %v6941
        %v7383 = vunpack.c.l.b16 %v6942
        %v7384 = vunpack.c.h.b16 %v6942
        %v7385 = vunpack.c.l.b16 %v6943
        %v7386 = vunpack.c.h.b16 %v6943
        %v7387 = vunpack.c.l.b16 %v6944
        %v7388 = vunpack.c.h.b16 %v6944
        %v7389 = vunpack.c.l.b16 %v6945
        %v7390 = vunpack.c.h.b16 %v6945
        %v7391 = vunpack.c.l.b16 %v6946
        %v7392 = vunpack.c.h.b16 %v6946
        %v7393 = vunpack.c.l.b16 %v6947
        %v7394 = vunpack.c.h.b16 %v6947
        %v7395 = vunpack.c.l.b16 %v6948
        %v7396 = vunpack.c.h.b16 %v6948
        %v7397 = vunpack.c.l.b16 %v6949
        %v7398 = vunpack.c.h.b16 %v6949
        %v7399 = vunpack.c.l.b16 %v6950
        %v7400 = vunpack.c.h.b16 %v6950
        %v7401 = vunpack.c.l.b16 %v6951
        %v7402 = vunpack.c.h.b16 %v6951
        %v7403 = vunpack.c.l.b16 %v6952
        %v7404 = vunpack.c.h.b16 %v6952
        %v7405 = vunpack.c.l.b16 %v6953
        %v7406 = vunpack.c.h.b16 %v6953
        %v7407 = vunpack.c.l.b16 %v6954
        %v7408 = vunpack.c.h.b16 %v6954
        %v7409 = vunpack.c.l.b16 %v6955
        %v7410 = vunpack.c.h.b16 %v6955
        %v7411 = vunpack.c.l.b16 %v6956
        %v7412 = vunpack.c.h.b16 %v6956
        %v7413 = vunpack.c.l.b16 %v6957
        %v7414 = vunpack.c.h.b16 %v6957
        %v7415 = vunpack.c.l.b16 %v6958
        %v7416 = vunpack.c.h.b16 %v6958
        %v7417 = vunpack.c.l.b16 %v6959
        %v7418 = vunpack.c.h.b16 %v6959
        %v7419 = vunpack.c.l.b16 %v6960
        %v7420 = vunpack.c.h.b16 %v6960
        %v7421 = vunpack.c.l.b16 %v6961
        %v7422 = vunpack.c.h.b16 %v6961
        %v7423 = vunpack.c.l.b16 %v6962
        %v7424 = vunpack.c.h.b16 %v6962
        %v7425 = vunpack.c.l.b16 %v6963
        %v7426 = vunpack.c.h.b16 %v6963
        %v7427 = vunpack.c.l.b16 %v6964
        %v7428 = vunpack.c.h.b16 %v6964
        %v7429 = vunpack.c.l.b16 %v6965
        %v7430 = vunpack.c.h.b16 %v6965
        %v7431 = vunpack.c.l.b16 %v6966
        %v7432 = vunpack.c.h.b16 %v6966
        %v7433 = vunpack.c.l.b16 %v6967
        %v7434 = vunpack.c.h.b16 %v6967
        %v7435 = vunpack.c.l.b16 %v6968
        %v7436 = vunpack.c.h.b16 %v6968
        %v7437 = vunpack.c.l.b16 %v6969
        %v7438 = vunpack.c.h.b16 %v6969
        %v7439 = vunpack.c.l.b16 %v6970
        %v7440 = vunpack.c.h.b16 %v6970
        %v7441 = vunpack.c.l.b16 %v6971
        %v7442 = vunpack.c.h.b16 %v6971
        %v7443 = vunpack.c.l.b16 %v6972
        %v7444 = vunpack.c.h.b16 %v6972
        %v7445 = vunpack.c.l.b16 %v6973
        %v7446 = vunpack.c.h.b16 %v6973
        %v7447 = vunpack.c.l.b16 %v6974
        %v7448 = vunpack.c.h.b16 %v6974
        %v7449 = vunpack.c.l.b16 %v6975
        %v7450 = vunpack.c.h.b16 %v6975
        %v7451 = vunpack.c.l.b16 %v6976
        %v7452 = vunpack.c.h.b16 %v6976
        %v7453 = vunpack.c.l.b16 %v6977
        %v7454 = vunpack.c.h.b16 %v6977
        %v7455 = vunpack.c.l.b16 %v6978
        %v7456 = vunpack.c.h.b16 %v6978
        %v7457 = vunpack.c.l.b16 %v6979
        %v7458 = vunpack.c.h.b16 %v6979
        %v7459 = vunpack.c.l.b16 %v6980
        %v7460 = vunpack.c.h.b16 %v6980
        %v7461 = vunpack.c.l.b16 %v6981
        %v7462 = vunpack.c.h.b16 %v6981
        %v7463 = vunpack.c.l.b16 %v6982
        %v7464 = vunpack.c.h.b16 %v6982
        %v7465 = vunpack.c.l.b16 %v6983
        %v7466 = vunpack.c.h.b16 %v6983
        %v7467 = vunpack.c.l.b16 %v6984
        %v7468 = vunpack.c.h.b16 %v6984
        %v7469 = vunpack.c.l.b16 %v6985
        %v7470 = vunpack.c.h.b16 %v6985
        %v7471 = vunpack.c.l.b16 %v6986
        %v7472 = vunpack.c.h.b16 %v6986
        %v7473 = vunpack.c.l.b16 %v6987
        %v7474 = vunpack.c.h.b16 %v6987
        %v7475 = vunpack.c.l.b16 %v6988
        %v7476 = vunpack.c.h.b16 %v6988
        %v7477 = vunpack.c.l.b16 %v6989
        %v7478 = vunpack.c.h.b16 %v6989
        %v7479 = vunpack.c.l.b16 %v6990
        %v7480 = vunpack.c.h.b16 %v6990
        %v7481 = vunpack.c.l.b16 %v6991
        %v7482 = vunpack.c.h.b16 %v6991
        %v7483 = vunpack.c.l.b16 %v6992
        %v7484 = vunpack.c.h.b16 %v6992
        %v7485 = vunpack.c.l.b16 %v6993
        %v7486 = vunpack.c.h.b16 %v6993
        %v7487 = vunpack.c.l.b16 %v6994
        %v7488 = vunpack.c.h.b16 %v6994
        %v7489 = vunpack.c.l.b16 %v6995
        %v7490 = vunpack.c.h.b16 %v6995
        %v7491 = vunpack.c.l.b16 %v6996
        %v7492 = vunpack.c.h.b16 %v6996
        %v7493 = vunpack.c.l.b16 %v6997
        %v7494 = vunpack.c.h.b16 %v6997
        %v7495 = vunpack.c.l.b16 %v6998
        %v7496 = vunpack.c.h.b16 %v6998
        %v7497 = vunpack.c.l.b16 %v6999
        %v7498 = vunpack.c.h.b16 %v6999
        %v7499 = vunpack.c.l.b16 %v7000
        %v7500 = vunpack.c.h.b16 %v7000
        %v7501 = vunpack.c.l.b16 %v7001
        %v7502 = vunpack.c.h.b16 %v7001
        %v7503 = vunpack.c.l.b16 %v7002
        %v7504 = vunpack.c.h.b16 %v7002
        %v7505 = vunpack.c.l.b16 %v7003
        %v7506 = vunpack.c.h.b16 %v7003
        %v7507 = vunpack.c.l.b16 %v7004
        %v7508 = vunpack.c.h.b16 %v7004
        %v7509 = vunpack.c.l.b16 %v7005
        %v7510 = vunpack.c.h.b16 %v7005
        %v7511 = vunpack.c.l.b16 %v7006
        %v7512 = vunpack.c.h.b16 %v7006
        %v7513 = vunpack.c.l.b16 %v7007
        %v7514 = vunpack.c.h.b16 %v7007
        %v7515 = vunpack.c.l.b16 %v7008
        %v7516 = vunpack.c.h.b16 %v7008
        %v7517 = vunpack.c.l.b16 %v7009
        %v7518 = vunpack.c.h.b16 %v7009
        %v7519 = vunpack.c.l.b16 %v7010
        %v7520 = vunpack.c.h.b16 %v7010
        %v7521 = vunpack.c.l.b16 %v7011
        %v7522 = vunpack.c.h.b16 %v7011
        %v7523 = vunpack.c.l.b16 %v7012
        %v7524 = vunpack.c.h.b16 %v7012
        %v7525 = vunpack.c.l.b16 %v7013
        %v7526 = vunpack.c.h.b16 %v7013
        %v7527 = vunpack.c.l.b16 %v7014
        %v7528 = vunpack.c.h.b16 %v7014
        %v7529 = vunpack.c.l.b16 %v7015
        %v7530 = vunpack.c.h.b16 %v7015
        %v7531 = vunpack.c.l.b16 %v7016
        %v7532 = vunpack.c.h.b16 %v7016
        %v7533 = vunpack.c.l.b16 %v7017
        %v7534 = vunpack.c.h.b16 %v7017
        %v7535 = vunpack.c.l.b16 %v7018
        %v7536 = vunpack.c.h.b16 %v7018
        %v7537 = vunpack.c.l.b16 %v7019
        %v7538 = vunpack.c.h.b16 %v7019
        %v7539 = vunpack.c.l.b16 %v7020
        %v7540 = vunpack.c.h.b16 %v7020
        %v7541 = vunpack.c.l.b16 %v7021
        %v7542 = vunpack.c.h.b16 %v7021
        %v7543 = vunpack.c.l.b16 %v7022
        %v7544 = vunpack.c.h.b16 %v7022
        %v7545 = vunpack.c.l.b16 %v7023
        %v7546 = vunpack.c.h.b16 %v7023
        %v7547 = vunpack.c.l.b16 %v7024
        %v7548 = vunpack.c.h.b16 %v7024
        %v7549 = vunpack.c.l.b16 %v7025
        %v7550 = vunpack.c.h.b16 %v7025
        %v7551 = vunpack.c.l.b16 %v7026
        %v7552 = vunpack.c.h.b16 %v7026
        %v7553 = vunpack.c.l.b16 %v7027
        %v7554 = vunpack.c.h.b16 %v7027
        %v7555 = vunpack.c.l.b16 %v7028
        %v7556 = vunpack.c.h.b16 %v7028
        %v7557 = vunpack.c.l.b16 %v7029
        %v7558 = vunpack.c.h.b16 %v7029
        %v7559 = vunpack.c.l.b16 %v7030
        %v7560 = vunpack.c.h.b16 %v7030
        %v7561 = vunpack.c.l.b16 %v7031
        %v7562 = vunpack.c.h.b16 %v7031
        %v7563 = vpack.c.b16 %v7247, %v7243
        %v7564 = vpack.c.b16 %v7248, %v7244
        %v7565 = vpack.c.b16 %v7249, %v7245
        %v7566 = vpack.c.b16 %v7250, %v7246
        %v7567 = vpack.c.b16 %v7255, %v7251
        %v7568 = vpack.c.b16 %v7256, %v7252
        %v7569 = vpack.c.b16 %v7257, %v7253
        %v7570 = vpack.c.b16 %v7258, %v7254
        %v7571 = vpack.c.b16 %v7263, %v7259
        %v7572 = vpack.c.b16 %v7264, %v7260
        %v7573 = vpack.c.b16 %v7265, %v7261
        %v7574 = vpack.c.b16 %v7266, %v7262
        %v7575 = vpack.c.b16 %v7271, %v7267
        %v7576 = vpack.c.b16 %v7272, %v7268
        %v7577 = vpack.c.b16 %v7273, %v7269
        %v7578 = vpack.c.b16 %v7274, %v7270
        %v7579 = vpack.c.b16 %v7279, %v7275
        %v7580 = vpack.c.b16 %v7280, %v7276
        %v7581 = vpack.c.b16 %v7281, %v7277
        %v7582 = vpack.c.b16 %v7282, %v7278
        %v7583 = vpack.c.b16 %v7287, %v7283
        %v7584 = vpack.c.b16 %v7288, %v7284
        %v7585 = vpack.c.b16 %v7289, %v7285
        %v7586 = vpack.c.b16 %v7290, %v7286
        %v7587 = vpack.c.b16 %v7295, %v7291
        %v7588 = vpack.c.b16 %v7296, %v7292
        %v7589 = vpack.c.b16 %v7297, %v7293
        %v7590 = vpack.c.b16 %v7298, %v7294
        %v7591 = vpack.c.b16 %v7303, %v7299
        %v7592 = vpack.c.b16 %v7304, %v7300
        %v7593 = vpack.c.b16 %v7305, %v7301
        %v7594 = vpack.c.b16 %v7306, %v7302
        %v7595 = vpack.c.b16 %v7311, %v7307
        %v7596 = vpack.c.b16 %v7312, %v7308
        %v7597 = vpack.c.b16 %v7313, %v7309
        %v7598 = vpack.c.b16 %v7314, %v7310
        %v7599 = vpack.c.b16 %v7319, %v7315
        %v7600 = vpack.c.b16 %v7320, %v7316
        %v7601 = vpack.c.b16 %v7321, %v7317
        %v7602 = vpack.c.b16 %v7322, %v7318
        %v7603 = vpack.c.b16 %v7327, %v7323
        %v7604 = vpack.c.b16 %v7328, %v7324
        %v7605 = vpack.c.b16 %v7329, %v7325
        %v7606 = vpack.c.b16 %v7330, %v7326
        %v7607 = vpack.c.b16 %v7335, %v7331
        %v7608 = vpack.c.b16 %v7336, %v7332
        %v7609 = vpack.c.b16 %v7337, %v7333
        %v7610 = vpack.c.b16 %v7338, %v7334
        %v7611 = vpack.c.b16 %v7343, %v7339
        %v7612 = vpack.c.b16 %v7344, %v7340
        %v7613 = vpack.c.b16 %v7345, %v7341
        %v7614 = vpack.c.b16 %v7346, %v7342
        %v7615 = vpack.c.b16 %v7351, %v7347
        %v7616 = vpack.c.b16 %v7352, %v7348
        %v7617 = vpack.c.b16 %v7353, %v7349
        %v7618 = vpack.c.b16 %v7354, %v7350
        %v7619 = vpack.c.b16 %v7359, %v7355
        %v7620 = vpack.c.b16 %v7360, %v7356
        %v7621 = vpack.c.b16 %v7361, %v7357
        %v7622 = vpack.c.b16 %v7362, %v7358
        %v7623 = vpack.c.b16 %v7367, %v7363
        %v7624 = vpack.c.b16 %v7368, %v7364
        %v7625 = vpack.c.b16 %v7369, %v7365
        %v7626 = vpack.c.b16 %v7370, %v7366
        %v7627 = vpack.c.b16 %v7375, %v7371
        %v7628 = vpack.c.b16 %v7376, %v7372
        %v7629 = vpack.c.b16 %v7377, %v7373
        %v7630 = vpack.c.b16 %v7378, %v7374
        %v7631 = vpack.c.b16 %v7383, %v7379
        %v7632 = vpack.c.b16 %v7384, %v7380
        %v7633 = vpack.c.b16 %v7385, %v7381
        %v7634 = vpack.c.b16 %v7386, %v7382
        %v7635 = vpack.c.b16 %v7391, %v7387
        %v7636 = vpack.c.b16 %v7392, %v7388
        %v7637 = vpack.c.b16 %v7393, %v7389
        %v7638 = vpack.c.b16 %v7394, %v7390
        %v7639 = vpack.c.b16 %v7399, %v7395
        %v7640 = vpack.c.b16 %v7400, %v7396
        %v7641 = vpack.c.b16 %v7401, %v7397
        %v7642 = vpack.c.b16 %v7402, %v7398
        %v7643 = vpack.c.b16 %v7407, %v7403
        %v7644 = vpack.c.b16 %v7408, %v7404
        %v7645 = vpack.c.b16 %v7409, %v7405
        %v7646 = vpack.c.b16 %v7410, %v7406
        %v7647 = vpack.c.b16 %v7415, %v7411
        %v7648 = vpack.c.b16 %v7416, %v7412
        %v7649 = vpack.c.b16 %v7417, %v7413
        %v7650 = vpack.c.b16 %v7418, %v7414
        %v7651 = vpack.c.b16 %v7423, %v7419
        %v7652 = vpack.c.b16 %v7424, %v7420
        %v7653 = vpack.c.b16 %v7425, %v7421
        %v7654 = vpack.c.b16 %v7426, %v7422
        %v7655 = vpack.c.b16 %v7431, %v7427
        %v7656 = vpack.c.b16 %v7432, %v7428
        %v7657 = vpack.c.b16 %v7433, %v7429
        %v7658 = vpack.c.b16 %v7434, %v7430
        %v7659 = vpack.c.b16 %v7439, %v7435
        %v7660 = vpack.c.b16 %v7440, %v7436
        %v7661 = vpack.c.b16 %v7441, %v7437
        %v7662 = vpack.c.b16 %v7442, %v7438
        %v7663 = vpack.c.b16 %v7447, %v7443
        %v7664 = vpack.c.b16 %v7448, %v7444
        %v7665 = vpack.c.b16 %v7449, %v7445
        %v7666 = vpack.c.b16 %v7450, %v7446
        %v7667 = vpack.c.b16 %v7455, %v7451
        %v7668 = vpack.c.b16 %v7456, %v7452
        %v7669 = vpack.c.b16 %v7457, %v7453
        %v7670 = vpack.c.b16 %v7458, %v7454
        %v7671 = vpack.c.b16 %v7463, %v7459
        %v7672 = vpack.c.b16 %v7464, %v7460
        %v7673 = vpack.c.b16 %v7465, %v7461
        %v7674 = vpack.c.b16 %v7466, %v7462
        %v7675 = vpack.c.b16 %v7471, %v7467
        %v7676 = vpack.c.b16 %v7472, %v7468
        %v7677 = vpack.c.b16 %v7473, %v7469
        %v7678 = vpack.c.b16 %v7474, %v7470
        %v7679 = vpack.c.b16 %v7479, %v7475
        %v7680 = vpack.c.b16 %v7480, %v7476
        %v7681 = vpack.c.b16 %v7481, %v7477
        %v7682 = vpack.c.b16 %v7482, %v7478
        %v7683 = vpack.c.b16 %v7487, %v7483
        %v7684 = vpack.c.b16 %v7488, %v7484
        %v7685 = vpack.c.b16 %v7489, %v7485
        %v7686 = vpack.c.b16 %v7490, %v7486
        %v7687 = vpack.c.b16 %v7495, %v7491
        %v7688 = vpack.c.b16 %v7496, %v7492
        %v7689 = vpack.c.b16 %v7497, %v7493
        %v7690 = vpack.c.b16 %v7498, %v7494
        %v7691 = vpack.c.b16 %v7503, %v7499
        %v7692 = vpack.c.b16 %v7504, %v7500
        %v7693 = vpack.c.b16 %v7505, %v7501
        %v7694 = vpack.c.b16 %v7506, %v7502
        %v7695 = vpack.c.b16 %v7511, %v7507
        %v7696 = vpack.c.b16 %v7512, %v7508
        %v7697 = vpack.c.b16 %v7513, %v7509
        %v7698 = vpack.c.b16 %v7514, %v7510
        %v7699 = vpack.c.b16 %v7519, %v7515
        %v7700 = vpack.c.b16 %v7520, %v7516
        %v7701 = vpack.c.b16 %v7521, %v7517
        %v7702 = vpack.c.b16 %v7522, %v7518
        %v7703 = vpack.c.b16 %v7527, %v7523
        %v7704 = vpack.c.b16 %v7528, %v7524
        %v7705 = vpack.c.b16 %v7529, %v7525
        %v7706 = vpack.c.b16 %v7530, %v7526
        %v7707 = vpack.c.b16 %v7535, %v7531
        %v7708 = vpack.c.b16 %v7536, %v7532
        %v7709 = vpack.c.b16 %v7537, %v7533
        %v7710 = vpack.c.b16 %v7538, %v7534
        %v7711 = vpack.c.b16 %v7543, %v7539
        %v7712 = vpack.c.b16 %v7544, %v7540
        %v7713 = vpack.c.b16 %v7545, %v7541
        %v7714 = vpack.c.b16 %v7546, %v7542
        %v7715 = vpack.c.b16 %v7551, %v7547
        %v7716 = vpack.c.b16 %v7552, %v7548
        %v7717 = vpack.c.b16 %v7553, %v7549
        %v7718 = vpack.c.b16 %v7554, %v7550
        %v7719 = vpack.c.b16 %v7559, %v7555
        %v7720 = vpack.c.b16 %v7560, %v7556
        %v7721 = vpack.c.b16 %v7561, %v7557
        %v7722 = vpack.c.b16 %v7562, %v7558
        %7883 = vmatprep.subr.bf16.mxu0 %v7564
        %7884 = vmatpush1.bf16.msra.mxu0 %v7563
        %7885 = vmatprep.subr.bf16.mxu0 %v7568
        %7886 = vmatpush1.bf16.msra.mxu0 %v7567
        %7887 = vmatprep.subr.bf16.mxu0 %v7572
        %7888 = vmatpush1.bf16.msra.mxu0 %v7571
        %7889 = vmatprep.subr.bf16.mxu0 %v7576
        %7890 = vmatpush1.bf16.msra.mxu0 %v7575
        %7891 = vmatprep.subr.bf16.mxu0 %v7580
        %7892 = vmatpush1.bf16.msra.mxu0 %v7579
        %7893 = vmatprep.subr.bf16.mxu0 %v7584
        %7894 = vmatpush1.bf16.msra.mxu0 %v7583
        %7895 = vmatprep.subr.bf16.mxu0 %v7588
        %7896 = vmatpush1.bf16.msra.mxu0 %v7587
        %7897 = vmatprep.subr.bf16.mxu0 %v7592
        %7898 = vmatpush1.bf16.msra.mxu0 %v7591
        %7899 = vmatprep.subr.bf16.mxu0 %v7596
        %7900 = vmatpush1.bf16.msra.mxu0 %v7595
        %7901 = vmatprep.subr.bf16.mxu0 %v7600
        %7902 = vmatpush1.bf16.msra.mxu0 %v7599
        %7903 = vmatprep.subr.bf16.mxu0 %v7604
        %7904 = vmatpush1.bf16.msra.mxu0 %v7603
        %7905 = vmatprep.subr.bf16.mxu0 %v7608
        %7906 = vmatpush1.bf16.msra.mxu0 %v7607
        %7907 = vmatprep.subr.bf16.mxu0 %v7612
        %7908 = vmatpush1.bf16.msra.mxu0 %v7611
        %7909 = vmatprep.subr.bf16.mxu0 %v7616
        %7910 = vmatpush1.bf16.msra.mxu0 %v7615
        %7911 = vmatprep.subr.bf16.mxu0 %v7620
        %7912 = vmatpush1.bf16.msra.mxu0 %v7619
        %7913 = vmatprep.subr.bf16.mxu0 %v7624
        %7914 = vmatpush1.bf16.msra.mxu0 %v7623
        %7915 = vmatprep.mubr.bf16.mxu0 %v7050
        %7916 = vmatmul.mubr.bf16.gmra.mrb[0].mxu0 %v7041
        %v7917 = vpop.f32.mrb[0].mxu0
        %v7918 = vadd.f32 0.0, %v7917
        %v7919 = vpop.f32.mrb[0].mxu0
        %v7920 = vadd.f32 0.0, %v7919
        %v7921 = vpop.f32.mrb[0].mxu0
        %v7922 = vadd.f32 0.0, %v7921
        %v7923 = vpop.f32.mrb[0].mxu0
        %v7924 = vadd.f32 0.0, %v7923
        %7925 = vdwg.mxu0
        %7926 = vmatprep.subr.bf16.mxu0 %v7628
        %7927 = vmatpush1.bf16.msra.mxu0 %v7627
        %7928 = vmatprep.subr.bf16.mxu0 %v7632
        %7929 = vmatpush1.bf16.msra.mxu0 %v7631
        %7930 = vmatprep.subr.bf16.mxu0 %v7636
        %7931 = vmatpush1.bf16.msra.mxu0 %v7635
        %7932 = vmatprep.subr.bf16.mxu0 %v7640
        %7933 = vmatpush1.bf16.msra.mxu0 %v7639
        %7934 = vmatprep.subr.bf16.mxu0 %v7644
        %7935 = vmatpush1.bf16.msra.mxu0 %v7643
        %7936 = vmatprep.subr.bf16.mxu0 %v7648
        %7937 = vmatpush1.bf16.msra.mxu0 %v7647
        %7938 = vmatprep.subr.bf16.mxu0 %v7652
        %7939 = vmatpush1.bf16.msra.mxu0 %v7651
        %7940 = vmatprep.subr.bf16.mxu0 %v7656
        %7941 = vmatpush1.bf16.msra.mxu0 %v7655
        %7942 = vmatprep.subr.bf16.mxu0 %v7660
        %7943 = vmatpush1.bf16.msra.mxu0 %v7659
        %7944 = vmatprep.subr.bf16.mxu0 %v7664
        %7945 = vmatpush1.bf16.msra.mxu0 %v7663
        %7946 = vmatprep.subr.bf16.mxu0 %v7668
        %7947 = vmatpush1.bf16.msra.mxu0 %v7667
        %7948 = vmatprep.subr.bf16.mxu0 %v7672
        %7949 = vmatpush1.bf16.msra.mxu0 %v7671
        %7950 = vmatprep.subr.bf16.mxu0 %v7676
        %7951 = vmatpush1.bf16.msra.mxu0 %v7675
        %7952 = vmatprep.subr.bf16.mxu0 %v7680
        %7953 = vmatpush1.bf16.msra.mxu0 %v7679
        %7954 = vmatprep.subr.bf16.mxu0 %v7684
        %7955 = vmatpush1.bf16.msra.mxu0 %v7683
        %7956 = vmatprep.subr.bf16.mxu0 %v7688
        %7957 = vmatpush1.bf16.msra.mxu0 %v7687
        %7958 = vmatprep.mubr.bf16.mxu0 %v7068
        %7959 = vmatmul.mubr.bf16.gmra.mrb[0].mxu0 %v7059
        %v7960 = vpop.f32.mrb[0].mxu0
        %v7961 = vadd.f32 %v7918, %v7960
        %v7962 = vpop.f32.mrb[0].mxu0
        %v7963 = vadd.f32 %v7920, %v7962
        %v7964 = vpop.f32.mrb[0].mxu0
        %v7965 = vadd.f32 %v7922, %v7964
        %v7966 = vpop.f32.mrb[0].mxu0
        %v7967 = vadd.f32 %v7924, %v7966
        %7968 = vdwg.mxu0
        %7969 = vmatprep.subr.bf16.mxu0 %v7692
        %7970 = vmatpush1.bf16.msra.mxu0 %v7691
        %7971 = vmatprep.subr.bf16.mxu0 %v7696
        %7972 = vmatpush1.bf16.msra.mxu0 %v7695
        %7973 = vmatprep.subr.bf16.mxu0 %v7700
        %7974 = vmatpush1.bf16.msra.mxu0 %v7699
        %7975 = vmatprep.subr.bf16.mxu0 %v7704
        %7976 = vmatpush1.bf16.msra.mxu0 %v7703
        %7977 = vmatprep.subr.bf16.mxu0 %v7708
        %7978 = vmatpush1.bf16.msra.mxu0 %v7707
        %7979 = vmatprep.subr.bf16.mxu0 %v7712
        %7980 = vmatpush1.bf16.msra.mxu0 %v7711
        %7981 = vmatprep.subr.bf16.mxu0 %v7716
        %7982 = vmatpush1.bf16.msra.mxu0 %v7715
        %7983 = vmatprep.subr.bf16.mxu0 %v7720
        %7984 = vmatpush1.bf16.msra.mxu0 %v7719
        %7985 = vmatprep.subr.bf16.mxu0 0
        %7986 = vmatpush1.bf16.msra.mxu0 0
        %7987 = vmatprep.subr.bf16.mxu0 0
        %7988 = vmatpush1.bf16.msra.mxu0 0
        %7989 = vmatprep.subr.bf16.mxu0 0
        %7990 = vmatpush1.bf16.msra.mxu0 0
        %7991 = vmatprep.subr.bf16.mxu0 0
        %7992 = vmatpush1.bf16.msra.mxu0 0
        %7993 = vmatprep.subr.bf16.mxu0 0
        %7994 = vmatpush1.bf16.msra.mxu0 0
        %7995 = vmatprep.subr.bf16.mxu0 0
        %7996 = vmatpush1.bf16.msra.mxu0 0
        %7997 = vmatprep.subr.bf16.mxu0 0
        %7998 = vmatpush1.bf16.msra.mxu0 0
        %7999 = vmatprep.subr.bf16.mxu0 0
        %8000 = vmatpush1.bf16.msra.mxu0 0
        %8001 = vmatprep.mubr.bf16.mxu0 0
        %8002 = vmatmul.mubr.bf16.gmra.mrb[0].mxu0 %v7077
        %v8003 = vpop.f32.mrb[0].mxu0
        %v8004 = vadd.f32 %v7961, %v8003
        %v8005 = vpop.f32.mrb[0].mxu0
        %v8006 = vadd.f32 %v7963, %v8005
        %v8007 = vpop.f32.mrb[0].mxu0
        %v8008 = vadd.f32 %v7965, %v8007
        %v8009 = vpop.f32.mrb[0].mxu0
        %v8010 = vadd.f32 %v7967, %v8009
        %8011 = vdwg.mxu0
        %8012 = vmatprep.subr.bf16.mxu0 %v7566
        %8013 = vmatpush1.bf16.msra.mxu0 %v7565
        %8014 = vmatprep.subr.bf16.mxu0 %v7570
        %8015 = vmatpush1.bf16.msra.mxu0 %v7569
        %8016 = vmatprep.subr.bf16.mxu0 %v7574
        %8017 = vmatpush1.bf16.msra.mxu0 %v7573
        %8018 = vmatprep.subr.bf16.mxu0 %v7578
        %8019 = vmatpush1.bf16.msra.mxu0 %v7577
        %8020 = vmatprep.subr.bf16.mxu0 %v7582
        %8021 = vmatpush1.bf16.msra.mxu0 %v7581
        %8022 = vmatprep.subr.bf16.mxu0 %v7586
        %8023 = vmatpush1.bf16.msra.mxu0 %v7585
        %8024 = vmatprep.subr.bf16.mxu0 %v7590
        %8025 = vmatpush1.bf16.msra.mxu0 %v7589
        %8026 = vmatprep.subr.bf16.mxu0 %v7594
        %8027 = vmatpush1.bf16.msra.mxu0 %v7593
        %8028 = vmatprep.subr.bf16.mxu0 %v7598
        %8029 = vmatpush1.bf16.msra.mxu0 %v7597
        %8030 = vmatprep.subr.bf16.mxu0 %v7602
        %8031 = vmatpush1.bf16.msra.mxu0 %v7601
        %8032 = vmatprep.subr.bf16.mxu0 %v7606
        %8033 = vmatpush1.bf16.msra.mxu0 %v7605
        %8034 = vmatprep.subr.bf16.mxu0 %v7610
        %8035 = vmatpush1.bf16.msra.mxu0 %v7609
        %8036 = vmatprep.subr.bf16.mxu0 %v7614
        %8037 = vmatpush1.bf16.msra.mxu0 %v7613
        %8038 = vmatprep.subr.bf16.mxu0 %v7618
        %8039 = vmatpush1.bf16.msra.mxu0 %v7617
        %8040 = vmatprep.subr.bf16.mxu0 %v7622
        %8041 = vmatpush1.bf16.msra.mxu0 %v7621
        %8042 = vmatprep.subr.bf16.mxu0 %v7626
        %8043 = vmatpush1.bf16.msra.mxu0 %v7625
        %8044 = vmatprep.mubr.bf16.mxu0 %v7050
        %8045 = vmatmul.mubr.bf16.gmra.mrb[0].mxu0 %v7041
        %v8046 = vpop.f32.mrb[0].mxu0
        %v8047 = vadd.f32 0.0, %v8046
        %v8048 = vpop.f32.mrb[0].mxu0
        %v8049 = vadd.f32 0.0, %v8048
        %v8050 = vpop.f32.mrb[0].mxu0
        %v8051 = vadd.f32 0.0, %v8050
        %v8052 = vpop.f32.mrb[0].mxu0
        %v8053 = vadd.f32 0.0, %v8052
        %8054 = vdwg.mxu0
        %8055 = vmatprep.subr.bf16.mxu0 %v7630
        %8056 = vmatpush1.bf16.msra.mxu0 %v7629
        %8057 = vmatprep.subr.bf16.mxu0 %v7634
        %8058 = vmatpush1.bf16.msra.mxu0 %v7633
        %8059 = vmatprep.subr.bf16.mxu0 %v7638
        %8060 = vmatpush1.bf16.msra.mxu0 %v7637
        %8061 = vmatprep.subr.bf16.mxu0 %v7642
        %8062 = vmatpush1.bf16.msra.mxu0 %v7641
        %8063 = vmatprep.subr.bf16.mxu0 %v7646
        %8064 = vmatpush1.bf16.msra.mxu0 %v7645
        %8065 = vmatprep.subr.bf16.mxu0 %v7650
        %8066 = vmatpush1.bf16.msra.mxu0 %v7649
        %8067 = vmatprep.subr.bf16.mxu0 %v7654
        %8068 = vmatpush1.bf16.msra.mxu0 %v7653
        %8069 = vmatprep.subr.bf16.mxu0 %v7658
        %8070 = vmatpush1.bf16.msra.mxu0 %v7657
        %8071 = vmatprep.subr.bf16.mxu0 %v7662
        %8072 = vmatpush1.bf16.msra.mxu0 %v7661
        %8073 = vmatprep.subr.bf16.mxu0 %v7666
        %8074 = vmatpush1.bf16.msra.mxu0 %v7665
        %8075 = vmatprep.subr.bf16.mxu0 %v7670
        %8076 = vmatpush1.bf16.msra.mxu0 %v7669
        %8077 = vmatprep.subr.bf16.mxu0 %v7674
        %8078 = vmatpush1.bf16.msra.mxu0 %v7673
        %8079 = vmatprep.subr.bf16.mxu0 %v7678
        %8080 = vmatpush1.bf16.msra.mxu0 %v7677
        %8081 = vmatprep.subr.bf16.mxu0 %v7682
        %8082 = vmatpush1.bf16.msra.mxu0 %v7681
        %8083 = vmatprep.subr.bf16.mxu0 %v7686
        %8084 = vmatpush1.bf16.msra.mxu0 %v7685
        %8085 = vmatprep.subr.bf16.mxu0 %v7690
        %8086 = vmatpush1.bf16.msra.mxu0 %v7689
        %8087 = vmatprep.mubr.bf16.mxu0 %v7068
        %8088 = vmatmul.mubr.bf16.gmra.mrb[0].mxu0 %v7059
        %v8089 = vpop.f32.mrb[0].mxu0
        %v8090 = vadd.f32 %v8047, %v8089
        %v8091 = vpop.f32.mrb[0].mxu0
        %v8092 = vadd.f32 %v8049, %v8091
        %v8093 = vpop.f32.mrb[0].mxu0
        %v8094 = vadd.f32 %v8051, %v8093
        %v8095 = vpop.f32.mrb[0].mxu0
        %v8096 = vadd.f32 %v8053, %v8095
        %8097 = vdwg.mxu0
        %8098 = vmatprep.subr.bf16.mxu0 %v7694
        %8099 = vmatpush1.bf16.msra.mxu0 %v7693
        %8100 = vmatprep.subr.bf16.mxu0 %v7698
        %8101 = vmatpush1.bf16.msra.mxu0 %v7697
        %8102 = vmatprep.subr.bf16.mxu0 %v7702
        %8103 = vmatpush1.bf16.msra.mxu0 %v7701
        %8104 = vmatprep.subr.bf16.mxu0 %v7706
        %8105 = vmatpush1.bf16.msra.mxu0 %v7705
        %8106 = vmatprep.subr.bf16.mxu0 %v7710
        %8107 = vmatpush1.bf16.msra.mxu0 %v7709
        %8108 = vmatprep.subr.bf16.mxu0 %v7714
        %8109 = vmatpush1.bf16.msra.mxu0 %v7713
        %8110 = vmatprep.subr.bf16.mxu0 %v7718
        %8111 = vmatpush1.bf16.msra.mxu0 %v7717
        %8112 = vmatprep.subr.bf16.mxu0 %v7722
        %8113 = vmatpush1.bf16.msra.mxu0 %v7721
        %8114 = vmatprep.subr.bf16.mxu0 0
        %8115 = vmatpush1.bf16.msra.mxu0 0
        %8116 = vmatprep.subr.bf16.mxu0 0
        %8117 = vmatpush1.bf16.msra.mxu0 0
        %8118 = vmatprep.subr.bf16.mxu0 0
        %8119 = vmatpush1.bf16.msra.mxu0 0
        %8120 = vmatprep.subr.bf16.mxu0 0
        %8121 = vmatpush1.bf16.msra.mxu0 0
        %8122 = vmatprep.subr.bf16.mxu0 0
        %8123 = vmatpush1.bf16.msra.mxu0 0
        %8124 = vmatprep.subr.bf16.mxu0 0
        %8125 = vmatpush1.bf16.msra.mxu0 0
        %8126 = vmatprep.subr.bf16.mxu0 0
        %8127 = vmatpush1.bf16.msra.mxu0 0
        %8128 = vmatprep.subr.bf16.mxu0 0
        %8129 = vmatpush1.bf16.msra.mxu0 0
        %8130 = vmatprep.mubr.bf16.mxu0 0
        %8131 = vmatmul.mubr.bf16.gmra.mrb[0].mxu0 %v7077
        %v8132 = vpop.f32.mrb[0].mxu0
        %v8133 = vadd.f32 %v8090, %v8132
        %v8134 = vpop.f32.mrb[0].mxu0
        %v8135 = vadd.f32 %v8092, %v8134
        %v8136 = vpop.f32.mrb[0].mxu0
        %v8137 = vadd.f32 %v8094, %v8136
        %v8138 = vpop.f32.mrb[0].mxu0
        %v8139 = vadd.f32 %v8096, %v8138
        %8140 = vdwg.mxu0
        %v8141 = vadd.f32 %v6863, %v8004
        %v8142 = vadd.f32 %v6864, %v8006
        %v8143 = vadd.f32 %v6865, %v8133
        %v8144 = vadd.f32 %v6866, %v8135
        %v8145 = vadd.f32 %v6867, %v8008
        %v8146 = vadd.f32 %v6868, %v8010
        %v8147 = vadd.f32 %v6869, %v8137
        %v8148 = vadd.f32 %v6870, %v8139
        %s8149 = scalar_lea.vmem [#allocation7], 5120
        %v8150 = vld [vmem:[%s8149] sm:$0xff]
        %v8151 = vld [vmem:[%s8149 + $0x8] sm:$0xff]
        %v8152 = vld [vmem:[%s8149 + $0x10] sm:$0xff]
        %v8153 = vld [vmem:[%s8149 + $0x18] sm:$0xff]
        %v8154 = vld [vmem:[%s8149 + $0x20] sm:$0xff]
        %v8155 = vld [vmem:[%s8149 + $0x28] sm:$0xff]
        %v8156 = vld [vmem:[%s8149 + $0x30] sm:$0xff]
        %v8157 = vld [vmem:[%s8149 + $0x38] sm:$0xff]
        %v8158 = vld [vmem:[%s8149 + $0x40] sm:$0xff]
        %v8159 = vld [vmem:[%s8149 + $0x48] sm:$0xff]
        %v8160 = vld [vmem:[%s8149 + $0x50] sm:$0xff]
        %v8161 = vld [vmem:[%s8149 + $0x58] sm:$0xff]
        %v8162 = vld [vmem:[%s8149 + $0x60] sm:$0xff]
        %v8163 = vld [vmem:[%s8149 + $0x68] sm:$0xff]
        %v8164 = vld [vmem:[%s8149 + $0x70] sm:$0xff]
        %v8165 = vld [vmem:[%s8149 + $0x78] sm:$0xff]
        %v8166 = vld [vmem:[%s8149 + $0x80] sm:$0xff]
        %v8167 = vld [vmem:[%s8149 + $0x88] sm:$0xff]
        %v8168 = vld [vmem:[%s8149 + $0x90] sm:$0xff]
        %v8169 = vld [vmem:[%s8149 + $0x98] sm:$0xff]
        %v8170 = vld [vmem:[%s8149 + $0xa0] sm:$0xff]
        %v8171 = vld [vmem:[%s8149 + $0xa8] sm:$0xff]
        %v8172 = vld [vmem:[%s8149 + $0xb0] sm:$0xff]
        %v8173 = vld [vmem:[%s8149 + $0xb8] sm:$0xff]
        %v8174 = vld [vmem:[%s8149 + $0xc0] sm:$0xff]
        %v8175 = vld [vmem:[%s8149 + $0xc8] sm:$0xff]
        %v8176 = vld [vmem:[%s8149 + $0xd0] sm:$0xff]
        %v8177 = vld [vmem:[%s8149 + $0xd8] sm:$0xff]
        %v8178 = vld [vmem:[%s8149 + $0xe0] sm:$0xff]
        %v8179 = vld [vmem:[%s8149 + $0xe8] sm:$0xff]
        %v8180 = vld [vmem:[%s8149 + $0xf0] sm:$0xff]
        %v8181 = vld [vmem:[%s8149 + $0xf8] sm:$0xff]
        %v8182 = vld [vmem:[%s8149 + $0x100] sm:$0xff]
        %v8183 = vld [vmem:[%s8149 + $0x108] sm:$0xff]
        %v8184 = vld [vmem:[%s8149 + $0x110] sm:$0xff]
        %v8185 = vld [vmem:[%s8149 + $0x118] sm:$0xff]
        %v8186 = vld [vmem:[%s8149 + $0x120] sm:$0xff]
        %v8187 = vld [vmem:[%s8149 + $0x128] sm:$0xff]
        %v8188 = vld [vmem:[%s8149 + $0x130] sm:$0xff]
        %v8189 = vld [vmem:[%s8149 + $0x138] sm:$0xff]
        %v8190 = vld [vmem:[%s8149 + $0x140] sm:$0xff]
        %v8191 = vld [vmem:[%s8149 + $0x148] sm:$0xff]
        %v8192 = vld [vmem:[%s8149 + $0x150] sm:$0xff]
        %v8193 = vld [vmem:[%s8149 + $0x158] sm:$0xff]
        %v8194 = vld [vmem:[%s8149 + $0x160] sm:$0xff]
        %v8195 = vld [vmem:[%s8149 + $0x168] sm:$0xff]
        %v8196 = vld [vmem:[%s8149 + $0x170] sm:$0xff]
        %v8197 = vld [vmem:[%s8149 + $0x178] sm:$0xff]
        %v8198 = vld [vmem:[%s8149 + $0x180] sm:$0xff]
        %v8199 = vld [vmem:[%s8149 + $0x188] sm:$0xff]
        %v8200 = vld [vmem:[%s8149 + $0x190] sm:$0xff]
        %v8201 = vld [vmem:[%s8149 + $0x198] sm:$0xff]
        %v8202 = vld [vmem:[%s8149 + $0x1a0] sm:$0xff]
        %v8203 = vld [vmem:[%s8149 + $0x1a8] sm:$0xff]
        %v8204 = vld [vmem:[%s8149 + $0x1b0] sm:$0xff]
        %v8205 = vld [vmem:[%s8149 + $0x1b8] sm:$0xff]
        %v8206 = vld [vmem:[%s8149 + $0x1c0] sm:$0xff]
        %v8207 = vld [vmem:[%s8149 + $0x1c8] sm:$0xff]
        %v8208 = vld [vmem:[%s8149 + $0x1d0] sm:$0xff]
        %v8209 = vld [vmem:[%s8149 + $0x1d8] sm:$0xff]
        %v8210 = vld [vmem:[%s8149 + $0x1e0] sm:$0xff]
        %v8211 = vld [vmem:[%s8149 + $0x1e8] sm:$0xff]
        %v8212 = vld [vmem:[%s8149 + $0x1f0] sm:$0xff]
        %v8213 = vld [vmem:[%s8149 + $0x1f8] sm:$0xff]
        %v8214 = vld [vmem:[%s8149 + $0x200] sm:$0xff]
        %v8215 = vld [vmem:[%s8149 + $0x208] sm:$0xff]
        %v8216 = vld [vmem:[%s8149 + $0x210] sm:$0xff]
        %v8217 = vld [vmem:[%s8149 + $0x218] sm:$0xff]
        %v8218 = vld [vmem:[%s8149 + $0x220] sm:$0xff]
        %v8219 = vld [vmem:[%s8149 + $0x228] sm:$0xff]
        %v8220 = vld [vmem:[%s8149 + $0x230] sm:$0xff]
        %v8221 = vld [vmem:[%s8149 + $0x238] sm:$0xff]
        %v8222 = vld [vmem:[%s8149 + $0x240] sm:$0xff]
        %v8223 = vld [vmem:[%s8149 + $0x248] sm:$0xff]
        %v8224 = vld [vmem:[%s8149 + $0x250] sm:$0xff]
        %v8225 = vld [vmem:[%s8149 + $0x258] sm:$0xff]
        %v8226 = vld [vmem:[%s8149 + $0x260] sm:$0xff]
        %v8227 = vld [vmem:[%s8149 + $0x268] sm:$0xff]
        %v8228 = vld [vmem:[%s8149 + $0x270] sm:$0xff]
        %v8229 = vld [vmem:[%s8149 + $0x278] sm:$0xff]
        %v8230 = vld [vmem:[%s8149 + $0x280] sm:$0xff]
        %v8231 = vld [vmem:[%s8149 + $0x288] sm:$0xff]
        %v8232 = vld [vmem:[%s8149 + $0x290] sm:$0xff]
        %v8233 = vld [vmem:[%s8149 + $0x298] sm:$0xff]
        %v8234 = vld [vmem:[%s8149 + $0x2a0] sm:$0xff]
        %v8235 = vld [vmem:[%s8149 + $0x2a8] sm:$0xff]
        %v8236 = vld [vmem:[%s8149 + $0x2b0] sm:$0xff]
        %v8237 = vld [vmem:[%s8149 + $0x2b8] sm:$0xff]
        %v8238 = vld [vmem:[%s8149 + $0x2c0] sm:$0xff]
        %v8239 = vld [vmem:[%s8149 + $0x2c8] sm:$0xff]
        %v8240 = vld [vmem:[%s8149 + $0x2d0] sm:$0xff]
        %v8241 = vld [vmem:[%s8149 + $0x2d8] sm:$0xff]
        %v8242 = vld [vmem:[%s8149 + $0x2e0] sm:$0xff]
        %v8243 = vld [vmem:[%s8149 + $0x2e8] sm:$0xff]
        %v8244 = vld [vmem:[%s8149 + $0x2f0] sm:$0xff]
        %v8245 = vld [vmem:[%s8149 + $0x2f8] sm:$0xff]
        %v8246 = vld [vmem:[%s8149 + $0x300] sm:$0xff]
        %v8247 = vld [vmem:[%s8149 + $0x308] sm:$0xff]
        %v8248 = vld [vmem:[%s8149 + $0x310] sm:$0xff]
        %v8249 = vld [vmem:[%s8149 + $0x318] sm:$0xff]
        %v8250 = vld [vmem:[%s8149 + $0x320] sm:$0xff]
        %v8251 = vld [vmem:[%s8149 + $0x328] sm:$0xff]
        %v8252 = vld [vmem:[%s8149 + $0x330] sm:$0xff]
        %v8253 = vld [vmem:[%s8149 + $0x338] sm:$0xff]
        %v8254 = vld [vmem:[%s8149 + $0x340] sm:$0xff]
        %v8255 = vld [vmem:[%s8149 + $0x348] sm:$0xff]
        %v8256 = vld [vmem:[%s8149 + $0x350] sm:$0xff]
        %v8257 = vld [vmem:[%s8149 + $0x358] sm:$0xff]
        %v8258 = vld [vmem:[%s8149 + $0x360] sm:$0xff]
        %v8259 = vld [vmem:[%s8149 + $0x368] sm:$0xff]
        %v8260 = vld [vmem:[%s8149 + $0x370] sm:$0xff]
        %v8261 = vld [vmem:[%s8149 + $0x378] sm:$0xff]
        %v8262 = vld [vmem:[%s8149 + $0x380] sm:$0xff]
        %v8263 = vld [vmem:[%s8149 + $0x388] sm:$0xff]
        %v8264 = vld [vmem:[%s8149 + $0x390] sm:$0xff]
        %v8265 = vld [vmem:[%s8149 + $0x398] sm:$0xff]
        %v8266 = vld [vmem:[%s8149 + $0x3a0] sm:$0xff]
        %v8267 = vld [vmem:[%s8149 + $0x3a8] sm:$0xff]
        %v8268 = vld [vmem:[%s8149 + $0x3b0] sm:$0xff]
        %v8269 = vld [vmem:[%s8149 + $0x3b8] sm:$0xff]
        %v8270 = vld [vmem:[%s8149 + $0x3c0] sm:$0xff]
        %v8271 = vld [vmem:[%s8149 + $0x3c8] sm:$0xff]
        %v8272 = vld [vmem:[%s8149 + $0x3d0] sm:$0xff]
        %v8273 = vld [vmem:[%s8149 + $0x3d8] sm:$0xff]
        %v8274 = vld [vmem:[%s8149 + $0x3e0] sm:$0xff]
        %v8275 = vld [vmem:[%s8149 + $0x3e8] sm:$0xff]
        %v8276 = vld [vmem:[%s8149 + $0x3f0] sm:$0xff]
        %v8277 = vld [vmem:[%s8149 + $0x3f8] sm:$0xff]
        %v8278 = vld [vmem:[%s8149 + $0x400] sm:$0xff]
        %v8279 = vld [vmem:[%s8149 + $0x408] sm:$0xff]
        %v8280 = vld [vmem:[%s8149 + $0x410] sm:$0xff]
        %v8281 = vld [vmem:[%s8149 + $0x418] sm:$0xff]
        %v8282 = vld [vmem:[%s8149 + $0x420] sm:$0xff]
        %v8283 = vld [vmem:[%s8149 + $0x428] sm:$0xff]
        %v8284 = vld [vmem:[%s8149 + $0x430] sm:$0xff]
        %v8285 = vld [vmem:[%s8149 + $0x438] sm:$0xff]
        %v8286 = vld [vmem:[%s8149 + $0x440] sm:$0xff]
        %v8287 = vld [vmem:[%s8149 + $0x448] sm:$0xff]
        %v8288 = vld [vmem:[%s8149 + $0x450] sm:$0xff]
        %v8289 = vld [vmem:[%s8149 + $0x458] sm:$0xff]
        %v8290 = vld [vmem:[%s8149 + $0x460] sm:$0xff]
        %v8291 = vld [vmem:[%s8149 + $0x468] sm:$0xff]
        %v8292 = vld [vmem:[%s8149 + $0x470] sm:$0xff]
        %v8293 = vld [vmem:[%s8149 + $0x478] sm:$0xff]
        %v8294 = vld [vmem:[%s8149 + $0x480] sm:$0xff]
        %v8295 = vld [vmem:[%s8149 + $0x488] sm:$0xff]
        %v8296 = vld [vmem:[%s8149 + $0x490] sm:$0xff]
        %v8297 = vld [vmem:[%s8149 + $0x498] sm:$0xff]
        %v8298 = vld [vmem:[%s8149 + $0x4a0] sm:$0xff]
        %v8299 = vld [vmem:[%s8149 + $0x4a8] sm:$0xff]
        %v8300 = vld [vmem:[%s8149 + $0x4b0] sm:$0xff]
        %v8301 = vld [vmem:[%s8149 + $0x4b8] sm:$0xff]
        %v8302 = vld [vmem:[%s8149 + $0x4c0] sm:$0xff]
        %v8303 = vld [vmem:[%s8149 + $0x4c8] sm:$0xff]
        %v8304 = vld [vmem:[%s8149 + $0x4d0] sm:$0xff]
        %v8305 = vld [vmem:[%s8149 + $0x4d8] sm:$0xff]
        %v8306 = vld [vmem:[%s8149 + $0x4e0] sm:$0xff]
        %v8307 = vld [vmem:[%s8149 + $0x4e8] sm:$0xff]
        %v8308 = vld [vmem:[%s8149 + $0x4f0] sm:$0xff]
        %v8309 = vld [vmem:[%s8149 + $0x4f8] sm:$0xff]
        %vm8310 = vcmask 1045504
        %v8311 = vrot.slane %v3076, 2
        %v8312 = vrot.slane %v3081, 2
        %v8313 = vsel %vm8310, %v8311, %v8312
        %v8314 = vrot.slane %v3077, 2
        %v8315 = vrot.slane %v3082, 2
        %v8316 = vsel %vm8310, %v8314, %v8315
        %v8317 = vrot.slane %v3078, 2
        %v8318 = vrot.slane %v3083, 2
        %v8319 = vsel %vm8310, %v8317, %v8318
        %v8320 = vrot.slane %v3079, 2
        %v8321 = vrot.slane %v3084, 2
        %v8322 = vsel %vm8310, %v8320, %v8321
        %v8323 = vrot.slane %v3080, 2
        %v8324 = vrot.slane %v3085, 2
        %v8325 = vsel %vm8310, %v8323, %v8324
        %v8491 = vunpack.c.l.b16 %v8150
        %v8492 = vunpack.c.h.b16 %v8150
        %v8493 = vunpack.c.l.b16 %v8151
        %v8494 = vunpack.c.h.b16 %v8151
        %v8495 = vunpack.c.l.b16 %v8152
        %v8496 = vunpack.c.h.b16 %v8152
        %v8497 = vunpack.c.l.b16 %v8153
        %v8498 = vunpack.c.h.b16 %v8153
        %v8499 = vunpack.c.l.b16 %v8154
        %v8500 = vunpack.c.h.b16 %v8154
        %v8501 = vunpack.c.l.b16 %v8155
        %v8502 = vunpack.c.h.b16 %v8155
        %v8503 = vunpack.c.l.b16 %v8156
        %v8504 = vunpack.c.h.b16 %v8156
        %v8505 = vunpack.c.l.b16 %v8157
        %v8506 = vunpack.c.h.b16 %v8157
        %v8507 = vunpack.c.l.b16 %v8158
        %v8508 = vunpack.c.h.b16 %v8158
        %v8509 = vunpack.c.l.b16 %v8159
        %v8510 = vunpack.c.h.b16 %v8159
        %v8511 = vunpack.c.l.b16 %v8160
        %v8512 = vunpack.c.h.b16 %v8160
        %v8513 = vunpack.c.l.b16 %v8161
        %v8514 = vunpack.c.h.b16 %v8161
        %v8515 = vunpack.c.l.b16 %v8162
        %v8516 = vunpack.c.h.b16 %v8162
        %v8517 = vunpack.c.l.b16 %v8163
        %v8518 = vunpack.c.h.b16 %v8163
        %v8519 = vunpack.c.l.b16 %v8164
        %v8520 = vunpack.c.h.b16 %v8164
        %v8521 = vunpack.c.l.b16 %v8165
        %v8522 = vunpack.c.h.b16 %v8165
        %v8523 = vunpack.c.l.b16 %v8166
        %v8524 = vunpack.c.h.b16 %v8166
        %v8525 = vunpack.c.l.b16 %v8167
        %v8526 = vunpack.c.h.b16 %v8167
        %v8527 = vunpack.c.l.b16 %v8168
        %v8528 = vunpack.c.h.b16 %v8168
        %v8529 = vunpack.c.l.b16 %v8169
        %v8530 = vunpack.c.h.b16 %v8169
        %v8531 = vunpack.c.l.b16 %v8170
        %v8532 = vunpack.c.h.b16 %v8170
        %v8533 = vunpack.c.l.b16 %v8171
        %v8534 = vunpack.c.h.b16 %v8171
        %v8535 = vunpack.c.l.b16 %v8172
        %v8536 = vunpack.c.h.b16 %v8172
        %v8537 = vunpack.c.l.b16 %v8173
        %v8538 = vunpack.c.h.b16 %v8173
        %v8539 = vunpack.c.l.b16 %v8174
        %v8540 = vunpack.c.h.b16 %v8174
        %v8541 = vunpack.c.l.b16 %v8175
        %v8542 = vunpack.c.h.b16 %v8175
        %v8543 = vunpack.c.l.b16 %v8176
        %v8544 = vunpack.c.h.b16 %v8176
        %v8545 = vunpack.c.l.b16 %v8177
        %v8546 = vunpack.c.h.b16 %v8177
        %v8547 = vunpack.c.l.b16 %v8178
        %v8548 = vunpack.c.h.b16 %v8178
        %v8549 = vunpack.c.l.b16 %v8179
        %v8550 = vunpack.c.h.b16 %v8179
        %v8551 = vunpack.c.l.b16 %v8180
        %v8552 = vunpack.c.h.b16 %v8180
        %v8553 = vunpack.c.l.b16 %v8181
        %v8554 = vunpack.c.h.b16 %v8181
        %v8555 = vunpack.c.l.b16 %v8182
        %v8556 = vunpack.c.h.b16 %v8182
        %v8557 = vunpack.c.l.b16 %v8183
        %v8558 = vunpack.c.h.b16 %v8183
        %v8559 = vunpack.c.l.b16 %v8184
        %v8560 = vunpack.c.h.b16 %v8184
        %v8561 = vunpack.c.l.b16 %v8185
        %v8562 = vunpack.c.h.b16 %v8185
        %v8563 = vunpack.c.l.b16 %v8186
        %v8564 = vunpack.c.h.b16 %v8186
        %v8565 = vunpack.c.l.b16 %v8187
        %v8566 = vunpack.c.h.b16 %v8187
        %v8567 = vunpack.c.l.b16 %v8188
        %v8568 = vunpack.c.h.b16 %v8188
        %v8569 = vunpack.c.l.b16 %v8189
        %v8570 = vunpack.c.h.b16 %v8189
        %v8571 = vunpack.c.l.b16 %v8190
        %v8572 = vunpack.c.h.b16 %v8190
        %v8573 = vunpack.c.l.b16 %v8191
        %v8574 = vunpack.c.h.b16 %v8191
        %v8575 = vunpack.c.l.b16 %v8192
        %v8576 = vunpack.c.h.b16 %v8192
        %v8577 = vunpack.c.l.b16 %v8193
        %v8578 = vunpack.c.h.b16 %v8193
        %v8579 = vunpack.c.l.b16 %v8194
        %v8580 = vunpack.c.h.b16 %v8194
        %v8581 = vunpack.c.l.b16 %v8195
        %v8582 = vunpack.c.h.b16 %v8195
        %v8583 = vunpack.c.l.b16 %v8196
        %v8584 = vunpack.c.h.b16 %v8196
        %v8585 = vunpack.c.l.b16 %v8197
        %v8586 = vunpack.c.h.b16 %v8197
        %v8587 = vunpack.c.l.b16 %v8198
        %v8588 = vunpack.c.h.b16 %v8198
        %v8589 = vunpack.c.l.b16 %v8199
        %v8590 = vunpack.c.h.b16 %v8199
        %v8591 = vunpack.c.l.b16 %v8200
        %v8592 = vunpack.c.h.b16 %v8200
        %v8593 = vunpack.c.l.b16 %v8201
        %v8594 = vunpack.c.h.b16 %v8201
        %v8595 = vunpack.c.l.b16 %v8202
        %v8596 = vunpack.c.h.b16 %v8202
        %v8597 = vunpack.c.l.b16 %v8203
        %v8598 = vunpack.c.h.b16 %v8203
        %v8599 = vunpack.c.l.b16 %v8204
        %v8600 = vunpack.c.h.b16 %v8204
        %v8601 = vunpack.c.l.b16 %v8205
        %v8602 = vunpack.c.h.b16 %v8205
        %v8603 = vunpack.c.l.b16 %v8206
        %v8604 = vunpack.c.h.b16 %v8206
        %v8605 = vunpack.c.l.b16 %v8207
        %v8606 = vunpack.c.h.b16 %v8207
        %v8607 = vunpack.c.l.b16 %v8208
        %v8608 = vunpack.c.h.b16 %v8208
        %v8609 = vunpack.c.l.b16 %v8209
        %v8610 = vunpack.c.h.b16 %v8209
        %v8611 = vunpack.c.l.b16 %v8210
        %v8612 = vunpack.c.h.b16 %v8210
        %v8613 = vunpack.c.l.b16 %v8211
        %v8614 = vunpack.c.h.b16 %v8211
        %v8615 = vunpack.c.l.b16 %v8212
        %v8616 = vunpack.c.h.b16 %v8212
        %v8617 = vunpack.c.l.b16 %v8213
        %v8618 = vunpack.c.h.b16 %v8213
        %v8619 = vunpack.c.l.b16 %v8214
        %v8620 = vunpack.c.h.b16 %v8214
        %v8621 = vunpack.c.l.b16 %v8215
        %v8622 = vunpack.c.h.b16 %v8215
        %v8623 = vunpack.c.l.b16 %v8216
        %v8624 = vunpack.c.h.b16 %v8216
        %v8625 = vunpack.c.l.b16 %v8217
        %v8626 = vunpack.c.h.b16 %v8217
        %v8627 = vunpack.c.l.b16 %v8218
        %v8628 = vunpack.c.h.b16 %v8218
        %v8629 = vunpack.c.l.b16 %v8219
        %v8630 = vunpack.c.h.b16 %v8219
        %v8631 = vunpack.c.l.b16 %v8220
        %v8632 = vunpack.c.h.b16 %v8220
        %v8633 = vunpack.c.l.b16 %v8221
        %v8634 = vunpack.c.h.b16 %v8221
        %v8635 = vunpack.c.l.b16 %v8222
        %v8636 = vunpack.c.h.b16 %v8222
        %v8637 = vunpack.c.l.b16 %v8223
        %v8638 = vunpack.c.h.b16 %v8223
        %v8639 = vunpack.c.l.b16 %v8224
        %v8640 = vunpack.c.h.b16 %v8224
        %v8641 = vunpack.c.l.b16 %v8225
        %v8642 = vunpack.c.h.b16 %v8225
        %v8643 = vunpack.c.l.b16 %v8226
        %v8644 = vunpack.c.h.b16 %v8226
        %v8645 = vunpack.c.l.b16 %v8227
        %v8646 = vunpack.c.h.b16 %v8227
        %v8647 = vunpack.c.l.b16 %v8228
        %v8648 = vunpack.c.h.b16 %v8228
        %v8649 = vunpack.c.l.b16 %v8229
        %v8650 = vunpack.c.h.b16 %v8229
        %v8651 = vunpack.c.l.b16 %v8230
        %v8652 = vunpack.c.h.b16 %v8230
        %v8653 = vunpack.c.l.b16 %v8231
        %v8654 = vunpack.c.h.b16 %v8231
        %v8655 = vunpack.c.l.b16 %v8232
        %v8656 = vunpack.c.h.b16 %v8232
        %v8657 = vunpack.c.l.b16 %v8233
        %v8658 = vunpack.c.h.b16 %v8233
        %v8659 = vunpack.c.l.b16 %v8234
        %v8660 = vunpack.c.h.b16 %v8234
        %v8661 = vunpack.c.l.b16 %v8235
        %v8662 = vunpack.c.h.b16 %v8235
        %v8663 = vunpack.c.l.b16 %v8236
        %v8664 = vunpack.c.h.b16 %v8236
        %v8665 = vunpack.c.l.b16 %v8237
        %v8666 = vunpack.c.h.b16 %v8237
        %v8667 = vunpack.c.l.b16 %v8238
        %v8668 = vunpack.c.h.b16 %v8238
        %v8669 = vunpack.c.l.b16 %v8239
        %v8670 = vunpack.c.h.b16 %v8239
        %v8671 = vunpack.c.l.b16 %v8240
        %v8672 = vunpack.c.h.b16 %v8240
        %v8673 = vunpack.c.l.b16 %v8241
        %v8674 = vunpack.c.h.b16 %v8241
        %v8675 = vunpack.c.l.b16 %v8242
        %v8676 = vunpack.c.h.b16 %v8242
        %v8677 = vunpack.c.l.b16 %v8243
        %v8678 = vunpack.c.h.b16 %v8243
        %v8679 = vunpack.c.l.b16 %v8244
        %v8680 = vunpack.c.h.b16 %v8244
        %v8681 = vunpack.c.l.b16 %v8245
        %v8682 = vunpack.c.h.b16 %v8245
        %v8683 = vunpack.c.l.b16 %v8246
        %v8684 = vunpack.c.h.b16 %v8246
        %v8685 = vunpack.c.l.b16 %v8247
        %v8686 = vunpack.c.h.b16 %v8247
        %v8687 = vunpack.c.l.b16 %v8248
        %v8688 = vunpack.c.h.b16 %v8248
        %v8689 = vunpack.c.l.b16 %v8249
        %v8690 = vunpack.c.h.b16 %v8249
        %v8691 = vunpack.c.l.b16 %v8250
        %v8692 = vunpack.c.h.b16 %v8250
        %v8693 = vunpack.c.l.b16 %v8251
        %v8694 = vunpack.c.h.b16 %v8251
        %v8695 = vunpack.c.l.b16 %v8252
        %v8696 = vunpack.c.h.b16 %v8252
        %v8697 = vunpack.c.l.b16 %v8253
        %v8698 = vunpack.c.h.b16 %v8253
        %v8699 = vunpack.c.l.b16 %v8254
        %v8700 = vunpack.c.h.b16 %v8254
        %v8701 = vunpack.c.l.b16 %v8255
        %v8702 = vunpack.c.h.b16 %v8255
        %v8703 = vunpack.c.l.b16 %v8256
        %v8704 = vunpack.c.h.b16 %v8256
        %v8705 = vunpack.c.l.b16 %v8257
        %v8706 = vunpack.c.h.b16 %v8257
        %v8707 = vunpack.c.l.b16 %v8258
        %v8708 = vunpack.c.h.b16 %v8258
        %v8709 = vunpack.c.l.b16 %v8259
        %v8710 = vunpack.c.h.b16 %v8259
        %v8711 = vunpack.c.l.b16 %v8260
        %v8712 = vunpack.c.h.b16 %v8260
        %v8713 = vunpack.c.l.b16 %v8261
        %v8714 = vunpack.c.h.b16 %v8261
        %v8715 = vunpack.c.l.b16 %v8262
        %v8716 = vunpack.c.h.b16 %v8262
        %v8717 = vunpack.c.l.b16 %v8263
        %v8718 = vunpack.c.h.b16 %v8263
        %v8719 = vunpack.c.l.b16 %v8264
        %v8720 = vunpack.c.h.b16 %v8264
        %v8721 = vunpack.c.l.b16 %v8265
        %v8722 = vunpack.c.h.b16 %v8265
        %v8723 = vunpack.c.l.b16 %v8266
        %v8724 = vunpack.c.h.b16 %v8266
        %v8725 = vunpack.c.l.b16 %v8267
        %v8726 = vunpack.c.h.b16 %v8267
        %v8727 = vunpack.c.l.b16 %v8268
        %v8728 = vunpack.c.h.b16 %v8268
        %v8729 = vunpack.c.l.b16 %v8269
        %v8730 = vunpack.c.h.b16 %v8269
        %v8731 = vunpack.c.l.b16 %v8270
        %v8732 = vunpack.c.h.b16 %v8270
        %v8733 = vunpack.c.l.b16 %v8271
        %v8734 = vunpack.c.h.b16 %v8271
        %v8735 = vunpack.c.l.b16 %v8272
        %v8736 = vunpack.c.h.b16 %v8272
        %v8737 = vunpack.c.l.b16 %v8273
        %v8738 = vunpack.c.h.b16 %v8273
        %v8739 = vunpack.c.l.b16 %v8274
        %v8740 = vunpack.c.h.b16 %v8274
        %v8741 = vunpack.c.l.b16 %v8275
        %v8742 = vunpack.c.h.b16 %v8275
        %v8743 = vunpack.c.l.b16 %v8276
        %v8744 = vunpack.c.h.b16 %v8276
        %v8745 = vunpack.c.l.b16 %v8277
        %v8746 = vunpack.c.h.b16 %v8277
        %v8747 = vunpack.c.l.b16 %v8278
        %v8748 = vunpack.c.h.b16 %v8278
        %v8749 = vunpack.c.l.b16 %v8279
        %v8750 = vunpack.c.h.b16 %v8279
        %v8751 = vunpack.c.l.b16 %v8280
        %v8752 = vunpack.c.h.b16 %v8280
        %v8753 = vunpack.c.l.b16 %v8281
        %v8754 = vunpack.c.h.b16 %v8281
        %v8755 = vunpack.c.l.b16 %v8282
        %v8756 = vunpack.c.h.b16 %v8282
        %v8757 = vunpack.c.l.b16 %v8283
        %v8758 = vunpack.c.h.b16 %v8283
        %v8759 = vunpack.c.l.b16 %v8284
        %v8760 = vunpack.c.h.b16 %v8284
        %v8761 = vunpack.c.l.b16 %v8285
        %v8762 = vunpack.c.h.b16 %v8285
        %v8763 = vunpack.c.l.b16 %v8286
        %v8764 = vunpack.c.h.b16 %v8286
        %v8765 = vunpack.c.l.b16 %v8287
        %v8766 = vunpack.c.h.b16 %v8287
        %v8767 = vunpack.c.l.b16 %v8288
        %v8768 = vunpack.c.h.b16 %v8288
        %v8769 = vunpack.c.l.b16 %v8289
        %v8770 = vunpack.c.h.b16 %v8289
        %v8771 = vunpack.c.l.b16 %v8290
        %v8772 = vunpack.c.h.b16 %v8290
        %v8773 = vunpack.c.l.b16 %v8291
        %v8774 = vunpack.c.h.b16 %v8291
        %v8775 = vunpack.c.l.b16 %v8292
        %v8776 = vunpack.c.h.b16 %v8292
        %v8777 = vunpack.c.l.b16 %v8293
        %v8778 = vunpack.c.h.b16 %v8293
        %v8779 = vunpack.c.l.b16 %v8294
        %v8780 = vunpack.c.h.b16 %v8294
        %v8781 = vunpack.c.l.b16 %v8295
        %v8782 = vunpack.c.h.b16 %v8295
        %v8783 = vunpack.c.l.b16 %v8296
        %v8784 = vunpack.c.h.b16 %v8296
        %v8785 = vunpack.c.l.b16 %v8297
        %v8786 = vunpack.c.h.b16 %v8297
        %v8787 = vunpack.c.l.b16 %v8298
        %v8788 = vunpack.c.h.b16 %v8298
        %v8789 = vunpack.c.l.b16 %v8299
        %v8790 = vunpack.c.h.b16 %v8299
        %v8791 = vunpack.c.l.b16 %v8300
        %v8792 = vunpack.c.h.b16 %v8300
        %v8793 = vunpack.c.l.b16 %v8301
        %v8794 = vunpack.c.h.b16 %v8301
        %v8795 = vunpack.c.l.b16 %v8302
        %v8796 = vunpack.c.h.b16 %v8302
        %v8797 = vunpack.c.l.b16 %v8303
        %v8798 = vunpack.c.h.b16 %v8303
        %v8799 = vunpack.c.l.b16 %v8304
        %v8800 = vunpack.c.h.b16 %v8304
        %v8801 = vunpack.c.l.b16 %v8305
        %v8802 = vunpack.c.h.b16 %v8305
        %v8803 = vunpack.c.l.b16 %v8306
        %v8804 = vunpack.c.h.b16 %v8306
        %v8805 = vunpack.c.l.b16 %v8307
        %v8806 = vunpack.c.h.b16 %v8307
        %v8807 = vunpack.c.l.b16 %v8308
        %v8808 = vunpack.c.h.b16 %v8308
        %v8809 = vunpack.c.l.b16 %v8309
        %v8810 = vunpack.c.h.b16 %v8309
        %v8811 = vpack.c.b16 %v8495, %v8491
        %v8812 = vpack.c.b16 %v8496, %v8492
        %v8813 = vpack.c.b16 %v8497, %v8493
        %v8814 = vpack.c.b16 %v8498, %v8494
        %v8815 = vpack.c.b16 %v8503, %v8499
        %v8816 = vpack.c.b16 %v8504, %v8500
        %v8817 = vpack.c.b16 %v8505, %v8501
        %v8818 = vpack.c.b16 %v8506, %v8502
        %v8819 = vpack.c.b16 %v8511, %v8507
        %v8820 = vpack.c.b16 %v8512, %v8508
        %v8821 = vpack.c.b16 %v8513, %v8509
        %v8822 = vpack.c.b16 %v8514, %v8510
        %v8823 = vpack.c.b16 %v8519, %v8515
        %v8824 = vpack.c.b16 %v8520, %v8516
        %v8825 = vpack.c.b16 %v8521, %v8517
        %v8826 = vpack.c.b16 %v8522, %v8518
        %v8827 = vpack.c.b16 %v8527, %v8523
        %v8828 = vpack.c.b16 %v8528, %v8524
        %v8829 = vpack.c.b16 %v8529, %v8525
        %v8830 = vpack.c.b16 %v8530, %v8526
        %v8831 = vpack.c.b16 %v8535, %v8531
        %v8832 = vpack.c.b16 %v8536, %v8532
        %v8833 = vpack.c.b16 %v8537, %v8533
        %v8834 = vpack.c.b16 %v8538, %v8534
        %v8835 = vpack.c.b16 %v8543, %v8539
        %v8836 = vpack.c.b16 %v8544, %v8540
        %v8837 = vpack.c.b16 %v8545, %v8541
        %v8838 = vpack.c.b16 %v8546, %v8542
        %v8839 = vpack.c.b16 %v8551, %v8547
        %v8840 = vpack.c.b16 %v8552, %v8548
        %v8841 = vpack.c.b16 %v8553, %v8549
        %v8842 = vpack.c.b16 %v8554, %v8550
        %v8843 = vpack.c.b16 %v8559, %v8555
        %v8844 = vpack.c.b16 %v8560, %v8556
        %v8845 = vpack.c.b16 %v8561, %v8557
        %v8846 = vpack.c.b16 %v8562, %v8558
        %v8847 = vpack.c.b16 %v8567, %v8563
        %v8848 = vpack.c.b16 %v8568, %v8564
        %v8849 = vpack.c.b16 %v8569, %v8565
        %v8850 = vpack.c.b16 %v8570, %v8566
        %v8851 = vpack.c.b16 %v8575, %v8571
        %v8852 = vpack.c.b16 %v8576, %v8572
        %v8853 = vpack.c.b16 %v8577, %v8573
        %v8854 = vpack.c.b16 %v8578, %v8574
        %v8855 = vpack.c.b16 %v8583, %v8579
        %v8856 = vpack.c.b16 %v8584, %v8580
        %v8857 = vpack.c.b16 %v8585, %v8581
        %v8858 = vpack.c.b16 %v8586, %v8582
        %v8859 = vpack.c.b16 %v8591, %v8587
        %v8860 = vpack.c.b16 %v8592, %v8588
        %v8861 = vpack.c.b16 %v8593, %v8589
        %v8862 = vpack.c.b16 %v8594, %v8590
        %v8863 = vpack.c.b16 %v8599, %v8595
        %v8864 = vpack.c.b16 %v8600, %v8596
        %v8865 = vpack.c.b16 %v8601, %v8597
        %v8866 = vpack.c.b16 %v8602, %v8598
        %v8867 = vpack.c.b16 %v8607, %v8603
        %v8868 = vpack.c.b16 %v8608, %v8604
        %v8869 = vpack.c.b16 %v8609, %v8605
        %v8870 = vpack.c.b16 %v8610, %v8606
        %v8871 = vpack.c.b16 %v8615, %v8611
        %v8872 = vpack.c.b16 %v8616, %v8612
        %v8873 = vpack.c.b16 %v8617, %v8613
        %v8874 = vpack.c.b16 %v8618, %v8614
        %v8875 = vpack.c.b16 %v8623, %v8619
        %v8876 = vpack.c.b16 %v8624, %v8620
        %v8877 = vpack.c.b16 %v8625, %v8621
        %v8878 = vpack.c.b16 %v8626, %v8622
        %v8879 = vpack.c.b16 %v8631, %v8627
        %v8880 = vpack.c.b16 %v8632, %v8628
        %v8881 = vpack.c.b16 %v8633, %v8629
        %v8882 = vpack.c.b16 %v8634, %v8630
        %v8883 = vpack.c.b16 %v8639, %v8635
        %v8884 = vpack.c.b16 %v8640, %v8636
        %v8885 = vpack.c.b16 %v8641, %v8637
        %v8886 = vpack.c.b16 %v8642, %v8638
        %v8887 = vpack.c.b16 %v8647, %v8643
        %v8888 = vpack.c.b16 %v8648, %v8644
        %v8889 = vpack.c.b16 %v8649, %v8645
        %v8890 = vpack.c.b16 %v8650, %v8646
        %v8891 = vpack.c.b16 %v8655, %v8651
        %v8892 = vpack.c.b16 %v8656, %v8652
        %v8893 = vpack.c.b16 %v8657, %v8653
        %v8894 = vpack.c.b16 %v8658, %v8654
        %v8895 = vpack.c.b16 %v8663, %v8659
        %v8896 = vpack.c.b16 %v8664, %v8660
        %v8897 = vpack.c.b16 %v8665, %v8661
        %v8898 = vpack.c.b16 %v8666, %v8662
        %v8899 = vpack.c.b16 %v8671, %v8667
        %v8900 = vpack.c.b16 %v8672, %v8668
        %v8901 = vpack.c.b16 %v8673, %v8669
        %v8902 = vpack.c.b16 %v8674, %v8670
        %v8903 = vpack.c.b16 %v8679, %v8675
        %v8904 = vpack.c.b16 %v8680, %v8676
        %v8905 = vpack.c.b16 %v8681, %v8677
        %v8906 = vpack.c.b16 %v8682, %v8678
        %v8907 = vpack.c.b16 %v8687, %v8683
        %v8908 = vpack.c.b16 %v8688, %v8684
        %v8909 = vpack.c.b16 %v8689, %v8685
        %v8910 = vpack.c.b16 %v8690, %v8686
        %v8911 = vpack.c.b16 %v8695, %v8691
        %v8912 = vpack.c.b16 %v8696, %v8692
        %v8913 = vpack.c.b16 %v8697, %v8693
        %v8914 = vpack.c.b16 %v8698, %v8694
        %v8915 = vpack.c.b16 %v8703, %v8699
        %v8916 = vpack.c.b16 %v8704, %v8700
        %v8917 = vpack.c.b16 %v8705, %v8701
        %v8918 = vpack.c.b16 %v8706, %v8702
        %v8919 = vpack.c.b16 %v8711, %v8707
        %v8920 = vpack.c.b16 %v8712, %v8708
        %v8921 = vpack.c.b16 %v8713, %v8709
        %v8922 = vpack.c.b16 %v8714, %v8710
        %v8923 = vpack.c.b16 %v8719, %v8715
        %v8924 = vpack.c.b16 %v8720, %v8716
        %v8925 = vpack.c.b16 %v8721, %v8717
        %v8926 = vpack.c.b16 %v8722, %v8718
        %v8927 = vpack.c.b16 %v8727, %v8723
        %v8928 = vpack.c.b16 %v8728, %v8724
        %v8929 = vpack.c.b16 %v8729, %v8725
        %v8930 = vpack.c.b16 %v8730, %v8726
        %v8931 = vpack.c.b16 %v8735, %v8731
        %v8932 = vpack.c.b16 %v8736, %v8732
        %v8933 = vpack.c.b16 %v8737, %v8733
        %v8934 = vpack.c.b16 %v8738, %v8734
        %v8935 = vpack.c.b16 %v8743, %v8739
        %v8936 = vpack.c.b16 %v8744, %v8740
        %v8937 = vpack.c.b16 %v8745, %v8741
        %v8938 = vpack.c.b16 %v8746, %v8742
        %v8939 = vpack.c.b16 %v8751, %v8747
        %v8940 = vpack.c.b16 %v8752, %v8748
        %v8941 = vpack.c.b16 %v8753, %v8749
        %v8942 = vpack.c.b16 %v8754, %v8750
        %v8943 = vpack.c.b16 %v8759, %v8755
        %v8944 = vpack.c.b16 %v8760, %v8756
        %v8945 = vpack.c.b16 %v8761, %v8757
        %v8946 = vpack.c.b16 %v8762, %v8758
        %v8947 = vpack.c.b16 %v8767, %v8763
        %v8948 = vpack.c.b16 %v8768, %v8764
        %v8949 = vpack.c.b16 %v8769, %v8765
        %v8950 = vpack.c.b16 %v8770, %v8766
        %v8951 = vpack.c.b16 %v8775, %v8771
        %v8952 = vpack.c.b16 %v8776, %v8772
        %v8953 = vpack.c.b16 %v8777, %v8773
        %v8954 = vpack.c.b16 %v8778, %v8774
        %v8955 = vpack.c.b16 %v8783, %v8779
        %v8956 = vpack.c.b16 %v8784, %v8780
        %v8957 = vpack.c.b16 %v8785, %v8781
        %v8958 = vpack.c.b16 %v8786, %v8782
        %v8959 = vpack.c.b16 %v8791, %v8787
        %v8960 = vpack.c.b16 %v8792, %v8788
        %v8961 = vpack.c.b16 %v8793, %v8789
        %v8962 = vpack.c.b16 %v8794, %v8790
        %v8963 = vpack.c.b16 %v8799, %v8795
        %v8964 = vpack.c.b16 %v8800, %v8796
        %v8965 = vpack.c.b16 %v8801, %v8797
        %v8966 = vpack.c.b16 %v8802, %v8798
        %v8967 = vpack.c.b16 %v8807, %v8803
        %v8968 = vpack.c.b16 %v8808, %v8804
        %v8969 = vpack.c.b16 %v8809, %v8805
        %v8970 = vpack.c.b16 %v8810, %v8806
        %9131 = vmatprep.subr.bf16.mxu0 %v8812
        %9132 = vmatpush1.bf16.msra.mxu0 %v8811
        %9133 = vmatprep.subr.bf16.mxu0 %v8816
        %9134 = vmatpush1.bf16.msra.mxu0 %v8815
        %9135 = vmatprep.subr.bf16.mxu0 %v8820
        %9136 = vmatpush1.bf16.msra.mxu0 %v8819
        %9137 = vmatprep.subr.bf16.mxu0 %v8824
        %9138 = vmatpush1.bf16.msra.mxu0 %v8823
        %9139 = vmatprep.subr.bf16.mxu0 %v8828
        %9140 = vmatpush1.bf16.msra.mxu0 %v8827
        %9141 = vmatprep.subr.bf16.mxu0 %v8832
        %9142 = vmatpush1.bf16.msra.mxu0 %v8831
        %9143 = vmatprep.subr.bf16.mxu0 %v8836
        %9144 = vmatpush1.bf16.msra.mxu0 %v8835
        %9145 = vmatprep.subr.bf16.mxu0 %v8840
        %9146 = vmatpush1.bf16.msra.mxu0 %v8839
        %9147 = vmatprep.subr.bf16.mxu0 %v8844
        %9148 = vmatpush1.bf16.msra.mxu0 %v8843
        %9149 = vmatprep.subr.bf16.mxu0 %v8848
        %9150 = vmatpush1.bf16.msra.mxu0 %v8847
        %9151 = vmatprep.subr.bf16.mxu0 %v8852
        %9152 = vmatpush1.bf16.msra.mxu0 %v8851
        %9153 = vmatprep.subr.bf16.mxu0 %v8856
        %9154 = vmatpush1.bf16.msra.mxu0 %v8855
        %9155 = vmatprep.subr.bf16.mxu0 %v8860
        %9156 = vmatpush1.bf16.msra.mxu0 %v8859
        %9157 = vmatprep.subr.bf16.mxu0 %v8864
        %9158 = vmatpush1.bf16.msra.mxu0 %v8863
        %9159 = vmatprep.subr.bf16.mxu0 %v8868
        %9160 = vmatpush1.bf16.msra.mxu0 %v8867
        %9161 = vmatprep.subr.bf16.mxu0 %v8872
        %9162 = vmatpush1.bf16.msra.mxu0 %v8871
        %9163 = vmatprep.mubr.bf16.mxu0 %v8316
        %9164 = vmatmul.mubr.bf16.gmra.mrb[0].mxu0 %v8313
        %v9165 = vpop.f32.mrb[0].mxu0
        %v9166 = vadd.f32 0.0, %v9165
        %v9167 = vpop.f32.mrb[0].mxu0
        %v9168 = vadd.f32 0.0, %v9167
        %v9169 = vpop.f32.mrb[0].mxu0
        %v9170 = vadd.f32 0.0, %v9169
        %v9171 = vpop.f32.mrb[0].mxu0
        %v9172 = vadd.f32 0.0, %v9171
        %9173 = vdwg.mxu0
        %9174 = vmatprep.subr.bf16.mxu0 %v8876
        %9175 = vmatpush1.bf16.msra.mxu0 %v8875
        %9176 = vmatprep.subr.bf16.mxu0 %v8880
        %9177 = vmatpush1.bf16.msra.mxu0 %v8879
        %9178 = vmatprep.subr.bf16.mxu0 %v8884
        %9179 = vmatpush1.bf16.msra.mxu0 %v8883
        %9180 = vmatprep.subr.bf16.mxu0 %v8888
        %9181 = vmatpush1.bf16.msra.mxu0 %v8887
        %9182 = vmatprep.subr.bf16.mxu0 %v8892
        %9183 = vmatpush1.bf16.msra.mxu0 %v8891
        %9184 = vmatprep.subr.bf16.mxu0 %v8896
        %9185 = vmatpush1.bf16.msra.mxu0 %v8895
        %9186 = vmatprep.subr.bf16.mxu0 %v8900
        %9187 = vmatpush1.bf16.msra.mxu0 %v8899
        %9188 = vmatprep.subr.bf16.mxu0 %v8904
        %9189 = vmatpush1.bf16.msra.mxu0 %v8903
        %9190 = vmatprep.subr.bf16.mxu0 %v8908
        %9191 = vmatpush1.bf16.msra.mxu0 %v8907
        %9192 = vmatprep.subr.bf16.mxu0 %v8912
        %9193 = vmatpush1.bf16.msra.mxu0 %v8911
        %9194 = vmatprep.subr.bf16.mxu0 %v8916
        %9195 = vmatpush1.bf16.msra.mxu0 %v8915
        %9196 = vmatprep.subr.bf16.mxu0 %v8920
        %9197 = vmatpush1.bf16.msra.mxu0 %v8919
        %9198 = vmatprep.subr.bf16.mxu0 %v8924
        %9199 = vmatpush1.bf16.msra.mxu0 %v8923
        %9200 = vmatprep.subr.bf16.mxu0 %v8928
        %9201 = vmatpush1.bf16.msra.mxu0 %v8927
        %9202 = vmatprep.subr.bf16.mxu0 %v8932
        %9203 = vmatpush1.bf16.msra.mxu0 %v8931
        %9204 = vmatprep.subr.bf16.mxu0 %v8936
        %9205 = vmatpush1.bf16.msra.mxu0 %v8935
        %9206 = vmatprep.mubr.bf16.mxu0 %v8322
        %9207 = vmatmul.mubr.bf16.gmra.mrb[0].mxu0 %v8319
        %v9208 = vpop.f32.mrb[0].mxu0
        %v9209 = vadd.f32 %v9166, %v9208
        %v9210 = vpop.f32.mrb[0].mxu0
        %v9211 = vadd.f32 %v9168, %v9210
        %v9212 = vpop.f32.mrb[0].mxu0
        %v9213 = vadd.f32 %v9170, %v9212
        %v9214 = vpop.f32.mrb[0].mxu0
        %v9215 = vadd.f32 %v9172, %v9214
        %9216 = vdwg.mxu0
        %9217 = vmatprep.subr.bf16.mxu0 %v8940
        %9218 = vmatpush1.bf16.msra.mxu0 %v8939
        %9219 = vmatprep.subr.bf16.mxu0 %v8944
        %9220 = vmatpush1.bf16.msra.mxu0 %v8943
        %9221 = vmatprep.subr.bf16.mxu0 %v8948
        %9222 = vmatpush1.bf16.msra.mxu0 %v8947
        %9223 = vmatprep.subr.bf16.mxu0 %v8952
        %9224 = vmatpush1.bf16.msra.mxu0 %v8951
        %9225 = vmatprep.subr.bf16.mxu0 %v8956
        %9226 = vmatpush1.bf16.msra.mxu0 %v8955
        %9227 = vmatprep.subr.bf16.mxu0 %v8960
        %9228 = vmatpush1.bf16.msra.mxu0 %v8959
        %9229 = vmatprep.subr.bf16.mxu0 %v8964
        %9230 = vmatpush1.bf16.msra.mxu0 %v8963
        %9231 = vmatprep.subr.bf16.mxu0 %v8968
        %9232 = vmatpush1.bf16.msra.mxu0 %v8967
        %9233 = vmatprep.subr.bf16.mxu0 0
        %9234 = vmatpush1.bf16.msra.mxu0 0
        %9235 = vmatprep.subr.bf16.mxu0 0
        %9236 = vmatpush1.bf16.msra.mxu0 0
        %9237 = vmatprep.subr.bf16.mxu0 0
        %9238 = vmatpush1.bf16.msra.mxu0 0
        %9239 = vmatprep.subr.bf16.mxu0 0
        %9240 = vmatpush1.bf16.msra.mxu0 0
        %9241 = vmatprep.subr.bf16.mxu0 0
        %9242 = vmatpush1.bf16.msra.mxu0 0
        %9243 = vmatprep.subr.bf16.mxu0 0
        %9244 = vmatpush1.bf16.msra.mxu0 0
        %9245 = vmatprep.subr.bf16.mxu0 0
        %9246 = vmatpush1.bf16.msra.mxu0 0
        %9247 = vmatprep.subr.bf16.mxu0 0
        %9248 = vmatpush1.bf16.msra.mxu0 0
        %9249 = vmatprep.mubr.bf16.mxu0 0
        %9250 = vmatmul.mubr.bf16.gmra.mrb[0].mxu0 %v8325
        %v9251 = vpop.f32.mrb[0].mxu0
        %v9252 = vadd.f32 %v9209, %v9251
        %v9253 = vpop.f32.mrb[0].mxu0
        %v9254 = vadd.f32 %v9211, %v9253
        %v9255 = vpop.f32.mrb[0].mxu0
        %v9256 = vadd.f32 %v9213, %v9255
        %v9257 = vpop.f32.mrb[0].mxu0
        %v9258 = vadd.f32 %v9215, %v9257
        %9259 = vdwg.mxu0
        %9260 = vmatprep.subr.bf16.mxu0 %v8814
        %9261 = vmatpush1.bf16.msra.mxu0 %v8813
        %9262 = vmatprep.subr.bf16.mxu0 %v8818
        %9263 = vmatpush1.bf16.msra.mxu0 %v8817
        %9264 = vmatprep.subr.bf16.mxu0 %v8822
        %9265 = vmatpush1.bf16.msra.mxu0 %v8821
        %9266 = vmatprep.subr.bf16.mxu0 %v8826
        %9267 = vmatpush1.bf16.msra.mxu0 %v8825
        %9268 = vmatprep.subr.bf16.mxu0 %v8830
        %9269 = vmatpush1.bf16.msra.mxu0 %v8829
        %9270 = vmatprep.subr.bf16.mxu0 %v8834
        %9271 = vmatpush1.bf16.msra.mxu0 %v8833
        %9272 = vmatprep.subr.bf16.mxu0 %v8838
        %9273 = vmatpush1.bf16.msra.mxu0 %v8837
        %9274 = vmatprep.subr.bf16.mxu0 %v8842
        %9275 = vmatpush1.bf16.msra.mxu0 %v8841
        %9276 = vmatprep.subr.bf16.mxu0 %v8846
        %9277 = vmatpush1.bf16.msra.mxu0 %v8845
        %9278 = vmatprep.subr.bf16.mxu0 %v8850
        %9279 = vmatpush1.bf16.msra.mxu0 %v8849
        %9280 = vmatprep.subr.bf16.mxu0 %v8854
        %9281 = vmatpush1.bf16.msra.mxu0 %v8853
        %9282 = vmatprep.subr.bf16.mxu0 %v8858
        %9283 = vmatpush1.bf16.msra.mxu0 %v8857
        %9284 = vmatprep.subr.bf16.mxu0 %v8862
        %9285 = vmatpush1.bf16.msra.mxu0 %v8861
        %9286 = vmatprep.subr.bf16.mxu0 %v8866
        %9287 = vmatpush1.bf16.msra.mxu0 %v8865
        %9288 = vmatprep.subr.bf16.mxu0 %v8870
        %9289 = vmatpush1.bf16.msra.mxu0 %v8869
        %9290 = vmatprep.subr.bf16.mxu0 %v8874
        %9291 = vmatpush1.bf16.msra.mxu0 %v8873
        %9292 = vmatprep.mubr.bf16.mxu0 %v8316
        %9293 = vmatmul.mubr.bf16.gmra.mrb[0].mxu0 %v8313
        %v9294 = vpop.f32.mrb[0].mxu0
        %v9295 = vadd.f32 0.0, %v9294
        %v9296 = vpop.f32.mrb[0].mxu0
        %v9297 = vadd.f32 0.0, %v9296
        %v9298 = vpop.f32.mrb[0].mxu0
        %v9299 = vadd.f32 0.0, %v9298
        %v9300 = vpop.f32.mrb[0].mxu0
        %v9301 = vadd.f32 0.0, %v9300
        %9302 = vdwg.mxu0
        %9303 = vmatprep.subr.bf16.mxu0 %v8878
        %9304 = vmatpush1.bf16.msra.mxu0 %v8877
        %9305 = vmatprep.subr.bf16.mxu0 %v8882
        %9306 = vmatpush1.bf16.msra.mxu0 %v8881
        %9307 = vmatprep.subr.bf16.mxu0 %v8886
        %9308 = vmatpush1.bf16.msra.mxu0 %v8885
        %9309 = vmatprep.subr.bf16.mxu0 %v8890
        %9310 = vmatpush1.bf16.msra.mxu0 %v8889
        %9311 = vmatprep.subr.bf16.mxu0 %v8894
        %9312 = vmatpush1.bf16.msra.mxu0 %v8893
        %9313 = vmatprep.subr.bf16.mxu0 %v8898
        %9314 = vmatpush1.bf16.msra.mxu0 %v8897
        %9315 = vmatprep.subr.bf16.mxu0 %v8902
        %9316 = vmatpush1.bf16.msra.mxu0 %v8901
        %9317 = vmatprep.subr.bf16.mxu0 %v8906
        %9318 = vmatpush1.bf16.msra.mxu0 %v8905
        %9319 = vmatprep.subr.bf16.mxu0 %v8910
        %9320 = vmatpush1.bf16.msra.mxu0 %v8909
        %9321 = vmatprep.subr.bf16.mxu0 %v8914
        %9322 = vmatpush1.bf16.msra.mxu0 %v8913
        %9323 = vmatprep.subr.bf16.mxu0 %v8918
        %9324 = vmatpush1.bf16.msra.mxu0 %v8917
        %9325 = vmatprep.subr.bf16.mxu0 %v8922
        %9326 = vmatpush1.bf16.msra.mxu0 %v8921
        %9327 = vmatprep.subr.bf16.mxu0 %v8926
        %9328 = vmatpush1.bf16.msra.mxu0 %v8925
        %9329 = vmatprep.subr.bf16.mxu0 %v8930
        %9330 = vmatpush1.bf16.msra.mxu0 %v8929
        %9331 = vmatprep.subr.bf16.mxu0 %v8934
        %9332 = vmatpush1.bf16.msra.mxu0 %v8933
        %9333 = vmatprep.subr.bf16.mxu0 %v8938
        %9334 = vmatpush1.bf16.msra.mxu0 %v8937
        %9335 = vmatprep.mubr.bf16.mxu0 %v8322
        %9336 = vmatmul.mubr.bf16.gmra.mrb[0].mxu0 %v8319
        %v9337 = vpop.f32.mrb[0].mxu0
        %v9338 = vadd.f32 %v9295, %v9337
        %v9339 = vpop.f32.mrb[0].mxu0
        %v9340 = vadd.f32 %v9297, %v9339
        %v9341 = vpop.f32.mrb[0].mxu0
        %v9342 = vadd.f32 %v9299, %v9341
        %v9343 = vpop.f32.mrb[0].mxu0
        %v9344 = vadd.f32 %v9301, %v9343
        %9345 = vdwg.mxu0
        %9346 = vmatprep.subr.bf16.mxu0 %v8942
        %9347 = vmatpush1.bf16.msra.mxu0 %v8941
        %9348 = vmatprep.subr.bf16.mxu0 %v8946
        %9349 = vmatpush1.bf16.msra.mxu0 %v8945
        %9350 = vmatprep.subr.bf16.mxu0 %v8950
        %9351 = vmatpush1.bf16.msra.mxu0 %v8949
        %9352 = vmatprep.subr.bf16.mxu0 %v8954
        %9353 = vmatpush1.bf16.msra.mxu0 %v8953
        %9354 = vmatprep.subr.bf16.mxu0 %v8958
        %9355 = vmatpush1.bf16.msra.mxu0 %v8957
        %9356 = vmatprep.subr.bf16.mxu0 %v8962
        %9357 = vmatpush1.bf16.msra.mxu0 %v8961
        %9358 = vmatprep.subr.bf16.mxu0 %v8966
        %9359 = vmatpush1.bf16.msra.mxu0 %v8965
        %9360 = vmatprep.subr.bf16.mxu0 %v8970
        %9361 = vmatpush1.bf16.msra.mxu0 %v8969
        %9362 = vmatprep.subr.bf16.mxu0 0
        %9363 = vmatpush1.bf16.msra.mxu0 0
        %9364 = vmatprep.subr.bf16.mxu0 0
        %9365 = vmatpush1.bf16.msra.mxu0 0
        %9366 = vmatprep.subr.bf16.mxu0 0
        %9367 = vmatpush1.bf16.msra.mxu0 0
        %9368 = vmatprep.subr.bf16.mxu0 0
        %9369 = vmatpush1.bf16.msra.mxu0 0
        %9370 = vmatprep.subr.bf16.mxu0 0
        %9371 = vmatpush1.bf16.msra.mxu0 0
        %9372 = vmatprep.subr.bf16.mxu0 0
        %9373 = vmatpush1.bf16.msra.mxu0 0
        %9374 = vmatprep.subr.bf16.mxu0 0
        %9375 = vmatpush1.bf16.msra.mxu0 0
        %9376 = vmatprep.subr.bf16.mxu0 0
        %9377 = vmatpush1.bf16.msra.mxu0 0
        %9378 = vmatprep.mubr.bf16.mxu0 0
        %9379 = vmatmul.mubr.bf16.gmra.mrb[0].mxu0 %v8325
        %v9380 = vpop.f32.mrb[0].mxu0
        %v9381 = vadd.f32 %v9338, %v9380
        %v9382 = vpop.f32.mrb[0].mxu0
        %v9383 = vadd.f32 %v9340, %v9382
        %v9384 = vpop.f32.mrb[0].mxu0
        %v9385 = vadd.f32 %v9342, %v9384
        %v9386 = vpop.f32.mrb[0].mxu0
        %v9387 = vadd.f32 %v9344, %v9386
        %9388 = vdwg.mxu0
        %v9389 = vadd.f32 %v8141, %v9252
        %v9390 = vadd.f32 %v8142, %v9254
        %v9391 = vadd.f32 %v8143, %v9381
        %v9392 = vadd.f32 %v8144, %v9383
        %v9393 = vadd.f32 %v8145, %v9256
        %v9394 = vadd.f32 %v8146, %v9258
        %v9395 = vadd.f32 %v8147, %v9385
        %v9396 = vadd.f32 %v8148, %v9387
        %v9405 = vrot.slane %v9389, 7
        %v9406 = vrot.slane %v9390, 7
        %v9407 = vrot.slane %v9391, 7
        %v9408 = vrot.slane %v9392, 7
        %v9409 = vrot.slane %v9393, 7
        %v9410 = vsel %vm567, %v9405, %v9409
        %v9411 = vrot.slane %v9394, 7
        %v9412 = vsel %vm567, %v9406, %v9411
        %v9413 = vrot.slane %v9395, 7
        %v9414 = vsel %vm567, %v9407, %v9413
        %v9415 = vrot.slane %v9396, 7
        %v9416 = vsel %vm567, %v9408, %v9415
        %v9429 = vsel %vm567, 0.0, %v9405
        %v9430 = vsel %vm567, 0.0, %v9406
        %v9431 = vsel %vm567, 0.0, %v9407
        %v9432 = vsel %vm567, 0.0, %v9408
        %v9433 = vsel %vm567, %v9409, 0.0
        %v9434 = vsel %vm567, %v9411, 0.0
        %v9435 = vsel %vm567, %v9413, 0.0
        %v9436 = vsel %vm567, %v9415, 0.0
        %v9437 = vpack.c.bf16 %v9410, %v9429
        %v9438 = vpack.c.bf16 %v9412, %v9430
        %v9439 = vpack.c.bf16 %v9414, %v9431
        %v9440 = vpack.c.bf16 %v9416, %v9432
        %v9441 = vpack.c.bf16 %v9433, %v9433
        %v9442 = vpack.c.bf16 %v9434, %v9434
        %v9443 = vpack.c.bf16 %v9435, %v9435
        %v9444 = vpack.c.bf16 %v9436, %v9436
        %v9445 = vld [vmem:[#allocation10] sm:$0xff]
        %v9446 = vld [vmem:[#allocation10 + $0x8] sm:$0xff]
        %v9447 = vld [vmem:[#allocation10 + $0x10] sm:$0xff]
        %v9448 = vld [vmem:[#allocation10 + $0x18] sm:$0xff]
        %v9449 = vld [vmem:[#allocation10 + $0x20] sm:$0xff]
        %v9450 = vld [vmem:[#allocation10 + $0x28] sm:$0xff]
        %v9451 = vld [vmem:[#allocation10 + $0x30] sm:$0xff]
        %v9452 = vld [vmem:[#allocation10 + $0x38] sm:$0xff]
        %v9453 = vld [vmem:[#allocation10 + $0x40] sm:$0xff]
        %v9454 = vld [vmem:[#allocation10 + $0x48] sm:$0xff]
        %v9455 = vld [vmem:[#allocation10 + $0x50] sm:$0xff]
        %v9456 = vld [vmem:[#allocation10 + $0x58] sm:$0xff]
        %v9457 = vld [vmem:[#allocation10 + $0x60] sm:$0xff]
        %v9458 = vld [vmem:[#allocation10 + $0x68] sm:$0xff]
        %v9459 = vld [vmem:[#allocation10 + $0x70] sm:$0xff]
        %v9460 = vld [vmem:[#allocation10 + $0x78] sm:$0xff]
        %v9461 = vld [vmem:[#allocation10 + $0x80] sm:$0xff]
        %v9462 = vld [vmem:[#allocation10 + $0x88] sm:$0xff]
        %v9463 = vld [vmem:[#allocation10 + $0x90] sm:$0xff]
        %v9464 = vld [vmem:[#allocation10 + $0x98] sm:$0xff]
        %v9465 = vld [vmem:[#allocation10 + $0xa0] sm:$0xff]
        %v9466 = vld [vmem:[#allocation10 + $0xa8] sm:$0xff]
        %v9467 = vld [vmem:[#allocation10 + $0xb0] sm:$0xff]
        %v9468 = vld [vmem:[#allocation10 + $0xb8] sm:$0xff]
        %v9469 = vld [vmem:[#allocation10 + $0xc0] sm:$0xff]
        %v9470 = vld [vmem:[#allocation10 + $0xc8] sm:$0xff]
        %v9471 = vld [vmem:[#allocation10 + $0xd0] sm:$0xff]
        %v9472 = vld [vmem:[#allocation10 + $0xd8] sm:$0xff]
        %v9473 = vld [vmem:[#allocation10 + $0xe0] sm:$0xff]
        %v9474 = vld [vmem:[#allocation10 + $0xe8] sm:$0xff]
        %v9475 = vld [vmem:[#allocation10 + $0xf0] sm:$0xff]
        %v9476 = vld [vmem:[#allocation10 + $0xf8] sm:$0xff]
        %v9477 = vld [vmem:[#allocation10 + $0x100] sm:$0xff]
        %v9478 = vld [vmem:[#allocation10 + $0x108] sm:$0xff]
        %v9479 = vld [vmem:[#allocation10 + $0x110] sm:$0xff]
        %v9480 = vld [vmem:[#allocation10 + $0x118] sm:$0xff]
        %v9481 = vld [vmem:[#allocation10 + $0x120] sm:$0xff]
        %v9482 = vld [vmem:[#allocation10 + $0x128] sm:$0xff]
        %v9483 = vld [vmem:[#allocation10 + $0x130] sm:$0xff]
        %v9484 = vld [vmem:[#allocation10 + $0x138] sm:$0xff]
        %v9485 = vld [vmem:[#allocation10 + $0x140] sm:$0xff]
        %v9486 = vld [vmem:[#allocation10 + $0x148] sm:$0xff]
        %v9487 = vld [vmem:[#allocation10 + $0x150] sm:$0xff]
        %v9488 = vld [vmem:[#allocation10 + $0x158] sm:$0xff]
        %v9489 = vld [vmem:[#allocation10 + $0x160] sm:$0xff]
        %v9490 = vld [vmem:[#allocation10 + $0x168] sm:$0xff]
        %v9491 = vld [vmem:[#allocation10 + $0x170] sm:$0xff]
        %v9492 = vld [vmem:[#allocation10 + $0x178] sm:$0xff]
        %v9493 = vld [vmem:[#allocation10 + $0x180] sm:$0xff]
        %v9494 = vld [vmem:[#allocation10 + $0x188] sm:$0xff]
        %v9495 = vld [vmem:[#allocation10 + $0x190] sm:$0xff]
        %v9496 = vld [vmem:[#allocation10 + $0x198] sm:$0xff]
        %v9497 = vld [vmem:[#allocation10 + $0x1a0] sm:$0xff]
        %v9498 = vld [vmem:[#allocation10 + $0x1a8] sm:$0xff]
        %v9499 = vld [vmem:[#allocation10 + $0x1b0] sm:$0xff]
        %v9500 = vld [vmem:[#allocation10 + $0x1b8] sm:$0xff]
        %v9501 = vld [vmem:[#allocation10 + $0x1c0] sm:$0xff]
        %v9502 = vld [vmem:[#allocation10 + $0x1c8] sm:$0xff]
        %v9503 = vld [vmem:[#allocation10 + $0x1d0] sm:$0xff]
        %v9504 = vld [vmem:[#allocation10 + $0x1d8] sm:$0xff]
        %v9505 = vld [vmem:[#allocation10 + $0x1e0] sm:$0xff]
        %v9506 = vld [vmem:[#allocation10 + $0x1e8] sm:$0xff]
        %v9507 = vld [vmem:[#allocation10 + $0x1f0] sm:$0xff]
        %v9508 = vld [vmem:[#allocation10 + $0x1f8] sm:$0xff]
        %v9509 = vld [vmem:[#allocation10 + $0x200] sm:$0xff]
        %v9510 = vld [vmem:[#allocation10 + $0x208] sm:$0xff]
        %v9511 = vld [vmem:[#allocation10 + $0x210] sm:$0xff]
        %v9512 = vld [vmem:[#allocation10 + $0x218] sm:$0xff]
        %v9513 = vld [vmem:[#allocation10 + $0x220] sm:$0xff]
        %v9514 = vld [vmem:[#allocation10 + $0x228] sm:$0xff]
        %v9515 = vld [vmem:[#allocation10 + $0x230] sm:$0xff]
        %v9516 = vld [vmem:[#allocation10 + $0x238] sm:$0xff]
        %v9517 = vld [vmem:[#allocation10 + $0x240] sm:$0xff]
        %v9518 = vld [vmem:[#allocation10 + $0x248] sm:$0xff]
        %v9519 = vld [vmem:[#allocation10 + $0x250] sm:$0xff]
        %v9520 = vld [vmem:[#allocation10 + $0x258] sm:$0xff]
        %v9521 = vld [vmem:[#allocation10 + $0x260] sm:$0xff]
        %v9522 = vld [vmem:[#allocation10 + $0x268] sm:$0xff]
        %v9523 = vld [vmem:[#allocation10 + $0x270] sm:$0xff]
        %v9524 = vld [vmem:[#allocation10 + $0x278] sm:$0xff]
        %v9525 = vld [vmem:[#allocation10 + $0x280] sm:$0xff]
        %v9526 = vld [vmem:[#allocation10 + $0x288] sm:$0xff]
        %v9527 = vld [vmem:[#allocation10 + $0x290] sm:$0xff]
        %v9528 = vld [vmem:[#allocation10 + $0x298] sm:$0xff]
        %v9529 = vld [vmem:[#allocation10 + $0x2a0] sm:$0xff]
        %v9530 = vld [vmem:[#allocation10 + $0x2a8] sm:$0xff]
        %v9531 = vld [vmem:[#allocation10 + $0x2b0] sm:$0xff]
        %v9532 = vld [vmem:[#allocation10 + $0x2b8] sm:$0xff]
        %v9533 = vld [vmem:[#allocation10 + $0x2c0] sm:$0xff]
        %v9534 = vld [vmem:[#allocation10 + $0x2c8] sm:$0xff]
        %v9535 = vld [vmem:[#allocation10 + $0x2d0] sm:$0xff]
        %v9536 = vld [vmem:[#allocation10 + $0x2d8] sm:$0xff]
        %v9537 = vld [vmem:[#allocation10 + $0x2e0] sm:$0xff]
        %v9538 = vld [vmem:[#allocation10 + $0x2e8] sm:$0xff]
        %v9539 = vld [vmem:[#allocation10 + $0x2f0] sm:$0xff]
        %v9540 = vld [vmem:[#allocation10 + $0x2f8] sm:$0xff]
        %v9541 = vld [vmem:[#allocation10 + $0x300] sm:$0xff]
        %v9542 = vld [vmem:[#allocation10 + $0x308] sm:$0xff]
        %v9543 = vld [vmem:[#allocation10 + $0x310] sm:$0xff]
        %v9544 = vld [vmem:[#allocation10 + $0x318] sm:$0xff]
        %v9545 = vld [vmem:[#allocation10 + $0x320] sm:$0xff]
        %v9546 = vld [vmem:[#allocation10 + $0x328] sm:$0xff]
        %v9547 = vld [vmem:[#allocation10 + $0x330] sm:$0xff]
        %v9548 = vld [vmem:[#allocation10 + $0x338] sm:$0xff]
        %v9549 = vld [vmem:[#allocation10 + $0x340] sm:$0xff]
        %v9550 = vld [vmem:[#allocation10 + $0x348] sm:$0xff]
        %v9551 = vld [vmem:[#allocation10 + $0x350] sm:$0xff]
        %v9552 = vld [vmem:[#allocation10 + $0x358] sm:$0xff]
        %v9553 = vld [vmem:[#allocation10 + $0x360] sm:$0xff]
        %v9554 = vld [vmem:[#allocation10 + $0x368] sm:$0xff]
        %v9555 = vld [vmem:[#allocation10 + $0x370] sm:$0xff]
        %v9556 = vld [vmem:[#allocation10 + $0x378] sm:$0xff]
        %v9557 = vld [vmem:[#allocation10 + $0x380] sm:$0xff]
        %v9558 = vld [vmem:[#allocation10 + $0x388] sm:$0xff]
        %v9559 = vld [vmem:[#allocation10 + $0x390] sm:$0xff]
        %v9560 = vld [vmem:[#allocation10 + $0x398] sm:$0xff]
        %v9561 = vld [vmem:[#allocation10 + $0x3a0] sm:$0xff]
        %v9562 = vld [vmem:[#allocation10 + $0x3a8] sm:$0xff]
        %v9563 = vld [vmem:[#allocation10 + $0x3b0] sm:$0xff]
        %v9564 = vld [vmem:[#allocation10 + $0x3b8] sm:$0xff]
        %v9565 = vld [vmem:[#allocation10 + $0x3c0] sm:$0xff]
        %v9566 = vld [vmem:[#allocation10 + $0x3c8] sm:$0xff]
        %v9567 = vld [vmem:[#allocation10 + $0x3d0] sm:$0xff]
        %v9568 = vld [vmem:[#allocation10 + $0x3d8] sm:$0xff]
        %v9569 = vld [vmem:[#allocation10 + $0x3e0] sm:$0xff]
        %v9570 = vld [vmem:[#allocation10 + $0x3e8] sm:$0xff]
        %v9571 = vld [vmem:[#allocation10 + $0x3f0] sm:$0xff]
        %v9572 = vld [vmem:[#allocation10 + $0x3f8] sm:$0xff]
        %s9573 = scalar_lea.vmem [#allocation10], 1024
        %v9574 = vld [vmem:[%s9573] sm:$0xff]
        %v9575 = vld [vmem:[%s9573 + $0x8] sm:$0xff]
        %v9576 = vld [vmem:[%s9573 + $0x10] sm:$0xff]
        %v9577 = vld [vmem:[%s9573 + $0x18] sm:$0xff]
        %v9578 = vld [vmem:[%s9573 + $0x20] sm:$0xff]
        %v9579 = vld [vmem:[%s9573 + $0x28] sm:$0xff]
        %v9580 = vld [vmem:[%s9573 + $0x30] sm:$0xff]
        %v9581 = vld [vmem:[%s9573 + $0x38] sm:$0xff]
        %v9582 = vld [vmem:[%s9573 + $0x40] sm:$0xff]
        %v9583 = vld [vmem:[%s9573 + $0x48] sm:$0xff]
        %v9584 = vld [vmem:[%s9573 + $0x50] sm:$0xff]
        %v9585 = vld [vmem:[%s9573 + $0x58] sm:$0xff]
        %v9586 = vld [vmem:[%s9573 + $0x60] sm:$0xff]
        %v9587 = vld [vmem:[%s9573 + $0x68] sm:$0xff]
        %v9588 = vld [vmem:[%s9573 + $0x70] sm:$0xff]
        %v9589 = vld [vmem:[%s9573 + $0x78] sm:$0xff]
        %v9590 = vld [vmem:[%s9573 + $0x80] sm:$0xff]
        %v9591 = vld [vmem:[%s9573 + $0x88] sm:$0xff]
        %v9592 = vld [vmem:[%s9573 + $0x90] sm:$0xff]
        %v9593 = vld [vmem:[%s9573 + $0x98] sm:$0xff]
        %v9594 = vld [vmem:[%s9573 + $0xa0] sm:$0xff]
        %v9595 = vld [vmem:[%s9573 + $0xa8] sm:$0xff]
        %v9596 = vld [vmem:[%s9573 + $0xb0] sm:$0xff]
        %v9597 = vld [vmem:[%s9573 + $0xb8] sm:$0xff]
        %v9598 = vld [vmem:[%s9573 + $0xc0] sm:$0xff]
        %v9599 = vld [vmem:[%s9573 + $0xc8] sm:$0xff]
        %v9600 = vld [vmem:[%s9573 + $0xd0] sm:$0xff]
        %v9601 = vld [vmem:[%s9573 + $0xd8] sm:$0xff]
        %v9602 = vld [vmem:[%s9573 + $0xe0] sm:$0xff]
        %v9603 = vld [vmem:[%s9573 + $0xe8] sm:$0xff]
        %v9604 = vld [vmem:[%s9573 + $0xf0] sm:$0xff]
        %v9605 = vld [vmem:[%s9573 + $0xf8] sm:$0xff]
        %v9606 = vld [vmem:[%s9573 + $0x100] sm:$0xff]
        %v9607 = vld [vmem:[%s9573 + $0x108] sm:$0xff]
        %v9608 = vld [vmem:[%s9573 + $0x110] sm:$0xff]
        %v9609 = vld [vmem:[%s9573 + $0x118] sm:$0xff]
        %v9610 = vld [vmem:[%s9573 + $0x120] sm:$0xff]
        %v9611 = vld [vmem:[%s9573 + $0x128] sm:$0xff]
        %v9612 = vld [vmem:[%s9573 + $0x130] sm:$0xff]
        %v9613 = vld [vmem:[%s9573 + $0x138] sm:$0xff]
        %v9614 = vld [vmem:[%s9573 + $0x140] sm:$0xff]
        %v9615 = vld [vmem:[%s9573 + $0x148] sm:$0xff]
        %v9616 = vld [vmem:[%s9573 + $0x150] sm:$0xff]
        %v9617 = vld [vmem:[%s9573 + $0x158] sm:$0xff]
        %v9618 = vld [vmem:[%s9573 + $0x160] sm:$0xff]
        %v9619 = vld [vmem:[%s9573 + $0x168] sm:$0xff]
        %v9620 = vld [vmem:[%s9573 + $0x170] sm:$0xff]
        %v9621 = vld [vmem:[%s9573 + $0x178] sm:$0xff]
        %v9622 = vld [vmem:[%s9573 + $0x180] sm:$0xff]
        %v9623 = vld [vmem:[%s9573 + $0x188] sm:$0xff]
        %v9624 = vld [vmem:[%s9573 + $0x190] sm:$0xff]
        %v9625 = vld [vmem:[%s9573 + $0x198] sm:$0xff]
        %v9626 = vld [vmem:[%s9573 + $0x1a0] sm:$0xff]
        %v9627 = vld [vmem:[%s9573 + $0x1a8] sm:$0xff]
        %v9628 = vld [vmem:[%s9573 + $0x1b0] sm:$0xff]
        %v9629 = vld [vmem:[%s9573 + $0x1b8] sm:$0xff]
        %v9630 = vld [vmem:[%s9573 + $0x1c0] sm:$0xff]
        %v9631 = vld [vmem:[%s9573 + $0x1c8] sm:$0xff]
        %v9632 = vld [vmem:[%s9573 + $0x1d0] sm:$0xff]
        %v9633 = vld [vmem:[%s9573 + $0x1d8] sm:$0xff]
        %v9634 = vld [vmem:[%s9573 + $0x1e0] sm:$0xff]
        %v9635 = vld [vmem:[%s9573 + $0x1e8] sm:$0xff]
        %v9636 = vld [vmem:[%s9573 + $0x1f0] sm:$0xff]
        %v9637 = vld [vmem:[%s9573 + $0x1f8] sm:$0xff]
        %v9638 = vld [vmem:[%s9573 + $0x200] sm:$0xff]
        %v9639 = vld [vmem:[%s9573 + $0x208] sm:$0xff]
        %v9640 = vld [vmem:[%s9573 + $0x210] sm:$0xff]
        %v9641 = vld [vmem:[%s9573 + $0x218] sm:$0xff]
        %v9642 = vld [vmem:[%s9573 + $0x220] sm:$0xff]
        %v9643 = vld [vmem:[%s9573 + $0x228] sm:$0xff]
        %v9644 = vld [vmem:[%s9573 + $0x230] sm:$0xff]
        %v9645 = vld [vmem:[%s9573 + $0x238] sm:$0xff]
        %v9646 = vld [vmem:[%s9573 + $0x240] sm:$0xff]
        %v9647 = vld [vmem:[%s9573 + $0x248] sm:$0xff]
        %v9648 = vld [vmem:[%s9573 + $0x250] sm:$0xff]
        %v9649 = vld [vmem:[%s9573 + $0x258] sm:$0xff]
        %v9650 = vld [vmem:[%s9573 + $0x260] sm:$0xff]
        %v9651 = vld [vmem:[%s9573 + $0x268] sm:$0xff]
        %v9652 = vld [vmem:[%s9573 + $0x270] sm:$0xff]
        %v9653 = vld [vmem:[%s9573 + $0x278] sm:$0xff]
        %v9654 = vld [vmem:[%s9573 + $0x280] sm:$0xff]
        %v9655 = vld [vmem:[%s9573 + $0x288] sm:$0xff]
        %v9656 = vld [vmem:[%s9573 + $0x290] sm:$0xff]
        %v9657 = vld [vmem:[%s9573 + $0x298] sm:$0xff]
        %v9658 = vld [vmem:[%s9573 + $0x2a0] sm:$0xff]
        %v9659 = vld [vmem:[%s9573 + $0x2a8] sm:$0xff]
        %v9660 = vld [vmem:[%s9573 + $0x2b0] sm:$0xff]
        %v9661 = vld [vmem:[%s9573 + $0x2b8] sm:$0xff]
        %v9662 = vld [vmem:[%s9573 + $0x2c0] sm:$0xff]
        %v9663 = vld [vmem:[%s9573 + $0x2c8] sm:$0xff]
        %v9664 = vld [vmem:[%s9573 + $0x2d0] sm:$0xff]
        %v9665 = vld [vmem:[%s9573 + $0x2d8] sm:$0xff]
        %v9666 = vld [vmem:[%s9573 + $0x2e0] sm:$0xff]
        %v9667 = vld [vmem:[%s9573 + $0x2e8] sm:$0xff]
        %v9668 = vld [vmem:[%s9573 + $0x2f0] sm:$0xff]
        %v9669 = vld [vmem:[%s9573 + $0x2f8] sm:$0xff]
        %v9670 = vld [vmem:[%s9573 + $0x300] sm:$0xff]
        %v9671 = vld [vmem:[%s9573 + $0x308] sm:$0xff]
        %v9672 = vld [vmem:[%s9573 + $0x310] sm:$0xff]
        %v9673 = vld [vmem:[%s9573 + $0x318] sm:$0xff]
        %v9674 = vld [vmem:[%s9573 + $0x320] sm:$0xff]
        %v9675 = vld [vmem:[%s9573 + $0x328] sm:$0xff]
        %v9676 = vld [vmem:[%s9573 + $0x330] sm:$0xff]
        %v9677 = vld [vmem:[%s9573 + $0x338] sm:$0xff]
        %v9678 = vld [vmem:[%s9573 + $0x340] sm:$0xff]
        %v9679 = vld [vmem:[%s9573 + $0x348] sm:$0xff]
        %v9680 = vld [vmem:[%s9573 + $0x350] sm:$0xff]
        %v9681 = vld [vmem:[%s9573 + $0x358] sm:$0xff]
        %v9682 = vld [vmem:[%s9573 + $0x360] sm:$0xff]
        %v9683 = vld [vmem:[%s9573 + $0x368] sm:$0xff]
        %v9684 = vld [vmem:[%s9573 + $0x370] sm:$0xff]
        %v9685 = vld [vmem:[%s9573 + $0x378] sm:$0xff]
        %v9686 = vld [vmem:[%s9573 + $0x380] sm:$0xff]
        %v9687 = vld [vmem:[%s9573 + $0x388] sm:$0xff]
        %v9688 = vld [vmem:[%s9573 + $0x390] sm:$0xff]
        %v9689 = vld [vmem:[%s9573 + $0x398] sm:$0xff]
        %v9690 = vld [vmem:[%s9573 + $0x3a0] sm:$0xff]
        %v9691 = vld [vmem:[%s9573 + $0x3a8] sm:$0xff]
        %v9692 = vld [vmem:[%s9573 + $0x3b0] sm:$0xff]
        %v9693 = vld [vmem:[%s9573 + $0x3b8] sm:$0xff]
        %v9694 = vld [vmem:[%s9573 + $0x3c0] sm:$0xff]
        %v9695 = vld [vmem:[%s9573 + $0x3c8] sm:$0xff]
        %v9696 = vld [vmem:[%s9573 + $0x3d0] sm:$0xff]
        %v9697 = vld [vmem:[%s9573 + $0x3d8] sm:$0xff]
        %v9698 = vld [vmem:[%s9573 + $0x3e0] sm:$0xff]
        %v9699 = vld [vmem:[%s9573 + $0x3e8] sm:$0xff]
        %v9700 = vld [vmem:[%s9573 + $0x3f0] sm:$0xff]
        %v9701 = vld [vmem:[%s9573 + $0x3f8] sm:$0xff]
        %v9703 = vshrl.u32 %v9437, 16
        %v9705 = vshll.u32 %v9437, 16
        %v9707 = vrot.slane %v9705, 1
        %v9708 = vor.u32 %v9703, %v9707
        %v9710 = vshll.u32 %v9441, 16
        %v9712 = vrot.slane %v9710, 1
        %v9713 = vsel %vm4481, %v9708, %v9712
        %v9715 = vshrl.u32 %v9438, 16
        %v9717 = vshll.u32 %v9438, 16
        %v9719 = vrot.slane %v9717, 1
        %v9720 = vor.u32 %v9715, %v9719
        %v9722 = vshll.u32 %v9442, 16
        %v9724 = vrot.slane %v9722, 1
        %v9725 = vsel %vm4481, %v9720, %v9724
        %v9727 = vshrl.u32 %v9439, 16
        %v9729 = vshll.u32 %v9439, 16
        %v9731 = vrot.slane %v9729, 1
        %v9732 = vor.u32 %v9727, %v9731
        %v9734 = vshll.u32 %v9443, 16
        %v9736 = vrot.slane %v9734, 1
        %v9737 = vsel %vm4481, %v9732, %v9736
        %v9739 = vshrl.u32 %v9440, 16
        %v9741 = vshll.u32 %v9440, 16
        %v9743 = vrot.slane %v9741, 1
        %v9744 = vor.u32 %v9739, %v9743
        %v9746 = vshll.u32 %v9444, 16
        %v9748 = vrot.slane %v9746, 1
        %v9749 = vsel %vm4481, %v9744, %v9748
        %v9882 = vunpack.c.l.b16 %v9574
        %v9883 = vunpack.c.h.b16 %v9574
        %v9884 = vunpack.c.l.b16 %v9575
        %v9885 = vunpack.c.h.b16 %v9575
        %v9886 = vunpack.c.l.b16 %v9576
        %v9887 = vunpack.c.h.b16 %v9576
        %v9888 = vunpack.c.l.b16 %v9577
        %v9889 = vunpack.c.h.b16 %v9577
        %v9890 = vunpack.c.l.b16 %v9578
        %v9891 = vunpack.c.h.b16 %v9578
        %v9892 = vunpack.c.l.b16 %v9579
        %v9893 = vunpack.c.h.b16 %v9579
        %v9894 = vunpack.c.l.b16 %v9580
        %v9895 = vunpack.c.h.b16 %v9580
        %v9896 = vunpack.c.l.b16 %v9581
        %v9897 = vunpack.c.h.b16 %v9581
        %v9898 = vunpack.c.l.b16 %v9582
        %v9899 = vunpack.c.h.b16 %v9582
        %v9900 = vunpack.c.l.b16 %v9583
        %v9901 = vunpack.c.h.b16 %v9583
        %v9902 = vunpack.c.l.b16 %v9584
        %v9903 = vunpack.c.h.b16 %v9584
        %v9904 = vunpack.c.l.b16 %v9585
        %v9905 = vunpack.c.h.b16 %v9585
        %v9906 = vunpack.c.l.b16 %v9586
        %v9907 = vunpack.c.h.b16 %v9586
        %v9908 = vunpack.c.l.b16 %v9587
        %v9909 = vunpack.c.h.b16 %v9587
        %v9910 = vunpack.c.l.b16 %v9588
        %v9911 = vunpack.c.h.b16 %v9588
        %v9912 = vunpack.c.l.b16 %v9589
        %v9913 = vunpack.c.h.b16 %v9589
        %v9914 = vunpack.c.l.b16 %v9590
        %v9915 = vunpack.c.h.b16 %v9590
        %v9916 = vunpack.c.l.b16 %v9591
        %v9917 = vunpack.c.h.b16 %v9591
        %v9918 = vunpack.c.l.b16 %v9592
        %v9919 = vunpack.c.h.b16 %v9592
        %v9920 = vunpack.c.l.b16 %v9593
        %v9921 = vunpack.c.h.b16 %v9593
        %v9922 = vunpack.c.l.b16 %v9594
        %v9923 = vunpack.c.h.b16 %v9594
        %v9924 = vunpack.c.l.b16 %v9595
        %v9925 = vunpack.c.h.b16 %v9595
        %v9926 = vunpack.c.l.b16 %v9596
        %v9927 = vunpack.c.h.b16 %v9596
        %v9928 = vunpack.c.l.b16 %v9597
        %v9929 = vunpack.c.h.b16 %v9597
        %v9930 = vunpack.c.l.b16 %v9598
        %v9931 = vunpack.c.h.b16 %v9598
        %v9932 = vunpack.c.l.b16 %v9599
        %v9933 = vunpack.c.h.b16 %v9599
        %v9934 = vunpack.c.l.b16 %v9600
        %v9935 = vunpack.c.h.b16 %v9600
        %v9936 = vunpack.c.l.b16 %v9601
        %v9937 = vunpack.c.h.b16 %v9601
        %v9938 = vunpack.c.l.b16 %v9602
        %v9939 = vunpack.c.h.b16 %v9602
        %v9940 = vunpack.c.l.b16 %v9603
        %v9941 = vunpack.c.h.b16 %v9603
        %v9942 = vunpack.c.l.b16 %v9604
        %v9943 = vunpack.c.h.b16 %v9604
        %v9944 = vunpack.c.l.b16 %v9605
        %v9945 = vunpack.c.h.b16 %v9605
        %v9946 = vunpack.c.l.b16 %v9606
        %v9947 = vunpack.c.h.b16 %v9606
        %v9948 = vunpack.c.l.b16 %v9607
        %v9949 = vunpack.c.h.b16 %v9607
        %v9950 = vunpack.c.l.b16 %v9608
        %v9951 = vunpack.c.h.b16 %v9608
        %v9952 = vunpack.c.l.b16 %v9609
        %v9953 = vunpack.c.h.b16 %v9609
        %v9954 = vunpack.c.l.b16 %v9610
        %v9955 = vunpack.c.h.b16 %v9610
        %v9956 = vunpack.c.l.b16 %v9611
        %v9957 = vunpack.c.h.b16 %v9611
        %v9958 = vunpack.c.l.b16 %v9612
        %v9959 = vunpack.c.h.b16 %v9612
        %v9960 = vunpack.c.l.b16 %v9613
        %v9961 = vunpack.c.h.b16 %v9613
        %v9962 = vunpack.c.l.b16 %v9614
        %v9963 = vunpack.c.h.b16 %v9614
        %v9964 = vunpack.c.l.b16 %v9615
        %v9965 = vunpack.c.h.b16 %v9615
        %v9966 = vunpack.c.l.b16 %v9616
        %v9967 = vunpack.c.h.b16 %v9616
        %v9968 = vunpack.c.l.b16 %v9617
        %v9969 = vunpack.c.h.b16 %v9617
        %v9970 = vunpack.c.l.b16 %v9618
        %v9971 = vunpack.c.h.b16 %v9618
        %v9972 = vunpack.c.l.b16 %v9619
        %v9973 = vunpack.c.h.b16 %v9619
        %v9974 = vunpack.c.l.b16 %v9620
        %v9975 = vunpack.c.h.b16 %v9620
        %v9976 = vunpack.c.l.b16 %v9621
        %v9977 = vunpack.c.h.b16 %v9621
        %v9978 = vunpack.c.l.b16 %v9622
        %v9979 = vunpack.c.h.b16 %v9622
        %v9980 = vunpack.c.l.b16 %v9623
        %v9981 = vunpack.c.h.b16 %v9623
        %v9982 = vunpack.c.l.b16 %v9624
        %v9983 = vunpack.c.h.b16 %v9624
        %v9984 = vunpack.c.l.b16 %v9625
        %v9985 = vunpack.c.h.b16 %v9625
        %v9986 = vunpack.c.l.b16 %v9626
        %v9987 = vunpack.c.h.b16 %v9626
        %v9988 = vunpack.c.l.b16 %v9627
        %v9989 = vunpack.c.h.b16 %v9627
        %v9990 = vunpack.c.l.b16 %v9628
        %v9991 = vunpack.c.h.b16 %v9628
        %v9992 = vunpack.c.l.b16 %v9629
        %v9993 = vunpack.c.h.b16 %v9629
        %v9994 = vunpack.c.l.b16 %v9630
        %v9995 = vunpack.c.h.b16 %v9630
        %v9996 = vunpack.c.l.b16 %v9631
        %v9997 = vunpack.c.h.b16 %v9631
        %v9998 = vunpack.c.l.b16 %v9632
        %v9999 = vunpack.c.h.b16 %v9632
        %v10000 = vunpack.c.l.b16 %v9633
        %v10001 = vunpack.c.h.b16 %v9633
        %v10002 = vunpack.c.l.b16 %v9634
        %v10003 = vunpack.c.h.b16 %v9634
        %v10004 = vunpack.c.l.b16 %v9635
        %v10005 = vunpack.c.h.b16 %v9635
        %v10006 = vunpack.c.l.b16 %v9636
        %v10007 = vunpack.c.h.b16 %v9636
        %v10008 = vunpack.c.l.b16 %v9637
        %v10009 = vunpack.c.h.b16 %v9637
        %v10010 = vunpack.c.l.b16 %v9638
        %v10011 = vunpack.c.h.b16 %v9638
        %v10012 = vunpack.c.l.b16 %v9639
        %v10013 = vunpack.c.h.b16 %v9639
        %v10014 = vunpack.c.l.b16 %v9640
        %v10015 = vunpack.c.h.b16 %v9640
        %v10016 = vunpack.c.l.b16 %v9641
        %v10017 = vunpack.c.h.b16 %v9641
        %v10018 = vunpack.c.l.b16 %v9642
        %v10019 = vunpack.c.h.b16 %v9642
        %v10020 = vunpack.c.l.b16 %v9643
        %v10021 = vunpack.c.h.b16 %v9643
        %v10022 = vunpack.c.l.b16 %v9644
        %v10023 = vunpack.c.h.b16 %v9644
        %v10024 = vunpack.c.l.b16 %v9645
        %v10025 = vunpack.c.h.b16 %v9645
        %v10026 = vunpack.c.l.b16 %v9646
        %v10027 = vunpack.c.h.b16 %v9646
        %v10028 = vunpack.c.l.b16 %v9647
        %v10029 = vunpack.c.h.b16 %v9647
        %v10030 = vunpack.c.l.b16 %v9648
        %v10031 = vunpack.c.h.b16 %v9648
        %v10032 = vunpack.c.l.b16 %v9649
        %v10033 = vunpack.c.h.b16 %v9649
        %v10034 = vunpack.c.l.b16 %v9650
        %v10035 = vunpack.c.h.b16 %v9650
        %v10036 = vunpack.c.l.b16 %v9651
        %v10037 = vunpack.c.h.b16 %v9651
        %v10038 = vunpack.c.l.b16 %v9652
        %v10039 = vunpack.c.h.b16 %v9652
        %v10040 = vunpack.c.l.b16 %v9653
        %v10041 = vunpack.c.h.b16 %v9653
        %v10042 = vunpack.c.l.b16 %v9654
        %v10043 = vunpack.c.h.b16 %v9654
        %v10044 = vunpack.c.l.b16 %v9655
        %v10045 = vunpack.c.h.b16 %v9655
        %v10046 = vunpack.c.l.b16 %v9656
        %v10047 = vunpack.c.h.b16 %v9656
        %v10048 = vunpack.c.l.b16 %v9657
        %v10049 = vunpack.c.h.b16 %v9657
        %v10050 = vunpack.c.l.b16 %v9658
        %v10051 = vunpack.c.h.b16 %v9658
        %v10052 = vunpack.c.l.b16 %v9659
        %v10053 = vunpack.c.h.b16 %v9659
        %v10054 = vunpack.c.l.b16 %v9660
        %v10055 = vunpack.c.h.b16 %v9660
        %v10056 = vunpack.c.l.b16 %v9661
        %v10057 = vunpack.c.h.b16 %v9661
        %v10058 = vunpack.c.l.b16 %v9662
        %v10059 = vunpack.c.h.b16 %v9662
        %v10060 = vunpack.c.l.b16 %v9663
        %v10061 = vunpack.c.h.b16 %v9663
        %v10062 = vunpack.c.l.b16 %v9664
        %v10063 = vunpack.c.h.b16 %v9664
        %v10064 = vunpack.c.l.b16 %v9665
        %v10065 = vunpack.c.h.b16 %v9665
        %v10066 = vunpack.c.l.b16 %v9666
        %v10067 = vunpack.c.h.b16 %v9666
        %v10068 = vunpack.c.l.b16 %v9667
        %v10069 = vunpack.c.h.b16 %v9667
        %v10070 = vunpack.c.l.b16 %v9668
        %v10071 = vunpack.c.h.b16 %v9668
        %v10072 = vunpack.c.l.b16 %v9669
        %v10073 = vunpack.c.h.b16 %v9669
        %v10074 = vunpack.c.l.b16 %v9670
        %v10075 = vunpack.c.h.b16 %v9670
        %v10076 = vunpack.c.l.b16 %v9671
        %v10077 = vunpack.c.h.b16 %v9671
        %v10078 = vunpack.c.l.b16 %v9672
        %v10079 = vunpack.c.h.b16 %v9672
        %v10080 = vunpack.c.l.b16 %v9673
        %v10081 = vunpack.c.h.b16 %v9673
        %v10082 = vunpack.c.l.b16 %v9674
        %v10083 = vunpack.c.h.b16 %v9674
        %v10084 = vunpack.c.l.b16 %v9675
        %v10085 = vunpack.c.h.b16 %v9675
        %v10086 = vunpack.c.l.b16 %v9676
        %v10087 = vunpack.c.h.b16 %v9676
        %v10088 = vunpack.c.l.b16 %v9677
        %v10089 = vunpack.c.h.b16 %v9677
        %v10090 = vunpack.c.l.b16 %v9678
        %v10091 = vunpack.c.h.b16 %v9678
        %v10092 = vunpack.c.l.b16 %v9679
        %v10093 = vunpack.c.h.b16 %v9679
        %v10094 = vunpack.c.l.b16 %v9680
        %v10095 = vunpack.c.h.b16 %v9680
        %v10096 = vunpack.c.l.b16 %v9681
        %v10097 = vunpack.c.h.b16 %v9681
        %v10098 = vunpack.c.l.b16 %v9682
        %v10099 = vunpack.c.h.b16 %v9682
        %v10100 = vunpack.c.l.b16 %v9683
        %v10101 = vunpack.c.h.b16 %v9683
        %v10102 = vunpack.c.l.b16 %v9684
        %v10103 = vunpack.c.h.b16 %v9684
        %v10104 = vunpack.c.l.b16 %v9685
        %v10105 = vunpack.c.h.b16 %v9685
        %v10106 = vunpack.c.l.b16 %v9686
        %v10107 = vunpack.c.h.b16 %v9686
        %v10108 = vunpack.c.l.b16 %v9687
        %v10109 = vunpack.c.h.b16 %v9687
        %v10110 = vunpack.c.l.b16 %v9688
        %v10111 = vunpack.c.h.b16 %v9688
        %v10112 = vunpack.c.l.b16 %v9689
        %v10113 = vunpack.c.h.b16 %v9689
        %v10114 = vunpack.c.l.b16 %v9690
        %v10115 = vunpack.c.h.b16 %v9690
        %v10116 = vunpack.c.l.b16 %v9691
        %v10117 = vunpack.c.h.b16 %v9691
        %v10118 = vunpack.c.l.b16 %v9692
        %v10119 = vunpack.c.h.b16 %v9692
        %v10120 = vunpack.c.l.b16 %v9693
        %v10121 = vunpack.c.h.b16 %v9693
        %v10122 = vunpack.c.l.b16 %v9694
        %v10123 = vunpack.c.h.b16 %v9694
        %v10124 = vunpack.c.l.b16 %v9695
        %v10125 = vunpack.c.h.b16 %v9695
        %v10126 = vunpack.c.l.b16 %v9696
        %v10127 = vunpack.c.h.b16 %v9696
        %v10128 = vunpack.c.l.b16 %v9697
        %v10129 = vunpack.c.h.b16 %v9697
        %v10130 = vunpack.c.l.b16 %v9698
        %v10131 = vunpack.c.h.b16 %v9698
        %v10132 = vunpack.c.l.b16 %v9699
        %v10133 = vunpack.c.h.b16 %v9699
        %v10134 = vunpack.c.l.b16 %v9700
        %v10135 = vunpack.c.h.b16 %v9700
        %v10136 = vunpack.c.l.b16 %v9701
        %v10137 = vunpack.c.h.b16 %v9701
        %v10138 = vpack.c.b16 %v9886, %v9882
        %v10139 = vpack.c.b16 %v9887, %v9883
        %v10140 = vpack.c.b16 %v9888, %v9884
        %v10141 = vpack.c.b16 %v9889, %v9885
        %v10142 = vpack.c.b16 %v9894, %v9890
        %v10143 = vpack.c.b16 %v9895, %v9891
        %v10144 = vpack.c.b16 %v9896, %v9892
        %v10145 = vpack.c.b16 %v9897, %v9893
        %v10146 = vpack.c.b16 %v9902, %v9898
        %v10147 = vpack.c.b16 %v9903, %v9899
        %v10148 = vpack.c.b16 %v9904, %v9900
        %v10149 = vpack.c.b16 %v9905, %v9901
        %v10150 = vpack.c.b16 %v9910, %v9906
        %v10151 = vpack.c.b16 %v9911, %v9907
        %v10152 = vpack.c.b16 %v9912, %v9908
        %v10153 = vpack.c.b16 %v9913, %v9909
        %v10154 = vpack.c.b16 %v9918, %v9914
        %v10155 = vpack.c.b16 %v9919, %v9915
        %v10156 = vpack.c.b16 %v9920, %v9916
        %v10157 = vpack.c.b16 %v9921, %v9917
        %v10158 = vpack.c.b16 %v9926, %v9922
        %v10159 = vpack.c.b16 %v9927, %v9923
        %v10160 = vpack.c.b16 %v9928, %v9924
        %v10161 = vpack.c.b16 %v9929, %v9925
        %v10162 = vpack.c.b16 %v9934, %v9930
        %v10163 = vpack.c.b16 %v9935, %v9931
        %v10164 = vpack.c.b16 %v9936, %v9932
        %v10165 = vpack.c.b16 %v9937, %v9933
        %v10166 = vpack.c.b16 %v9942, %v9938
        %v10167 = vpack.c.b16 %v9943, %v9939
        %v10168 = vpack.c.b16 %v9944, %v9940
        %v10169 = vpack.c.b16 %v9945, %v9941
        %v10170 = vpack.c.b16 %v9950, %v9946
        %v10171 = vpack.c.b16 %v9951, %v9947
        %v10172 = vpack.c.b16 %v9952, %v9948
        %v10173 = vpack.c.b16 %v9953, %v9949
        %v10174 = vpack.c.b16 %v9958, %v9954
        %v10175 = vpack.c.b16 %v9959, %v9955
        %v10176 = vpack.c.b16 %v9960, %v9956
        %v10177 = vpack.c.b16 %v9961, %v9957
        %v10178 = vpack.c.b16 %v9966, %v9962
        %v10179 = vpack.c.b16 %v9967, %v9963
        %v10180 = vpack.c.b16 %v9968, %v9964
        %v10181 = vpack.c.b16 %v9969, %v9965
        %v10182 = vpack.c.b16 %v9974, %v9970
        %v10183 = vpack.c.b16 %v9975, %v9971
        %v10184 = vpack.c.b16 %v9976, %v9972
        %v10185 = vpack.c.b16 %v9977, %v9973
        %v10186 = vpack.c.b16 %v9982, %v9978
        %v10187 = vpack.c.b16 %v9983, %v9979
        %v10188 = vpack.c.b16 %v9984, %v9980
        %v10189 = vpack.c.b16 %v9985, %v9981
        %v10190 = vpack.c.b16 %v9990, %v9986
        %v10191 = vpack.c.b16 %v9991, %v9987
        %v10192 = vpack.c.b16 %v9992, %v9988
        %v10193 = vpack.c.b16 %v9993, %v9989
        %v10194 = vpack.c.b16 %v9998, %v9994
        %v10195 = vpack.c.b16 %v9999, %v9995
        %v10196 = vpack.c.b16 %v10000, %v9996
        %v10197 = vpack.c.b16 %v10001, %v9997
        %v10198 = vpack.c.b16 %v10006, %v10002
        %v10199 = vpack.c.b16 %v10007, %v10003
        %v10200 = vpack.c.b16 %v10008, %v10004
        %v10201 = vpack.c.b16 %v10009, %v10005
        %v10202 = vpack.c.b16 %v10014, %v10010
        %v10203 = vpack.c.b16 %v10015, %v10011
        %v10204 = vpack.c.b16 %v10016, %v10012
        %v10205 = vpack.c.b16 %v10017, %v10013
        %v10206 = vpack.c.b16 %v10022, %v10018
        %v10207 = vpack.c.b16 %v10023, %v10019
        %v10208 = vpack.c.b16 %v10024, %v10020
        %v10209 = vpack.c.b16 %v10025, %v10021
        %v10210 = vpack.c.b16 %v10030, %v10026
        %v10211 = vpack.c.b16 %v10031, %v10027
        %v10212 = vpack.c.b16 %v10032, %v10028
        %v10213 = vpack.c.b16 %v10033, %v10029
        %v10214 = vpack.c.b16 %v10038, %v10034
        %v10215 = vpack.c.b16 %v10039, %v10035
        %v10216 = vpack.c.b16 %v10040, %v10036
        %v10217 = vpack.c.b16 %v10041, %v10037
        %v10218 = vpack.c.b16 %v10046, %v10042
        %v10219 = vpack.c.b16 %v10047, %v10043
        %v10220 = vpack.c.b16 %v10048, %v10044
        %v10221 = vpack.c.b16 %v10049, %v10045
        %v10222 = vpack.c.b16 %v10054, %v10050
        %v10223 = vpack.c.b16 %v10055, %v10051
        %v10224 = vpack.c.b16 %v10056, %v10052
        %v10225 = vpack.c.b16 %v10057, %v10053
        %v10226 = vpack.c.b16 %v10062, %v10058
        %v10227 = vpack.c.b16 %v10063, %v10059
        %v10228 = vpack.c.b16 %v10064, %v10060
        %v10229 = vpack.c.b16 %v10065, %v10061
        %v10230 = vpack.c.b16 %v10070, %v10066
        %v10231 = vpack.c.b16 %v10071, %v10067
        %v10232 = vpack.c.b16 %v10072, %v10068
        %v10233 = vpack.c.b16 %v10073, %v10069
        %v10234 = vpack.c.b16 %v10078, %v10074
        %v10235 = vpack.c.b16 %v10079, %v10075
        %v10236 = vpack.c.b16 %v10080, %v10076
        %v10237 = vpack.c.b16 %v10081, %v10077
        %v10238 = vpack.c.b16 %v10086, %v10082
        %v10239 = vpack.c.b16 %v10087, %v10083
        %v10240 = vpack.c.b16 %v10088, %v10084
        %v10241 = vpack.c.b16 %v10089, %v10085
        %v10242 = vpack.c.b16 %v10094, %v10090
        %v10243 = vpack.c.b16 %v10095, %v10091
        %v10244 = vpack.c.b16 %v10096, %v10092
        %v10245 = vpack.c.b16 %v10097, %v10093
        %v10246 = vpack.c.b16 %v10102, %v10098
        %v10247 = vpack.c.b16 %v10103, %v10099
        %v10248 = vpack.c.b16 %v10104, %v10100
        %v10249 = vpack.c.b16 %v10105, %v10101
        %v10250 = vpack.c.b16 %v10110, %v10106
        %v10251 = vpack.c.b16 %v10111, %v10107
        %v10252 = vpack.c.b16 %v10112, %v10108
        %v10253 = vpack.c.b16 %v10113, %v10109
        %v10254 = vpack.c.b16 %v10118, %v10114
        %v10255 = vpack.c.b16 %v10119, %v10115
        %v10256 = vpack.c.b16 %v10120, %v10116
        %v10257 = vpack.c.b16 %v10121, %v10117
        %v10258 = vpack.c.b16 %v10126, %v10122
        %v10259 = vpack.c.b16 %v10127, %v10123
        %v10260 = vpack.c.b16 %v10128, %v10124
        %v10261 = vpack.c.b16 %v10129, %v10125
        %v10262 = vpack.c.b16 %v10134, %v10130
        %v10263 = vpack.c.b16 %v10135, %v10131
        %v10264 = vpack.c.b16 %v10136, %v10132
        %v10265 = vpack.c.b16 %v10137, %v10133
        %10394 = vmatprep.subr.bf16.mxu0 %v10139
        %10395 = vmatpush1.bf16.msra.mxu0 %v10138
        %10396 = vmatprep.subr.bf16.mxu0 %v10143
        %10397 = vmatpush1.bf16.msra.mxu0 %v10142
        %10398 = vmatprep.subr.bf16.mxu0 %v10147
        %10399 = vmatpush1.bf16.msra.mxu0 %v10146
        %10400 = vmatprep.subr.bf16.mxu0 %v10151
        %10401 = vmatpush1.bf16.msra.mxu0 %v10150
        %10402 = vmatprep.subr.bf16.mxu0 %v10155
        %10403 = vmatpush1.bf16.msra.mxu0 %v10154
        %10404 = vmatprep.subr.bf16.mxu0 %v10159
        %10405 = vmatpush1.bf16.msra.mxu0 %v10158
        %10406 = vmatprep.subr.bf16.mxu0 %v10163
        %10407 = vmatpush1.bf16.msra.mxu0 %v10162
        %10408 = vmatprep.subr.bf16.mxu0 %v10167
        %10409 = vmatpush1.bf16.msra.mxu0 %v10166
        %10410 = vmatprep.subr.bf16.mxu0 %v10171
        %10411 = vmatpush1.bf16.msra.mxu0 %v10170
        %10412 = vmatprep.subr.bf16.mxu0 %v10175
        %10413 = vmatpush1.bf16.msra.mxu0 %v10174
        %10414 = vmatprep.subr.bf16.mxu0 %v10179
        %10415 = vmatpush1.bf16.msra.mxu0 %v10178
        %10416 = vmatprep.subr.bf16.mxu0 %v10183
        %10417 = vmatpush1.bf16.msra.mxu0 %v10182
        %10418 = vmatprep.subr.bf16.mxu0 %v10187
        %10419 = vmatpush1.bf16.msra.mxu0 %v10186
        %10420 = vmatprep.subr.bf16.mxu0 %v10191
        %10421 = vmatpush1.bf16.msra.mxu0 %v10190
        %10422 = vmatprep.subr.bf16.mxu0 %v10195
        %10423 = vmatpush1.bf16.msra.mxu0 %v10194
        %10424 = vmatprep.subr.bf16.mxu0 %v10199
        %10425 = vmatpush1.bf16.msra.mxu0 %v10198
        %10426 = vmatprep.mubr.bf16.mxu0 %v9725
        %10427 = vmatmul.mubr.bf16.gmra.mrb[0].mxu0 %v9713
        %v10428 = vpop.f32.mrb[0].mxu0
        %v10429 = vadd.f32 0.0, %v10428
        %v10430 = vpop.f32.mrb[0].mxu0
        %v10431 = vadd.f32 0.0, %v10430
        %v10432 = vpop.f32.mrb[0].mxu0
        %v10433 = vadd.f32 0.0, %v10432
        %v10434 = vpop.f32.mrb[0].mxu0
        %v10435 = vadd.f32 0.0, %v10434
        %10436 = vdwg.mxu0
        %10437 = vmatprep.subr.bf16.mxu0 %v10203
        %10438 = vmatpush1.bf16.msra.mxu0 %v10202
        %10439 = vmatprep.subr.bf16.mxu0 %v10207
        %10440 = vmatpush1.bf16.msra.mxu0 %v10206
        %10441 = vmatprep.subr.bf16.mxu0 %v10211
        %10442 = vmatpush1.bf16.msra.mxu0 %v10210
        %10443 = vmatprep.subr.bf16.mxu0 %v10215
        %10444 = vmatpush1.bf16.msra.mxu0 %v10214
        %10445 = vmatprep.subr.bf16.mxu0 %v10219
        %10446 = vmatpush1.bf16.msra.mxu0 %v10218
        %10447 = vmatprep.subr.bf16.mxu0 %v10223
        %10448 = vmatpush1.bf16.msra.mxu0 %v10222
        %10449 = vmatprep.subr.bf16.mxu0 %v10227
        %10450 = vmatpush1.bf16.msra.mxu0 %v10226
        %10451 = vmatprep.subr.bf16.mxu0 %v10231
        %10452 = vmatpush1.bf16.msra.mxu0 %v10230
        %10453 = vmatprep.subr.bf16.mxu0 %v10235
        %10454 = vmatpush1.bf16.msra.mxu0 %v10234
        %10455 = vmatprep.subr.bf16.mxu0 %v10239
        %10456 = vmatpush1.bf16.msra.mxu0 %v10238
        %10457 = vmatprep.subr.bf16.mxu0 %v10243
        %10458 = vmatpush1.bf16.msra.mxu0 %v10242
        %10459 = vmatprep.subr.bf16.mxu0 %v10247
        %10460 = vmatpush1.bf16.msra.mxu0 %v10246
        %10461 = vmatprep.subr.bf16.mxu0 %v10251
        %10462 = vmatpush1.bf16.msra.mxu0 %v10250
        %10463 = vmatprep.subr.bf16.mxu0 %v10255
        %10464 = vmatpush1.bf16.msra.mxu0 %v10254
        %10465 = vmatprep.subr.bf16.mxu0 %v10259
        %10466 = vmatpush1.bf16.msra.mxu0 %v10258
        %10467 = vmatprep.subr.bf16.mxu0 %v10263
        %10468 = vmatpush1.bf16.msra.mxu0 %v10262
        %10469 = vmatprep.mubr.bf16.mxu0 %v9749
        %10470 = vmatmul.mubr.bf16.gmra.mrb[0].mxu0 %v9737
        %v10471 = vpop.f32.mrb[0].mxu0
        %v10472 = vadd.f32 %v10429, %v10471
        %v10473 = vpop.f32.mrb[0].mxu0
        %v10474 = vadd.f32 %v10431, %v10473
        %v10475 = vpop.f32.mrb[0].mxu0
        %v10476 = vadd.f32 %v10433, %v10475
        %v10477 = vpop.f32.mrb[0].mxu0
        %v10478 = vadd.f32 %v10435, %v10477
        %10479 = vdwg.mxu0
        %10480 = vmatprep.subr.bf16.mxu0 %v10141
        %10481 = vmatpush1.bf16.msra.mxu0 %v10140
        %10482 = vmatprep.subr.bf16.mxu0 %v10145
        %10483 = vmatpush1.bf16.msra.mxu0 %v10144
        %10484 = vmatprep.subr.bf16.mxu0 %v10149
        %10485 = vmatpush1.bf16.msra.mxu0 %v10148
        %10486 = vmatprep.subr.bf16.mxu0 %v10153
        %10487 = vmatpush1.bf16.msra.mxu0 %v10152
        %10488 = vmatprep.subr.bf16.mxu0 %v10157
        %10489 = vmatpush1.bf16.msra.mxu0 %v10156
        %10490 = vmatprep.subr.bf16.mxu0 %v10161
        %10491 = vmatpush1.bf16.msra.mxu0 %v10160
        %10492 = vmatprep.subr.bf16.mxu0 %v10165
        %10493 = vmatpush1.bf16.msra.mxu0 %v10164
        %10494 = vmatprep.subr.bf16.mxu0 %v10169
        %10495 = vmatpush1.bf16.msra.mxu0 %v10168
        %10496 = vmatprep.subr.bf16.mxu0 %v10173
        %10497 = vmatpush1.bf16.msra.mxu0 %v10172
        %10498 = vmatprep.subr.bf16.mxu0 %v10177
        %10499 = vmatpush1.bf16.msra.mxu0 %v10176
        %10500 = vmatprep.subr.bf16.mxu0 %v10181
        %10501 = vmatpush1.bf16.msra.mxu0 %v10180
        %10502 = vmatprep.subr.bf16.mxu0 %v10185
        %10503 = vmatpush1.bf16.msra.mxu0 %v10184
        %10504 = vmatprep.subr.bf16.mxu0 %v10189
        %10505 = vmatpush1.bf16.msra.mxu0 %v10188
        %10506 = vmatprep.subr.bf16.mxu0 %v10193
        %10507 = vmatpush1.bf16.msra.mxu0 %v10192
        %10508 = vmatprep.subr.bf16.mxu0 %v10197
        %10509 = vmatpush1.bf16.msra.mxu0 %v10196
        %10510 = vmatprep.subr.bf16.mxu0 %v10201
        %10511 = vmatpush1.bf16.msra.mxu0 %v10200
        %10512 = vmatprep.mubr.bf16.mxu0 %v9725
        %10513 = vmatmul.mubr.bf16.gmra.mrb[0].mxu0 %v9713
        %v10514 = vpop.f32.mrb[0].mxu0
        %v10515 = vadd.f32 0.0, %v10514
        %v10516 = vpop.f32.mrb[0].mxu0
        %v10517 = vadd.f32 0.0, %v10516
        %v10518 = vpop.f32.mrb[0].mxu0
        %v10519 = vadd.f32 0.0, %v10518
        %v10520 = vpop.f32.mrb[0].mxu0
        %v10521 = vadd.f32 0.0, %v10520
        %10522 = vdwg.mxu0
        %10523 = vmatprep.subr.bf16.mxu0 %v10205
        %10524 = vmatpush1.bf16.msra.mxu0 %v10204
        %10525 = vmatprep.subr.bf16.mxu0 %v10209
        %10526 = vmatpush1.bf16.msra.mxu0 %v10208
        %10527 = vmatprep.subr.bf16.mxu0 %v10213
        %10528 = vmatpush1.bf16.msra.mxu0 %v10212
        %10529 = vmatprep.subr.bf16.mxu0 %v10217
        %10530 = vmatpush1.bf16.msra.mxu0 %v10216
        %10531 = vmatprep.subr.bf16.mxu0 %v10221
        %10532 = vmatpush1.bf16.msra.mxu0 %v10220
        %10533 = vmatprep.subr.bf16.mxu0 %v10225
        %10534 = vmatpush1.bf16.msra.mxu0 %v10224
        %10535 = vmatprep.subr.bf16.mxu0 %v10229
        %10536 = vmatpush1.bf16.msra.mxu0 %v10228
        %10537 = vmatprep.subr.bf16.mxu0 %v10233
        %10538 = vmatpush1.bf16.msra.mxu0 %v10232
        %10539 = vmatprep.subr.bf16.mxu0 %v10237
        %10540 = vmatpush1.bf16.msra.mxu0 %v10236
        %10541 = vmatprep.subr.bf16.mxu0 %v10241
        %10542 = vmatpush1.bf16.msra.mxu0 %v10240
        %10543 = vmatprep.subr.bf16.mxu0 %v10245
        %10544 = vmatpush1.bf16.msra.mxu0 %v10244
        %10545 = vmatprep.subr.bf16.mxu0 %v10249
        %10546 = vmatpush1.bf16.msra.mxu0 %v10248
        %10547 = vmatprep.subr.bf16.mxu0 %v10253
        %10548 = vmatpush1.bf16.msra.mxu0 %v10252
        %10549 = vmatprep.subr.bf16.mxu0 %v10257
        %10550 = vmatpush1.bf16.msra.mxu0 %v10256
        %10551 = vmatprep.subr.bf16.mxu0 %v10261
        %10552 = vmatpush1.bf16.msra.mxu0 %v10260
        %10553 = vmatprep.subr.bf16.mxu0 %v10265
        %10554 = vmatpush1.bf16.msra.mxu0 %v10264
        %10555 = vmatprep.mubr.bf16.mxu0 %v9749
        %10556 = vmatmul.mubr.bf16.gmra.mrb[0].mxu0 %v9737
        %v10557 = vpop.f32.mrb[0].mxu0
        %v10558 = vadd.f32 %v10515, %v10557
        %v10559 = vpop.f32.mrb[0].mxu0
        %v10560 = vadd.f32 %v10517, %v10559
        %v10561 = vpop.f32.mrb[0].mxu0
        %v10562 = vadd.f32 %v10519, %v10561
        %v10563 = vpop.f32.mrb[0].mxu0
        %v10564 = vadd.f32 %v10521, %v10563
        %10565 = vdwg.mxu0
        %v10694 = vunpack.c.l.b16 %v9445
        %v10695 = vunpack.c.h.b16 %v9445
        %v10696 = vunpack.c.l.b16 %v9446
        %v10697 = vunpack.c.h.b16 %v9446
        %v10698 = vunpack.c.l.b16 %v9447
        %v10699 = vunpack.c.h.b16 %v9447
        %v10700 = vunpack.c.l.b16 %v9448
        %v10701 = vunpack.c.h.b16 %v9448
        %v10702 = vunpack.c.l.b16 %v9449
        %v10703 = vunpack.c.h.b16 %v9449
        %v10704 = vunpack.c.l.b16 %v9450
        %v10705 = vunpack.c.h.b16 %v9450
        %v10706 = vunpack.c.l.b16 %v9451
        %v10707 = vunpack.c.h.b16 %v9451
        %v10708 = vunpack.c.l.b16 %v9452
        %v10709 = vunpack.c.h.b16 %v9452
        %v10710 = vunpack.c.l.b16 %v9453
        %v10711 = vunpack.c.h.b16 %v9453
        %v10712 = vunpack.c.l.b16 %v9454
        %v10713 = vunpack.c.h.b16 %v9454
        %v10714 = vunpack.c.l.b16 %v9455
        %v10715 = vunpack.c.h.b16 %v9455
        %v10716 = vunpack.c.l.b16 %v9456
        %v10717 = vunpack.c.h.b16 %v9456
        %v10718 = vunpack.c.l.b16 %v9457
        %v10719 = vunpack.c.h.b16 %v9457
        %v10720 = vunpack.c.l.b16 %v9458
        %v10721 = vunpack.c.h.b16 %v9458
        %v10722 = vunpack.c.l.b16 %v9459
        %v10723 = vunpack.c.h.b16 %v9459
        %v10724 = vunpack.c.l.b16 %v9460
        %v10725 = vunpack.c.h.b16 %v9460
        %v10726 = vunpack.c.l.b16 %v9461
        %v10727 = vunpack.c.h.b16 %v9461
        %v10728 = vunpack.c.l.b16 %v9462
        %v10729 = vunpack.c.h.b16 %v9462
        %v10730 = vunpack.c.l.b16 %v9463
        %v10731 = vunpack.c.h.b16 %v9463
        %v10732 = vunpack.c.l.b16 %v9464
        %v10733 = vunpack.c.h.b16 %v9464
        %v10734 = vunpack.c.l.b16 %v9465
        %v10735 = vunpack.c.h.b16 %v9465
        %v10736 = vunpack.c.l.b16 %v9466
        %v10737 = vunpack.c.h.b16 %v9466
        %v10738 = vunpack.c.l.b16 %v9467
        %v10739 = vunpack.c.h.b16 %v9467
        %v10740 = vunpack.c.l.b16 %v9468
        %v10741 = vunpack.c.h.b16 %v9468
        %v10742 = vunpack.c.l.b16 %v9469
        %v10743 = vunpack.c.h.b16 %v9469
        %v10744 = vunpack.c.l.b16 %v9470
        %v10745 = vunpack.c.h.b16 %v9470
        %v10746 = vunpack.c.l.b16 %v9471
        %v10747 = vunpack.c.h.b16 %v9471
        %v10748 = vunpack.c.l.b16 %v9472
        %v10749 = vunpack.c.h.b16 %v9472
        %v10750 = vunpack.c.l.b16 %v9473
        %v10751 = vunpack.c.h.b16 %v9473
        %v10752 = vunpack.c.l.b16 %v9474
        %v10753 = vunpack.c.h.b16 %v9474
        %v10754 = vunpack.c.l.b16 %v9475
        %v10755 = vunpack.c.h.b16 %v9475
        %v10756 = vunpack.c.l.b16 %v9476
        %v10757 = vunpack.c.h.b16 %v9476
        %v10758 = vunpack.c.l.b16 %v9477
        %v10759 = vunpack.c.h.b16 %v9477
        %v10760 = vunpack.c.l.b16 %v9478
        %v10761 = vunpack.c.h.b16 %v9478
        %v10762 = vunpack.c.l.b16 %v9479
        %v10763 = vunpack.c.h.b16 %v9479
        %v10764 = vunpack.c.l.b16 %v9480
        %v10765 = vunpack.c.h.b16 %v9480
        %v10766 = vunpack.c.l.b16 %v9481
        %v10767 = vunpack.c.h.b16 %v9481
        %v10768 = vunpack.c.l.b16 %v9482
        %v10769 = vunpack.c.h.b16 %v9482
        %v10770 = vunpack.c.l.b16 %v9483
        %v10771 = vunpack.c.h.b16 %v9483
        %v10772 = vunpack.c.l.b16 %v9484
        %v10773 = vunpack.c.h.b16 %v9484
        %v10774 = vunpack.c.l.b16 %v9485
        %v10775 = vunpack.c.h.b16 %v9485
        %v10776 = vunpack.c.l.b16 %v9486
        %v10777 = vunpack.c.h.b16 %v9486
        %v10778 = vunpack.c.l.b16 %v9487
        %v10779 = vunpack.c.h.b16 %v9487
        %v10780 = vunpack.c.l.b16 %v9488
        %v10781 = vunpack.c.h.b16 %v9488
        %v10782 = vunpack.c.l.b16 %v9489
        %v10783 = vunpack.c.h.b16 %v9489
        %v10784 = vunpack.c.l.b16 %v9490
        %v10785 = vunpack.c.h.b16 %v9490
        %v10786 = vunpack.c.l.b16 %v9491
        %v10787 = vunpack.c.h.b16 %v9491
        %v10788 = vunpack.c.l.b16 %v9492
        %v10789 = vunpack.c.h.b16 %v9492
        %v10790 = vunpack.c.l.b16 %v9493
        %v10791 = vunpack.c.h.b16 %v9493
        %v10792 = vunpack.c.l.b16 %v9494
        %v10793 = vunpack.c.h.b16 %v9494
        %v10794 = vunpack.c.l.b16 %v9495
        %v10795 = vunpack.c.h.b16 %v9495
        %v10796 = vunpack.c.l.b16 %v9496
        %v10797 = vunpack.c.h.b16 %v9496
        %v10798 = vunpack.c.l.b16 %v9497
        %v10799 = vunpack.c.h.b16 %v9497
        %v10800 = vunpack.c.l.b16 %v9498
        %v10801 = vunpack.c.h.b16 %v9498
        %v10802 = vunpack.c.l.b16 %v9499
        %v10803 = vunpack.c.h.b16 %v9499
        %v10804 = vunpack.c.l.b16 %v9500
        %v10805 = vunpack.c.h.b16 %v9500
        %v10806 = vunpack.c.l.b16 %v9501
        %v10807 = vunpack.c.h.b16 %v9501
        %v10808 = vunpack.c.l.b16 %v9502
        %v10809 = vunpack.c.h.b16 %v9502
        %v10810 = vunpack.c.l.b16 %v9503
        %v10811 = vunpack.c.h.b16 %v9503
        %v10812 = vunpack.c.l.b16 %v9504
        %v10813 = vunpack.c.h.b16 %v9504
        %v10814 = vunpack.c.l.b16 %v9505
        %v10815 = vunpack.c.h.b16 %v9505
        %v10816 = vunpack.c.l.b16 %v9506
        %v10817 = vunpack.c.h.b16 %v9506
        %v10818 = vunpack.c.l.b16 %v9507
        %v10819 = vunpack.c.h.b16 %v9507
        %v10820 = vunpack.c.l.b16 %v9508
        %v10821 = vunpack.c.h.b16 %v9508
        %v10822 = vunpack.c.l.b16 %v9509
        %v10823 = vunpack.c.h.b16 %v9509
        %v10824 = vunpack.c.l.b16 %v9510
        %v10825 = vunpack.c.h.b16 %v9510
        %v10826 = vunpack.c.l.b16 %v9511
        %v10827 = vunpack.c.h.b16 %v9511
        %v10828 = vunpack.c.l.b16 %v9512
        %v10829 = vunpack.c.h.b16 %v9512
        %v10830 = vunpack.c.l.b16 %v9513
        %v10831 = vunpack.c.h.b16 %v9513
        %v10832 = vunpack.c.l.b16 %v9514
        %v10833 = vunpack.c.h.b16 %v9514
        %v10834 = vunpack.c.l.b16 %v9515
        %v10835 = vunpack.c.h.b16 %v9515
        %v10836 = vunpack.c.l.b16 %v9516
        %v10837 = vunpack.c.h.b16 %v9516
        %v10838 = vunpack.c.l.b16 %v9517
        %v10839 = vunpack.c.h.b16 %v9517
        %v10840 = vunpack.c.l.b16 %v9518
        %v10841 = vunpack.c.h.b16 %v9518
        %v10842 = vunpack.c.l.b16 %v9519
        %v10843 = vunpack.c.h.b16 %v9519
        %v10844 = vunpack.c.l.b16 %v9520
        %v10845 = vunpack.c.h.b16 %v9520
        %v10846 = vunpack.c.l.b16 %v9521
        %v10847 = vunpack.c.h.b16 %v9521
        %v10848 = vunpack.c.l.b16 %v9522
        %v10849 = vunpack.c.h.b16 %v9522
        %v10850 = vunpack.c.l.b16 %v9523
        %v10851 = vunpack.c.h.b16 %v9523
        %v10852 = vunpack.c.l.b16 %v9524
        %v10853 = vunpack.c.h.b16 %v9524
        %v10854 = vunpack.c.l.b16 %v9525
        %v10855 = vunpack.c.h.b16 %v9525
        %v10856 = vunpack.c.l.b16 %v9526
        %v10857 = vunpack.c.h.b16 %v9526
        %v10858 = vunpack.c.l.b16 %v9527
        %v10859 = vunpack.c.h.b16 %v9527
        %v10860 = vunpack.c.l.b16 %v9528
        %v10861 = vunpack.c.h.b16 %v9528
        %v10862 = vunpack.c.l.b16 %v9529
        %v10863 = vunpack.c.h.b16 %v9529
        %v10864 = vunpack.c.l.b16 %v9530
        %v10865 = vunpack.c.h.b16 %v9530
        %v10866 = vunpack.c.l.b16 %v9531
        %v10867 = vunpack.c.h.b16 %v9531
        %v10868 = vunpack.c.l.b16 %v9532
        %v10869 = vunpack.c.h.b16 %v9532
        %v10870 = vunpack.c.l.b16 %v9533
        %v10871 = vunpack.c.h.b16 %v9533
        %v10872 = vunpack.c.l.b16 %v9534
        %v10873 = vunpack.c.h.b16 %v9534
        %v10874 = vunpack.c.l.b16 %v9535
        %v10875 = vunpack.c.h.b16 %v9535
        %v10876 = vunpack.c.l.b16 %v9536
        %v10877 = vunpack.c.h.b16 %v9536
        %v10878 = vunpack.c.l.b16 %v9537
        %v10879 = vunpack.c.h.b16 %v9537
        %v10880 = vunpack.c.l.b16 %v9538
        %v10881 = vunpack.c.h.b16 %v9538
        %v10882 = vunpack.c.l.b16 %v9539
        %v10883 = vunpack.c.h.b16 %v9539
        %v10884 = vunpack.c.l.b16 %v9540
        %v10885 = vunpack.c.h.b16 %v9540
        %v10886 = vunpack.c.l.b16 %v9541
        %v10887 = vunpack.c.h.b16 %v9541
        %v10888 = vunpack.c.l.b16 %v9542
        %v10889 = vunpack.c.h.b16 %v9542
        %v10890 = vunpack.c.l.b16 %v9543
        %v10891 = vunpack.c.h.b16 %v9543
        %v10892 = vunpack.c.l.b16 %v9544
        %v10893 = vunpack.c.h.b16 %v9544
        %v10894 = vunpack.c.l.b16 %v9545
        %v10895 = vunpack.c.h.b16 %v9545
        %v10896 = vunpack.c.l.b16 %v9546
        %v10897 = vunpack.c.h.b16 %v9546
        %v10898 = vunpack.c.l.b16 %v9547
        %v10899 = vunpack.c.h.b16 %v9547
        %v10900 = vunpack.c.l.b16 %v9548
        %v10901 = vunpack.c.h.b16 %v9548
        %v10902 = vunpack.c.l.b16 %v9549
        %v10903 = vunpack.c.h.b16 %v9549
        %v10904 = vunpack.c.l.b16 %v9550
        %v10905 = vunpack.c.h.b16 %v9550
        %v10906 = vunpack.c.l.b16 %v9551
        %v10907 = vunpack.c.h.b16 %v9551
        %v10908 = vunpack.c.l.b16 %v9552
        %v10909 = vunpack.c.h.b16 %v9552
        %v10910 = vunpack.c.l.b16 %v9553
        %v10911 = vunpack.c.h.b16 %v9553
        %v10912 = vunpack.c.l.b16 %v9554
        %v10913 = vunpack.c.h.b16 %v9554
        %v10914 = vunpack.c.l.b16 %v9555
        %v10915 = vunpack.c.h.b16 %v9555
        %v10916 = vunpack.c.l.b16 %v9556
        %v10917 = vunpack.c.h.b16 %v9556
        %v10918 = vunpack.c.l.b16 %v9557
        %v10919 = vunpack.c.h.b16 %v9557
        %v10920 = vunpack.c.l.b16 %v9558
        %v10921 = vunpack.c.h.b16 %v9558
        %v10922 = vunpack.c.l.b16 %v9559
        %v10923 = vunpack.c.h.b16 %v9559
        %v10924 = vunpack.c.l.b16 %v9560
        %v10925 = vunpack.c.h.b16 %v9560
        %v10926 = vunpack.c.l.b16 %v9561
        %v10927 = vunpack.c.h.b16 %v9561
        %v10928 = vunpack.c.l.b16 %v9562
        %v10929 = vunpack.c.h.b16 %v9562
        %v10930 = vunpack.c.l.b16 %v9563
        %v10931 = vunpack.c.h.b16 %v9563
        %v10932 = vunpack.c.l.b16 %v9564
        %v10933 = vunpack.c.h.b16 %v9564
        %v10934 = vunpack.c.l.b16 %v9565
        %v10935 = vunpack.c.h.b16 %v9565
        %v10936 = vunpack.c.l.b16 %v9566
        %v10937 = vunpack.c.h.b16 %v9566
        %v10938 = vunpack.c.l.b16 %v9567
        %v10939 = vunpack.c.h.b16 %v9567
        %v10940 = vunpack.c.l.b16 %v9568
        %v10941 = vunpack.c.h.b16 %v9568
        %v10942 = vunpack.c.l.b16 %v9569
        %v10943 = vunpack.c.h.b16 %v9569
        %v10944 = vunpack.c.l.b16 %v9570
        %v10945 = vunpack.c.h.b16 %v9570
        %v10946 = vunpack.c.l.b16 %v9571
        %v10947 = vunpack.c.h.b16 %v9571
        %v10948 = vunpack.c.l.b16 %v9572
        %v10949 = vunpack.c.h.b16 %v9572
        %v10950 = vpack.c.b16 %v10698, %v10694
        %v10951 = vpack.c.b16 %v10699, %v10695
        %v10952 = vpack.c.b16 %v10700, %v10696
        %v10953 = vpack.c.b16 %v10701, %v10697
        %v10954 = vpack.c.b16 %v10706, %v10702
        %v10955 = vpack.c.b16 %v10707, %v10703
        %v10956 = vpack.c.b16 %v10708, %v10704
        %v10957 = vpack.c.b16 %v10709, %v10705
        %v10958 = vpack.c.b16 %v10714, %v10710
        %v10959 = vpack.c.b16 %v10715, %v10711
        %v10960 = vpack.c.b16 %v10716, %v10712
        %v10961 = vpack.c.b16 %v10717, %v10713
        %v10962 = vpack.c.b16 %v10722, %v10718
        %v10963 = vpack.c.b16 %v10723, %v10719
        %v10964 = vpack.c.b16 %v10724, %v10720
        %v10965 = vpack.c.b16 %v10725, %v10721
        %v10966 = vpack.c.b16 %v10730, %v10726
        %v10967 = vpack.c.b16 %v10731, %v10727
        %v10968 = vpack.c.b16 %v10732, %v10728
        %v10969 = vpack.c.b16 %v10733, %v10729
        %v10970 = vpack.c.b16 %v10738, %v10734
        %v10971 = vpack.c.b16 %v10739, %v10735
        %v10972 = vpack.c.b16 %v10740, %v10736
        %v10973 = vpack.c.b16 %v10741, %v10737
        %v10974 = vpack.c.b16 %v10746, %v10742
        %v10975 = vpack.c.b16 %v10747, %v10743
        %v10976 = vpack.c.b16 %v10748, %v10744
        %v10977 = vpack.c.b16 %v10749, %v10745
        %v10978 = vpack.c.b16 %v10754, %v10750
        %v10979 = vpack.c.b16 %v10755, %v10751
        %v10980 = vpack.c.b16 %v10756, %v10752
        %v10981 = vpack.c.b16 %v10757, %v10753
        %v10982 = vpack.c.b16 %v10762, %v10758
        %v10983 = vpack.c.b16 %v10763, %v10759
        %v10984 = vpack.c.b16 %v10764, %v10760
        %v10985 = vpack.c.b16 %v10765, %v10761
        %v10986 = vpack.c.b16 %v10770, %v10766
        %v10987 = vpack.c.b16 %v10771, %v10767
        %v10988 = vpack.c.b16 %v10772, %v10768
        %v10989 = vpack.c.b16 %v10773, %v10769
        %v10990 = vpack.c.b16 %v10778, %v10774
        %v10991 = vpack.c.b16 %v10779, %v10775
        %v10992 = vpack.c.b16 %v10780, %v10776
        %v10993 = vpack.c.b16 %v10781, %v10777
        %v10994 = vpack.c.b16 %v10786, %v10782
        %v10995 = vpack.c.b16 %v10787, %v10783
        %v10996 = vpack.c.b16 %v10788, %v10784
        %v10997 = vpack.c.b16 %v10789, %v10785
        %v10998 = vpack.c.b16 %v10794, %v10790
        %v10999 = vpack.c.b16 %v10795, %v10791
        %v11000 = vpack.c.b16 %v10796, %v10792
        %v11001 = vpack.c.b16 %v10797, %v10793
        %v11002 = vpack.c.b16 %v10802, %v10798
        %v11003 = vpack.c.b16 %v10803, %v10799
        %v11004 = vpack.c.b16 %v10804, %v10800
        %v11005 = vpack.c.b16 %v10805, %v10801
        %v11006 = vpack.c.b16 %v10810, %v10806
        %v11007 = vpack.c.b16 %v10811, %v10807
        %v11008 = vpack.c.b16 %v10812, %v10808
        %v11009 = vpack.c.b16 %v10813, %v10809
        %v11010 = vpack.c.b16 %v10818, %v10814
        %v11011 = vpack.c.b16 %v10819, %v10815
        %v11012 = vpack.c.b16 %v10820, %v10816
        %v11013 = vpack.c.b16 %v10821, %v10817
        %v11014 = vpack.c.b16 %v10826, %v10822
        %v11015 = vpack.c.b16 %v10827, %v10823
        %v11016 = vpack.c.b16 %v10828, %v10824
        %v11017 = vpack.c.b16 %v10829, %v10825
        %v11018 = vpack.c.b16 %v10834, %v10830
        %v11019 = vpack.c.b16 %v10835, %v10831
        %v11020 = vpack.c.b16 %v10836, %v10832
        %v11021 = vpack.c.b16 %v10837, %v10833
        %v11022 = vpack.c.b16 %v10842, %v10838
        %v11023 = vpack.c.b16 %v10843, %v10839
        %v11024 = vpack.c.b16 %v10844, %v10840
        %v11025 = vpack.c.b16 %v10845, %v10841
        %v11026 = vpack.c.b16 %v10850, %v10846
        %v11027 = vpack.c.b16 %v10851, %v10847
        %v11028 = vpack.c.b16 %v10852, %v10848
        %v11029 = vpack.c.b16 %v10853, %v10849
        %v11030 = vpack.c.b16 %v10858, %v10854
        %v11031 = vpack.c.b16 %v10859, %v10855
        %v11032 = vpack.c.b16 %v10860, %v10856
        %v11033 = vpack.c.b16 %v10861, %v10857
        %v11034 = vpack.c.b16 %v10866, %v10862
        %v11035 = vpack.c.b16 %v10867, %v10863
        %v11036 = vpack.c.b16 %v10868, %v10864
        %v11037 = vpack.c.b16 %v10869, %v10865
        %v11038 = vpack.c.b16 %v10874, %v10870
        %v11039 = vpack.c.b16 %v10875, %v10871
        %v11040 = vpack.c.b16 %v10876, %v10872
        %v11041 = vpack.c.b16 %v10877, %v10873
        %v11042 = vpack.c.b16 %v10882, %v10878
        %v11043 = vpack.c.b16 %v10883, %v10879
        %v11044 = vpack.c.b16 %v10884, %v10880
        %v11045 = vpack.c.b16 %v10885, %v10881
        %v11046 = vpack.c.b16 %v10890, %v10886
        %v11047 = vpack.c.b16 %v10891, %v10887
        %v11048 = vpack.c.b16 %v10892, %v10888
        %v11049 = vpack.c.b16 %v10893, %v10889
        %v11050 = vpack.c.b16 %v10898, %v10894
        %v11051 = vpack.c.b16 %v10899, %v10895
        %v11052 = vpack.c.b16 %v10900, %v10896
        %v11053 = vpack.c.b16 %v10901, %v10897
        %v11054 = vpack.c.b16 %v10906, %v10902
        %v11055 = vpack.c.b16 %v10907, %v10903
        %v11056 = vpack.c.b16 %v10908, %v10904
        %v11057 = vpack.c.b16 %v10909, %v10905
        %v11058 = vpack.c.b16 %v10914, %v10910
        %v11059 = vpack.c.b16 %v10915, %v10911
        %v11060 = vpack.c.b16 %v10916, %v10912
        %v11061 = vpack.c.b16 %v10917, %v10913
        %v11062 = vpack.c.b16 %v10922, %v10918
        %v11063 = vpack.c.b16 %v10923, %v10919
        %v11064 = vpack.c.b16 %v10924, %v10920
        %v11065 = vpack.c.b16 %v10925, %v10921
        %v11066 = vpack.c.b16 %v10930, %v10926
        %v11067 = vpack.c.b16 %v10931, %v10927
        %v11068 = vpack.c.b16 %v10932, %v10928
        %v11069 = vpack.c.b16 %v10933, %v10929
        %v11070 = vpack.c.b16 %v10938, %v10934
        %v11071 = vpack.c.b16 %v10939, %v10935
        %v11072 = vpack.c.b16 %v10940, %v10936
        %v11073 = vpack.c.b16 %v10941, %v10937
        %v11074 = vpack.c.b16 %v10946, %v10942
        %v11075 = vpack.c.b16 %v10947, %v10943
        %v11076 = vpack.c.b16 %v10948, %v10944
        %v11077 = vpack.c.b16 %v10949, %v10945
        %11206 = vmatprep.subr.bf16.mxu0 %v10951
        %11207 = vmatpush1.bf16.msra.mxu0 %v10950
        %11208 = vmatprep.subr.bf16.mxu0 %v10955
        %11209 = vmatpush1.bf16.msra.mxu0 %v10954
        %11210 = vmatprep.subr.bf16.mxu0 %v10959
        %11211 = vmatpush1.bf16.msra.mxu0 %v10958
        %11212 = vmatprep.subr.bf16.mxu0 %v10963
        %11213 = vmatpush1.bf16.msra.mxu0 %v10962
        %11214 = vmatprep.subr.bf16.mxu0 %v10967
        %11215 = vmatpush1.bf16.msra.mxu0 %v10966
        %11216 = vmatprep.subr.bf16.mxu0 %v10971
        %11217 = vmatpush1.bf16.msra.mxu0 %v10970
        %11218 = vmatprep.subr.bf16.mxu0 %v10975
        %11219 = vmatpush1.bf16.msra.mxu0 %v10974
        %11220 = vmatprep.subr.bf16.mxu0 %v10979
        %11221 = vmatpush1.bf16.msra.mxu0 %v10978
        %11222 = vmatprep.subr.bf16.mxu0 %v10983
        %11223 = vmatpush1.bf16.msra.mxu0 %v10982
        %11224 = vmatprep.subr.bf16.mxu0 %v10987
        %11225 = vmatpush1.bf16.msra.mxu0 %v10986
        %11226 = vmatprep.subr.bf16.mxu0 %v10991
        %11227 = vmatpush1.bf16.msra.mxu0 %v10990
        %11228 = vmatprep.subr.bf16.mxu0 %v10995
        %11229 = vmatpush1.bf16.msra.mxu0 %v10994
        %11230 = vmatprep.subr.bf16.mxu0 %v10999
        %11231 = vmatpush1.bf16.msra.mxu0 %v10998
        %11232 = vmatprep.subr.bf16.mxu0 %v11003
        %11233 = vmatpush1.bf16.msra.mxu0 %v11002
        %11234 = vmatprep.subr.bf16.mxu0 %v11007
        %11235 = vmatpush1.bf16.msra.mxu0 %v11006
        %11236 = vmatprep.subr.bf16.mxu0 %v11011
        %11237 = vmatpush1.bf16.msra.mxu0 %v11010
        %11238 = vmatprep.mubr.bf16.mxu0 %v9438
        %11239 = vmatmul.mubr.bf16.gmra.mrb[0].mxu0 %v9437
        %v11240 = vpop.f32.mrb[0].mxu0
        %v11241 = vadd.f32 %v10472, %v11240
        %v11242 = vpop.f32.mrb[0].mxu0
        %v11243 = vadd.f32 %v10474, %v11242
        %v11244 = vpop.f32.mrb[0].mxu0
        %v11245 = vadd.f32 %v10476, %v11244
        %v11246 = vpop.f32.mrb[0].mxu0
        %v11247 = vadd.f32 %v10478, %v11246
        %11248 = vdwg.mxu0
        %11249 = vmatprep.subr.bf16.mxu0 %v11015
        %11250 = vmatpush1.bf16.msra.mxu0 %v11014
        %11251 = vmatprep.subr.bf16.mxu0 %v11019
        %11252 = vmatpush1.bf16.msra.mxu0 %v11018
        %11253 = vmatprep.subr.bf16.mxu0 %v11023
        %11254 = vmatpush1.bf16.msra.mxu0 %v11022
        %11255 = vmatprep.subr.bf16.mxu0 %v11027
        %11256 = vmatpush1.bf16.msra.mxu0 %v11026
        %11257 = vmatprep.subr.bf16.mxu0 %v11031
        %11258 = vmatpush1.bf16.msra.mxu0 %v11030
        %11259 = vmatprep.subr.bf16.mxu0 %v11035
        %11260 = vmatpush1.bf16.msra.mxu0 %v11034
        %11261 = vmatprep.subr.bf16.mxu0 %v11039
        %11262 = vmatpush1.bf16.msra.mxu0 %v11038
        %11263 = vmatprep.subr.bf16.mxu0 %v11043
        %11264 = vmatpush1.bf16.msra.mxu0 %v11042
        %11265 = vmatprep.subr.bf16.mxu0 %v11047
        %11266 = vmatpush1.bf16.msra.mxu0 %v11046
        %11267 = vmatprep.subr.bf16.mxu0 %v11051
        %11268 = vmatpush1.bf16.msra.mxu0 %v11050
        %11269 = vmatprep.subr.bf16.mxu0 %v11055
        %11270 = vmatpush1.bf16.msra.mxu0 %v11054
        %11271 = vmatprep.subr.bf16.mxu0 %v11059
        %11272 = vmatpush1.bf16.msra.mxu0 %v11058
        %11273 = vmatprep.subr.bf16.mxu0 %v11063
        %11274 = vmatpush1.bf16.msra.mxu0 %v11062
        %11275 = vmatprep.subr.bf16.mxu0 %v11067
        %11276 = vmatpush1.bf16.msra.mxu0 %v11066
        %11277 = vmatprep.subr.bf16.mxu0 %v11071
        %11278 = vmatpush1.bf16.msra.mxu0 %v11070
        %11279 = vmatprep.subr.bf16.mxu0 %v11075
        %11280 = vmatpush1.bf16.msra.mxu0 %v11074
        %11281 = vmatprep.mubr.bf16.mxu0 %v9440
        %11282 = vmatmul.mubr.bf16.gmra.mrb[0].mxu0 %v9439
        %v11283 = vpop.f32.mrb[0].mxu0
        %v11284 = vadd.f32 %v11241, %v11283
        %v11285 = vpop.f32.mrb[0].mxu0
        %v11286 = vadd.f32 %v11243, %v11285
        %v11287 = vpop.f32.mrb[0].mxu0
        %v11288 = vadd.f32 %v11245, %v11287
        %v11289 = vpop.f32.mrb[0].mxu0
        %v11290 = vadd.f32 %v11247, %v11289
        %11291 = vdwg.mxu0
        %11292 = vmatprep.subr.bf16.mxu0 %v10953
        %11293 = vmatpush1.bf16.msra.mxu0 %v10952
        %11294 = vmatprep.subr.bf16.mxu0 %v10957
        %11295 = vmatpush1.bf16.msra.mxu0 %v10956
        %11296 = vmatprep.subr.bf16.mxu0 %v10961
        %11297 = vmatpush1.bf16.msra.mxu0 %v10960
        %11298 = vmatprep.subr.bf16.mxu0 %v10965
        %11299 = vmatpush1.bf16.msra.mxu0 %v10964
        %11300 = vmatprep.subr.bf16.mxu0 %v10969
        %11301 = vmatpush1.bf16.msra.mxu0 %v10968
        %11302 = vmatprep.subr.bf16.mxu0 %v10973
        %11303 = vmatpush1.bf16.msra.mxu0 %v10972
        %11304 = vmatprep.subr.bf16.mxu0 %v10977
        %11305 = vmatpush1.bf16.msra.mxu0 %v10976
        %11306 = vmatprep.subr.bf16.mxu0 %v10981
        %11307 = vmatpush1.bf16.msra.mxu0 %v10980
        %11308 = vmatprep.subr.bf16.mxu0 %v10985
        %11309 = vmatpush1.bf16.msra.mxu0 %v10984
        %11310 = vmatprep.subr.bf16.mxu0 %v10989
        %11311 = vmatpush1.bf16.msra.mxu0 %v10988
        %11312 = vmatprep.subr.bf16.mxu0 %v10993
        %11313 = vmatpush1.bf16.msra.mxu0 %v10992
        %11314 = vmatprep.subr.bf16.mxu0 %v10997
        %11315 = vmatpush1.bf16.msra.mxu0 %v10996
        %11316 = vmatprep.subr.bf16.mxu0 %v11001
        %11317 = vmatpush1.bf16.msra.mxu0 %v11000
        %11318 = vmatprep.subr.bf16.mxu0 %v11005
        %11319 = vmatpush1.bf16.msra.mxu0 %v11004
        %11320 = vmatprep.subr.bf16.mxu0 %v11009
        %11321 = vmatpush1.bf16.msra.mxu0 %v11008
        %11322 = vmatprep.subr.bf16.mxu0 %v11013
        %11323 = vmatpush1.bf16.msra.mxu0 %v11012
        %11324 = vmatprep.mubr.bf16.mxu0 %v9438
        %11325 = vmatmul.mubr.bf16.gmra.mrb[0].mxu0 %v9437
        %v11326 = vpop.f32.mrb[0].mxu0
        %v11327 = vadd.f32 %v10558, %v11326
        %v11328 = vpop.f32.mrb[0].mxu0
        %v11329 = vadd.f32 %v10560, %v11328
        %v11330 = vpop.f32.mrb[0].mxu0
        %v11331 = vadd.f32 %v10562, %v11330
        %v11332 = vpop.f32.mrb[0].mxu0
        %v11333 = vadd.f32 %v10564, %v11332
        %11334 = vdwg.mxu0
        %11335 = vmatprep.subr.bf16.mxu0 %v11017
        %11336 = vmatpush1.bf16.msra.mxu0 %v11016
        %11337 = vmatprep.subr.bf16.mxu0 %v11021
        %11338 = vmatpush1.bf16.msra.mxu0 %v11020
        %11339 = vmatprep.subr.bf16.mxu0 %v11025
        %11340 = vmatpush1.bf16.msra.mxu0 %v11024
        %11341 = vmatprep.subr.bf16.mxu0 %v11029
        %11342 = vmatpush1.bf16.msra.mxu0 %v11028
        %11343 = vmatprep.subr.bf16.mxu0 %v11033
        %11344 = vmatpush1.bf16.msra.mxu0 %v11032
        %11345 = vmatprep.subr.bf16.mxu0 %v11037
        %11346 = vmatpush1.bf16.msra.mxu0 %v11036
        %11347 = vmatprep.subr.bf16.mxu0 %v11041
        %11348 = vmatpush1.bf16.msra.mxu0 %v11040
        %11349 = vmatprep.subr.bf16.mxu0 %v11045
        %11350 = vmatpush1.bf16.msra.mxu0 %v11044
        %11351 = vmatprep.subr.bf16.mxu0 %v11049
        %11352 = vmatpush1.bf16.msra.mxu0 %v11048
        %11353 = vmatprep.subr.bf16.mxu0 %v11053
        %11354 = vmatpush1.bf16.msra.mxu0 %v11052
        %11355 = vmatprep.subr.bf16.mxu0 %v11057
        %11356 = vmatpush1.bf16.msra.mxu0 %v11056
        %11357 = vmatprep.subr.bf16.mxu0 %v11061
        %11358 = vmatpush1.bf16.msra.mxu0 %v11060
        %11359 = vmatprep.subr.bf16.mxu0 %v11065
        %11360 = vmatpush1.bf16.msra.mxu0 %v11064
        %11361 = vmatprep.subr.bf16.mxu0 %v11069
        %11362 = vmatpush1.bf16.msra.mxu0 %v11068
        %11363 = vmatprep.subr.bf16.mxu0 %v11073
        %11364 = vmatpush1.bf16.msra.mxu0 %v11072
        %11365 = vmatprep.subr.bf16.mxu0 %v11077
        %11366 = vmatpush1.bf16.msra.mxu0 %v11076
        %11367 = vmatprep.mubr.bf16.mxu0 %v9440
        %11368 = vmatmul.mubr.bf16.gmra.mrb[0].mxu0 %v9439
        %v11369 = vpop.f32.mrb[0].mxu0
        %v11370 = vadd.f32 %v11327, %v11369
        %v11371 = vpop.f32.mrb[0].mxu0
        %v11372 = vadd.f32 %v11329, %v11371
        %v11373 = vpop.f32.mrb[0].mxu0
        %v11374 = vadd.f32 %v11331, %v11373
        %v11375 = vpop.f32.mrb[0].mxu0
        %v11376 = vadd.f32 %v11333, %v11375
        %11377 = vdwg.mxu0
        %s11378 = scalar_lea.vmem [#allocation10], 2048
        %v11379 = vld [vmem:[%s11378] sm:$0xff]
        %v11380 = vld [vmem:[%s11378 + $0x8] sm:$0xff]
        %v11381 = vld [vmem:[%s11378 + $0x10] sm:$0xff]
        %v11382 = vld [vmem:[%s11378 + $0x18] sm:$0xff]
        %v11383 = vld [vmem:[%s11378 + $0x20] sm:$0xff]
        %v11384 = vld [vmem:[%s11378 + $0x28] sm:$0xff]
        %v11385 = vld [vmem:[%s11378 + $0x30] sm:$0xff]
        %v11386 = vld [vmem:[%s11378 + $0x38] sm:$0xff]
        %v11387 = vld [vmem:[%s11378 + $0x40] sm:$0xff]
        %v11388 = vld [vmem:[%s11378 + $0x48] sm:$0xff]
        %v11389 = vld [vmem:[%s11378 + $0x50] sm:$0xff]
        %v11390 = vld [vmem:[%s11378 + $0x58] sm:$0xff]
        %v11391 = vld [vmem:[%s11378 + $0x60] sm:$0xff]
        %v11392 = vld [vmem:[%s11378 + $0x68] sm:$0xff]
        %v11393 = vld [vmem:[%s11378 + $0x70] sm:$0xff]
        %v11394 = vld [vmem:[%s11378 + $0x78] sm:$0xff]
        %v11395 = vld [vmem:[%s11378 + $0x80] sm:$0xff]
        %v11396 = vld [vmem:[%s11378 + $0x88] sm:$0xff]
        %v11397 = vld [vmem:[%s11378 + $0x90] sm:$0xff]
        %v11398 = vld [vmem:[%s11378 + $0x98] sm:$0xff]
        %v11399 = vld [vmem:[%s11378 + $0xa0] sm:$0xff]
        %v11400 = vld [vmem:[%s11378 + $0xa8] sm:$0xff]
        %v11401 = vld [vmem:[%s11378 + $0xb0] sm:$0xff]
        %v11402 = vld [vmem:[%s11378 + $0xb8] sm:$0xff]
        %v11403 = vld [vmem:[%s11378 + $0xc0] sm:$0xff]
        %v11404 = vld [vmem:[%s11378 + $0xc8] sm:$0xff]
        %v11405 = vld [vmem:[%s11378 + $0xd0] sm:$0xff]
        %v11406 = vld [vmem:[%s11378 + $0xd8] sm:$0xff]
        %v11407 = vld [vmem:[%s11378 + $0xe0] sm:$0xff]
        %v11408 = vld [vmem:[%s11378 + $0xe8] sm:$0xff]
        %v11409 = vld [vmem:[%s11378 + $0xf0] sm:$0xff]
        %v11410 = vld [vmem:[%s11378 + $0xf8] sm:$0xff]
        %v11411 = vld [vmem:[%s11378 + $0x100] sm:$0xff]
        %v11412 = vld [vmem:[%s11378 + $0x108] sm:$0xff]
        %v11413 = vld [vmem:[%s11378 + $0x110] sm:$0xff]
        %v11414 = vld [vmem:[%s11378 + $0x118] sm:$0xff]
        %v11415 = vld [vmem:[%s11378 + $0x120] sm:$0xff]
        %v11416 = vld [vmem:[%s11378 + $0x128] sm:$0xff]
        %v11417 = vld [vmem:[%s11378 + $0x130] sm:$0xff]
        %v11418 = vld [vmem:[%s11378 + $0x138] sm:$0xff]
        %v11419 = vld [vmem:[%s11378 + $0x140] sm:$0xff]
        %v11420 = vld [vmem:[%s11378 + $0x148] sm:$0xff]
        %v11421 = vld [vmem:[%s11378 + $0x150] sm:$0xff]
        %v11422 = vld [vmem:[%s11378 + $0x158] sm:$0xff]
        %v11423 = vld [vmem:[%s11378 + $0x160] sm:$0xff]
        %v11424 = vld [vmem:[%s11378 + $0x168] sm:$0xff]
        %v11425 = vld [vmem:[%s11378 + $0x170] sm:$0xff]
        %v11426 = vld [vmem:[%s11378 + $0x178] sm:$0xff]
        %v11427 = vld [vmem:[%s11378 + $0x180] sm:$0xff]
        %v11428 = vld [vmem:[%s11378 + $0x188] sm:$0xff]
        %v11429 = vld [vmem:[%s11378 + $0x190] sm:$0xff]
        %v11430 = vld [vmem:[%s11378 + $0x198] sm:$0xff]
        %v11431 = vld [vmem:[%s11378 + $0x1a0] sm:$0xff]
        %v11432 = vld [vmem:[%s11378 + $0x1a8] sm:$0xff]
        %v11433 = vld [vmem:[%s11378 + $0x1b0] sm:$0xff]
        %v11434 = vld [vmem:[%s11378 + $0x1b8] sm:$0xff]
        %v11435 = vld [vmem:[%s11378 + $0x1c0] sm:$0xff]
        %v11436 = vld [vmem:[%s11378 + $0x1c8] sm:$0xff]
        %v11437 = vld [vmem:[%s11378 + $0x1d0] sm:$0xff]
        %v11438 = vld [vmem:[%s11378 + $0x1d8] sm:$0xff]
        %v11439 = vld [vmem:[%s11378 + $0x1e0] sm:$0xff]
        %v11440 = vld [vmem:[%s11378 + $0x1e8] sm:$0xff]
        %v11441 = vld [vmem:[%s11378 + $0x1f0] sm:$0xff]
        %v11442 = vld [vmem:[%s11378 + $0x1f8] sm:$0xff]
        %v11443 = vld [vmem:[%s11378 + $0x200] sm:$0xff]
        %v11444 = vld [vmem:[%s11378 + $0x208] sm:$0xff]
        %v11445 = vld [vmem:[%s11378 + $0x210] sm:$0xff]
        %v11446 = vld [vmem:[%s11378 + $0x218] sm:$0xff]
        %v11447 = vld [vmem:[%s11378 + $0x220] sm:$0xff]
        %v11448 = vld [vmem:[%s11378 + $0x228] sm:$0xff]
        %v11449 = vld [vmem:[%s11378 + $0x230] sm:$0xff]
        %v11450 = vld [vmem:[%s11378 + $0x238] sm:$0xff]
        %v11451 = vld [vmem:[%s11378 + $0x240] sm:$0xff]
        %v11452 = vld [vmem:[%s11378 + $0x248] sm:$0xff]
        %v11453 = vld [vmem:[%s11378 + $0x250] sm:$0xff]
        %v11454 = vld [vmem:[%s11378 + $0x258] sm:$0xff]
        %v11455 = vld [vmem:[%s11378 + $0x260] sm:$0xff]
        %v11456 = vld [vmem:[%s11378 + $0x268] sm:$0xff]
        %v11457 = vld [vmem:[%s11378 + $0x270] sm:$0xff]
        %v11458 = vld [vmem:[%s11378 + $0x278] sm:$0xff]
        %v11459 = vld [vmem:[%s11378 + $0x280] sm:$0xff]
        %v11460 = vld [vmem:[%s11378 + $0x288] sm:$0xff]
        %v11461 = vld [vmem:[%s11378 + $0x290] sm:$0xff]
        %v11462 = vld [vmem:[%s11378 + $0x298] sm:$0xff]
        %v11463 = vld [vmem:[%s11378 + $0x2a0] sm:$0xff]
        %v11464 = vld [vmem:[%s11378 + $0x2a8] sm:$0xff]
        %v11465 = vld [vmem:[%s11378 + $0x2b0] sm:$0xff]
        %v11466 = vld [vmem:[%s11378 + $0x2b8] sm:$0xff]
        %v11467 = vld [vmem:[%s11378 + $0x2c0] sm:$0xff]
        %v11468 = vld [vmem:[%s11378 + $0x2c8] sm:$0xff]
        %v11469 = vld [vmem:[%s11378 + $0x2d0] sm:$0xff]
        %v11470 = vld [vmem:[%s11378 + $0x2d8] sm:$0xff]
        %v11471 = vld [vmem:[%s11378 + $0x2e0] sm:$0xff]
        %v11472 = vld [vmem:[%s11378 + $0x2e8] sm:$0xff]
        %v11473 = vld [vmem:[%s11378 + $0x2f0] sm:$0xff]
        %v11474 = vld [vmem:[%s11378 + $0x2f8] sm:$0xff]
        %v11475 = vld [vmem:[%s11378 + $0x300] sm:$0xff]
        %v11476 = vld [vmem:[%s11378 + $0x308] sm:$0xff]
        %v11477 = vld [vmem:[%s11378 + $0x310] sm:$0xff]
        %v11478 = vld [vmem:[%s11378 + $0x318] sm:$0xff]
        %v11479 = vld [vmem:[%s11378 + $0x320] sm:$0xff]
        %v11480 = vld [vmem:[%s11378 + $0x328] sm:$0xff]
        %v11481 = vld [vmem:[%s11378 + $0x330] sm:$0xff]
        %v11482 = vld [vmem:[%s11378 + $0x338] sm:$0xff]
        %v11483 = vld [vmem:[%s11378 + $0x340] sm:$0xff]
        %v11484 = vld [vmem:[%s11378 + $0x348] sm:$0xff]
        %v11485 = vld [vmem:[%s11378 + $0x350] sm:$0xff]
        %v11486 = vld [vmem:[%s11378 + $0x358] sm:$0xff]
        %v11487 = vld [vmem:[%s11378 + $0x360] sm:$0xff]
        %v11488 = vld [vmem:[%s11378 + $0x368] sm:$0xff]
        %v11489 = vld [vmem:[%s11378 + $0x370] sm:$0xff]
        %v11490 = vld [vmem:[%s11378 + $0x378] sm:$0xff]
        %v11491 = vld [vmem:[%s11378 + $0x380] sm:$0xff]
        %v11492 = vld [vmem:[%s11378 + $0x388] sm:$0xff]
        %v11493 = vld [vmem:[%s11378 + $0x390] sm:$0xff]
        %v11494 = vld [vmem:[%s11378 + $0x398] sm:$0xff]
        %v11495 = vld [vmem:[%s11378 + $0x3a0] sm:$0xff]
        %v11496 = vld [vmem:[%s11378 + $0x3a8] sm:$0xff]
        %v11497 = vld [vmem:[%s11378 + $0x3b0] sm:$0xff]
        %v11498 = vld [vmem:[%s11378 + $0x3b8] sm:$0xff]
        %v11499 = vld [vmem:[%s11378 + $0x3c0] sm:$0xff]
        %v11500 = vld [vmem:[%s11378 + $0x3c8] sm:$0xff]
        %v11501 = vld [vmem:[%s11378 + $0x3d0] sm:$0xff]
        %v11502 = vld [vmem:[%s11378 + $0x3d8] sm:$0xff]
        %v11503 = vld [vmem:[%s11378 + $0x3e0] sm:$0xff]
        %v11504 = vld [vmem:[%s11378 + $0x3e8] sm:$0xff]
        %v11505 = vld [vmem:[%s11378 + $0x3f0] sm:$0xff]
        %v11506 = vld [vmem:[%s11378 + $0x3f8] sm:$0xff]
        %v11515 = vrot.slane %v9437, 1
        %v11516 = vrot.slane %v9441, 1
        %v11517 = vsel %vm5784, %v11515, %v11516
        %v11518 = vrot.slane %v9438, 1
        %v11519 = vrot.slane %v9442, 1
        %v11520 = vsel %vm5784, %v11518, %v11519
        %v11521 = vrot.slane %v9439, 1
        %v11522 = vrot.slane %v9443, 1
        %v11523 = vsel %vm5784, %v11521, %v11522
        %v11524 = vrot.slane %v9440, 1
        %v11525 = vrot.slane %v9444, 1
        %v11526 = vsel %vm5784, %v11524, %v11525
        %v11659 = vunpack.c.l.b16 %v11379
        %v11660 = vunpack.c.h.b16 %v11379
        %v11661 = vunpack.c.l.b16 %v11380
        %v11662 = vunpack.c.h.b16 %v11380
        %v11663 = vunpack.c.l.b16 %v11381
        %v11664 = vunpack.c.h.b16 %v11381
        %v11665 = vunpack.c.l.b16 %v11382
        %v11666 = vunpack.c.h.b16 %v11382
        %v11667 = vunpack.c.l.b16 %v11383
        %v11668 = vunpack.c.h.b16 %v11383
        %v11669 = vunpack.c.l.b16 %v11384
        %v11670 = vunpack.c.h.b16 %v11384
        %v11671 = vunpack.c.l.b16 %v11385
        %v11672 = vunpack.c.h.b16 %v11385
        %v11673 = vunpack.c.l.b16 %v11386
        %v11674 = vunpack.c.h.b16 %v11386
        %v11675 = vunpack.c.l.b16 %v11387
        %v11676 = vunpack.c.h.b16 %v11387
        %v11677 = vunpack.c.l.b16 %v11388
        %v11678 = vunpack.c.h.b16 %v11388
        %v11679 = vunpack.c.l.b16 %v11389
        %v11680 = vunpack.c.h.b16 %v11389
        %v11681 = vunpack.c.l.b16 %v11390
        %v11682 = vunpack.c.h.b16 %v11390
        %v11683 = vunpack.c.l.b16 %v11391
        %v11684 = vunpack.c.h.b16 %v11391
        %v11685 = vunpack.c.l.b16 %v11392
        %v11686 = vunpack.c.h.b16 %v11392
        %v11687 = vunpack.c.l.b16 %v11393
        %v11688 = vunpack.c.h.b16 %v11393
        %v11689 = vunpack.c.l.b16 %v11394
        %v11690 = vunpack.c.h.b16 %v11394
        %v11691 = vunpack.c.l.b16 %v11395
        %v11692 = vunpack.c.h.b16 %v11395
        %v11693 = vunpack.c.l.b16 %v11396
        %v11694 = vunpack.c.h.b16 %v11396
        %v11695 = vunpack.c.l.b16 %v11397
        %v11696 = vunpack.c.h.b16 %v11397
        %v11697 = vunpack.c.l.b16 %v11398
        %v11698 = vunpack.c.h.b16 %v11398
        %v11699 = vunpack.c.l.b16 %v11399
        %v11700 = vunpack.c.h.b16 %v11399
        %v11701 = vunpack.c.l.b16 %v11400
        %v11702 = vunpack.c.h.b16 %v11400
        %v11703 = vunpack.c.l.b16 %v11401
        %v11704 = vunpack.c.h.b16 %v11401
        %v11705 = vunpack.c.l.b16 %v11402
        %v11706 = vunpack.c.h.b16 %v11402
        %v11707 = vunpack.c.l.b16 %v11403
        %v11708 = vunpack.c.h.b16 %v11403
        %v11709 = vunpack.c.l.b16 %v11404
        %v11710 = vunpack.c.h.b16 %v11404
        %v11711 = vunpack.c.l.b16 %v11405
        %v11712 = vunpack.c.h.b16 %v11405
        %v11713 = vunpack.c.l.b16 %v11406
        %v11714 = vunpack.c.h.b16 %v11406
        %v11715 = vunpack.c.l.b16 %v11407
        %v11716 = vunpack.c.h.b16 %v11407
        %v11717 = vunpack.c.l.b16 %v11408
        %v11718 = vunpack.c.h.b16 %v11408
        %v11719 = vunpack.c.l.b16 %v11409
        %v11720 = vunpack.c.h.b16 %v11409
        %v11721 = vunpack.c.l.b16 %v11410
        %v11722 = vunpack.c.h.b16 %v11410
        %v11723 = vunpack.c.l.b16 %v11411
        %v11724 = vunpack.c.h.b16 %v11411
        %v11725 = vunpack.c.l.b16 %v11412
        %v11726 = vunpack.c.h.b16 %v11412
        %v11727 = vunpack.c.l.b16 %v11413
        %v11728 = vunpack.c.h.b16 %v11413
        %v11729 = vunpack.c.l.b16 %v11414
        %v11730 = vunpack.c.h.b16 %v11414
        %v11731 = vunpack.c.l.b16 %v11415
        %v11732 = vunpack.c.h.b16 %v11415
        %v11733 = vunpack.c.l.b16 %v11416
        %v11734 = vunpack.c.h.b16 %v11416
        %v11735 = vunpack.c.l.b16 %v11417
        %v11736 = vunpack.c.h.b16 %v11417
        %v11737 = vunpack.c.l.b16 %v11418
        %v11738 = vunpack.c.h.b16 %v11418
        %v11739 = vunpack.c.l.b16 %v11419
        %v11740 = vunpack.c.h.b16 %v11419
        %v11741 = vunpack.c.l.b16 %v11420
        %v11742 = vunpack.c.h.b16 %v11420
        %v11743 = vunpack.c.l.b16 %v11421
        %v11744 = vunpack.c.h.b16 %v11421
        %v11745 = vunpack.c.l.b16 %v11422
        %v11746 = vunpack.c.h.b16 %v11422
        %v11747 = vunpack.c.l.b16 %v11423
        %v11748 = vunpack.c.h.b16 %v11423
        %v11749 = vunpack.c.l.b16 %v11424
        %v11750 = vunpack.c.h.b16 %v11424
        %v11751 = vunpack.c.l.b16 %v11425
        %v11752 = vunpack.c.h.b16 %v11425
        %v11753 = vunpack.c.l.b16 %v11426
        %v11754 = vunpack.c.h.b16 %v11426
        %v11755 = vunpack.c.l.b16 %v11427
        %v11756 = vunpack.c.h.b16 %v11427
        %v11757 = vunpack.c.l.b16 %v11428
        %v11758 = vunpack.c.h.b16 %v11428
        %v11759 = vunpack.c.l.b16 %v11429
        %v11760 = vunpack.c.h.b16 %v11429
        %v11761 = vunpack.c.l.b16 %v11430
        %v11762 = vunpack.c.h.b16 %v11430
        %v11763 = vunpack.c.l.b16 %v11431
        %v11764 = vunpack.c.h.b16 %v11431
        %v11765 = vunpack.c.l.b16 %v11432
        %v11766 = vunpack.c.h.b16 %v11432
        %v11767 = vunpack.c.l.b16 %v11433
        %v11768 = vunpack.c.h.b16 %v11433
        %v11769 = vunpack.c.l.b16 %v11434
        %v11770 = vunpack.c.h.b16 %v11434
        %v11771 = vunpack.c.l.b16 %v11435
        %v11772 = vunpack.c.h.b16 %v11435
        %v11773 = vunpack.c.l.b16 %v11436
        %v11774 = vunpack.c.h.b16 %v11436
        %v11775 = vunpack.c.l.b16 %v11437
        %v11776 = vunpack.c.h.b16 %v11437
        %v11777 = vunpack.c.l.b16 %v11438
        %v11778 = vunpack.c.h.b16 %v11438
        %v11779 = vunpack.c.l.b16 %v11439
        %v11780 = vunpack.c.h.b16 %v11439
        %v11781 = vunpack.c.l.b16 %v11440
        %v11782 = vunpack.c.h.b16 %v11440
        %v11783 = vunpack.c.l.b16 %v11441
        %v11784 = vunpack.c.h.b16 %v11441
        %v11785 = vunpack.c.l.b16 %v11442
        %v11786 = vunpack.c.h.b16 %v11442
        %v11787 = vunpack.c.l.b16 %v11443
        %v11788 = vunpack.c.h.b16 %v11443
        %v11789 = vunpack.c.l.b16 %v11444
        %v11790 = vunpack.c.h.b16 %v11444
        %v11791 = vunpack.c.l.b16 %v11445
        %v11792 = vunpack.c.h.b16 %v11445
        %v11793 = vunpack.c.l.b16 %v11446
        %v11794 = vunpack.c.h.b16 %v11446
        %v11795 = vunpack.c.l.b16 %v11447
        %v11796 = vunpack.c.h.b16 %v11447
        %v11797 = vunpack.c.l.b16 %v11448
        %v11798 = vunpack.c.h.b16 %v11448
        %v11799 = vunpack.c.l.b16 %v11449
        %v11800 = vunpack.c.h.b16 %v11449
        %v11801 = vunpack.c.l.b16 %v11450
        %v11802 = vunpack.c.h.b16 %v11450
        %v11803 = vunpack.c.l.b16 %v11451
        %v11804 = vunpack.c.h.b16 %v11451
        %v11805 = vunpack.c.l.b16 %v11452
        %v11806 = vunpack.c.h.b16 %v11452
        %v11807 = vunpack.c.l.b16 %v11453
        %v11808 = vunpack.c.h.b16 %v11453
        %v11809 = vunpack.c.l.b16 %v11454
        %v11810 = vunpack.c.h.b16 %v11454
        %v11811 = vunpack.c.l.b16 %v11455
        %v11812 = vunpack.c.h.b16 %v11455
        %v11813 = vunpack.c.l.b16 %v11456
        %v11814 = vunpack.c.h.b16 %v11456
        %v11815 = vunpack.c.l.b16 %v11457
        %v11816 = vunpack.c.h.b16 %v11457
        %v11817 = vunpack.c.l.b16 %v11458
        %v11818 = vunpack.c.h.b16 %v11458
        %v11819 = vunpack.c.l.b16 %v11459
        %v11820 = vunpack.c.h.b16 %v11459
        %v11821 = vunpack.c.l.b16 %v11460
        %v11822 = vunpack.c.h.b16 %v11460
        %v11823 = vunpack.c.l.b16 %v11461
        %v11824 = vunpack.c.h.b16 %v11461
        %v11825 = vunpack.c.l.b16 %v11462
        %v11826 = vunpack.c.h.b16 %v11462
        %v11827 = vunpack.c.l.b16 %v11463
        %v11828 = vunpack.c.h.b16 %v11463
        %v11829 = vunpack.c.l.b16 %v11464
        %v11830 = vunpack.c.h.b16 %v11464
        %v11831 = vunpack.c.l.b16 %v11465
        %v11832 = vunpack.c.h.b16 %v11465
        %v11833 = vunpack.c.l.b16 %v11466
        %v11834 = vunpack.c.h.b16 %v11466
        %v11835 = vunpack.c.l.b16 %v11467
        %v11836 = vunpack.c.h.b16 %v11467
        %v11837 = vunpack.c.l.b16 %v11468
        %v11838 = vunpack.c.h.b16 %v11468
        %v11839 = vunpack.c.l.b16 %v11469
        %v11840 = vunpack.c.h.b16 %v11469
        %v11841 = vunpack.c.l.b16 %v11470
        %v11842 = vunpack.c.h.b16 %v11470
        %v11843 = vunpack.c.l.b16 %v11471
        %v11844 = vunpack.c.h.b16 %v11471
        %v11845 = vunpack.c.l.b16 %v11472
        %v11846 = vunpack.c.h.b16 %v11472
        %v11847 = vunpack.c.l.b16 %v11473
        %v11848 = vunpack.c.h.b16 %v11473
        %v11849 = vunpack.c.l.b16 %v11474
        %v11850 = vunpack.c.h.b16 %v11474
        %v11851 = vunpack.c.l.b16 %v11475
        %v11852 = vunpack.c.h.b16 %v11475
        %v11853 = vunpack.c.l.b16 %v11476
        %v11854 = vunpack.c.h.b16 %v11476
        %v11855 = vunpack.c.l.b16 %v11477
        %v11856 = vunpack.c.h.b16 %v11477
        %v11857 = vunpack.c.l.b16 %v11478
        %v11858 = vunpack.c.h.b16 %v11478
        %v11859 = vunpack.c.l.b16 %v11479
        %v11860 = vunpack.c.h.b16 %v11479
        %v11861 = vunpack.c.l.b16 %v11480
        %v11862 = vunpack.c.h.b16 %v11480
        %v11863 = vunpack.c.l.b16 %v11481
        %v11864 = vunpack.c.h.b16 %v11481
        %v11865 = vunpack.c.l.b16 %v11482
        %v11866 = vunpack.c.h.b16 %v11482
        %v11867 = vunpack.c.l.b16 %v11483
        %v11868 = vunpack.c.h.b16 %v11483
        %v11869 = vunpack.c.l.b16 %v11484
        %v11870 = vunpack.c.h.b16 %v11484
        %v11871 = vunpack.c.l.b16 %v11485
        %v11872 = vunpack.c.h.b16 %v11485
        %v11873 = vunpack.c.l.b16 %v11486
        %v11874 = vunpack.c.h.b16 %v11486
        %v11875 = vunpack.c.l.b16 %v11487
        %v11876 = vunpack.c.h.b16 %v11487
        %v11877 = vunpack.c.l.b16 %v11488
        %v11878 = vunpack.c.h.b16 %v11488
        %v11879 = vunpack.c.l.b16 %v11489
        %v11880 = vunpack.c.h.b16 %v11489
        %v11881 = vunpack.c.l.b16 %v11490
        %v11882 = vunpack.c.h.b16 %v11490
        %v11883 = vunpack.c.l.b16 %v11491
        %v11884 = vunpack.c.h.b16 %v11491
        %v11885 = vunpack.c.l.b16 %v11492
        %v11886 = vunpack.c.h.b16 %v11492
        %v11887 = vunpack.c.l.b16 %v11493
        %v11888 = vunpack.c.h.b16 %v11493
        %v11889 = vunpack.c.l.b16 %v11494
        %v11890 = vunpack.c.h.b16 %v11494
        %v11891 = vunpack.c.l.b16 %v11495
        %v11892 = vunpack.c.h.b16 %v11495
        %v11893 = vunpack.c.l.b16 %v11496
        %v11894 = vunpack.c.h.b16 %v11496
        %v11895 = vunpack.c.l.b16 %v11497
        %v11896 = vunpack.c.h.b16 %v11497
        %v11897 = vunpack.c.l.b16 %v11498
        %v11898 = vunpack.c.h.b16 %v11498
        %v11899 = vunpack.c.l.b16 %v11499
        %v11900 = vunpack.c.h.b16 %v11499
        %v11901 = vunpack.c.l.b16 %v11500
        %v11902 = vunpack.c.h.b16 %v11500
        %v11903 = vunpack.c.l.b16 %v11501
        %v11904 = vunpack.c.h.b16 %v11501
        %v11905 = vunpack.c.l.b16 %v11502
        %v11906 = vunpack.c.h.b16 %v11502
        %v11907 = vunpack.c.l.b16 %v11503
        %v11908 = vunpack.c.h.b16 %v11503
        %v11909 = vunpack.c.l.b16 %v11504
        %v11910 = vunpack.c.h.b16 %v11504
        %v11911 = vunpack.c.l.b16 %v11505
        %v11912 = vunpack.c.h.b16 %v11505
        %v11913 = vunpack.c.l.b16 %v11506
        %v11914 = vunpack.c.h.b16 %v11506
        %v11915 = vpack.c.b16 %v11663, %v11659
        %v11916 = vpack.c.b16 %v11664, %v11660
        %v11917 = vpack.c.b16 %v11665, %v11661
        %v11918 = vpack.c.b16 %v11666, %v11662
        %v11919 = vpack.c.b16 %v11671, %v11667
        %v11920 = vpack.c.b16 %v11672, %v11668
        %v11921 = vpack.c.b16 %v11673, %v11669
        %v11922 = vpack.c.b16 %v11674, %v11670
        %v11923 = vpack.c.b16 %v11679, %v11675
        %v11924 = vpack.c.b16 %v11680, %v11676
        %v11925 = vpack.c.b16 %v11681, %v11677
        %v11926 = vpack.c.b16 %v11682, %v11678
        %v11927 = vpack.c.b16 %v11687, %v11683
        %v11928 = vpack.c.b16 %v11688, %v11684
        %v11929 = vpack.c.b16 %v11689, %v11685
        %v11930 = vpack.c.b16 %v11690, %v11686
        %v11931 = vpack.c.b16 %v11695, %v11691
        %v11932 = vpack.c.b16 %v11696, %v11692
        %v11933 = vpack.c.b16 %v11697, %v11693
        %v11934 = vpack.c.b16 %v11698, %v11694
        %v11935 = vpack.c.b16 %v11703, %v11699
        %v11936 = vpack.c.b16 %v11704, %v11700
        %v11937 = vpack.c.b16 %v11705, %v11701
        %v11938 = vpack.c.b16 %v11706, %v11702
        %v11939 = vpack.c.b16 %v11711, %v11707
        %v11940 = vpack.c.b16 %v11712, %v11708
        %v11941 = vpack.c.b16 %v11713, %v11709
        %v11942 = vpack.c.b16 %v11714, %v11710
        %v11943 = vpack.c.b16 %v11719, %v11715
        %v11944 = vpack.c.b16 %v11720, %v11716
        %v11945 = vpack.c.b16 %v11721, %v11717
        %v11946 = vpack.c.b16 %v11722, %v11718
        %v11947 = vpack.c.b16 %v11727, %v11723
        %v11948 = vpack.c.b16 %v11728, %v11724
        %v11949 = vpack.c.b16 %v11729, %v11725
        %v11950 = vpack.c.b16 %v11730, %v11726
        %v11951 = vpack.c.b16 %v11735, %v11731
        %v11952 = vpack.c.b16 %v11736, %v11732
        %v11953 = vpack.c.b16 %v11737, %v11733
        %v11954 = vpack.c.b16 %v11738, %v11734
        %v11955 = vpack.c.b16 %v11743, %v11739
        %v11956 = vpack.c.b16 %v11744, %v11740
        %v11957 = vpack.c.b16 %v11745, %v11741
        %v11958 = vpack.c.b16 %v11746, %v11742
        %v11959 = vpack.c.b16 %v11751, %v11747
        %v11960 = vpack.c.b16 %v11752, %v11748
        %v11961 = vpack.c.b16 %v11753, %v11749
        %v11962 = vpack.c.b16 %v11754, %v11750
        %v11963 = vpack.c.b16 %v11759, %v11755
        %v11964 = vpack.c.b16 %v11760, %v11756
        %v11965 = vpack.c.b16 %v11761, %v11757
        %v11966 = vpack.c.b16 %v11762, %v11758
        %v11967 = vpack.c.b16 %v11767, %v11763
        %v11968 = vpack.c.b16 %v11768, %v11764
        %v11969 = vpack.c.b16 %v11769, %v11765
        %v11970 = vpack.c.b16 %v11770, %v11766
        %v11971 = vpack.c.b16 %v11775, %v11771
        %v11972 = vpack.c.b16 %v11776, %v11772
        %v11973 = vpack.c.b16 %v11777, %v11773
        %v11974 = vpack.c.b16 %v11778, %v11774
        %v11975 = vpack.c.b16 %v11783, %v11779
        %v11976 = vpack.c.b16 %v11784, %v11780
        %v11977 = vpack.c.b16 %v11785, %v11781
        %v11978 = vpack.c.b16 %v11786, %v11782
        %v11979 = vpack.c.b16 %v11791, %v11787
        %v11980 = vpack.c.b16 %v11792, %v11788
        %v11981 = vpack.c.b16 %v11793, %v11789
        %v11982 = vpack.c.b16 %v11794, %v11790
        %v11983 = vpack.c.b16 %v11799, %v11795
        %v11984 = vpack.c.b16 %v11800, %v11796
        %v11985 = vpack.c.b16 %v11801, %v11797
        %v11986 = vpack.c.b16 %v11802, %v11798
        %v11987 = vpack.c.b16 %v11807, %v11803
        %v11988 = vpack.c.b16 %v11808, %v11804
        %v11989 = vpack.c.b16 %v11809, %v11805
        %v11990 = vpack.c.b16 %v11810, %v11806
        %v11991 = vpack.c.b16 %v11815, %v11811
        %v11992 = vpack.c.b16 %v11816, %v11812
        %v11993 = vpack.c.b16 %v11817, %v11813
        %v11994 = vpack.c.b16 %v11818, %v11814
        %v11995 = vpack.c.b16 %v11823, %v11819
        %v11996 = vpack.c.b16 %v11824, %v11820
        %v11997 = vpack.c.b16 %v11825, %v11821
        %v11998 = vpack.c.b16 %v11826, %v11822
        %v11999 = vpack.c.b16 %v11831, %v11827
        %v12000 = vpack.c.b16 %v11832, %v11828
        %v12001 = vpack.c.b16 %v11833, %v11829
        %v12002 = vpack.c.b16 %v11834, %v11830
        %v12003 = vpack.c.b16 %v11839, %v11835
        %v12004 = vpack.c.b16 %v11840, %v11836
        %v12005 = vpack.c.b16 %v11841, %v11837
        %v12006 = vpack.c.b16 %v11842, %v11838
        %v12007 = vpack.c.b16 %v11847, %v11843
        %v12008 = vpack.c.b16 %v11848, %v11844
        %v12009 = vpack.c.b16 %v11849, %v11845
        %v12010 = vpack.c.b16 %v11850, %v11846
        %v12011 = vpack.c.b16 %v11855, %v11851
        %v12012 = vpack.c.b16 %v11856, %v11852
        %v12013 = vpack.c.b16 %v11857, %v11853
        %v12014 = vpack.c.b16 %v11858, %v11854
        %v12015 = vpack.c.b16 %v11863, %v11859
        %v12016 = vpack.c.b16 %v11864, %v11860
        %v12017 = vpack.c.b16 %v11865, %v11861
        %v12018 = vpack.c.b16 %v11866, %v11862
        %v12019 = vpack.c.b16 %v11871, %v11867
        %v12020 = vpack.c.b16 %v11872, %v11868
        %v12021 = vpack.c.b16 %v11873, %v11869
        %v12022 = vpack.c.b16 %v11874, %v11870
        %v12023 = vpack.c.b16 %v11879, %v11875
        %v12024 = vpack.c.b16 %v11880, %v11876
        %v12025 = vpack.c.b16 %v11881, %v11877
        %v12026 = vpack.c.b16 %v11882, %v11878
        %v12027 = vpack.c.b16 %v11887, %v11883
        %v12028 = vpack.c.b16 %v11888, %v11884
        %v12029 = vpack.c.b16 %v11889, %v11885
        %v12030 = vpack.c.b16 %v11890, %v11886
        %v12031 = vpack.c.b16 %v11895, %v11891
        %v12032 = vpack.c.b16 %v11896, %v11892
        %v12033 = vpack.c.b16 %v11897, %v11893
        %v12034 = vpack.c.b16 %v11898, %v11894
        %v12035 = vpack.c.b16 %v11903, %v11899
        %v12036 = vpack.c.b16 %v11904, %v11900
        %v12037 = vpack.c.b16 %v11905, %v11901
        %v12038 = vpack.c.b16 %v11906, %v11902
        %v12039 = vpack.c.b16 %v11911, %v11907
        %v12040 = vpack.c.b16 %v11912, %v11908
        %v12041 = vpack.c.b16 %v11913, %v11909
        %v12042 = vpack.c.b16 %v11914, %v11910
        %12171 = vmatprep.subr.bf16.mxu0 %v11916
        %12172 = vmatpush1.bf16.msra.mxu0 %v11915
        %12173 = vmatprep.subr.bf16.mxu0 %v11920
        %12174 = vmatpush1.bf16.msra.mxu0 %v11919
        %12175 = vmatprep.subr.bf16.mxu0 %v11924
        %12176 = vmatpush1.bf16.msra.mxu0 %v11923
        %12177 = vmatprep.subr.bf16.mxu0 %v11928
        %12178 = vmatpush1.bf16.msra.mxu0 %v11927
        %12179 = vmatprep.subr.bf16.mxu0 %v11932
        %12180 = vmatpush1.bf16.msra.mxu0 %v11931
        %12181 = vmatprep.subr.bf16.mxu0 %v11936
        %12182 = vmatpush1.bf16.msra.mxu0 %v11935
        %12183 = vmatprep.subr.bf16.mxu0 %v11940
        %12184 = vmatpush1.bf16.msra.mxu0 %v11939
        %12185 = vmatprep.subr.bf16.mxu0 %v11944
        %12186 = vmatpush1.bf16.msra.mxu0 %v11943
        %12187 = vmatprep.subr.bf16.mxu0 %v11948
        %12188 = vmatpush1.bf16.msra.mxu0 %v11947
        %12189 = vmatprep.subr.bf16.mxu0 %v11952
        %12190 = vmatpush1.bf16.msra.mxu0 %v11951
        %12191 = vmatprep.subr.bf16.mxu0 %v11956
        %12192 = vmatpush1.bf16.msra.mxu0 %v11955
        %12193 = vmatprep.subr.bf16.mxu0 %v11960
        %12194 = vmatpush1.bf16.msra.mxu0 %v11959
        %12195 = vmatprep.subr.bf16.mxu0 %v11964
        %12196 = vmatpush1.bf16.msra.mxu0 %v11963
        %12197 = vmatprep.subr.bf16.mxu0 %v11968
        %12198 = vmatpush1.bf16.msra.mxu0 %v11967
        %12199 = vmatprep.subr.bf16.mxu0 %v11972
        %12200 = vmatpush1.bf16.msra.mxu0 %v11971
        %12201 = vmatprep.subr.bf16.mxu0 %v11976
        %12202 = vmatpush1.bf16.msra.mxu0 %v11975
        %12203 = vmatprep.mubr.bf16.mxu0 %v11520
        %12204 = vmatmul.mubr.bf16.gmra.mrb[0].mxu0 %v11517
        %v12205 = vpop.f32.mrb[0].mxu0
        %v12206 = vadd.f32 0.0, %v12205
        %v12207 = vpop.f32.mrb[0].mxu0
        %v12208 = vadd.f32 0.0, %v12207
        %v12209 = vpop.f32.mrb[0].mxu0
        %v12210 = vadd.f32 0.0, %v12209
        %v12211 = vpop.f32.mrb[0].mxu0
        %v12212 = vadd.f32 0.0, %v12211
        %12213 = vdwg.mxu0
        %12214 = vmatprep.subr.bf16.mxu0 %v11980
        %12215 = vmatpush1.bf16.msra.mxu0 %v11979
        %12216 = vmatprep.subr.bf16.mxu0 %v11984
        %12217 = vmatpush1.bf16.msra.mxu0 %v11983
        %12218 = vmatprep.subr.bf16.mxu0 %v11988
        %12219 = vmatpush1.bf16.msra.mxu0 %v11987
        %12220 = vmatprep.subr.bf16.mxu0 %v11992
        %12221 = vmatpush1.bf16.msra.mxu0 %v11991
        %12222 = vmatprep.subr.bf16.mxu0 %v11996
        %12223 = vmatpush1.bf16.msra.mxu0 %v11995
        %12224 = vmatprep.subr.bf16.mxu0 %v12000
        %12225 = vmatpush1.bf16.msra.mxu0 %v11999
        %12226 = vmatprep.subr.bf16.mxu0 %v12004
        %12227 = vmatpush1.bf16.msra.mxu0 %v12003
        %12228 = vmatprep.subr.bf16.mxu0 %v12008
        %12229 = vmatpush1.bf16.msra.mxu0 %v12007
        %12230 = vmatprep.subr.bf16.mxu0 %v12012
        %12231 = vmatpush1.bf16.msra.mxu0 %v12011
        %12232 = vmatprep.subr.bf16.mxu0 %v12016
        %12233 = vmatpush1.bf16.msra.mxu0 %v12015
        %12234 = vmatprep.subr.bf16.mxu0 %v12020
        %12235 = vmatpush1.bf16.msra.mxu0 %v12019
        %12236 = vmatprep.subr.bf16.mxu0 %v12024
        %12237 = vmatpush1.bf16.msra.mxu0 %v12023
        %12238 = vmatprep.subr.bf16.mxu0 %v12028
        %12239 = vmatpush1.bf16.msra.mxu0 %v12027
        %12240 = vmatprep.subr.bf16.mxu0 %v12032
        %12241 = vmatpush1.bf16.msra.mxu0 %v12031
        %12242 = vmatprep.subr.bf16.mxu0 %v12036
        %12243 = vmatpush1.bf16.msra.mxu0 %v12035
        %12244 = vmatprep.subr.bf16.mxu0 %v12040
        %12245 = vmatpush1.bf16.msra.mxu0 %v12039
        %12246 = vmatprep.mubr.bf16.mxu0 %v11526
        %12247 = vmatmul.mubr.bf16.gmra.mrb[0].mxu0 %v11523
        %v12248 = vpop.f32.mrb[0].mxu0
        %v12249 = vadd.f32 %v12206, %v12248
        %v12250 = vpop.f32.mrb[0].mxu0
        %v12251 = vadd.f32 %v12208, %v12250
        %v12252 = vpop.f32.mrb[0].mxu0
        %v12253 = vadd.f32 %v12210, %v12252
        %v12254 = vpop.f32.mrb[0].mxu0
        %v12255 = vadd.f32 %v12212, %v12254
        %12256 = vdwg.mxu0
        %12257 = vmatprep.subr.bf16.mxu0 %v11918
        %12258 = vmatpush1.bf16.msra.mxu0 %v11917
        %12259 = vmatprep.subr.bf16.mxu0 %v11922
        %12260 = vmatpush1.bf16.msra.mxu0 %v11921
        %12261 = vmatprep.subr.bf16.mxu0 %v11926
        %12262 = vmatpush1.bf16.msra.mxu0 %v11925
        %12263 = vmatprep.subr.bf16.mxu0 %v11930
        %12264 = vmatpush1.bf16.msra.mxu0 %v11929
        %12265 = vmatprep.subr.bf16.mxu0 %v11934
        %12266 = vmatpush1.bf16.msra.mxu0 %v11933
        %12267 = vmatprep.subr.bf16.mxu0 %v11938
        %12268 = vmatpush1.bf16.msra.mxu0 %v11937
        %12269 = vmatprep.subr.bf16.mxu0 %v11942
        %12270 = vmatpush1.bf16.msra.mxu0 %v11941
        %12271 = vmatprep.subr.bf16.mxu0 %v11946
        %12272 = vmatpush1.bf16.msra.mxu0 %v11945
        %12273 = vmatprep.subr.bf16.mxu0 %v11950
        %12274 = vmatpush1.bf16.msra.mxu0 %v11949
        %12275 = vmatprep.subr.bf16.mxu0 %v11954
        %12276 = vmatpush1.bf16.msra.mxu0 %v11953
        %12277 = vmatprep.subr.bf16.mxu0 %v11958
        %12278 = vmatpush1.bf16.msra.mxu0 %v11957
        %12279 = vmatprep.subr.bf16.mxu0 %v11962
        %12280 = vmatpush1.bf16.msra.mxu0 %v11961
        %12281 = vmatprep.subr.bf16.mxu0 %v11966
        %12282 = vmatpush1.bf16.msra.mxu0 %v11965
        %12283 = vmatprep.subr.bf16.mxu0 %v11970
        %12284 = vmatpush1.bf16.msra.mxu0 %v11969
        %12285 = vmatprep.subr.bf16.mxu0 %v11974
        %12286 = vmatpush1.bf16.msra.mxu0 %v11973
        %12287 = vmatprep.subr.bf16.mxu0 %v11978
        %12288 = vmatpush1.bf16.msra.mxu0 %v11977
        %12289 = vmatprep.mubr.bf16.mxu0 %v11520
        %12290 = vmatmul.mubr.bf16.gmra.mrb[0].mxu0 %v11517
        %v12291 = vpop.f32.mrb[0].mxu0
        %v12292 = vadd.f32 0.0, %v12291
        %v12293 = vpop.f32.mrb[0].mxu0
        %v12294 = vadd.f32 0.0, %v12293
        %v12295 = vpop.f32.mrb[0].mxu0
        %v12296 = vadd.f32 0.0, %v12295
        %v12297 = vpop.f32.mrb[0].mxu0
        %v12298 = vadd.f32 0.0, %v12297
        %12299 = vdwg.mxu0
        %12300 = vmatprep.subr.bf16.mxu0 %v11982
        %12301 = vmatpush1.bf16.msra.mxu0 %v11981
        %12302 = vmatprep.subr.bf16.mxu0 %v11986
        %12303 = vmatpush1.bf16.msra.mxu0 %v11985
        %12304 = vmatprep.subr.bf16.mxu0 %v11990
        %12305 = vmatpush1.bf16.msra.mxu0 %v11989
        %12306 = vmatprep.subr.bf16.mxu0 %v11994
        %12307 = vmatpush1.bf16.msra.mxu0 %v11993
        %12308 = vmatprep.subr.bf16.mxu0 %v11998
        %12309 = vmatpush1.bf16.msra.mxu0 %v11997
        %12310 = vmatprep.subr.bf16.mxu0 %v12002
        %12311 = vmatpush1.bf16.msra.mxu0 %v12001
        %12312 = vmatprep.subr.bf16.mxu0 %v12006
        %12313 = vmatpush1.bf16.msra.mxu0 %v12005
        %12314 = vmatprep.subr.bf16.mxu0 %v12010
        %12315 = vmatpush1.bf16.msra.mxu0 %v12009
        %12316 = vmatprep.subr.bf16.mxu0 %v12014
        %12317 = vmatpush1.bf16.msra.mxu0 %v12013
        %12318 = vmatprep.subr.bf16.mxu0 %v12018
        %12319 = vmatpush1.bf16.msra.mxu0 %v12017
        %12320 = vmatprep.subr.bf16.mxu0 %v12022
        %12321 = vmatpush1.bf16.msra.mxu0 %v12021
        %12322 = vmatprep.subr.bf16.mxu0 %v12026
        %12323 = vmatpush1.bf16.msra.mxu0 %v12025
        %12324 = vmatprep.subr.bf16.mxu0 %v12030
        %12325 = vmatpush1.bf16.msra.mxu0 %v12029
        %12326 = vmatprep.subr.bf16.mxu0 %v12034
        %12327 = vmatpush1.bf16.msra.mxu0 %v12033
        %12328 = vmatprep.subr.bf16.mxu0 %v12038
        %12329 = vmatpush1.bf16.msra.mxu0 %v12037
        %12330 = vmatprep.subr.bf16.mxu0 %v12042
        %12331 = vmatpush1.bf16.msra.mxu0 %v12041
        %12332 = vmatprep.mubr.bf16.mxu0 %v11526
        %12333 = vmatmul.mubr.bf16.gmra.mrb[0].mxu0 %v11523
        %v12334 = vpop.f32.mrb[0].mxu0
        %v12335 = vadd.f32 %v12292, %v12334
        %v12336 = vpop.f32.mrb[0].mxu0
        %v12337 = vadd.f32 %v12294, %v12336
        %v12338 = vpop.f32.mrb[0].mxu0
        %v12339 = vadd.f32 %v12296, %v12338
        %v12340 = vpop.f32.mrb[0].mxu0
        %v12341 = vadd.f32 %v12298, %v12340
        %12342 = vdwg.mxu0
        %v12343 = vadd.f32 %v11284, %v12249
        %v12344 = vadd.f32 %v11286, %v12251
        %v12345 = vadd.f32 %v11370, %v12335
        %v12346 = vadd.f32 %v11372, %v12337
        %v12347 = vadd.f32 %v11288, %v12253
        %v12348 = vadd.f32 %v11290, %v12255
        %v12349 = vadd.f32 %v11374, %v12339
        %v12350 = vadd.f32 %v11376, %v12341
        %v12351 = vld [vmem:[#allocation11] sm:$0xf]
        %v12353 = vlaneseq
        %v12354 = vshrl.u32 %v12353, 7
        %v12355 = vsub.s32 0, %v12354
        %v12356 = vrot.slane %v12351, %v12355
        %v12357 = vlaneseq
        %v12358 = vshrl.u32 %v12357, 7
        %v12359 = vsub.s32 1, %v12358
        %v12360 = vrot.slane %v12351, %v12359
        %v12361 = vlaneseq
        %v12362 = vshrl.u32 %v12361, 7
        %v12363 = vsub.s32 2, %v12362
        %v12364 = vrot.slane %v12351, %v12363
        %v12365 = vlaneseq
        %v12366 = vshrl.u32 %v12365, 7
        %v12367 = vsub.s32 3, %v12366
        %v12368 = vrot.slane %v12351, %v12367
        %v12373 = vadd.f32 %v12343, %v12356
        %v12374 = vadd.f32 %v12344, %v12360
        %v12375 = vadd.f32 %v12345, %v12364
        %v12376 = vadd.f32 %v12346, %v12368
        %v12377 = vadd.f32 %v12347, %v12356
        %v12378 = vadd.f32 %v12348, %v12360
        %v12379 = vadd.f32 %v12349, %v12364
        %v12380 = vadd.f32 %v12350, %v12368
        %vm12381 = vcmp.ge.f32.partialorder %v12373, 0.0
        %vm12382 = vcmp.ge.f32.partialorder %v12374, 0.0
        %vm12383 = vcmp.ge.f32.partialorder %v12375, 0.0
        %vm12384 = vcmp.ge.f32.partialorder %v12376, 0.0
        %vm12385 = vcmp.ge.f32.partialorder %v12377, 0.0
        %vm12386 = vcmp.ge.f32.partialorder %v12378, 0.0
        %vm12387 = vcmp.ge.f32.partialorder %v12379, 0.0
        %vm12388 = vcmp.ge.f32.partialorder %v12380, 0.0
        %v12389 = vmul.f32 %v12373, 0.01
        %v12390 = vmul.f32 %v12374, 0.01
        %v12391 = vmul.f32 %v12375, 0.01
        %v12392 = vmul.f32 %v12376, 0.01
        %v12393 = vmul.f32 %v12377, 0.01
        %v12394 = vmul.f32 %v12378, 0.01
        %v12395 = vmul.f32 %v12379, 0.01
        %v12396 = vmul.f32 %v12380, 0.01
        %v12397 = vsel %vm12381, %v12373, %v12389
        %v12398 = vsel %vm12382, %v12374, %v12390
        %v12399 = vsel %vm12383, %v12375, %v12391
        %v12400 = vsel %vm12384, %v12376, %v12392
        %v12401 = vsel %vm12385, %v12377, %v12393
        %v12402 = vsel %vm12386, %v12378, %v12394
        %v12403 = vsel %vm12387, %v12379, %v12395
        %v12404 = vsel %vm12388, %v12380, %v12396
        %12405 = vst [vmem:[%s392] sm:$0xff] %v12397
        %12406 = vst [vmem:[%s392 + $0x8] sm:$0xff] %v12398
        %12407 = vst [vmem:[%s392 + $0x10] sm:$0xff] %v12399
        %12408 = vst [vmem:[%s392 + $0x18] sm:$0xff] %v12400
        %12409 = vst [vmem:[%s392 + $0x20] sm:$0xff] %v12401
        %12410 = vst [vmem:[%s392 + $0x28] sm:$0xff] %v12402
        %12411 = vst [vmem:[%s392 + $0x30] sm:$0xff] %v12403
        %12412 = vst [vmem:[%s392 + $0x38] sm:$0xff] %v12404
        %s12413 = sand.u32 %s209, 1
        %s12414 = scalar_lea.sflag [#allocation4], %s12413
        %s12415 = sand.u32 %s209, 1
        %s12416 = smul.addr %s12415, 64
        %s12417 = scalar_lea.vmem [#allocation13], %s12416
        // Predicated region
        $region77: #{tpu_custom_call.1} parent=51 // pred_check
          %p12418 = pneg %p219
        $region78: #{tpu_custom_call.1} parent=51 // pred_check_branch
          %12420 = sbr.rel (%p12418) target = $region80
        $region79: #{tpu_custom_call.1} parent=51 // pred_region
          %s12422 = ssub.s32 1024, 1024
          %12423 = vsyncadd %s12414, %s12422
          %s12424 = smul.addr %s28, 8
          %s12425 = smul.addr %s12424, 128
          %s12426 = scalar_lea.hbm %s8, %s12425
          %s12427 = sshll.u32 %s12417, 4
          %s12428 = int_to_ptr.vmem [resolvable:$true] %s12427
          %12433 = dma.vmem_to_hbm [thread:$0]  %s12428, 1024, %s12426, %s12414, 512, 512, 32
        $region80: #{tpu_custom_call.1} parent=51 // pred_fallthru
          _
      $region52: #{tpu_custom_call.1} parent=5 // pred_fallthru
        _
      %p12434 = scmp.le.s32.totalorder 2, %s23
      // Predicated region
      $region81: #{tpu_custom_call.1} parent=5 // pred_check
        %p12435 = pneg %p12434
      $region82: #{tpu_custom_call.1} parent=5 // pred_check_branch
        %12437 = sbr.rel (%p12435) target = $region84
      $region83: #{tpu_custom_call.1} parent=5 // pred_region
        %s12438 = ssub.s32 %s23, 2
        // Predicated region
        $region85: #{tpu_custom_call.1} parent=83 // pred_check
          %p12439 = pneg %p225
        $region86: #{tpu_custom_call.1} parent=83 // pred_check_branch
          %12441 = sbr.rel (%p12439) target = $region88
        $region87: #{tpu_custom_call.1} parent=83 // pred_region
          %s12442 = sand.u32 %s210, 1
          %s12443 = scalar_lea.sflag [#allocation4], %s12442
          %s12444 = sand.u32 %s210, 1
          %s12445 = smul.addr %s12444, 64
          %s12446 = scalar_lea.vmem [#allocation13], %s12445
          %12447 = dma.done %s12443, 1024
        $region88: #{tpu_custom_call.1} parent=83 // pred_fallthru
          _
      $region84: #{tpu_custom_call.1} parent=5 // pred_fallthru
        _
    $region6: #{tpu_custom_call.1} parent=1 // loop_footer
      %s27 = sadd.s32 1, %s23
    $region7: #{tpu_custom_call.1} parent=1 // loop_footer_branch
      %22 = sbr.rel target = $region3
    $region8: #{tpu_custom_call.1} parent=1 // loop_exit
      _
    %12448 = vsyncpa [#allocation3], 1
    %s12449 = scalar_lea.sflag [#allocation3], 1
    %12450 = vsyncpa %s12449, 1
    %12451 = vsyncpa [#allocation6], 1
    %12452 = vsyncpa [#allocation9], 1
    %12453 = vsyncpa [#allocation12], 1
    %12454 = vsyncpa [#allocation4], 1
    %s12455 = scalar_lea.sflag [#allocation4], 1
    %12456 = vsyncpa %s12455, 1

</llo_original>
